<compile_context>
chip_gen: v7x
topology: tpu7x:2x2x1
jax: 0.10.0
libtpu: 0.0.40
codegen_flags: <defaults>
</compile_context>

<pallas_src>
import jax
import jax.numpy as jnp
import numpy as np
from jax import lax
from jax.experimental import pallas as pl
from jax.experimental.pallas import tpu as pltpu

INPUT_SIZE = 3
HIDDEN_SIZE = 64
NUM_LAYERS = 2   # kernel hard-codes the 2-layer encoder/decoder structure
SUBLANE = 8      # f32 sublane size -> pad batch to a multiple of this


def _gate_update(gates, c):
    """LSTM cell update. Gate columns already reordered to [i | f | o | g]."""
    H = HIDDEN_SIZE
    sig = jax.nn.sigmoid(gates[:, :3 * H])       # one contiguous sigmoid (i, f, o)
    i = sig[:, 0 * H:1 * H]
    f = sig[:, 1 * H:2 * H]
    o = sig[:, 2 * H:3 * H]
    g = jnp.tanh(gates[:, 3 * H:])
    c_new = f * c + i * g
    h_new = o * jnp.tanh(c_new)
    return h_new, c_new


# Weight-pack row indices (w_ref, shape (8, H, 4H)):
#   0: enc-L0 Whh   1: enc-L1 Wih   2: enc-L1 Whh
#   3: dec-L0 Wih   4: dec-L0 Whh   5: dec-L1 Wih   6: dec-L1 Whh
#   7: fc W (zero-padded to 4H output columns)
def lstm_autoencoder_kernel(
    x_ref,        # (T*Bp, D+1)  input with trailing ones column (folds e0 bias)
    w_ref,        # (8, H, 4H)   packed weight matrices (see table above)
    small_ref,    # (D+5, 4H)    rows 0..D-1: e0_wih, D: e0_b, D+1: e1_b,
                  #              D+2: d0_b, D+3: d1_b, D+4: fc_b (padded to 4H)
    out_ref,      # (T*Bp, 4H)   fc output, lane-dense (cols >= D have zero weight)
    enc_ref,      # (Bp, H)      encoded = encoder hidden[-1]
    xproj_ref,    # scratch (T, Bp, 4H): encoder layer-0 input projection (+bias)
    dech_ref,     # scratch (T, Bp, H):  decoder layer-1 hidden states
):
    H = HIDDEN_SIZE
    G = 4 * H
    T, Bp, _ = xproj_ref.shape
    Din = x_ref.shape[1]              # D + 1

    f32 = jnp.float32
    zeros = jnp.zeros((Bp, H), f32)

    # ---- encoder layer 0: batched input projection for all timesteps --------
    xproj = jnp.dot(x_ref[...], small_ref[0:Din, :],
                    preferred_element_type=f32)                    # (T*Bp, 4H)
    xproj_ref[...] = xproj.reshape(T, Bp, G)

    # ---- hoisted bias broadcasts (outside the time loops) -------------------
    e1_bb = jnp.broadcast_to(small_ref[Din + 0:Din + 1, :], (Bp, G))
    d0_b = small_ref[Din + 1:Din + 2, :]
    d1_bb = jnp.broadcast_to(small_ref[Din + 2:Din + 3, :], (Bp, G))
    fc_b = small_ref[Din + 3:Din + 4, :]

    # =============================== encoder =================================
    def enc_step(t, carry):
        h0, c0, h1, c1 = carry
        # Both recurrent matmuls depend only on previous-step state, so they can
        # issue immediately (off the nh0 critical path).
        r0 = jnp.dot(h0, w_ref[0], preferred_element_type=f32)           # Whh0
        r1 = jnp.dot(h1, w_ref[2], preferred_element_type=f32) + e1_bb   # Whh1
        nh0, nc0 = _gate_update(xproj_ref[t] + r0, c0)
        g1 = jnp.dot(nh0, w_ref[1], preferred_element_type=f32) + r1     # Wih1
        nh1, nc1 = _gate_update(g1, c1)
        return (nh0, nc0, nh1, nc1)

    _, _, enc_h1, _ = lax.fori_loop(0, T, enc_step,
                                    (zeros, zeros, zeros, zeros), unroll=True)
    encoded = enc_h1                                                 # hidden[-1]
    enc_ref[...] = encoded

    # =============================== decoder =================================
    # layer-0 input is the same code at every step: project once, outside loop.
    dproj0 = jnp.dot(encoded, w_ref[3], preferred_element_type=f32) + d0_b

    def dec_step(t, carry):
        h0, c0, h1, c1 = carry
        r0 = jnp.dot(h0, w_ref[4], preferred_element_type=f32)           # Whh0
        r1 = jnp.dot(h1, w_ref[6], preferred_element_type=f32) + d1_bb   # Whh1
        nh0, nc0 = _gate_update(dproj0 + r0, c0)
        g1 = jnp.dot(nh0, w_ref[5], preferred_element_type=f32) + r1     # Wih1
        nh1, nc1 = _gate_update(g1, c1)
        dech_ref[t] = nh1
        return (nh0, nc0, nh1, nc1)

    lax.fori_loop(0, T, dec_step, (zeros, zeros, zeros, zeros), unroll=True)

    # ---- final fc: one batched lane-dense matmul + a single unmasked store --
    dh = dech_ref[...].reshape(T * Bp, H)
    out_ref[...] = jnp.dot(dh, w_ref[7], preferred_element_type=f32) + fc_b


def _reorder_gates(a):
    """Reorder last-axis gate blocks from PyTorch's [i|f|g|o] to [i|f|o|g]."""
    H = HIDDEN_SIZE
    return jnp.concatenate([a[..., :2 * H], a[..., 3 * H:], a[..., 2 * H:3 * H]],
                           axis=-1)


def _prep_params(params):
    """Reorder gate columns, pad fc to 4H lanes, pack into 2 arrays."""
    H, D, G = HIDDEN_SIZE, INPUT_SIZE, 4 * HIDDEN_SIZE
    e0, e1 = params["enc"]
    d0, d1 = params["dec"]

    e0_wih = _reorder_gates(e0["w_ih"])                                  # (D, 4H)
    e0_whh = _reorder_gates(e0["w_hh"])                                  # (H, 4H)
    e0_b = _reorder_gates(e0["b"])                                       # (1, 4H)
    e1_wih = _reorder_gates(e1["w_ih"])
    e1_whh = _reorder_gates(e1["w_hh"])
    e1_b = _reorder_gates(e1["b"])
    d0_wih = _reorder_gates(d0["w_ih"])
    d0_whh = _reorder_gates(d0["w_hh"])
    d0_b = _reorder_gates(d0["b"])
    d1_wih = _reorder_gates(d1["w_ih"])
    d1_whh = _reorder_gates(d1["w_hh"])
    d1_b = _reorder_gates(d1["b"])

    fc_w_pad = jnp.zeros((H, G), jnp.float32).at[:, :D].set(params["fc_w"])
    fc_b_pad = jnp.zeros((1, G), jnp.float32).at[:, :D].set(params["fc_b"])

    w_pack = jnp.stack([e0_whh, e1_wih, e1_whh,
                        d0_wih, d0_whh, d1_wih, d1_whh, fc_w_pad], axis=0)  # (8,H,4H)
    small_pack = jnp.concatenate(
        [e0_wih, e0_b, e1_b, d0_b, d1_b, fc_b_pad], axis=0)                 # (D+5,4H)
    return w_pack, small_pack


def lstm_autoencoder_forward(x, params):
    """x: (B, T, D) batch-first, like the PyTorch module. Returns (output, encoded)."""
    B, T, D = x.shape
    H, G = HIDDEN_SIZE, 4 * HIDDEN_SIZE
    Bp = ((B + SUBLANE - 1) // SUBLANE) * SUBLANE     # pad batch to sublane multiple

    w_pack, small_pack = _prep_params(params)

    x_tm = jnp.transpose(x, (1, 0, 2)).astype(jnp.float32)       # (T, B, D)
    x_tm = jnp.pad(x_tm, ((0, 0), (0, Bp - B), (0, 0)))          # (T, Bp, D)
    ones = jnp.ones((T, Bp, 1), jnp.float32)
    x_aug = jnp.concatenate([x_tm, ones], axis=-1)               # (T, Bp, D+1)
    x_flat = x_aug.reshape(T * Bp, D + 1)

    vmem = pl.BlockSpec(memory_space=pltpu.MemorySpace.VMEM)
    out_flat, enc_pad = pl.pallas_call(
        lstm_autoencoder_kernel,
        out_shape=(jax.ShapeDtypeStruct((T * Bp, G), jnp.float32),
                   jax.ShapeDtypeStruct((Bp, H), jnp.float32)),
        in_specs=[vmem, vmem, vmem],
        out_specs=(vmem, vmem),
        scratch_shapes=[
            pltpu.VMEM((T, Bp, G), jnp.float32),   # encoder L0 input projections
            pltpu.VMEM((T, Bp, H), jnp.float32),   # decoder L1 hidden states
        ],
        # TODO(synk): if batch grows, add a batch grid with
        # dimension_semantics=("parallel",) so v7x's two TensorCores split it.
    )(x_flat, w_pack, small_pack)

    out_tm = out_flat.reshape(T, Bp, G)[:, :B, :D]               # (T, B, D)
    output = jnp.transpose(out_tm, (1, 0, 2))                    # (B, T, D)
    encoded = enc_pad[:B]                                        # (B, H)
    return output, encoded


def init_params(key):
    """Deterministic PyTorch-style init: U(-1/sqrt(H), 1/sqrt(H)).
    Stored in PyTorch gate order [i|f|g|o]; weights pre-transposed to (in, 4H),
    biases combined (b_ih + b_hh) as (1, 4H)."""
    H, D = HIDDEN_SIZE, INPUT_SIZE
    bound = 1.0 / np.sqrt(H)
    keys = iter(jax.random.split(key, 64))

    def u(shape):
        return jax.random.uniform(next(keys), shape, jnp.float32, -bound, bound)

    def lstm_layer(in_dim):
        return {
            "w_ih": u((in_dim, 4 * H)),
            "w_hh": u((H, 4 * H)),
            "b": u((1, 4 * H)) + u((1, 4 * H)),   # b_ih + b_hh
        }

    params = {
        "enc": [lstm_layer(D), lstm_layer(H)],
        "dec": [lstm_layer(H), lstm_layer(H)],
        "fc_w": u((H, D)),
        "fc_b": u((1, D)),
    }
    return params


def reference_forward(x, params):
    """Pure-JAX reference mirroring the PyTorch forward (for correctness check)."""
    B, T, D = x.shape
    H = HIDDEN_SIZE

    def run_stack(seq, layers):
        h_last = None
        for lp in layers:
            h = jnp.zeros((B, H), jnp.float32)
            c = jnp.zeros((B, H), jnp.float32)
            outs = []
            for t in range(T):
                gates = seq[:, t] @ lp["w_ih"] + h @ lp["w_hh"] + lp["b"]
                i = jax.nn.sigmoid(gates[:, :H])
                f = jax.nn.sigmoid(gates[:, H:2 * H])
                g = jnp.tanh(gates[:, 2 * H:3 * H])
                o = jax.nn.sigmoid(gates[:, 3 * H:4 * H])
                c = f * c + i * g
                h = o * jnp.tanh(c)
                outs.append(h)
            seq = jnp.stack(outs, axis=1)
            h_last = h
        return seq, h_last

    _, encoded = run_stack(x, params["enc"])
    dec_in = jnp.repeat(encoded[:, None, :], T, axis=1)
    decoded, _ = run_stack(dec_in, params["dec"])
    output = decoded @ params["fc_w"] + params["fc_b"]
    return output, encoded


if __name__ == "__main__":
    B, T = 2, 8
    key = jax.random.PRNGKey(0)
    k_params, k_x = jax.random.split(key)

    params = init_params(k_params)
    x = jax.random.normal(k_x, (B, T, INPUT_SIZE), jnp.float32)

    output, encoded = lstm_autoencoder_forward(x, params)
    output = jax.block_until_ready(output)
    encoded = jax.block_until_ready(encoded)

    assert output.shape == (B, T, INPUT_SIZE)
    assert encoded.shape == (B, HIDDEN_SIZE)

    ref_out, ref_enc = reference_forward(x, params)
    np.testing.assert_allclose(np.asarray(output), np.asarray(ref_out),
                               rtol=1e-4, atol=1e-4)
    np.testing.assert_allclose(np.asarray(encoded), np.asarray(ref_enc),
                               rtol=1e-4, atol=1e-4)

    print("KERNEL_OK")
</pallas_src>

<mosaic_0001>
module attributes {stable_mosaic.version = 11 : i64} {
  func.func @lstm_autoencoder_kernel(%arg0: memref<64x4xf32, #tpu.memory_space<vmem>>, %arg1: memref<8x64x256xf32, #tpu.memory_space<vmem>>, %arg2: memref<8x256xf32, #tpu.memory_space<vmem>>, %arg3: memref<64x256xf32, #tpu.memory_space<vmem>>, %arg4: memref<8x64xf32, #tpu.memory_space<vmem>>, %arg5: memref<8x8x256xf32, #tpu.memory_space<vmem>>, %arg6: memref<8x8x64xf32, #tpu.memory_space<vmem>>) attributes {dimension_semantics = [], scalar_prefetch = 0 : i64, scratch_operands = 2 : i64, tpu.core_type = #tpu.core_type<tc>} {
    %cst = arith.constant 0.000000e+00 : f32
    %0 = vector.broadcast %cst : f32 to vector<8x64xf32>
    %c0 = arith.constant 0 : index
    %c0_0 = arith.constant 0 : index
    %1 = vector.load %arg0[%c0, %c0_0] : memref<64x4xf32, #tpu.memory_space<vmem>>, vector<64x4xf32>
    %c0_1 = arith.constant 0 : index
    %c0_2 = arith.constant 0 : index
    %2 = vector.load %arg2[%c0_1, %c0_2] : memref<8x256xf32, #tpu.memory_space<vmem>>, vector<4x256xf32>
    %cst_3 = arith.constant dense<0.000000e+00> : vector<64x256xf32>
    %3 = tpu.matmul %1, %2, %cst_3 {dimension_numbers = #tpu.dot_dimension_numbers<[1], [0], [0], [1], [0, 0, 1, 1], [], []>} : vector<64x4xf32>, vector<4x256xf32>, vector<64x256xf32> -> vector<64x256xf32>
    %4 = vector.shape_cast %3 : vector<64x256xf32> to vector<8x8x256xf32>
    %c0_4 = arith.constant 0 : index
    %c0_5 = arith.constant 0 : index
    %c0_6 = arith.constant 0 : index
    %5 = vector.load %arg5[%c0_4, %c0_5, %c0_6] : memref<8x8x256xf32, #tpu.memory_space<vmem>>, vector<8x8x256xf32>
    tpu.vector_store %arg5[%c0_4, %c0_5, %c0_6], %4 {strides = array<i32>} : memref<8x8x256xf32, #tpu.memory_space<vmem>>, vector<8x8x256xf32>,
    %c4 = arith.constant 4 : index
    %c0_7 = arith.constant 0 : index
    %6 = vector.load %arg2[%c4, %c0_7] : memref<8x256xf32, #tpu.memory_space<vmem>>, vector<1x256xf32>
    %7 = vector.shape_cast %6 : vector<1x256xf32> to vector<1x256xf32>
    %8 = vector.broadcast %7 : vector<1x256xf32> to vector<8x256xf32>
    %c5 = arith.constant 5 : index
    %c0_8 = arith.constant 0 : index
    %9 = vector.load %arg2[%c5, %c0_8] : memref<8x256xf32, #tpu.memory_space<vmem>>, vector<1x256xf32>
    %c6 = arith.constant 6 : index
    %c0_9 = arith.constant 0 : index
    %10 = vector.load %arg2[%c6, %c0_9] : memref<8x256xf32, #tpu.memory_space<vmem>>, vector<1x256xf32>
    %11 = vector.shape_cast %10 : vector<1x256xf32> to vector<1x256xf32>
    %12 = vector.broadcast %11 : vector<1x256xf32> to vector<8x256xf32>
    %c7 = arith.constant 7 : index
    %c0_10 = arith.constant 0 : index
    %13 = vector.load %arg2[%c7, %c0_10] : memref<8x256xf32, #tpu.memory_space<vmem>>, vector<1x256xf32>
    %c0_i32 = arith.constant 0 : i32
    %c0_11 = arith.constant 0 : index
    %c0_12 = arith.constant 0 : index
    %c0_13 = arith.constant 0 : index
    %14 = vector.load %arg1[%c0_11, %c0_12, %c0_13] : memref<8x64x256xf32, #tpu.memory_space<vmem>>, vector<1x64x256xf32>
    %15 = vector.shape_cast %14 : vector<1x64x256xf32> to vector<64x256xf32>
    %cst_14 = arith.constant dense<0.000000e+00> : vector<8x256xf32>
    %16 = tpu.matmul %0, %15, %cst_14 {dimension_numbers = #tpu.dot_dimension_numbers<[1], [0], [0], [1], [0, 0, 1, 1], [], []>} : vector<8x64xf32>, vector<64x256xf32>, vector<8x256xf32> -> vector<8x256xf32>
    %c2 = arith.constant 2 : index
    %c0_15 = arith.constant 0 : index
    %c0_16 = arith.constant 0 : index
    %17 = vector.load %arg1[%c2, %c0_15, %c0_16] : memref<8x64x256xf32, #tpu.memory_space<vmem>>, vector<1x64x256xf32>
    %18 = vector.shape_cast %17 : vector<1x64x256xf32> to vector<64x256xf32>
    %cst_17 = arith.constant dense<0.000000e+00> : vector<8x256xf32>
    %19 = tpu.matmul %0, %18, %cst_17 {dimension_numbers = #tpu.dot_dimension_numbers<[1], [0], [0], [1], [0, 0, 1, 1], [], []>} : vector<8x64xf32>, vector<64x256xf32>, vector<8x256xf32> -> vector<8x256xf32>
    %20 = arith.addf %19, %8 : vector<8x256xf32>
    %21 = arith.index_cast %c0_i32 : i32 to index
    %c0_18 = arith.constant 0 : index
    %c0_19 = arith.constant 0 : index
    %22 = vector.load %arg5[%21, %c0_18, %c0_19] : memref<8x8x256xf32, #tpu.memory_space<vmem>>, vector<1x8x256xf32>
    %23 = vector.shape_cast %22 : vector<1x8x256xf32> to vector<8x256xf32>
    %24 = arith.addf %23, %16 : vector<8x256xf32>
    %25 = vector.extract_strided_slice %24 {offsets = [0, 0], sizes = [8, 192], strides = [1, 1]} : vector<8x256xf32> to vector<8x192xf32>
    %26 = arith.negf %25 : vector<8x192xf32>
    %27 = math.exp %26 : vector<8x192xf32>
    %cst_20 = arith.constant 1.000000e+00 : f32
    %28 = vector.broadcast %cst_20 : f32 to vector<8x192xf32>
    %29 = arith.addf %28, %27 : vector<8x192xf32>
    %30 = arith.divf %28, %29 : vector<8x192xf32>
    %31 = vector.extract_strided_slice %30 {offsets = [0, 0], sizes = [8, 64], strides = [1, 1]} : vector<8x192xf32> to vector<8x64xf32>
    %32 = vector.extract_strided_slice %30 {offsets = [0, 64], sizes = [8, 64], strides = [1, 1]} : vector<8x192xf32> to vector<8x64xf32>
    %33 = vector.extract_strided_slice %30 {offsets = [0, 128], sizes = [8, 64], strides = [1, 1]} : vector<8x192xf32> to vector<8x64xf32>
    %34 = vector.extract_strided_slice %24 {offsets = [0, 192], sizes = [8, 64], strides = [1, 1]} : vector<8x256xf32> to vector<8x64xf32>
    %35 = math.tanh %34 : vector<8x64xf32>
    %36 = arith.mulf %32, %0 : vector<8x64xf32>
    %37 = arith.mulf %31, %35 : vector<8x64xf32>
    %38 = arith.addf %36, %37 : vector<8x64xf32>
    %39 = math.tanh %38 : vector<8x64xf32>
    %40 = arith.mulf %33, %39 : vector<8x64xf32>
    %c1 = arith.constant 1 : index
    %c0_21 = arith.constant 0 : index
    %c0_22 = arith.constant 0 : index
    %41 = vector.load %arg1[%c1, %c0_21, %c0_22] : memref<8x64x256xf32, #tpu.memory_space<vmem>>, vector<1x64x256xf32>
    %42 = vector.shape_cast %41 : vector<1x64x256xf32> to vector<64x256xf32>
    %cst_23 = arith.constant dense<0.000000e+00> : vector<8x256xf32>
    %43 = tpu.matmul %40, %42, %cst_23 {dimension_numbers = #tpu.dot_dimension_numbers<[1], [0], [0], [1], [0, 0, 1, 1], [], []>} : vector<8x64xf32>, vector<64x256xf32>, vector<8x256xf32> -> vector<8x256xf32>
    %44 = arith.addf %43, %20 : vector<8x256xf32>
    %45 = vector.extract_strided_slice %44 {offsets = [0, 0], sizes = [8, 192], strides = [1, 1]} : vector<8x256xf32> to vector<8x192xf32>
    %46 = arith.negf %45 : vector<8x192xf32>
    %47 = math.exp %46 : vector<8x192xf32>
    %cst_24 = arith.constant 1.000000e+00 : f32
    %48 = vector.broadcast %cst_24 : f32 to vector<8x192xf32>
    %49 = arith.addf %48, %47 : vector<8x192xf32>
    %50 = arith.divf %48, %49 : vector<8x192xf32>
    %51 = vector.extract_strided_slice %50 {offsets = [0, 0], sizes = [8, 64], strides = [1, 1]} : vector<8x192xf32> to vector<8x64xf32>
    %52 = vector.extract_strided_slice %50 {offsets = [0, 64], sizes = [8, 64], strides = [1, 1]} : vector<8x192xf32> to vector<8x64xf32>
    %53 = vector.extract_strided_slice %50 {offsets = [0, 128], sizes = [8, 64], strides = [1, 1]} : vector<8x192xf32> to vector<8x64xf32>
    %54 = vector.extract_strided_slice %44 {offsets = [0, 192], sizes = [8, 64], strides = [1, 1]} : vector<8x256xf32> to vector<8x64xf32>
    %55 = math.tanh %54 : vector<8x64xf32>
    %56 = arith.mulf %52, %0 : vector<8x64xf32>
    %57 = arith.mulf %51, %55 : vector<8x64xf32>
    %58 = arith.addf %56, %57 : vector<8x64xf32>
    %59 = math.tanh %58 : vector<8x64xf32>
    %60 = arith.mulf %53, %59 : vector<8x64xf32>
    %c1_i32 = arith.constant 1 : i32
    %c0_25 = arith.constant 0 : index
    %c0_26 = arith.constant 0 : index
    %c0_27 = arith.constant 0 : index
    %61 = vector.load %arg1[%c0_25, %c0_26, %c0_27] : memref<8x64x256xf32, #tpu.memory_space<vmem>>, vector<1x64x256xf32>
    %62 = vector.shape_cast %61 : vector<1x64x256xf32> to vector<64x256xf32>
    %cst_28 = arith.constant dense<0.000000e+00> : vector<8x256xf32>
    %63 = tpu.matmul %40, %62, %cst_28 {dimension_numbers = #tpu.dot_dimension_numbers<[1], [0], [0], [1], [0, 0, 1, 1], [], []>} : vector<8x64xf32>, vector<64x256xf32>, vector<8x256xf32> -> vector<8x256xf32>
    %c2_29 = arith.constant 2 : index
    %c0_30 = arith.constant 0 : index
    %c0_31 = arith.constant 0 : index
    %64 = vector.load %arg1[%c2_29, %c0_30, %c0_31] : memref<8x64x256xf32, #tpu.memory_space<vmem>>, vector<1x64x256xf32>
    %65 = vector.shape_cast %64 : vector<1x64x256xf32> to vector<64x256xf32>
    %cst_32 = arith.constant dense<0.000000e+00> : vector<8x256xf32>
    %66 = tpu.matmul %60, %65, %cst_32 {dimension_numbers = #tpu.dot_dimension_numbers<[1], [0], [0], [1], [0, 0, 1, 1], [], []>} : vector<8x64xf32>, vector<64x256xf32>, vector<8x256xf32> -> vector<8x256xf32>
    %67 = arith.addf %66, %8 : vector<8x256xf32>
    %68 = arith.index_cast %c1_i32 : i32 to index
    %c0_33 = arith.constant 0 : index
    %c0_34 = arith.constant 0 : index
    %69 = vector.load %arg5[%68, %c0_33, %c0_34] : memref<8x8x256xf32, #tpu.memory_space<vmem>>, vector<1x8x256xf32>
    %70 = vector.shape_cast %69 : vector<1x8x256xf32> to vector<8x256xf32>
    %71 = arith.addf %70, %63 : vector<8x256xf32>
    %72 = vector.extract_strided_slice %71 {offsets = [0, 0], sizes = [8, 192], strides = [1, 1]} : vector<8x256xf32> to vector<8x192xf32>
    %73 = arith.negf %72 : vector<8x192xf32>
    %74 = math.exp %73 : vector<8x192xf32>
    %cst_35 = arith.constant 1.000000e+00 : f32
    %75 = vector.broadcast %cst_35 : f32 to vector<8x192xf32>
    %76 = arith.addf %75, %74 : vector<8x192xf32>
    %77 = arith.divf %75, %76 : vector<8x192xf32>
    %78 = vector.extract_strided_slice %77 {offsets = [0, 0], sizes = [8, 64], strides = [1, 1]} : vector<8x192xf32> to vector<8x64xf32>
    %79 = vector.extract_strided_slice %77 {offsets = [0, 64], sizes = [8, 64], strides = [1, 1]} : vector<8x192xf32> to vector<8x64xf32>
    %80 = vector.extract_strided_slice %77 {offsets = [0, 128], sizes = [8, 64], strides = [1, 1]} : vector<8x192xf32> to vector<8x64xf32>
    %81 = vector.extract_strided_slice %71 {offsets = [0, 192], sizes = [8, 64], strides = [1, 1]} : vector<8x256xf32> to vector<8x64xf32>
    %82 = math.tanh %81 : vector<8x64xf32>
    %83 = arith.mulf %79, %38 : vector<8x64xf32>
    %84 = arith.mulf %78, %82 : vector<8x64xf32>
    %85 = arith.addf %83, %84 : vector<8x64xf32>
    %86 = math.tanh %85 : vector<8x64xf32>
    %87 = arith.mulf %80, %86 : vector<8x64xf32>
    %c1_36 = arith.constant 1 : index
    %c0_37 = arith.constant 0 : index
    %c0_38 = arith.constant 0 : index
    %88 = vector.load %arg1[%c1_36, %c0_37, %c0_38] : memref<8x64x256xf32, #tpu.memory_space<vmem>>, vector<1x64x256xf32>
    %89 = vector.shape_cast %88 : vector<1x64x256xf32> to vector<64x256xf32>
    %cst_39 = arith.constant dense<0.000000e+00> : vector<8x256xf32>
    %90 = tpu.matmul %87, %89, %cst_39 {dimension_numbers = #tpu.dot_dimension_numbers<[1], [0], [0], [1], [0, 0, 1, 1], [], []>} : vector<8x64xf32>, vector<64x256xf32>, vector<8x256xf32> -> vector<8x256xf32>
    %91 = arith.addf %90, %67 : vector<8x256xf32>
    %92 = vector.extract_strided_slice %91 {offsets = [0, 0], sizes = [8, 192], strides = [1, 1]} : vector<8x256xf32> to vector<8x192xf32>
    %93 = arith.negf %92 : vector<8x192xf32>
    %94 = math.exp %93 : vector<8x192xf32>
    %cst_40 = arith.constant 1.000000e+00 : f32
    %95 = vector.broadcast %cst_40 : f32 to vector<8x192xf32>
    %96 = arith.addf %95, %94 : vector<8x192xf32>
    %97 = arith.divf %95, %96 : vector<8x192xf32>
    %98 = vector.extract_strided_slice %97 {offsets = [0, 0], sizes = [8, 64], strides = [1, 1]} : vector<8x192xf32> to vector<8x64xf32>
    %99 = vector.extract_strided_slice %97 {offsets = [0, 64], sizes = [8, 64], strides = [1, 1]} : vector<8x192xf32> to vector<8x64xf32>
    %100 = vector.extract_strided_slice %97 {offsets = [0, 128], sizes = [8, 64], strides = [1, 1]} : vector<8x192xf32> to vector<8x64xf32>
    %101 = vector.extract_strided_slice %91 {offsets = [0, 192], sizes = [8, 64], strides = [1, 1]} : vector<8x256xf32> to vector<8x64xf32>
    %102 = math.tanh %101 : vector<8x64xf32>
    %103 = arith.mulf %99, %58 : vector<8x64xf32>
    %104 = arith.mulf %98, %102 : vector<8x64xf32>
    %105 = arith.addf %103, %104 : vector<8x64xf32>
    %106 = math.tanh %105 : vector<8x64xf32>
    %107 = arith.mulf %100, %106 : vector<8x64xf32>
    %c2_i32 = arith.constant 2 : i32
    %c0_41 = arith.constant 0 : index
    %c0_42 = arith.constant 0 : index
    %c0_43 = arith.constant 0 : index
    %108 = vector.load %arg1[%c0_41, %c0_42, %c0_43] : memref<8x64x256xf32, #tpu.memory_space<vmem>>, vector<1x64x256xf32>
    %109 = vector.shape_cast %108 : vector<1x64x256xf32> to vector<64x256xf32>
    %cst_44 = arith.constant dense<0.000000e+00> : vector<8x256xf32>
    %110 = tpu.matmul %87, %109, %cst_44 {dimension_numbers = #tpu.dot_dimension_numbers<[1], [0], [0], [1], [0, 0, 1, 1], [], []>} : vector<8x64xf32>, vector<64x256xf32>, vector<8x256xf32> -> vector<8x256xf32>
    %c2_45 = arith.constant 2 : index
    %c0_46 = arith.constant 0 : index
    %c0_47 = arith.constant 0 : index
    %111 = vector.load %arg1[%c2_45, %c0_46, %c0_47] : memref<8x64x256xf32, #tpu.memory_space<vmem>>, vector<1x64x256xf32>
    %112 = vector.shape_cast %111 : vector<1x64x256xf32> to vector<64x256xf32>
    %cst_48 = arith.constant dense<0.000000e+00> : vector<8x256xf32>
    %113 = tpu.matmul %107, %112, %cst_48 {dimension_numbers = #tpu.dot_dimension_numbers<[1], [0], [0], [1], [0, 0, 1, 1], [], []>} : vector<8x64xf32>, vector<64x256xf32>, vector<8x256xf32> -> vector<8x256xf32>
    %114 = arith.addf %113, %8 : vector<8x256xf32>
    %115 = arith.index_cast %c2_i32 : i32 to index
    %c0_49 = arith.constant 0 : index
    %c0_50 = arith.constant 0 : index
    %116 = vector.load %arg5[%115, %c0_49, %c0_50] : memref<8x8x256xf32, #tpu.memory_space<vmem>>, vector<1x8x256xf32>
    %117 = vector.shape_cast %116 : vector<1x8x256xf32> to vector<8x256xf32>
    %118 = arith.addf %117, %110 : vector<8x256xf32>
    %119 = vector.extract_strided_slice %118 {offsets = [0, 0], sizes = [8, 192], strides = [1, 1]} : vector<8x256xf32> to vector<8x192xf32>
    %120 = arith.negf %119 : vector<8x192xf32>
    %121 = math.exp %120 : vector<8x192xf32>
    %cst_51 = arith.constant 1.000000e+00 : f32
    %122 = vector.broadcast %cst_51 : f32 to vector<8x192xf32>
    %123 = arith.addf %122, %121 : vector<8x192xf32>
    %124 = arith.divf %122, %123 : vector<8x192xf32>
    %125 = vector.extract_strided_slice %124 {offsets = [0, 0], sizes = [8, 64], strides = [1, 1]} : vector<8x192xf32> to vector<8x64xf32>
    %126 = vector.extract_strided_slice %124 {offsets = [0, 64], sizes = [8, 64], strides = [1, 1]} : vector<8x192xf32> to vector<8x64xf32>
    %127 = vector.extract_strided_slice %124 {offsets = [0, 128], sizes = [8, 64], strides = [1, 1]} : vector<8x192xf32> to vector<8x64xf32>
    %128 = vector.extract_strided_slice %118 {offsets = [0, 192], sizes = [8, 64], strides = [1, 1]} : vector<8x256xf32> to vector<8x64xf32>
    %129 = math.tanh %128 : vector<8x64xf32>
    %130 = arith.mulf %126, %85 : vector<8x64xf32>
    %131 = arith.mulf %125, %129 : vector<8x64xf32>
    %132 = arith.addf %130, %131 : vector<8x64xf32>
    %133 = math.tanh %132 : vector<8x64xf32>
    %134 = arith.mulf %127, %133 : vector<8x64xf32>
    %c1_52 = arith.constant 1 : index
    %c0_53 = arith.constant 0 : index
    %c0_54 = arith.constant 0 : index
    %135 = vector.load %arg1[%c1_52, %c0_53, %c0_54] : memref<8x64x256xf32, #tpu.memory_space<vmem>>, vector<1x64x256xf32>
    %136 = vector.shape_cast %135 : vector<1x64x256xf32> to vector<64x256xf32>
    %cst_55 = arith.constant dense<0.000000e+00> : vector<8x256xf32>
    %137 = tpu.matmul %134, %136, %cst_55 {dimension_numbers = #tpu.dot_dimension_numbers<[1], [0], [0], [1], [0, 0, 1, 1], [], []>} : vector<8x64xf32>, vector<64x256xf32>, vector<8x256xf32> -> vector<8x256xf32>
    %138 = arith.addf %137, %114 : vector<8x256xf32>
    %139 = vector.extract_strided_slice %138 {offsets = [0, 0], sizes = [8, 192], strides = [1, 1]} : vector<8x256xf32> to vector<8x192xf32>
    %140 = arith.negf %139 : vector<8x192xf32>
    %141 = math.exp %140 : vector<8x192xf32>
    %cst_56 = arith.constant 1.000000e+00 : f32
    %142 = vector.broadcast %cst_56 : f32 to vector<8x192xf32>
    %143 = arith.addf %142, %141 : vector<8x192xf32>
    %144 = arith.divf %142, %143 : vector<8x192xf32>
    %145 = vector.extract_strided_slice %144 {offsets = [0, 0], sizes = [8, 64], strides = [1, 1]} : vector<8x192xf32> to vector<8x64xf32>
    %146 = vector.extract_strided_slice %144 {offsets = [0, 64], sizes = [8, 64], strides = [1, 1]} : vector<8x192xf32> to vector<8x64xf32>
    %147 = vector.extract_strided_slice %144 {offsets = [0, 128], sizes = [8, 64], strides = [1, 1]} : vector<8x192xf32> to vector<8x64xf32>
    %148 = vector.extract_strided_slice %138 {offsets = [0, 192], sizes = [8, 64], strides = [1, 1]} : vector<8x256xf32> to vector<8x64xf32>
    %149 = math.tanh %148 : vector<8x64xf32>
    %150 = arith.mulf %146, %105 : vector<8x64xf32>
    %151 = arith.mulf %145, %149 : vector<8x64xf32>
    %152 = arith.addf %150, %151 : vector<8x64xf32>
    %153 = math.tanh %152 : vector<8x64xf32>
    %154 = arith.mulf %147, %153 : vector<8x64xf32>
    %c3_i32 = arith.constant 3 : i32
    %c0_57 = arith.constant 0 : index
    %c0_58 = arith.constant 0 : index
    %c0_59 = arith.constant 0 : index
    %155 = vector.load %arg1[%c0_57, %c0_58, %c0_59] : memref<8x64x256xf32, #tpu.memory_space<vmem>>, vector<1x64x256xf32>
    %156 = vector.shape_cast %155 : vector<1x64x256xf32> to vector<64x256xf32>
    %cst_60 = arith.constant dense<0.000000e+00> : vector<8x256xf32>
    %157 = tpu.matmul %134, %156, %cst_60 {dimension_numbers = #tpu.dot_dimension_numbers<[1], [0], [0], [1], [0, 0, 1, 1], [], []>} : vector<8x64xf32>, vector<64x256xf32>, vector<8x256xf32> -> vector<8x256xf32>
    %c2_61 = arith.constant 2 : index
    %c0_62 = arith.constant 0 : index
    %c0_63 = arith.constant 0 : index
    %158 = vector.load %arg1[%c2_61, %c0_62, %c0_63] : memref<8x64x256xf32, #tpu.memory_space<vmem>>, vector<1x64x256xf32>
    %159 = vector.shape_cast %158 : vector<1x64x256xf32> to vector<64x256xf32>
    %cst_64 = arith.constant dense<0.000000e+00> : vector<8x256xf32>
    %160 = tpu.matmul %154, %159, %cst_64 {dimension_numbers = #tpu.dot_dimension_numbers<[1], [0], [0], [1], [0, 0, 1, 1], [], []>} : vector<8x64xf32>, vector<64x256xf32>, vector<8x256xf32> -> vector<8x256xf32>
    %161 = arith.addf %160, %8 : vector<8x256xf32>
    %162 = arith.index_cast %c3_i32 : i32 to index
    %c0_65 = arith.constant 0 : index
    %c0_66 = arith.constant 0 : index
    %163 = vector.load %arg5[%162, %c0_65, %c0_66] : memref<8x8x256xf32, #tpu.memory_space<vmem>>, vector<1x8x256xf32>
    %164 = vector.shape_cast %163 : vector<1x8x256xf32> to vector<8x256xf32>
    %165 = arith.addf %164, %157 : vector<8x256xf32>
    %166 = vector.extract_strided_slice %165 {offsets = [0, 0], sizes = [8, 192], strides = [1, 1]} : vector<8x256xf32> to vector<8x192xf32>
    %167 = arith.negf %166 : vector<8x192xf32>
    %168 = math.exp %167 : vector<8x192xf32>
    %cst_67 = arith.constant 1.000000e+00 : f32
    %169 = vector.broadcast %cst_67 : f32 to vector<8x192xf32>
    %170 = arith.addf %169, %168 : vector<8x192xf32>
    %171 = arith.divf %169, %170 : vector<8x192xf32>
    %172 = vector.extract_strided_slice %171 {offsets = [0, 0], sizes = [8, 64], strides = [1, 1]} : vector<8x192xf32> to vector<8x64xf32>
    %173 = vector.extract_strided_slice %171 {offsets = [0, 64], sizes = [8, 64], strides = [1, 1]} : vector<8x192xf32> to vector<8x64xf32>
    %174 = vector.extract_strided_slice %171 {offsets = [0, 128], sizes = [8, 64], strides = [1, 1]} : vector<8x192xf32> to vector<8x64xf32>
    %175 = vector.extract_strided_slice %165 {offsets = [0, 192], sizes = [8, 64], strides = [1, 1]} : vector<8x256xf32> to vector<8x64xf32>
    %176 = math.tanh %175 : vector<8x64xf32>
    %177 = arith.mulf %173, %132 : vector<8x64xf32>
    %178 = arith.mulf %172, %176 : vector<8x64xf32>
    %179 = arith.addf %177, %178 : vector<8x64xf32>
    %180 = math.tanh %179 : vector<8x64xf32>
    %181 = arith.mulf %174, %180 : vector<8x64xf32>
    %c1_68 = arith.constant 1 : index
    %c0_69 = arith.constant 0 : index
    %c0_70 = arith.constant 0 : index
    %182 = vector.load %arg1[%c1_68, %c0_69, %c0_70] : memref<8x64x256xf32, #tpu.memory_space<vmem>>, vector<1x64x256xf32>
    %183 = vector.shape_cast %182 : vector<1x64x256xf32> to vector<64x256xf32>
    %cst_71 = arith.constant dense<0.000000e+00> : vector<8x256xf32>
    %184 = tpu.matmul %181, %183, %cst_71 {dimension_numbers = #tpu.dot_dimension_numbers<[1], [0], [0], [1], [0, 0, 1, 1], [], []>} : vector<8x64xf32>, vector<64x256xf32>, vector<8x256xf32> -> vector<8x256xf32>
    %185 = arith.addf %184, %161 : vector<8x256xf32>
    %186 = vector.extract_strided_slice %185 {offsets = [0, 0], sizes = [8, 192], strides = [1, 1]} : vector<8x256xf32> to vector<8x192xf32>
    %187 = arith.negf %186 : vector<8x192xf32>
    %188 = math.exp %187 : vector<8x192xf32>
    %cst_72 = arith.constant 1.000000e+00 : f32
    %189 = vector.broadcast %cst_72 : f32 to vector<8x192xf32>
    %190 = arith.addf %189, %188 : vector<8x192xf32>
    %191 = arith.divf %189, %190 : vector<8x192xf32>
    %192 = vector.extract_strided_slice %191 {offsets = [0, 0], sizes = [8, 64], strides = [1, 1]} : vector<8x192xf32> to vector<8x64xf32>
    %193 = vector.extract_strided_slice %191 {offsets = [0, 64], sizes = [8, 64], strides = [1, 1]} : vector<8x192xf32> to vector<8x64xf32>
    %194 = vector.extract_strided_slice %191 {offsets = [0, 128], sizes = [8, 64], strides = [1, 1]} : vector<8x192xf32> to vector<8x64xf32>
    %195 = vector.extract_strided_slice %185 {offsets = [0, 192], sizes = [8, 64], strides = [1, 1]} : vector<8x256xf32> to vector<8x64xf32>
    %196 = math.tanh %195 : vector<8x64xf32>
    %197 = arith.mulf %193, %152 : vector<8x64xf32>
    %198 = arith.mulf %192, %196 : vector<8x64xf32>
    %199 = arith.addf %197, %198 : vector<8x64xf32>
    %200 = math.tanh %199 : vector<8x64xf32>
    %201 = arith.mulf %194, %200 : vector<8x64xf32>
    %c4_i32 = arith.constant 4 : i32
    %c0_73 = arith.constant 0 : index
    %c0_74 = arith.constant 0 : index
    %c0_75 = arith.constant 0 : index
    %202 = vector.load %arg1[%c0_73, %c0_74, %c0_75] : memref<8x64x256xf32, #tpu.memory_space<vmem>>, vector<1x64x256xf32>
    %203 = vector.shape_cast %202 : vector<1x64x256xf32> to vector<64x256xf32>
    %cst_76 = arith.constant dense<0.000000e+00> : vector<8x256xf32>
    %204 = tpu.matmul %181, %203, %cst_76 {dimension_numbers = #tpu.dot_dimension_numbers<[1], [0], [0], [1], [0, 0, 1, 1], [], []>} : vector<8x64xf32>, vector<64x256xf32>, vector<8x256xf32> -> vector<8x256xf32>
    %c2_77 = arith.constant 2 : index
    %c0_78 = arith.constant 0 : index
    %c0_79 = arith.constant 0 : index
    %205 = vector.load %arg1[%c2_77, %c0_78, %c0_79] : memref<8x64x256xf32, #tpu.memory_space<vmem>>, vector<1x64x256xf32>
    %206 = vector.shape_cast %205 : vector<1x64x256xf32> to vector<64x256xf32>
    %cst_80 = arith.constant dense<0.000000e+00> : vector<8x256xf32>
    %207 = tpu.matmul %201, %206, %cst_80 {dimension_numbers = #tpu.dot_dimension_numbers<[1], [0], [0], [1], [0, 0, 1, 1], [], []>} : vector<8x64xf32>, vector<64x256xf32>, vector<8x256xf32> -> vector<8x256xf32>
    %208 = arith.addf %207, %8 : vector<8x256xf32>
    %209 = arith.index_cast %c4_i32 : i32 to index
    %c0_81 = arith.constant 0 : index
    %c0_82 = arith.constant 0 : index
    %210 = vector.load %arg5[%209, %c0_81, %c0_82] : memref<8x8x256xf32, #tpu.memory_space<vmem>>, vector<1x8x256xf32>
    %211 = vector.shape_cast %210 : vector<1x8x256xf32> to vector<8x256xf32>
    %212 = arith.addf %211, %204 : vector<8x256xf32>
    %213 = vector.extract_strided_slice %212 {offsets = [0, 0], sizes = [8, 192], strides = [1, 1]} : vector<8x256xf32> to vector<8x192xf32>
    %214 = arith.negf %213 : vector<8x192xf32>
    %215 = math.exp %214 : vector<8x192xf32>
    %cst_83 = arith.constant 1.000000e+00 : f32
    %216 = vector.broadcast %cst_83 : f32 to vector<8x192xf32>
    %217 = arith.addf %216, %215 : vector<8x192xf32>
    %218 = arith.divf %216, %217 : vector<8x192xf32>
    %219 = vector.extract_strided_slice %218 {offsets = [0, 0], sizes = [8, 64], strides = [1, 1]} : vector<8x192xf32> to vector<8x64xf32>
    %220 = vector.extract_strided_slice %218 {offsets = [0, 64], sizes = [8, 64], strides = [1, 1]} : vector<8x192xf32> to vector<8x64xf32>
    %221 = vector.extract_strided_slice %218 {offsets = [0, 128], sizes = [8, 64], strides = [1, 1]} : vector<8x192xf32> to vector<8x64xf32>
    %222 = vector.extract_strided_slice %212 {offsets = [0, 192], sizes = [8, 64], strides = [1, 1]} : vector<8x256xf32> to vector<8x64xf32>
    %223 = math.tanh %222 : vector<8x64xf32>
    %224 = arith.mulf %220, %179 : vector<8x64xf32>
    %225 = arith.mulf %219, %223 : vector<8x64xf32>
    %226 = arith.addf %224, %225 : vector<8x64xf32>
    %227 = math.tanh %226 : vector<8x64xf32>
    %228 = arith.mulf %221, %227 : vector<8x64xf32>
    %c1_84 = arith.constant 1 : index
    %c0_85 = arith.constant 0 : index
    %c0_86 = arith.constant 0 : index
    %229 = vector.load %arg1[%c1_84, %c0_85, %c0_86] : memref<8x64x256xf32, #tpu.memory_space<vmem>>, vector<1x64x256xf32>
    %230 = vector.shape_cast %229 : vector<1x64x256xf32> to vector<64x256xf32>
    %cst_87 = arith.constant dense<0.000000e+00> : vector<8x256xf32>
    %231 = tpu.matmul %228, %230, %cst_87 {dimension_numbers = #tpu.dot_dimension_numbers<[1], [0], [0], [1], [0, 0, 1, 1], [], []>} : vector<8x64xf32>, vector<64x256xf32>, vector<8x256xf32> -> vector<8x256xf32>
    %232 = arith.addf %231, %208 : vector<8x256xf32>
    %233 = vector.extract_strided_slice %232 {offsets = [0, 0], sizes = [8, 192], strides = [1, 1]} : vector<8x256xf32> to vector<8x192xf32>
    %234 = arith.negf %233 : vector<8x192xf32>
    %235 = math.exp %234 : vector<8x192xf32>
    %cst_88 = arith.constant 1.000000e+00 : f32
    %236 = vector.broadcast %cst_88 : f32 to vector<8x192xf32>
    %237 = arith.addf %236, %235 : vector<8x192xf32>
    %238 = arith.divf %236, %237 : vector<8x192xf32>
    %239 = vector.extract_strided_slice %238 {offsets = [0, 0], sizes = [8, 64], strides = [1, 1]} : vector<8x192xf32> to vector<8x64xf32>
    %240 = vector.extract_strided_slice %238 {offsets = [0, 64], sizes = [8, 64], strides = [1, 1]} : vector<8x192xf32> to vector<8x64xf32>
    %241 = vector.extract_strided_slice %238 {offsets = [0, 128], sizes = [8, 64], strides = [1, 1]} : vector<8x192xf32> to vector<8x64xf32>
    %242 = vector.extract_strided_slice %232 {offsets = [0, 192], sizes = [8, 64], strides = [1, 1]} : vector<8x256xf32> to vector<8x64xf32>
    %243 = math.tanh %242 : vector<8x64xf32>
    %244 = arith.mulf %240, %199 : vector<8x64xf32>
    %245 = arith.mulf %239, %243 : vector<8x64xf32>
    %246 = arith.addf %244, %245 : vector<8x64xf32>
    %247 = math.tanh %246 : vector<8x64xf32>
    %248 = arith.mulf %241, %247 : vector<8x64xf32>
    %c5_i32 = arith.constant 5 : i32
    %c0_89 = arith.constant 0 : index
    %c0_90 = arith.constant 0 : index
    %c0_91 = arith.constant 0 : index
    %249 = vector.load %arg1[%c0_89, %c0_90, %c0_91] : memref<8x64x256xf32, #tpu.memory_space<vmem>>, vector<1x64x256xf32>
    %250 = vector.shape_cast %249 : vector<1x64x256xf32> to vector<64x256xf32>
    %cst_92 = arith.constant dense<0.000000e+00> : vector<8x256xf32>
    %251 = tpu.matmul %228, %250, %cst_92 {dimension_numbers = #tpu.dot_dimension_numbers<[1], [0], [0], [1], [0, 0, 1, 1], [], []>} : vector<8x64xf32>, vector<64x256xf32>, vector<8x256xf32> -> vector<8x256xf32>
    %c2_93 = arith.constant 2 : index
    %c0_94 = arith.constant 0 : index
    %c0_95 = arith.constant 0 : index
    %252 = vector.load %arg1[%c2_93, %c0_94, %c0_95] : memref<8x64x256xf32, #tpu.memory_space<vmem>>, vector<1x64x256xf32>
    %253 = vector.shape_cast %252 : vector<1x64x256xf32> to vector<64x256xf32>
    %cst_96 = arith.constant dense<0.000000e+00> : vector<8x256xf32>
    %254 = tpu.matmul %248, %253, %cst_96 {dimension_numbers = #tpu.dot_dimension_numbers<[1], [0], [0], [1], [0, 0, 1, 1], [], []>} : vector<8x64xf32>, vector<64x256xf32>, vector<8x256xf32> -> vector<8x256xf32>
    %255 = arith.addf %254, %8 : vector<8x256xf32>
    %256 = arith.index_cast %c5_i32 : i32 to index
    %c0_97 = arith.constant 0 : index
    %c0_98 = arith.constant 0 : index
    %257 = vector.load %arg5[%256, %c0_97, %c0_98] : memref<8x8x256xf32, #tpu.memory_space<vmem>>, vector<1x8x256xf32>
    %258 = vector.shape_cast %257 : vector<1x8x256xf32> to vector<8x256xf32>
    %259 = arith.addf %258, %251 : vector<8x256xf32>
    %260 = vector.extract_strided_slice %259 {offsets = [0, 0], sizes = [8, 192], strides = [1, 1]} : vector<8x256xf32> to vector<8x192xf32>
    %261 = arith.negf %260 : vector<8x192xf32>
    %262 = math.exp %261 : vector<8x192xf32>
    %cst_99 = arith.constant 1.000000e+00 : f32
    %263 = vector.broadcast %cst_99 : f32 to vector<8x192xf32>
    %264 = arith.addf %263, %262 : vector<8x192xf32>
    %265 = arith.divf %263, %264 : vector<8x192xf32>
    %266 = vector.extract_strided_slice %265 {offsets = [0, 0], sizes = [8, 64], strides = [1, 1]} : vector<8x192xf32> to vector<8x64xf32>
    %267 = vector.extract_strided_slice %265 {offsets = [0, 64], sizes = [8, 64], strides = [1, 1]} : vector<8x192xf32> to vector<8x64xf32>
    %268 = vector.extract_strided_slice %265 {offsets = [0, 128], sizes = [8, 64], strides = [1, 1]} : vector<8x192xf32> to vector<8x64xf32>
    %269 = vector.extract_strided_slice %259 {offsets = [0, 192], sizes = [8, 64], strides = [1, 1]} : vector<8x256xf32> to vector<8x64xf32>
    %270 = math.tanh %269 : vector<8x64xf32>
    %271 = arith.mulf %267, %226 : vector<8x64xf32>
    %272 = arith.mulf %266, %270 : vector<8x64xf32>
    %273 = arith.addf %271, %272 : vector<8x64xf32>
    %274 = math.tanh %273 : vector<8x64xf32>
    %275 = arith.mulf %268, %274 : vector<8x64xf32>
    %c1_100 = arith.constant 1 : index
    %c0_101 = arith.constant 0 : index
    %c0_102 = arith.constant 0 : index
    %276 = vector.load %arg1[%c1_100, %c0_101, %c0_102] : memref<8x64x256xf32, #tpu.memory_space<vmem>>, vector<1x64x256xf32>
    %277 = vector.shape_cast %276 : vector<1x64x256xf32> to vector<64x256xf32>
    %cst_103 = arith.constant dense<0.000000e+00> : vector<8x256xf32>
    %278 = tpu.matmul %275, %277, %cst_103 {dimension_numbers = #tpu.dot_dimension_numbers<[1], [0], [0], [1], [0, 0, 1, 1], [], []>} : vector<8x64xf32>, vector<64x256xf32>, vector<8x256xf32> -> vector<8x256xf32>
    %279 = arith.addf %278, %255 : vector<8x256xf32>
    %280 = vector.extract_strided_slice %279 {offsets = [0, 0], sizes = [8, 192], strides = [1, 1]} : vector<8x256xf32> to vector<8x192xf32>
    %281 = arith.negf %280 : vector<8x192xf32>
    %282 = math.exp %281 : vector<8x192xf32>
    %cst_104 = arith.constant 1.000000e+00 : f32
    %283 = vector.broadcast %cst_104 : f32 to vector<8x192xf32>
    %284 = arith.addf %283, %282 : vector<8x192xf32>
    %285 = arith.divf %283, %284 : vector<8x192xf32>
    %286 = vector.extract_strided_slice %285 {offsets = [0, 0], sizes = [8, 64], strides = [1, 1]} : vector<8x192xf32> to vector<8x64xf32>
    %287 = vector.extract_strided_slice %285 {offsets = [0, 64], sizes = [8, 64], strides = [1, 1]} : vector<8x192xf32> to vector<8x64xf32>
    %288 = vector.extract_strided_slice %285 {offsets = [0, 128], sizes = [8, 64], strides = [1, 1]} : vector<8x192xf32> to vector<8x64xf32>
    %289 = vector.extract_strided_slice %279 {offsets = [0, 192], sizes = [8, 64], strides = [1, 1]} : vector<8x256xf32> to vector<8x64xf32>
    %290 = math.tanh %289 : vector<8x64xf32>
    %291 = arith.mulf %287, %246 : vector<8x64xf32>
    %292 = arith.mulf %286, %290 : vector<8x64xf32>
    %293 = arith.addf %291, %292 : vector<8x64xf32>
    %294 = math.tanh %293 : vector<8x64xf32>
    %295 = arith.mulf %288, %294 : vector<8x64xf32>
    %c6_i32 = arith.constant 6 : i32
    %c0_105 = arith.constant 0 : index
    %c0_106 = arith.constant 0 : index
    %c0_107 = arith.constant 0 : index
    %296 = vector.load %arg1[%c0_105, %c0_106, %c0_107] : memref<8x64x256xf32, #tpu.memory_space<vmem>>, vector<1x64x256xf32>
    %297 = vector.shape_cast %296 : vector<1x64x256xf32> to vector<64x256xf32>
    %cst_108 = arith.constant dense<0.000000e+00> : vector<8x256xf32>
    %298 = tpu.matmul %275, %297, %cst_108 {dimension_numbers = #tpu.dot_dimension_numbers<[1], [0], [0], [1], [0, 0, 1, 1], [], []>} : vector<8x64xf32>, vector<64x256xf32>, vector<8x256xf32> -> vector<8x256xf32>
    %c2_109 = arith.constant 2 : index
    %c0_110 = arith.constant 0 : index
    %c0_111 = arith.constant 0 : index
    %299 = vector.load %arg1[%c2_109, %c0_110, %c0_111] : memref<8x64x256xf32, #tpu.memory_space<vmem>>, vector<1x64x256xf32>
    %300 = vector.shape_cast %299 : vector<1x64x256xf32> to vector<64x256xf32>
    %cst_112 = arith.constant dense<0.000000e+00> : vector<8x256xf32>
    %301 = tpu.matmul %295, %300, %cst_112 {dimension_numbers = #tpu.dot_dimension_numbers<[1], [0], [0], [1], [0, 0, 1, 1], [], []>} : vector<8x64xf32>, vector<64x256xf32>, vector<8x256xf32> -> vector<8x256xf32>
    %302 = arith.addf %301, %8 : vector<8x256xf32>
    %303 = arith.index_cast %c6_i32 : i32 to index
    %c0_113 = arith.constant 0 : index
    %c0_114 = arith.constant 0 : index
    %304 = vector.load %arg5[%303, %c0_113, %c0_114] : memref<8x8x256xf32, #tpu.memory_space<vmem>>, vector<1x8x256xf32>
    %305 = vector.shape_cast %304 : vector<1x8x256xf32> to vector<8x256xf32>
    %306 = arith.addf %305, %298 : vector<8x256xf32>
    %307 = vector.extract_strided_slice %306 {offsets = [0, 0], sizes = [8, 192], strides = [1, 1]} : vector<8x256xf32> to vector<8x192xf32>
    %308 = arith.negf %307 : vector<8x192xf32>
    %309 = math.exp %308 : vector<8x192xf32>
    %cst_115 = arith.constant 1.000000e+00 : f32
    %310 = vector.broadcast %cst_115 : f32 to vector<8x192xf32>
    %311 = arith.addf %310, %309 : vector<8x192xf32>
    %312 = arith.divf %310, %311 : vector<8x192xf32>
    %313 = vector.extract_strided_slice %312 {offsets = [0, 0], sizes = [8, 64], strides = [1, 1]} : vector<8x192xf32> to vector<8x64xf32>
    %314 = vector.extract_strided_slice %312 {offsets = [0, 64], sizes = [8, 64], strides = [1, 1]} : vector<8x192xf32> to vector<8x64xf32>
    %315 = vector.extract_strided_slice %312 {offsets = [0, 128], sizes = [8, 64], strides = [1, 1]} : vector<8x192xf32> to vector<8x64xf32>
    %316 = vector.extract_strided_slice %306 {offsets = [0, 192], sizes = [8, 64], strides = [1, 1]} : vector<8x256xf32> to vector<8x64xf32>
    %317 = math.tanh %316 : vector<8x64xf32>
    %318 = arith.mulf %314, %273 : vector<8x64xf32>
    %319 = arith.mulf %313, %317 : vector<8x64xf32>
    %320 = arith.addf %318, %319 : vector<8x64xf32>
    %321 = math.tanh %320 : vector<8x64xf32>
    %322 = arith.mulf %315, %321 : vector<8x64xf32>
    %c1_116 = arith.constant 1 : index
    %c0_117 = arith.constant 0 : index
    %c0_118 = arith.constant 0 : index
    %323 = vector.load %arg1[%c1_116, %c0_117, %c0_118] : memref<8x64x256xf32, #tpu.memory_space<vmem>>, vector<1x64x256xf32>
    %324 = vector.shape_cast %323 : vector<1x64x256xf32> to vector<64x256xf32>
    %cst_119 = arith.constant dense<0.000000e+00> : vector<8x256xf32>
    %325 = tpu.matmul %322, %324, %cst_119 {dimension_numbers = #tpu.dot_dimension_numbers<[1], [0], [0], [1], [0, 0, 1, 1], [], []>} : vector<8x64xf32>, vector<64x256xf32>, vector<8x256xf32> -> vector<8x256xf32>
    %326 = arith.addf %325, %302 : vector<8x256xf32>
    %327 = vector.extract_strided_slice %326 {offsets = [0, 0], sizes = [8, 192], strides = [1, 1]} : vector<8x256xf32> to vector<8x192xf32>
    %328 = arith.negf %327 : vector<8x192xf32>
    %329 = math.exp %328 : vector<8x192xf32>
    %cst_120 = arith.constant 1.000000e+00 : f32
    %330 = vector.broadcast %cst_120 : f32 to vector<8x192xf32>
    %331 = arith.addf %330, %329 : vector<8x192xf32>
    %332 = arith.divf %330, %331 : vector<8x192xf32>
    %333 = vector.extract_strided_slice %332 {offsets = [0, 0], sizes = [8, 64], strides = [1, 1]} : vector<8x192xf32> to vector<8x64xf32>
    %334 = vector.extract_strided_slice %332 {offsets = [0, 64], sizes = [8, 64], strides = [1, 1]} : vector<8x192xf32> to vector<8x64xf32>
    %335 = vector.extract_strided_slice %332 {offsets = [0, 128], sizes = [8, 64], strides = [1, 1]} : vector<8x192xf32> to vector<8x64xf32>
    %336 = vector.extract_strided_slice %326 {offsets = [0, 192], sizes = [8, 64], strides = [1, 1]} : vector<8x256xf32> to vector<8x64xf32>
    %337 = math.tanh %336 : vector<8x64xf32>
    %338 = arith.mulf %334, %293 : vector<8x64xf32>
    %339 = arith.mulf %333, %337 : vector<8x64xf32>
    %340 = arith.addf %338, %339 : vector<8x64xf32>
    %341 = math.tanh %340 : vector<8x64xf32>
    %342 = arith.mulf %335, %341 : vector<8x64xf32>
    %c7_i32 = arith.constant 7 : i32
    %c0_121 = arith.constant 0 : index
    %c0_122 = arith.constant 0 : index
    %c0_123 = arith.constant 0 : index
    %343 = vector.load %arg1[%c0_121, %c0_122, %c0_123] : memref<8x64x256xf32, #tpu.memory_space<vmem>>, vector<1x64x256xf32>
    %344 = vector.shape_cast %343 : vector<1x64x256xf32> to vector<64x256xf32>
    %cst_124 = arith.constant dense<0.000000e+00> : vector<8x256xf32>
    %345 = tpu.matmul %322, %344, %cst_124 {dimension_numbers = #tpu.dot_dimension_numbers<[1], [0], [0], [1], [0, 0, 1, 1], [], []>} : vector<8x64xf32>, vector<64x256xf32>, vector<8x256xf32> -> vector<8x256xf32>
    %c2_125 = arith.constant 2 : index
    %c0_126 = arith.constant 0 : index
    %c0_127 = arith.constant 0 : index
    %346 = vector.load %arg1[%c2_125, %c0_126, %c0_127] : memref<8x64x256xf32, #tpu.memory_space<vmem>>, vector<1x64x256xf32>
    %347 = vector.shape_cast %346 : vector<1x64x256xf32> to vector<64x256xf32>
    %cst_128 = arith.constant dense<0.000000e+00> : vector<8x256xf32>
    %348 = tpu.matmul %342, %347, %cst_128 {dimension_numbers = #tpu.dot_dimension_numbers<[1], [0], [0], [1], [0, 0, 1, 1], [], []>} : vector<8x64xf32>, vector<64x256xf32>, vector<8x256xf32> -> vector<8x256xf32>
    %349 = arith.addf %348, %8 : vector<8x256xf32>
    %350 = arith.index_cast %c7_i32 : i32 to index
    %c0_129 = arith.constant 0 : index
    %c0_130 = arith.constant 0 : index
    %351 = vector.load %arg5[%350, %c0_129, %c0_130] : memref<8x8x256xf32, #tpu.memory_space<vmem>>, vector<1x8x256xf32>
    %352 = vector.shape_cast %351 : vector<1x8x256xf32> to vector<8x256xf32>
    %353 = arith.addf %352, %345 : vector<8x256xf32>
    %354 = vector.extract_strided_slice %353 {offsets = [0, 0], sizes = [8, 192], strides = [1, 1]} : vector<8x256xf32> to vector<8x192xf32>
    %355 = arith.negf %354 : vector<8x192xf32>
    %356 = math.exp %355 : vector<8x192xf32>
    %cst_131 = arith.constant 1.000000e+00 : f32
    %357 = vector.broadcast %cst_131 : f32 to vector<8x192xf32>
    %358 = arith.addf %357, %356 : vector<8x192xf32>
    %359 = arith.divf %357, %358 : vector<8x192xf32>
    %360 = vector.extract_strided_slice %359 {offsets = [0, 0], sizes = [8, 64], strides = [1, 1]} : vector<8x192xf32> to vector<8x64xf32>
    %361 = vector.extract_strided_slice %359 {offsets = [0, 64], sizes = [8, 64], strides = [1, 1]} : vector<8x192xf32> to vector<8x64xf32>
    %362 = vector.extract_strided_slice %359 {offsets = [0, 128], sizes = [8, 64], strides = [1, 1]} : vector<8x192xf32> to vector<8x64xf32>
    %363 = vector.extract_strided_slice %353 {offsets = [0, 192], sizes = [8, 64], strides = [1, 1]} : vector<8x256xf32> to vector<8x64xf32>
    %364 = math.tanh %363 : vector<8x64xf32>
    %365 = arith.mulf %361, %320 : vector<8x64xf32>
    %366 = arith.mulf %360, %364 : vector<8x64xf32>
    %367 = arith.addf %365, %366 : vector<8x64xf32>
    %368 = math.tanh %367 : vector<8x64xf32>
    %369 = arith.mulf %362, %368 : vector<8x64xf32>
    %c1_132 = arith.constant 1 : index
    %c0_133 = arith.constant 0 : index
    %c0_134 = arith.constant 0 : index
    %370 = vector.load %arg1[%c1_132, %c0_133, %c0_134] : memref<8x64x256xf32, #tpu.memory_space<vmem>>, vector<1x64x256xf32>
    %371 = vector.shape_cast %370 : vector<1x64x256xf32> to vector<64x256xf32>
    %cst_135 = arith.constant dense<0.000000e+00> : vector<8x256xf32>
    %372 = tpu.matmul %369, %371, %cst_135 {dimension_numbers = #tpu.dot_dimension_numbers<[1], [0], [0], [1], [0, 0, 1, 1], [], []>} : vector<8x64xf32>, vector<64x256xf32>, vector<8x256xf32> -> vector<8x256xf32>
    %373 = arith.addf %372, %349 : vector<8x256xf32>
    %374 = vector.extract_strided_slice %373 {offsets = [0, 0], sizes = [8, 192], strides = [1, 1]} : vector<8x256xf32> to vector<8x192xf32>
    %375 = arith.negf %374 : vector<8x192xf32>
    %376 = math.exp %375 : vector<8x192xf32>
    %cst_136 = arith.constant 1.000000e+00 : f32
    %377 = vector.broadcast %cst_136 : f32 to vector<8x192xf32>
    %378 = arith.addf %377, %376 : vector<8x192xf32>
    %379 = arith.divf %377, %378 : vector<8x192xf32>
    %380 = vector.extract_strided_slice %379 {offsets = [0, 0], sizes = [8, 64], strides = [1, 1]} : vector<8x192xf32> to vector<8x64xf32>
    %381 = vector.extract_strided_slice %379 {offsets = [0, 64], sizes = [8, 64], strides = [1, 1]} : vector<8x192xf32> to vector<8x64xf32>
    %382 = vector.extract_strided_slice %379 {offsets = [0, 128], sizes = [8, 64], strides = [1, 1]} : vector<8x192xf32> to vector<8x64xf32>
    %383 = vector.extract_strided_slice %373 {offsets = [0, 192], sizes = [8, 64], strides = [1, 1]} : vector<8x256xf32> to vector<8x64xf32>
    %384 = math.tanh %383 : vector<8x64xf32>
    %385 = arith.mulf %381, %340 : vector<8x64xf32>
    %386 = arith.mulf %380, %384 : vector<8x64xf32>
    %387 = arith.addf %385, %386 : vector<8x64xf32>
    %388 = math.tanh %387 : vector<8x64xf32>
    %389 = arith.mulf %382, %388 : vector<8x64xf32>
    %c8_i32 = arith.constant 8 : i32
    %c0_137 = arith.constant 0 : index
    %c0_138 = arith.constant 0 : index
    %390 = vector.load %arg4[%c0_137, %c0_138] : memref<8x64xf32, #tpu.memory_space<vmem>>, vector<8x64xf32>
    tpu.vector_store %arg4[%c0_137, %c0_138], %389 {strides = array<i32>} : memref<8x64xf32, #tpu.memory_space<vmem>>, vector<8x64xf32>,
    %c3 = arith.constant 3 : index
    %c0_139 = arith.constant 0 : index
    %c0_140 = arith.constant 0 : index
    %391 = vector.load %arg1[%c3, %c0_139, %c0_140] : memref<8x64x256xf32, #tpu.memory_space<vmem>>, vector<1x64x256xf32>
    %392 = vector.shape_cast %391 : vector<1x64x256xf32> to vector<64x256xf32>
    %cst_141 = arith.constant dense<0.000000e+00> : vector<8x256xf32>
    %393 = tpu.matmul %389, %392, %cst_141 {dimension_numbers = #tpu.dot_dimension_numbers<[1], [0], [0], [1], [0, 0, 1, 1], [], []>} : vector<8x64xf32>, vector<64x256xf32>, vector<8x256xf32> -> vector<8x256xf32>
    %394 = vector.broadcast %9 : vector<1x256xf32> to vector<8x256xf32>
    %395 = arith.addf %393, %394 : vector<8x256xf32>
    %c0_i32_142 = arith.constant 0 : i32
    %c4_143 = arith.constant 4 : index
    %c0_144 = arith.constant 0 : index
    %c0_145 = arith.constant 0 : index
    %396 = vector.load %arg1[%c4_143, %c0_144, %c0_145] : memref<8x64x256xf32, #tpu.memory_space<vmem>>, vector<1x64x256xf32>
    %397 = vector.shape_cast %396 : vector<1x64x256xf32> to vector<64x256xf32>
    %cst_146 = arith.constant dense<0.000000e+00> : vector<8x256xf32>
    %398 = tpu.matmul %0, %397, %cst_146 {dimension_numbers = #tpu.dot_dimension_numbers<[1], [0], [0], [1], [0, 0, 1, 1], [], []>} : vector<8x64xf32>, vector<64x256xf32>, vector<8x256xf32> -> vector<8x256xf32>
    %c6_147 = arith.constant 6 : index
    %c0_148 = arith.constant 0 : index
    %c0_149 = arith.constant 0 : index
    %399 = vector.load %arg1[%c6_147, %c0_148, %c0_149] : memref<8x64x256xf32, #tpu.memory_space<vmem>>, vector<1x64x256xf32>
    %400 = vector.shape_cast %399 : vector<1x64x256xf32> to vector<64x256xf32>
    %cst_150 = arith.constant dense<0.000000e+00> : vector<8x256xf32>
    %401 = tpu.matmul %0, %400, %cst_150 {dimension_numbers = #tpu.dot_dimension_numbers<[1], [0], [0], [1], [0, 0, 1, 1], [], []>} : vector<8x64xf32>, vector<64x256xf32>, vector<8x256xf32> -> vector<8x256xf32>
    %402 = arith.addf %401, %12 : vector<8x256xf32>
    %403 = arith.addf %395, %398 : vector<8x256xf32>
    %404 = vector.extract_strided_slice %403 {offsets = [0, 0], sizes = [8, 192], strides = [1, 1]} : vector<8x256xf32> to vector<8x192xf32>
    %405 = arith.negf %404 : vector<8x192xf32>
    %406 = math.exp %405 : vector<8x192xf32>
    %cst_151 = arith.constant 1.000000e+00 : f32
    %407 = vector.broadcast %cst_151 : f32 to vector<8x192xf32>
    %408 = arith.addf %407, %406 : vector<8x192xf32>
    %409 = arith.divf %407, %408 : vector<8x192xf32>
    %410 = vector.extract_strided_slice %409 {offsets = [0, 0], sizes = [8, 64], strides = [1, 1]} : vector<8x192xf32> to vector<8x64xf32>
    %411 = vector.extract_strided_slice %409 {offsets = [0, 64], sizes = [8, 64], strides = [1, 1]} : vector<8x192xf32> to vector<8x64xf32>
    %412 = vector.extract_strided_slice %409 {offsets = [0, 128], sizes = [8, 64], strides = [1, 1]} : vector<8x192xf32> to vector<8x64xf32>
    %413 = vector.extract_strided_slice %403 {offsets = [0, 192], sizes = [8, 64], strides = [1, 1]} : vector<8x256xf32> to vector<8x64xf32>
    %414 = math.tanh %413 : vector<8x64xf32>
    %415 = arith.mulf %411, %0 : vector<8x64xf32>
    %416 = arith.mulf %410, %414 : vector<8x64xf32>
    %417 = arith.addf %415, %416 : vector<8x64xf32>
    %418 = math.tanh %417 : vector<8x64xf32>
    %419 = arith.mulf %412, %418 : vector<8x64xf32>
    %c5_152 = arith.constant 5 : index
    %c0_153 = arith.constant 0 : index
    %c0_154 = arith.constant 0 : index
    %420 = vector.load %arg1[%c5_152, %c0_153, %c0_154] : memref<8x64x256xf32, #tpu.memory_space<vmem>>, vector<1x64x256xf32>
    %421 = vector.shape_cast %420 : vector<1x64x256xf32> to vector<64x256xf32>
    %cst_155 = arith.constant dense<0.000000e+00> : vector<8x256xf32>
    %422 = tpu.matmul %419, %421, %cst_155 {dimension_numbers = #tpu.dot_dimension_numbers<[1], [0], [0], [1], [0, 0, 1, 1], [], []>} : vector<8x64xf32>, vector<64x256xf32>, vector<8x256xf32> -> vector<8x256xf32>
    %423 = arith.addf %422, %402 : vector<8x256xf32>
    %424 = vector.extract_strided_slice %423 {offsets = [0, 0], sizes = [8, 192], strides = [1, 1]} : vector<8x256xf32> to vector<8x192xf32>
    %425 = arith.negf %424 : vector<8x192xf32>
    %426 = math.exp %425 : vector<8x192xf32>
    %cst_156 = arith.constant 1.000000e+00 : f32
    %427 = vector.broadcast %cst_156 : f32 to vector<8x192xf32>
    %428 = arith.addf %427, %426 : vector<8x192xf32>
    %429 = arith.divf %427, %428 : vector<8x192xf32>
    %430 = vector.extract_strided_slice %429 {offsets = [0, 0], sizes = [8, 64], strides = [1, 1]} : vector<8x192xf32> to vector<8x64xf32>
    %431 = vector.extract_strided_slice %429 {offsets = [0, 64], sizes = [8, 64], strides = [1, 1]} : vector<8x192xf32> to vector<8x64xf32>
    %432 = vector.extract_strided_slice %429 {offsets = [0, 128], sizes = [8, 64], strides = [1, 1]} : vector<8x192xf32> to vector<8x64xf32>
    %433 = vector.extract_strided_slice %423 {offsets = [0, 192], sizes = [8, 64], strides = [1, 1]} : vector<8x256xf32> to vector<8x64xf32>
    %434 = math.tanh %433 : vector<8x64xf32>
    %435 = arith.mulf %431, %0 : vector<8x64xf32>
    %436 = arith.mulf %430, %434 : vector<8x64xf32>
    %437 = arith.addf %435, %436 : vector<8x64xf32>
    %438 = math.tanh %437 : vector<8x64xf32>
    %439 = arith.mulf %432, %438 : vector<8x64xf32>
    %440 = arith.index_cast %c0_i32_142 : i32 to index
    %c0_157 = arith.constant 0 : index
    %c0_158 = arith.constant 0 : index
    %441 = vector.load %arg6[%440, %c0_157, %c0_158] : memref<8x8x64xf32, #tpu.memory_space<vmem>>, vector<1x8x64xf32>
    %442 = vector.shape_cast %441 : vector<1x8x64xf32> to vector<8x64xf32>
    %443 = vector.shape_cast %439 : vector<8x64xf32> to vector<1x8x64xf32>
    tpu.vector_store %arg6[%440, %c0_157, %c0_158], %443 {strides = array<i32>} : memref<8x8x64xf32, #tpu.memory_space<vmem>>, vector<1x8x64xf32>,
    %c1_i32_159 = arith.constant 1 : i32
    %c4_160 = arith.constant 4 : index
    %c0_161 = arith.constant 0 : index
    %c0_162 = arith.constant 0 : index
    %444 = vector.load %arg1[%c4_160, %c0_161, %c0_162] : memref<8x64x256xf32, #tpu.memory_space<vmem>>, vector<1x64x256xf32>
    %445 = vector.shape_cast %444 : vector<1x64x256xf32> to vector<64x256xf32>
    %cst_163 = arith.constant dense<0.000000e+00> : vector<8x256xf32>
    %446 = tpu.matmul %419, %445, %cst_163 {dimension_numbers = #tpu.dot_dimension_numbers<[1], [0], [0], [1], [0, 0, 1, 1], [], []>} : vector<8x64xf32>, vector<64x256xf32>, vector<8x256xf32> -> vector<8x256xf32>
    %c6_164 = arith.constant 6 : index
    %c0_165 = arith.constant 0 : index
    %c0_166 = arith.constant 0 : index
    %447 = vector.load %arg1[%c6_164, %c0_165, %c0_166] : memref<8x64x256xf32, #tpu.memory_space<vmem>>, vector<1x64x256xf32>
    %448 = vector.shape_cast %447 : vector<1x64x256xf32> to vector<64x256xf32>
    %cst_167 = arith.constant dense<0.000000e+00> : vector<8x256xf32>
    %449 = tpu.matmul %439, %448, %cst_167 {dimension_numbers = #tpu.dot_dimension_numbers<[1], [0], [0], [1], [0, 0, 1, 1], [], []>} : vector<8x64xf32>, vector<64x256xf32>, vector<8x256xf32> -> vector<8x256xf32>
    %450 = arith.addf %449, %12 : vector<8x256xf32>
    %451 = arith.addf %395, %446 : vector<8x256xf32>
    %452 = vector.extract_strided_slice %451 {offsets = [0, 0], sizes = [8, 192], strides = [1, 1]} : vector<8x256xf32> to vector<8x192xf32>
    %453 = arith.negf %452 : vector<8x192xf32>
    %454 = math.exp %453 : vector<8x192xf32>
    %cst_168 = arith.constant 1.000000e+00 : f32
    %455 = vector.broadcast %cst_168 : f32 to vector<8x192xf32>
    %456 = arith.addf %455, %454 : vector<8x192xf32>
    %457 = arith.divf %455, %456 : vector<8x192xf32>
    %458 = vector.extract_strided_slice %457 {offsets = [0, 0], sizes = [8, 64], strides = [1, 1]} : vector<8x192xf32> to vector<8x64xf32>
    %459 = vector.extract_strided_slice %457 {offsets = [0, 64], sizes = [8, 64], strides = [1, 1]} : vector<8x192xf32> to vector<8x64xf32>
    %460 = vector.extract_strided_slice %457 {offsets = [0, 128], sizes = [8, 64], strides = [1, 1]} : vector<8x192xf32> to vector<8x64xf32>
    %461 = vector.extract_strided_slice %451 {offsets = [0, 192], sizes = [8, 64], strides = [1, 1]} : vector<8x256xf32> to vector<8x64xf32>
    %462 = math.tanh %461 : vector<8x64xf32>
    %463 = arith.mulf %459, %417 : vector<8x64xf32>
    %464 = arith.mulf %458, %462 : vector<8x64xf32>
    %465 = arith.addf %463, %464 : vector<8x64xf32>
    %466 = math.tanh %465 : vector<8x64xf32>
    %467 = arith.mulf %460, %466 : vector<8x64xf32>
    %c5_169 = arith.constant 5 : index
    %c0_170 = arith.constant 0 : index
    %c0_171 = arith.constant 0 : index
    %468 = vector.load %arg1[%c5_169, %c0_170, %c0_171] : memref<8x64x256xf32, #tpu.memory_space<vmem>>, vector<1x64x256xf32>
    %469 = vector.shape_cast %468 : vector<1x64x256xf32> to vector<64x256xf32>
    %cst_172 = arith.constant dense<0.000000e+00> : vector<8x256xf32>
    %470 = tpu.matmul %467, %469, %cst_172 {dimension_numbers = #tpu.dot_dimension_numbers<[1], [0], [0], [1], [0, 0, 1, 1], [], []>} : vector<8x64xf32>, vector<64x256xf32>, vector<8x256xf32> -> vector<8x256xf32>
    %471 = arith.addf %470, %450 : vector<8x256xf32>
    %472 = vector.extract_strided_slice %471 {offsets = [0, 0], sizes = [8, 192], strides = [1, 1]} : vector<8x256xf32> to vector<8x192xf32>
    %473 = arith.negf %472 : vector<8x192xf32>
    %474 = math.exp %473 : vector<8x192xf32>
    %cst_173 = arith.constant 1.000000e+00 : f32
    %475 = vector.broadcast %cst_173 : f32 to vector<8x192xf32>
    %476 = arith.addf %475, %474 : vector<8x192xf32>
    %477 = arith.divf %475, %476 : vector<8x192xf32>
    %478 = vector.extract_strided_slice %477 {offsets = [0, 0], sizes = [8, 64], strides = [1, 1]} : vector<8x192xf32> to vector<8x64xf32>
    %479 = vector.extract_strided_slice %477 {offsets = [0, 64], sizes = [8, 64], strides = [1, 1]} : vector<8x192xf32> to vector<8x64xf32>
    %480 = vector.extract_strided_slice %477 {offsets = [0, 128], sizes = [8, 64], strides = [1, 1]} : vector<8x192xf32> to vector<8x64xf32>
    %481 = vector.extract_strided_slice %471 {offsets = [0, 192], sizes = [8, 64], strides = [1, 1]} : vector<8x256xf32> to vector<8x64xf32>
    %482 = math.tanh %481 : vector<8x64xf32>
    %483 = arith.mulf %479, %437 : vector<8x64xf32>
    %484 = arith.mulf %478, %482 : vector<8x64xf32>
    %485 = arith.addf %483, %484 : vector<8x64xf32>
    %486 = math.tanh %485 : vector<8x64xf32>
    %487 = arith.mulf %480, %486 : vector<8x64xf32>
    %488 = arith.index_cast %c1_i32_159 : i32 to index
    %c0_174 = arith.constant 0 : index
    %c0_175 = arith.constant 0 : index
    %489 = vector.load %arg6[%488, %c0_174, %c0_175] : memref<8x8x64xf32, #tpu.memory_space<vmem>>, vector<1x8x64xf32>
    %490 = vector.shape_cast %489 : vector<1x8x64xf32> to vector<8x64xf32>
    %491 = vector.shape_cast %487 : vector<8x64xf32> to vector<1x8x64xf32>
    tpu.vector_store %arg6[%488, %c0_174, %c0_175], %491 {strides = array<i32>} : memref<8x8x64xf32, #tpu.memory_space<vmem>>, vector<1x8x64xf32>,
    %c2_i32_176 = arith.constant 2 : i32
    %c4_177 = arith.constant 4 : index
    %c0_178 = arith.constant 0 : index
    %c0_179 = arith.constant 0 : index
    %492 = vector.load %arg1[%c4_177, %c0_178, %c0_179] : memref<8x64x256xf32, #tpu.memory_space<vmem>>, vector<1x64x256xf32>
    %493 = vector.shape_cast %492 : vector<1x64x256xf32> to vector<64x256xf32>
    %cst_180 = arith.constant dense<0.000000e+00> : vector<8x256xf32>
    %494 = tpu.matmul %467, %493, %cst_180 {dimension_numbers = #tpu.dot_dimension_numbers<[1], [0], [0], [1], [0, 0, 1, 1], [], []>} : vector<8x64xf32>, vector<64x256xf32>, vector<8x256xf32> -> vector<8x256xf32>
    %c6_181 = arith.constant 6 : index
    %c0_182 = arith.constant 0 : index
    %c0_183 = arith.constant 0 : index
    %495 = vector.load %arg1[%c6_181, %c0_182, %c0_183] : memref<8x64x256xf32, #tpu.memory_space<vmem>>, vector<1x64x256xf32>
    %496 = vector.shape_cast %495 : vector<1x64x256xf32> to vector<64x256xf32>
    %cst_184 = arith.constant dense<0.000000e+00> : vector<8x256xf32>
    %497 = tpu.matmul %487, %496, %cst_184 {dimension_numbers = #tpu.dot_dimension_numbers<[1], [0], [0], [1], [0, 0, 1, 1], [], []>} : vector<8x64xf32>, vector<64x256xf32>, vector<8x256xf32> -> vector<8x256xf32>
    %498 = arith.addf %497, %12 : vector<8x256xf32>
    %499 = arith.addf %395, %494 : vector<8x256xf32>
    %500 = vector.extract_strided_slice %499 {offsets = [0, 0], sizes = [8, 192], strides = [1, 1]} : vector<8x256xf32> to vector<8x192xf32>
    %501 = arith.negf %500 : vector<8x192xf32>
    %502 = math.exp %501 : vector<8x192xf32>
    %cst_185 = arith.constant 1.000000e+00 : f32
    %503 = vector.broadcast %cst_185 : f32 to vector<8x192xf32>
    %504 = arith.addf %503, %502 : vector<8x192xf32>
    %505 = arith.divf %503, %504 : vector<8x192xf32>
    %506 = vector.extract_strided_slice %505 {offsets = [0, 0], sizes = [8, 64], strides = [1, 1]} : vector<8x192xf32> to vector<8x64xf32>
    %507 = vector.extract_strided_slice %505 {offsets = [0, 64], sizes = [8, 64], strides = [1, 1]} : vector<8x192xf32> to vector<8x64xf32>
    %508 = vector.extract_strided_slice %505 {offsets = [0, 128], sizes = [8, 64], strides = [1, 1]} : vector<8x192xf32> to vector<8x64xf32>
    %509 = vector.extract_strided_slice %499 {offsets = [0, 192], sizes = [8, 64], strides = [1, 1]} : vector<8x256xf32> to vector<8x64xf32>
    %510 = math.tanh %509 : vector<8x64xf32>
    %511 = arith.mulf %507, %465 : vector<8x64xf32>
    %512 = arith.mulf %506, %510 : vector<8x64xf32>
    %513 = arith.addf %511, %512 : vector<8x64xf32>
    %514 = math.tanh %513 : vector<8x64xf32>
    %515 = arith.mulf %508, %514 : vector<8x64xf32>
    %c5_186 = arith.constant 5 : index
    %c0_187 = arith.constant 0 : index
    %c0_188 = arith.constant 0 : index
    %516 = vector.load %arg1[%c5_186, %c0_187, %c0_188] : memref<8x64x256xf32, #tpu.memory_space<vmem>>, vector<1x64x256xf32>
    %517 = vector.shape_cast %516 : vector<1x64x256xf32> to vector<64x256xf32>
    %cst_189 = arith.constant dense<0.000000e+00> : vector<8x256xf32>
    %518 = tpu.matmul %515, %517, %cst_189 {dimension_numbers = #tpu.dot_dimension_numbers<[1], [0], [0], [1], [0, 0, 1, 1], [], []>} : vector<8x64xf32>, vector<64x256xf32>, vector<8x256xf32> -> vector<8x256xf32>
    %519 = arith.addf %518, %498 : vector<8x256xf32>
    %520 = vector.extract_strided_slice %519 {offsets = [0, 0], sizes = [8, 192], strides = [1, 1]} : vector<8x256xf32> to vector<8x192xf32>
    %521 = arith.negf %520 : vector<8x192xf32>
    %522 = math.exp %521 : vector<8x192xf32>
    %cst_190 = arith.constant 1.000000e+00 : f32
    %523 = vector.broadcast %cst_190 : f32 to vector<8x192xf32>
    %524 = arith.addf %523, %522 : vector<8x192xf32>
    %525 = arith.divf %523, %524 : vector<8x192xf32>
    %526 = vector.extract_strided_slice %525 {offsets = [0, 0], sizes = [8, 64], strides = [1, 1]} : vector<8x192xf32> to vector<8x64xf32>
    %527 = vector.extract_strided_slice %525 {offsets = [0, 64], sizes = [8, 64], strides = [1, 1]} : vector<8x192xf32> to vector<8x64xf32>
    %528 = vector.extract_strided_slice %525 {offsets = [0, 128], sizes = [8, 64], strides = [1, 1]} : vector<8x192xf32> to vector<8x64xf32>
    %529 = vector.extract_strided_slice %519 {offsets = [0, 192], sizes = [8, 64], strides = [1, 1]} : vector<8x256xf32> to vector<8x64xf32>
    %530 = math.tanh %529 : vector<8x64xf32>
    %531 = arith.mulf %527, %485 : vector<8x64xf32>
    %532 = arith.mulf %526, %530 : vector<8x64xf32>
    %533 = arith.addf %531, %532 : vector<8x64xf32>
    %534 = math.tanh %533 : vector<8x64xf32>
    %535 = arith.mulf %528, %534 : vector<8x64xf32>
    %536 = arith.index_cast %c2_i32_176 : i32 to index
    %c0_191 = arith.constant 0 : index
    %c0_192 = arith.constant 0 : index
    %537 = vector.load %arg6[%536, %c0_191, %c0_192] : memref<8x8x64xf32, #tpu.memory_space<vmem>>, vector<1x8x64xf32>
    %538 = vector.shape_cast %537 : vector<1x8x64xf32> to vector<8x64xf32>
    %539 = vector.shape_cast %535 : vector<8x64xf32> to vector<1x8x64xf32>
    tpu.vector_store %arg6[%536, %c0_191, %c0_192], %539 {strides = array<i32>} : memref<8x8x64xf32, #tpu.memory_space<vmem>>, vector<1x8x64xf32>,
    %c3_i32_193 = arith.constant 3 : i32
    %c4_194 = arith.constant 4 : index
    %c0_195 = arith.constant 0 : index
    %c0_196 = arith.constant 0 : index
    %540 = vector.load %arg1[%c4_194, %c0_195, %c0_196] : memref<8x64x256xf32, #tpu.memory_space<vmem>>, vector<1x64x256xf32>
    %541 = vector.shape_cast %540 : vector<1x64x256xf32> to vector<64x256xf32>
    %cst_197 = arith.constant dense<0.000000e+00> : vector<8x256xf32>
    %542 = tpu.matmul %515, %541, %cst_197 {dimension_numbers = #tpu.dot_dimension_numbers<[1], [0], [0], [1], [0, 0, 1, 1], [], []>} : vector<8x64xf32>, vector<64x256xf32>, vector<8x256xf32> -> vector<8x256xf32>
    %c6_198 = arith.constant 6 : index
    %c0_199 = arith.constant 0 : index
    %c0_200 = arith.constant 0 : index
    %543 = vector.load %arg1[%c6_198, %c0_199, %c0_200] : memref<8x64x256xf32, #tpu.memory_space<vmem>>, vector<1x64x256xf32>
    %544 = vector.shape_cast %543 : vector<1x64x256xf32> to vector<64x256xf32>
    %cst_201 = arith.constant dense<0.000000e+00> : vector<8x256xf32>
    %545 = tpu.matmul %535, %544, %cst_201 {dimension_numbers = #tpu.dot_dimension_numbers<[1], [0], [0], [1], [0, 0, 1, 1], [], []>} : vector<8x64xf32>, vector<64x256xf32>, vector<8x256xf32> -> vector<8x256xf32>
    %546 = arith.addf %545, %12 : vector<8x256xf32>
    %547 = arith.addf %395, %542 : vector<8x256xf32>
    %548 = vector.extract_strided_slice %547 {offsets = [0, 0], sizes = [8, 192], strides = [1, 1]} : vector<8x256xf32> to vector<8x192xf32>
    %549 = arith.negf %548 : vector<8x192xf32>
    %550 = math.exp %549 : vector<8x192xf32>
    %cst_202 = arith.constant 1.000000e+00 : f32
    %551 = vector.broadcast %cst_202 : f32 to vector<8x192xf32>
    %552 = arith.addf %551, %550 : vector<8x192xf32>
    %553 = arith.divf %551, %552 : vector<8x192xf32>
    %554 = vector.extract_strided_slice %553 {offsets = [0, 0], sizes = [8, 64], strides = [1, 1]} : vector<8x192xf32> to vector<8x64xf32>
    %555 = vector.extract_strided_slice %553 {offsets = [0, 64], sizes = [8, 64], strides = [1, 1]} : vector<8x192xf32> to vector<8x64xf32>
    %556 = vector.extract_strided_slice %553 {offsets = [0, 128], sizes = [8, 64], strides = [1, 1]} : vector<8x192xf32> to vector<8x64xf32>
    %557 = vector.extract_strided_slice %547 {offsets = [0, 192], sizes = [8, 64], strides = [1, 1]} : vector<8x256xf32> to vector<8x64xf32>
    %558 = math.tanh %557 : vector<8x64xf32>
    %559 = arith.mulf %555, %513 : vector<8x64xf32>
    %560 = arith.mulf %554, %558 : vector<8x64xf32>
    %561 = arith.addf %559, %560 : vector<8x64xf32>
    %562 = math.tanh %561 : vector<8x64xf32>
    %563 = arith.mulf %556, %562 : vector<8x64xf32>
    %c5_203 = arith.constant 5 : index
    %c0_204 = arith.constant 0 : index
    %c0_205 = arith.constant 0 : index
    %564 = vector.load %arg1[%c5_203, %c0_204, %c0_205] : memref<8x64x256xf32, #tpu.memory_space<vmem>>, vector<1x64x256xf32>
    %565 = vector.shape_cast %564 : vector<1x64x256xf32> to vector<64x256xf32>
    %cst_206 = arith.constant dense<0.000000e+00> : vector<8x256xf32>
    %566 = tpu.matmul %563, %565, %cst_206 {dimension_numbers = #tpu.dot_dimension_numbers<[1], [0], [0], [1], [0, 0, 1, 1], [], []>} : vector<8x64xf32>, vector<64x256xf32>, vector<8x256xf32> -> vector<8x256xf32>
    %567 = arith.addf %566, %546 : vector<8x256xf32>
    %568 = vector.extract_strided_slice %567 {offsets = [0, 0], sizes = [8, 192], strides = [1, 1]} : vector<8x256xf32> to vector<8x192xf32>
    %569 = arith.negf %568 : vector<8x192xf32>
    %570 = math.exp %569 : vector<8x192xf32>
    %cst_207 = arith.constant 1.000000e+00 : f32
    %571 = vector.broadcast %cst_207 : f32 to vector<8x192xf32>
    %572 = arith.addf %571, %570 : vector<8x192xf32>
    %573 = arith.divf %571, %572 : vector<8x192xf32>
    %574 = vector.extract_strided_slice %573 {offsets = [0, 0], sizes = [8, 64], strides = [1, 1]} : vector<8x192xf32> to vector<8x64xf32>
    %575 = vector.extract_strided_slice %573 {offsets = [0, 64], sizes = [8, 64], strides = [1, 1]} : vector<8x192xf32> to vector<8x64xf32>
    %576 = vector.extract_strided_slice %573 {offsets = [0, 128], sizes = [8, 64], strides = [1, 1]} : vector<8x192xf32> to vector<8x64xf32>
    %577 = vector.extract_strided_slice %567 {offsets = [0, 192], sizes = [8, 64], strides = [1, 1]} : vector<8x256xf32> to vector<8x64xf32>
    %578 = math.tanh %577 : vector<8x64xf32>
    %579 = arith.mulf %575, %533 : vector<8x64xf32>
    %580 = arith.mulf %574, %578 : vector<8x64xf32>
    %581 = arith.addf %579, %580 : vector<8x64xf32>
    %582 = math.tanh %581 : vector<8x64xf32>
    %583 = arith.mulf %576, %582 : vector<8x64xf32>
    %584 = arith.index_cast %c3_i32_193 : i32 to index
    %c0_208 = arith.constant 0 : index
    %c0_209 = arith.constant 0 : index
    %585 = vector.load %arg6[%584, %c0_208, %c0_209] : memref<8x8x64xf32, #tpu.memory_space<vmem>>, vector<1x8x64xf32>
    %586 = vector.shape_cast %585 : vector<1x8x64xf32> to vector<8x64xf32>
    %587 = vector.shape_cast %583 : vector<8x64xf32> to vector<1x8x64xf32>
    tpu.vector_store %arg6[%584, %c0_208, %c0_209], %587 {strides = array<i32>} : memref<8x8x64xf32, #tpu.memory_space<vmem>>, vector<1x8x64xf32>,
    %c4_i32_210 = arith.constant 4 : i32
    %c4_211 = arith.constant 4 : index
    %c0_212 = arith.constant 0 : index
    %c0_213 = arith.constant 0 : index
    %588 = vector.load %arg1[%c4_211, %c0_212, %c0_213] : memref<8x64x256xf32, #tpu.memory_space<vmem>>, vector<1x64x256xf32>
    %589 = vector.shape_cast %588 : vector<1x64x256xf32> to vector<64x256xf32>
    %cst_214 = arith.constant dense<0.000000e+00> : vector<8x256xf32>
    %590 = tpu.matmul %563, %589, %cst_214 {dimension_numbers = #tpu.dot_dimension_numbers<[1], [0], [0], [1], [0, 0, 1, 1], [], []>} : vector<8x64xf32>, vector<64x256xf32>, vector<8x256xf32> -> vector<8x256xf32>
    %c6_215 = arith.constant 6 : index
    %c0_216 = arith.constant 0 : index
    %c0_217 = arith.constant 0 : index
    %591 = vector.load %arg1[%c6_215, %c0_216, %c0_217] : memref<8x64x256xf32, #tpu.memory_space<vmem>>, vector<1x64x256xf32>
    %592 = vector.shape_cast %591 : vector<1x64x256xf32> to vector<64x256xf32>
    %cst_218 = arith.constant dense<0.000000e+00> : vector<8x256xf32>
    %593 = tpu.matmul %583, %592, %cst_218 {dimension_numbers = #tpu.dot_dimension_numbers<[1], [0], [0], [1], [0, 0, 1, 1], [], []>} : vector<8x64xf32>, vector<64x256xf32>, vector<8x256xf32> -> vector<8x256xf32>
    %594 = arith.addf %593, %12 : vector<8x256xf32>
    %595 = arith.addf %395, %590 : vector<8x256xf32>
    %596 = vector.extract_strided_slice %595 {offsets = [0, 0], sizes = [8, 192], strides = [1, 1]} : vector<8x256xf32> to vector<8x192xf32>
    %597 = arith.negf %596 : vector<8x192xf32>
    %598 = math.exp %597 : vector<8x192xf32>
    %cst_219 = arith.constant 1.000000e+00 : f32
    %599 = vector.broadcast %cst_219 : f32 to vector<8x192xf32>
    %600 = arith.addf %599, %598 : vector<8x192xf32>
    %601 = arith.divf %599, %600 : vector<8x192xf32>
    %602 = vector.extract_strided_slice %601 {offsets = [0, 0], sizes = [8, 64], strides = [1, 1]} : vector<8x192xf32> to vector<8x64xf32>
    %603 = vector.extract_strided_slice %601 {offsets = [0, 64], sizes = [8, 64], strides = [1, 1]} : vector<8x192xf32> to vector<8x64xf32>
    %604 = vector.extract_strided_slice %601 {offsets = [0, 128], sizes = [8, 64], strides = [1, 1]} : vector<8x192xf32> to vector<8x64xf32>
    %605 = vector.extract_strided_slice %595 {offsets = [0, 192], sizes = [8, 64], strides = [1, 1]} : vector<8x256xf32> to vector<8x64xf32>
    %606 = math.tanh %605 : vector<8x64xf32>
    %607 = arith.mulf %603, %561 : vector<8x64xf32>
    %608 = arith.mulf %602, %606 : vector<8x64xf32>
    %609 = arith.addf %607, %608 : vector<8x64xf32>
    %610 = math.tanh %609 : vector<8x64xf32>
    %611 = arith.mulf %604, %610 : vector<8x64xf32>
    %c5_220 = arith.constant 5 : index
    %c0_221 = arith.constant 0 : index
    %c0_222 = arith.constant 0 : index
    %612 = vector.load %arg1[%c5_220, %c0_221, %c0_222] : memref<8x64x256xf32, #tpu.memory_space<vmem>>, vector<1x64x256xf32>
    %613 = vector.shape_cast %612 : vector<1x64x256xf32> to vector<64x256xf32>
    %cst_223 = arith.constant dense<0.000000e+00> : vector<8x256xf32>
    %614 = tpu.matmul %611, %613, %cst_223 {dimension_numbers = #tpu.dot_dimension_numbers<[1], [0], [0], [1], [0, 0, 1, 1], [], []>} : vector<8x64xf32>, vector<64x256xf32>, vector<8x256xf32> -> vector<8x256xf32>
    %615 = arith.addf %614, %594 : vector<8x256xf32>
    %616 = vector.extract_strided_slice %615 {offsets = [0, 0], sizes = [8, 192], strides = [1, 1]} : vector<8x256xf32> to vector<8x192xf32>
    %617 = arith.negf %616 : vector<8x192xf32>
    %618 = math.exp %617 : vector<8x192xf32>
    %cst_224 = arith.constant 1.000000e+00 : f32
    %619 = vector.broadcast %cst_224 : f32 to vector<8x192xf32>
    %620 = arith.addf %619, %618 : vector<8x192xf32>
    %621 = arith.divf %619, %620 : vector<8x192xf32>
    %622 = vector.extract_strided_slice %621 {offsets = [0, 0], sizes = [8, 64], strides = [1, 1]} : vector<8x192xf32> to vector<8x64xf32>
    %623 = vector.extract_strided_slice %621 {offsets = [0, 64], sizes = [8, 64], strides = [1, 1]} : vector<8x192xf32> to vector<8x64xf32>
    %624 = vector.extract_strided_slice %621 {offsets = [0, 128], sizes = [8, 64], strides = [1, 1]} : vector<8x192xf32> to vector<8x64xf32>
    %625 = vector.extract_strided_slice %615 {offsets = [0, 192], sizes = [8, 64], strides = [1, 1]} : vector<8x256xf32> to vector<8x64xf32>
    %626 = math.tanh %625 : vector<8x64xf32>
    %627 = arith.mulf %623, %581 : vector<8x64xf32>
    %628 = arith.mulf %622, %626 : vector<8x64xf32>
    %629 = arith.addf %627, %628 : vector<8x64xf32>
    %630 = math.tanh %629 : vector<8x64xf32>
    %631 = arith.mulf %624, %630 : vector<8x64xf32>
    %632 = arith.index_cast %c4_i32_210 : i32 to index
    %c0_225 = arith.constant 0 : index
    %c0_226 = arith.constant 0 : index
    %633 = vector.load %arg6[%632, %c0_225, %c0_226] : memref<8x8x64xf32, #tpu.memory_space<vmem>>, vector<1x8x64xf32>
    %634 = vector.shape_cast %633 : vector<1x8x64xf32> to vector<8x64xf32>
    %635 = vector.shape_cast %631 : vector<8x64xf32> to vector<1x8x64xf32>
    tpu.vector_store %arg6[%632, %c0_225, %c0_226], %635 {strides = array<i32>} : memref<8x8x64xf32, #tpu.memory_space<vmem>>, vector<1x8x64xf32>,
    %c5_i32_227 = arith.constant 5 : i32
    %c4_228 = arith.constant 4 : index
    %c0_229 = arith.constant 0 : index
    %c0_230 = arith.constant 0 : index
    %636 = vector.load %arg1[%c4_228, %c0_229, %c0_230] : memref<8x64x256xf32, #tpu.memory_space<vmem>>, vector<1x64x256xf32>
    %637 = vector.shape_cast %636 : vector<1x64x256xf32> to vector<64x256xf32>
    %cst_231 = arith.constant dense<0.000000e+00> : vector<8x256xf32>
    %638 = tpu.matmul %611, %637, %cst_231 {dimension_numbers = #tpu.dot_dimension_numbers<[1], [0], [0], [1], [0, 0, 1, 1], [], []>} : vector<8x64xf32>, vector<64x256xf32>, vector<8x256xf32> -> vector<8x256xf32>
    %c6_232 = arith.constant 6 : index
    %c0_233 = arith.constant 0 : index
    %c0_234 = arith.constant 0 : index
    %639 = vector.load %arg1[%c6_232, %c0_233, %c0_234] : memref<8x64x256xf32, #tpu.memory_space<vmem>>, vector<1x64x256xf32>
    %640 = vector.shape_cast %639 : vector<1x64x256xf32> to vector<64x256xf32>
    %cst_235 = arith.constant dense<0.000000e+00> : vector<8x256xf32>
    %641 = tpu.matmul %631, %640, %cst_235 {dimension_numbers = #tpu.dot_dimension_numbers<[1], [0], [0], [1], [0, 0, 1, 1], [], []>} : vector<8x64xf32>, vector<64x256xf32>, vector<8x256xf32> -> vector<8x256xf32>
    %642 = arith.addf %641, %12 : vector<8x256xf32>
    %643 = arith.addf %395, %638 : vector<8x256xf32>
    %644 = vector.extract_strided_slice %643 {offsets = [0, 0], sizes = [8, 192], strides = [1, 1]} : vector<8x256xf32> to vector<8x192xf32>
    %645 = arith.negf %644 : vector<8x192xf32>
    %646 = math.exp %645 : vector<8x192xf32>
    %cst_236 = arith.constant 1.000000e+00 : f32
    %647 = vector.broadcast %cst_236 : f32 to vector<8x192xf32>
    %648 = arith.addf %647, %646 : vector<8x192xf32>
    %649 = arith.divf %647, %648 : vector<8x192xf32>
    %650 = vector.extract_strided_slice %649 {offsets = [0, 0], sizes = [8, 64], strides = [1, 1]} : vector<8x192xf32> to vector<8x64xf32>
    %651 = vector.extract_strided_slice %649 {offsets = [0, 64], sizes = [8, 64], strides = [1, 1]} : vector<8x192xf32> to vector<8x64xf32>
    %652 = vector.extract_strided_slice %649 {offsets = [0, 128], sizes = [8, 64], strides = [1, 1]} : vector<8x192xf32> to vector<8x64xf32>
    %653 = vector.extract_strided_slice %643 {offsets = [0, 192], sizes = [8, 64], strides = [1, 1]} : vector<8x256xf32> to vector<8x64xf32>
    %654 = math.tanh %653 : vector<8x64xf32>
    %655 = arith.mulf %651, %609 : vector<8x64xf32>
    %656 = arith.mulf %650, %654 : vector<8x64xf32>
    %657 = arith.addf %655, %656 : vector<8x64xf32>
    %658 = math.tanh %657 : vector<8x64xf32>
    %659 = arith.mulf %652, %658 : vector<8x64xf32>
    %c5_237 = arith.constant 5 : index
    %c0_238 = arith.constant 0 : index
    %c0_239 = arith.constant 0 : index
    %660 = vector.load %arg1[%c5_237, %c0_238, %c0_239] : memref<8x64x256xf32, #tpu.memory_space<vmem>>, vector<1x64x256xf32>
    %661 = vector.shape_cast %660 : vector<1x64x256xf32> to vector<64x256xf32>
    %cst_240 = arith.constant dense<0.000000e+00> : vector<8x256xf32>
    %662 = tpu.matmul %659, %661, %cst_240 {dimension_numbers = #tpu.dot_dimension_numbers<[1], [0], [0], [1], [0, 0, 1, 1], [], []>} : vector<8x64xf32>, vector<64x256xf32>, vector<8x256xf32> -> vector<8x256xf32>
    %663 = arith.addf %662, %642 : vector<8x256xf32>
    %664 = vector.extract_strided_slice %663 {offsets = [0, 0], sizes = [8, 192], strides = [1, 1]} : vector<8x256xf32> to vector<8x192xf32>
    %665 = arith.negf %664 : vector<8x192xf32>
    %666 = math.exp %665 : vector<8x192xf32>
    %cst_241 = arith.constant 1.000000e+00 : f32
    %667 = vector.broadcast %cst_241 : f32 to vector<8x192xf32>
    %668 = arith.addf %667, %666 : vector<8x192xf32>
    %669 = arith.divf %667, %668 : vector<8x192xf32>
    %670 = vector.extract_strided_slice %669 {offsets = [0, 0], sizes = [8, 64], strides = [1, 1]} : vector<8x192xf32> to vector<8x64xf32>
    %671 = vector.extract_strided_slice %669 {offsets = [0, 64], sizes = [8, 64], strides = [1, 1]} : vector<8x192xf32> to vector<8x64xf32>
    %672 = vector.extract_strided_slice %669 {offsets = [0, 128], sizes = [8, 64], strides = [1, 1]} : vector<8x192xf32> to vector<8x64xf32>
    %673 = vector.extract_strided_slice %663 {offsets = [0, 192], sizes = [8, 64], strides = [1, 1]} : vector<8x256xf32> to vector<8x64xf32>
    %674 = math.tanh %673 : vector<8x64xf32>
    %675 = arith.mulf %671, %629 : vector<8x64xf32>
    %676 = arith.mulf %670, %674 : vector<8x64xf32>
    %677 = arith.addf %675, %676 : vector<8x64xf32>
    %678 = math.tanh %677 : vector<8x64xf32>
    %679 = arith.mulf %672, %678 : vector<8x64xf32>
    %680 = arith.index_cast %c5_i32_227 : i32 to index
    %c0_242 = arith.constant 0 : index
    %c0_243 = arith.constant 0 : index
    %681 = vector.load %arg6[%680, %c0_242, %c0_243] : memref<8x8x64xf32, #tpu.memory_space<vmem>>, vector<1x8x64xf32>
    %682 = vector.shape_cast %681 : vector<1x8x64xf32> to vector<8x64xf32>
    %683 = vector.shape_cast %679 : vector<8x64xf32> to vector<1x8x64xf32>
    tpu.vector_store %arg6[%680, %c0_242, %c0_243], %683 {strides = array<i32>} : memref<8x8x64xf32, #tpu.memory_space<vmem>>, vector<1x8x64xf32>,
    %c6_i32_244 = arith.constant 6 : i32
    %c4_245 = arith.constant 4 : index
    %c0_246 = arith.constant 0 : index
    %c0_247 = arith.constant 0 : index
    %684 = vector.load %arg1[%c4_245, %c0_246, %c0_247] : memref<8x64x256xf32, #tpu.memory_space<vmem>>, vector<1x64x256xf32>
    %685 = vector.shape_cast %684 : vector<1x64x256xf32> to vector<64x256xf32>
    %cst_248 = arith.constant dense<0.000000e+00> : vector<8x256xf32>
    %686 = tpu.matmul %659, %685, %cst_248 {dimension_numbers = #tpu.dot_dimension_numbers<[1], [0], [0], [1], [0, 0, 1, 1], [], []>} : vector<8x64xf32>, vector<64x256xf32>, vector<8x256xf32> -> vector<8x256xf32>
    %c6_249 = arith.constant 6 : index
    %c0_250 = arith.constant 0 : index
    %c0_251 = arith.constant 0 : index
    %687 = vector.load %arg1[%c6_249, %c0_250, %c0_251] : memref<8x64x256xf32, #tpu.memory_space<vmem>>, vector<1x64x256xf32>
    %688 = vector.shape_cast %687 : vector<1x64x256xf32> to vector<64x256xf32>
    %cst_252 = arith.constant dense<0.000000e+00> : vector<8x256xf32>
    %689 = tpu.matmul %679, %688, %cst_252 {dimension_numbers = #tpu.dot_dimension_numbers<[1], [0], [0], [1], [0, 0, 1, 1], [], []>} : vector<8x64xf32>, vector<64x256xf32>, vector<8x256xf32> -> vector<8x256xf32>
    %690 = arith.addf %689, %12 : vector<8x256xf32>
    %691 = arith.addf %395, %686 : vector<8x256xf32>
    %692 = vector.extract_strided_slice %691 {offsets = [0, 0], sizes = [8, 192], strides = [1, 1]} : vector<8x256xf32> to vector<8x192xf32>
    %693 = arith.negf %692 : vector<8x192xf32>
    %694 = math.exp %693 : vector<8x192xf32>
    %cst_253 = arith.constant 1.000000e+00 : f32
    %695 = vector.broadcast %cst_253 : f32 to vector<8x192xf32>
    %696 = arith.addf %695, %694 : vector<8x192xf32>
    %697 = arith.divf %695, %696 : vector<8x192xf32>
    %698 = vector.extract_strided_slice %697 {offsets = [0, 0], sizes = [8, 64], strides = [1, 1]} : vector<8x192xf32> to vector<8x64xf32>
    %699 = vector.extract_strided_slice %697 {offsets = [0, 64], sizes = [8, 64], strides = [1, 1]} : vector<8x192xf32> to vector<8x64xf32>
    %700 = vector.extract_strided_slice %697 {offsets = [0, 128], sizes = [8, 64], strides = [1, 1]} : vector<8x192xf32> to vector<8x64xf32>
    %701 = vector.extract_strided_slice %691 {offsets = [0, 192], sizes = [8, 64], strides = [1, 1]} : vector<8x256xf32> to vector<8x64xf32>
    %702 = math.tanh %701 : vector<8x64xf32>
    %703 = arith.mulf %699, %657 : vector<8x64xf32>
    %704 = arith.mulf %698, %702 : vector<8x64xf32>
    %705 = arith.addf %703, %704 : vector<8x64xf32>
    %706 = math.tanh %705 : vector<8x64xf32>
    %707 = arith.mulf %700, %706 : vector<8x64xf32>
    %c5_254 = arith.constant 5 : index
    %c0_255 = arith.constant 0 : index
    %c0_256 = arith.constant 0 : index
    %708 = vector.load %arg1[%c5_254, %c0_255, %c0_256] : memref<8x64x256xf32, #tpu.memory_space<vmem>>, vector<1x64x256xf32>
    %709 = vector.shape_cast %708 : vector<1x64x256xf32> to vector<64x256xf32>
    %cst_257 = arith.constant dense<0.000000e+00> : vector<8x256xf32>
    %710 = tpu.matmul %707, %709, %cst_257 {dimension_numbers = #tpu.dot_dimension_numbers<[1], [0], [0], [1], [0, 0, 1, 1], [], []>} : vector<8x64xf32>, vector<64x256xf32>, vector<8x256xf32> -> vector<8x256xf32>
    %711 = arith.addf %710, %690 : vector<8x256xf32>
    %712 = vector.extract_strided_slice %711 {offsets = [0, 0], sizes = [8, 192], strides = [1, 1]} : vector<8x256xf32> to vector<8x192xf32>
    %713 = arith.negf %712 : vector<8x192xf32>
    %714 = math.exp %713 : vector<8x192xf32>
    %cst_258 = arith.constant 1.000000e+00 : f32
    %715 = vector.broadcast %cst_258 : f32 to vector<8x192xf32>
    %716 = arith.addf %715, %714 : vector<8x192xf32>
    %717 = arith.divf %715, %716 : vector<8x192xf32>
    %718 = vector.extract_strided_slice %717 {offsets = [0, 0], sizes = [8, 64], strides = [1, 1]} : vector<8x192xf32> to vector<8x64xf32>
    %719 = vector.extract_strided_slice %717 {offsets = [0, 64], sizes = [8, 64], strides = [1, 1]} : vector<8x192xf32> to vector<8x64xf32>
    %720 = vector.extract_strided_slice %717 {offsets = [0, 128], sizes = [8, 64], strides = [1, 1]} : vector<8x192xf32> to vector<8x64xf32>
    %721 = vector.extract_strided_slice %711 {offsets = [0, 192], sizes = [8, 64], strides = [1, 1]} : vector<8x256xf32> to vector<8x64xf32>
    %722 = math.tanh %721 : vector<8x64xf32>
    %723 = arith.mulf %719, %677 : vector<8x64xf32>
    %724 = arith.mulf %718, %722 : vector<8x64xf32>
    %725 = arith.addf %723, %724 : vector<8x64xf32>
    %726 = math.tanh %725 : vector<8x64xf32>
    %727 = arith.mulf %720, %726 : vector<8x64xf32>
    %728 = arith.index_cast %c6_i32_244 : i32 to index
    %c0_259 = arith.constant 0 : index
    %c0_260 = arith.constant 0 : index
    %729 = vector.load %arg6[%728, %c0_259, %c0_260] : memref<8x8x64xf32, #tpu.memory_space<vmem>>, vector<1x8x64xf32>
    %730 = vector.shape_cast %729 : vector<1x8x64xf32> to vector<8x64xf32>
    %731 = vector.shape_cast %727 : vector<8x64xf32> to vector<1x8x64xf32>
    tpu.vector_store %arg6[%728, %c0_259, %c0_260], %731 {strides = array<i32>} : memref<8x8x64xf32, #tpu.memory_space<vmem>>, vector<1x8x64xf32>,
    %c7_i32_261 = arith.constant 7 : i32
    %c4_262 = arith.constant 4 : index
    %c0_263 = arith.constant 0 : index
    %c0_264 = arith.constant 0 : index
    %732 = vector.load %arg1[%c4_262, %c0_263, %c0_264] : memref<8x64x256xf32, #tpu.memory_space<vmem>>, vector<1x64x256xf32>
    %733 = vector.shape_cast %732 : vector<1x64x256xf32> to vector<64x256xf32>
    %cst_265 = arith.constant dense<0.000000e+00> : vector<8x256xf32>
    %734 = tpu.matmul %707, %733, %cst_265 {dimension_numbers = #tpu.dot_dimension_numbers<[1], [0], [0], [1], [0, 0, 1, 1], [], []>} : vector<8x64xf32>, vector<64x256xf32>, vector<8x256xf32> -> vector<8x256xf32>
    %c6_266 = arith.constant 6 : index
    %c0_267 = arith.constant 0 : index
    %c0_268 = arith.constant 0 : index
    %735 = vector.load %arg1[%c6_266, %c0_267, %c0_268] : memref<8x64x256xf32, #tpu.memory_space<vmem>>, vector<1x64x256xf32>
    %736 = vector.shape_cast %735 : vector<1x64x256xf32> to vector<64x256xf32>
    %cst_269 = arith.constant dense<0.000000e+00> : vector<8x256xf32>
    %737 = tpu.matmul %727, %736, %cst_269 {dimension_numbers = #tpu.dot_dimension_numbers<[1], [0], [0], [1], [0, 0, 1, 1], [], []>} : vector<8x64xf32>, vector<64x256xf32>, vector<8x256xf32> -> vector<8x256xf32>
    %738 = arith.addf %737, %12 : vector<8x256xf32>
    %739 = arith.addf %395, %734 : vector<8x256xf32>
    %740 = vector.extract_strided_slice %739 {offsets = [0, 0], sizes = [8, 192], strides = [1, 1]} : vector<8x256xf32> to vector<8x192xf32>
    %741 = arith.negf %740 : vector<8x192xf32>
    %742 = math.exp %741 : vector<8x192xf32>
    %cst_270 = arith.constant 1.000000e+00 : f32
    %743 = vector.broadcast %cst_270 : f32 to vector<8x192xf32>
    %744 = arith.addf %743, %742 : vector<8x192xf32>
    %745 = arith.divf %743, %744 : vector<8x192xf32>
    %746 = vector.extract_strided_slice %745 {offsets = [0, 0], sizes = [8, 64], strides = [1, 1]} : vector<8x192xf32> to vector<8x64xf32>
    %747 = vector.extract_strided_slice %745 {offsets = [0, 64], sizes = [8, 64], strides = [1, 1]} : vector<8x192xf32> to vector<8x64xf32>
    %748 = vector.extract_strided_slice %745 {offsets = [0, 128], sizes = [8, 64], strides = [1, 1]} : vector<8x192xf32> to vector<8x64xf32>
    %749 = vector.extract_strided_slice %739 {offsets = [0, 192], sizes = [8, 64], strides = [1, 1]} : vector<8x256xf32> to vector<8x64xf32>
    %750 = math.tanh %749 : vector<8x64xf32>
    %751 = arith.mulf %747, %705 : vector<8x64xf32>
    %752 = arith.mulf %746, %750 : vector<8x64xf32>
    %753 = arith.addf %751, %752 : vector<8x64xf32>
    %754 = math.tanh %753 : vector<8x64xf32>
    %755 = arith.mulf %748, %754 : vector<8x64xf32>
    %c5_271 = arith.constant 5 : index
    %c0_272 = arith.constant 0 : index
    %c0_273 = arith.constant 0 : index
    %756 = vector.load %arg1[%c5_271, %c0_272, %c0_273] : memref<8x64x256xf32, #tpu.memory_space<vmem>>, vector<1x64x256xf32>
    %757 = vector.shape_cast %756 : vector<1x64x256xf32> to vector<64x256xf32>
    %cst_274 = arith.constant dense<0.000000e+00> : vector<8x256xf32>
    %758 = tpu.matmul %755, %757, %cst_274 {dimension_numbers = #tpu.dot_dimension_numbers<[1], [0], [0], [1], [0, 0, 1, 1], [], []>} : vector<8x64xf32>, vector<64x256xf32>, vector<8x256xf32> -> vector<8x256xf32>
    %759 = arith.addf %758, %738 : vector<8x256xf32>
    %760 = vector.extract_strided_slice %759 {offsets = [0, 0], sizes = [8, 192], strides = [1, 1]} : vector<8x256xf32> to vector<8x192xf32>
    %761 = arith.negf %760 : vector<8x192xf32>
    %762 = math.exp %761 : vector<8x192xf32>
    %cst_275 = arith.constant 1.000000e+00 : f32
    %763 = vector.broadcast %cst_275 : f32 to vector<8x192xf32>
    %764 = arith.addf %763, %762 : vector<8x192xf32>
    %765 = arith.divf %763, %764 : vector<8x192xf32>
    %766 = vector.extract_strided_slice %765 {offsets = [0, 0], sizes = [8, 64], strides = [1, 1]} : vector<8x192xf32> to vector<8x64xf32>
    %767 = vector.extract_strided_slice %765 {offsets = [0, 64], sizes = [8, 64], strides = [1, 1]} : vector<8x192xf32> to vector<8x64xf32>
    %768 = vector.extract_strided_slice %765 {offsets = [0, 128], sizes = [8, 64], strides = [1, 1]} : vector<8x192xf32> to vector<8x64xf32>
    %769 = vector.extract_strided_slice %759 {offsets = [0, 192], sizes = [8, 64], strides = [1, 1]} : vector<8x256xf32> to vector<8x64xf32>
    %770 = math.tanh %769 : vector<8x64xf32>
    %771 = arith.mulf %767, %725 : vector<8x64xf32>
    %772 = arith.mulf %766, %770 : vector<8x64xf32>
    %773 = arith.addf %771, %772 : vector<8x64xf32>
    %774 = math.tanh %773 : vector<8x64xf32>
    %775 = arith.mulf %768, %774 : vector<8x64xf32>
    %776 = arith.index_cast %c7_i32_261 : i32 to index
    %c0_276 = arith.constant 0 : index
    %c0_277 = arith.constant 0 : index
    %777 = vector.load %arg6[%776, %c0_276, %c0_277] : memref<8x8x64xf32, #tpu.memory_space<vmem>>, vector<1x8x64xf32>
    %778 = vector.shape_cast %777 : vector<1x8x64xf32> to vector<8x64xf32>
    %779 = vector.shape_cast %775 : vector<8x64xf32> to vector<1x8x64xf32>
    tpu.vector_store %arg6[%776, %c0_276, %c0_277], %779 {strides = array<i32>} : memref<8x8x64xf32, #tpu.memory_space<vmem>>, vector<1x8x64xf32>,
    %c8_i32_278 = arith.constant 8 : i32
    %c0_279 = arith.constant 0 : index
    %c0_280 = arith.constant 0 : index
    %c0_281 = arith.constant 0 : index
    %780 = vector.load %arg6[%c0_279, %c0_280, %c0_281] : memref<8x8x64xf32, #tpu.memory_space<vmem>>, vector<8x8x64xf32>
    %781 = vector.shape_cast %780 : vector<8x8x64xf32> to vector<64x64xf32>
    %c7_282 = arith.constant 7 : index
    %c0_283 = arith.constant 0 : index
    %c0_284 = arith.constant 0 : index
    %782 = vector.load %arg1[%c7_282, %c0_283, %c0_284] : memref<8x64x256xf32, #tpu.memory_space<vmem>>, vector<1x64x256xf32>
    %783 = vector.shape_cast %782 : vector<1x64x256xf32> to vector<64x256xf32>
    %cst_285 = arith.constant dense<0.000000e+00> : vector<64x256xf32>
    %784 = tpu.matmul %781, %783, %cst_285 {dimension_numbers = #tpu.dot_dimension_numbers<[1], [0], [0], [1], [0, 0, 1, 1], [], []>} : vector<64x64xf32>, vector<64x256xf32>, vector<64x256xf32> -> vector<64x256xf32>
    %785 = vector.broadcast %13 : vector<1x256xf32> to vector<64x256xf32>
    %786 = arith.addf %784, %785 : vector<64x256xf32>
    %c0_286 = arith.constant 0 : index
    %c0_287 = arith.constant 0 : index
    %787 = vector.load %arg3[%c0_286, %c0_287] : memref<64x256xf32, #tpu.memory_space<vmem>>, vector<64x256xf32>
    tpu.vector_store %arg3[%c0_286, %c0_287], %786 {strides = array<i32>} : memref<64x256xf32, #tpu.memory_space<vmem>>, vector<64x256xf32>,
    return
  }
}

</mosaic_0001>

<llo_original>
// kernel: tpu_custom_call.1
$region0: #{tpu_custom_call.1}
  #allocation0 [shape = 'u32[]', space=smem, size = 0x4, offset = 0x4, fixed_abs, tag = 'smem constant byte address 0x4 - core index']
  #allocation1 [shape = 'u32[144,128]{1,0:T(1,128)}', space=vmem, size = 0x12000, scoped, tag = 'internal scratch']
  #allocation2 [shape = 'f32[8,8,256]{2,1,0:T(8,128)}', space=vmem, size = 0x10000, scoped, tag = 'scratch operand']
  #allocation3 [shape = 'f32[8,8,64]{2,1,0:T(8,128)}', space=vmem, size = 0x8000, scoped, tag = 'scratch operand']
  %s0 = inlined_call_operand.vmem [shape: f32[64,4], index: 0, kind: input, shape index: {}]
  %s1 = inlined_call_operand.hbm [shape: f32[8,64,256], index: 1, kind: input, shape index: {}]
  %s2 = inlined_call_operand.vmem [shape: f32[8,256], index: 2, kind: input, shape index: {}]
  %s3 = inlined_call_operand.hbm [shape: f32[64,256], index: 3, kind: output, shape index: {0}]
  %s4 = inlined_call_operand.hbm [shape: f32[8,64], index: 4, kind: output, shape index: {1}]
  %5 = xla_tuple %s3, %s4
  %s6 = sld [smem:[#allocation0]]
  $region34: #{tpu_custom_call.1} parent=0
    _
  %s8 = ssub.s32 1, %s6
  %s9 = scalar_select 0, %s8, %s6
  $region1: #{tpu_custom_call.1} parent=0
    #allocation4 [shape = 'u8[524288]{0}', space=vmem, size = 0x80000, scoped, tag = 'input window, operand 1, single buffered']
    #allocation5 [shape = 's32[1]{0}', space=sflag, size = 0x4, scoped, tag = 'scoped memory for tpu_custom_call.1']
    #allocation6 [shape = 's32[1]{0}', space=sflag, size = 0x4, scoped, tag = 'scoped memory for tpu_custom_call.1']
    #allocation7 [shape = 'u8[65536]{0}', space=vmem, size = 0x10000, scoped, tag = 'output window, operand 0, single buffered']
    #allocation8 [shape = 'u8[4096]{0}', space=vmem, size = 0x1000, scoped, tag = 'output window, operand 1, single buffered']
    #allocation9 [shape = 's32[1]{0}', space=sflag, size = 0x4, scoped, tag = 'scoped memory for tpu_custom_call.1']
    %10 = vsyncpa [#allocation5], 0
    %11 = vsyncpa [#allocation6], 0
    %12 = vsyncpa [#allocation9], 0
    // Predicated region
    $region2: #{tpu_custom_call.1} parent=1 // pred_check
      _
    $region3: #{tpu_custom_call.1} parent=1 // pred_check_branch
      %14 = sbr.rel (0) target = $region5
    $region4: #{tpu_custom_call.1} parent=1 // pred_region
      _
    $region5: #{tpu_custom_call.1} parent=1 // pred_fallthru
      _
    // Predicated region
    $region6: #{tpu_custom_call.1} parent=1 // pred_check
      _
    $region7: #{tpu_custom_call.1} parent=1 // pred_check_branch
      %16 = sbr.rel (0) target = $region9
    $region8: #{tpu_custom_call.1} parent=1 // pred_region
      %s18 = ssub.s32 16384, 16384
      %19 = vsyncadd [#allocation5], %s18
      %s20 = sshll.u32 [#allocation4], 4
      %s21 = int_to_ptr.vmem [resolvable:$true] %s20
      %26 = dma.hbm_to_vmem [thread:$0]  %s1, 16384, %s21, [#allocation5], 256, 256, 16
    $region9: #{tpu_custom_call.1} parent=1 // pred_fallthru
      _
    // Predicated region
    $region10: #{tpu_custom_call.1} parent=1 // pred_check
      _
    $region11: #{tpu_custom_call.1} parent=1 // pred_check_branch
      %28 = sbr.rel (0) target = $region13
    $region12: #{tpu_custom_call.1} parent=1 // pred_region
      _
    $region13: #{tpu_custom_call.1} parent=1 // pred_fallthru
      _
    // Predicated region
    $region14: #{tpu_custom_call.1} parent=1 // pred_check
      _
    $region15: #{tpu_custom_call.1} parent=1 // pred_check_branch
      %30 = sbr.rel (0) target = $region17
    $region16: #{tpu_custom_call.1} parent=1 // pred_region
      %31 = dma.done [#allocation5], 16384
    $region17: #{tpu_custom_call.1} parent=1 // pred_fallthru
      _
    %v32 = vld [vmem:[%s0] sm:$0xff]
    %v33 = vld [vmem:[%s0 + $0x8] sm:$0xff]
    %v34 = vld [vmem:[%s0 + $0x10] sm:$0xff]
    %v35 = vld [vmem:[%s0 + $0x18] sm:$0xff]
    %v36 = vld [vmem:[%s0 + $0x20] sm:$0xff]
    %v37 = vld [vmem:[%s0 + $0x28] sm:$0xff]
    %v38 = vld [vmem:[%s0 + $0x30] sm:$0xff]
    %v39 = vld [vmem:[%s0 + $0x38] sm:$0xff]
    %v40 = vld [vmem:[%s2] sm:$0xf]
    %v41 = vld [vmem:[%s2 + $0x8] sm:$0xf]
    %vm42 = vcmask 31744
    %v44 = vsel %vm42, %v32, 0
    %v47 = vsel %vm42, %v33, 0
    %v50 = vsel %vm42, %v34, 0
    %v53 = vsel %vm42, %v35, 0
    %v56 = vsel %vm42, %v36, 0
    %v59 = vsel %vm42, %v37, 0
    %v62 = vsel %vm42, %v38, 0
    %v65 = vsel %vm42, %v39, 0
    %vm67 = vcmask 1043456
    %v69 = vsel %vm67, %v40, 0
    %v72 = vsel %vm67, %v41, 0
    %74 = vmatprep.subr.mxu0 %v72
    %75 = vmatpush1.msra.mxu0 %v69
    %76 = vmatprep.subr.mxu0 0.0
    %77 = vmatpush1.msra.mxu0 0.0
    %78 = vmatprep.subr.mxu0 0.0
    %79 = vmatpush1.msra.mxu0 0.0
    %80 = vmatprep.subr.mxu0 0.0
    %81 = vmatpush1.msra.mxu0 0.0
    %82 = vmatprep.subr.mxu0 0.0
    %83 = vmatpush1.msra.mxu0 0.0
    %84 = vmatprep.subr.mxu0 0.0
    %85 = vmatpush1.msra.mxu0 0.0
    %86 = vmatprep.subr.mxu0 0.0
    %87 = vmatpush1.msra.mxu0 0.0
    %88 = vmatprep.subr.mxu0 0.0
    %89 = vmatpush1.msra.mxu0 0.0
    %90 = vmatprep.subr.mxu0 0.0
    %91 = vmatpush1.msra.mxu0 0.0
    %92 = vmatprep.subr.mxu0 0.0
    %93 = vmatpush1.msra.mxu0 0.0
    %94 = vmatprep.subr.mxu0 0.0
    %95 = vmatpush1.msra.mxu0 0.0
    %96 = vmatprep.subr.mxu0 0.0
    %97 = vmatpush1.msra.mxu0 0.0
    %98 = vmatprep.subr.mxu0 0.0
    %99 = vmatpush1.msra.mxu0 0.0
    %100 = vmatprep.subr.mxu0 0.0
    %101 = vmatpush1.msra.mxu0 0.0
    %102 = vmatprep.subr.mxu0 0.0
    %103 = vmatpush1.msra.mxu0 0.0
    %104 = vmatprep.subr.mxu0 0.0
    %105 = vmatpush1.msra.mxu0 0.0
    %106 = vmatprep.subr.mxu0 0.0
    %107 = vmatpush1.msra.mxu0 0.0
    %108 = vmatprep.subr.mxu0 0.0
    %109 = vmatpush1.msra.mxu0 0.0
    %110 = vmatprep.subr.mxu0 0.0
    %111 = vmatpush1.msra.mxu0 0.0
    %112 = vmatprep.subr.mxu0 0.0
    %113 = vmatpush1.msra.mxu0 0.0
    %114 = vmatprep.subr.mxu0 0.0
    %115 = vmatpush1.msra.mxu0 0.0
    %116 = vmatprep.subr.mxu0 0.0
    %117 = vmatpush1.msra.mxu0 0.0
    %118 = vmatprep.subr.mxu0 0.0
    %119 = vmatpush1.msra.mxu0 0.0
    %120 = vmatprep.subr.mxu0 0.0
    %121 = vmatpush1.msra.mxu0 0.0
    %122 = vmatprep.subr.mxu0 0.0
    %123 = vmatpush1.msra.mxu0 0.0
    %124 = vmatprep.subr.mxu0 0.0
    %125 = vmatpush1.msra.mxu0 0.0
    %126 = vmatprep.subr.mxu0 0.0
    %127 = vmatpush1.msra.mxu0 0.0
    %128 = vmatprep.subr.mxu0 0.0
    %129 = vmatpush1.msra.mxu0 0.0
    %130 = vmatprep.subr.mxu0 0.0
    %131 = vmatpush1.msra.mxu0 0.0
    %132 = vmatprep.subr.mxu0 0.0
    %133 = vmatpush1.msra.mxu0 0.0
    %134 = vmatprep.subr.mxu0 0.0
    %135 = vmatpush1.msra.mxu0 0.0
    %136 = vmatprep.subr.mxu0 0.0
    %137 = vmatpush1.msra.mxu0 0.0
    %138 = vmatprep.mubr.f32.mxu0 0.0
    %139 = vmatmul.mubr.f32.gmra.mrb[0].mxu0 %v44
    %v140 = vpop.f32.mrb[0].mxu0
    %v141 = vadd.f32 0.0, %v140
    %v142 = vpop.f32.mrb[0].mxu0
    %v143 = vadd.f32 0.0, %v142
    %144 = vmatprep.mubr.f32.mxu0 0.0
    %145 = vmatmul.mubr.f32.gmra.mrb[0].mxu0 %v47
    %v146 = vpop.f32.mrb[0].mxu0
    %v147 = vadd.f32 0.0, %v146
    %v148 = vpop.f32.mrb[0].mxu0
    %v149 = vadd.f32 0.0, %v148
    %150 = vmatprep.mubr.f32.mxu0 0.0
    %151 = vmatmul.mubr.f32.gmra.mrb[0].mxu0 %v50
    %v152 = vpop.f32.mrb[0].mxu0
    %v153 = vadd.f32 0.0, %v152
    %v154 = vpop.f32.mrb[0].mxu0
    %v155 = vadd.f32 0.0, %v154
    %156 = vmatprep.mubr.f32.mxu0 0.0
    %157 = vmatmul.mubr.f32.gmra.mrb[0].mxu0 %v53
    %v158 = vpop.f32.mrb[0].mxu0
    %v159 = vadd.f32 0.0, %v158
    %v160 = vpop.f32.mrb[0].mxu0
    %v161 = vadd.f32 0.0, %v160
    %162 = vmatprep.mubr.f32.mxu0 0.0
    %163 = vmatmul.mubr.f32.gmra.mrb[0].mxu0 %v56
    %v164 = vpop.f32.mrb[0].mxu0
    %v165 = vadd.f32 0.0, %v164
    %v166 = vpop.f32.mrb[0].mxu0
    %v167 = vadd.f32 0.0, %v166
    %168 = vmatprep.mubr.f32.mxu0 0.0
    %169 = vmatmul.mubr.f32.gmra.mrb[0].mxu0 %v59
    %v170 = vpop.f32.mrb[0].mxu0
    %v171 = vadd.f32 0.0, %v170
    %v172 = vpop.f32.mrb[0].mxu0
    %v173 = vadd.f32 0.0, %v172
    %174 = vmatprep.mubr.f32.mxu0 0.0
    %175 = vmatmul.mubr.f32.gmra.mrb[0].mxu0 %v62
    %v176 = vpop.f32.mrb[0].mxu0
    %v177 = vadd.f32 0.0, %v176
    %v178 = vpop.f32.mrb[0].mxu0
    %v179 = vadd.f32 0.0, %v178
    %180 = vmatprep.mubr.f32.mxu0 0.0
    %181 = vmatmul.mubr.f32.gmra.mrb[0].mxu0 %v65
    %v182 = vpop.f32.mrb[0].mxu0
    %v183 = vadd.f32 0.0, %v182
    %v184 = vpop.f32.mrb[0].mxu0
    %v185 = vadd.f32 0.0, %v184
    %186 = vdwg.mxu0
    %187 = vst [vmem:[#allocation2] sm:$0xff] %v141
    %188 = vst [vmem:[#allocation2 + $0x8] sm:$0xff] %v143
    %189 = vst [vmem:[#allocation2 + $0x10] sm:$0xff] %v147
    %190 = vst [vmem:[#allocation2 + $0x18] sm:$0xff] %v149
    %191 = vst [vmem:[#allocation2 + $0x20] sm:$0xff] %v153
    %192 = vst [vmem:[#allocation2 + $0x28] sm:$0xff] %v155
    %193 = vst [vmem:[#allocation2 + $0x30] sm:$0xff] %v159
    %194 = vst [vmem:[#allocation2 + $0x38] sm:$0xff] %v161
    %195 = vst [vmem:[#allocation2 + $0x40] sm:$0xff] %v165
    %196 = vst [vmem:[#allocation2 + $0x48] sm:$0xff] %v167
    %197 = vst [vmem:[#allocation2 + $0x50] sm:$0xff] %v171
    %198 = vst [vmem:[#allocation2 + $0x58] sm:$0xff] %v173
    %199 = vst [vmem:[#allocation2 + $0x60] sm:$0xff] %v177
    %200 = vst [vmem:[#allocation2 + $0x68] sm:$0xff] %v179
    %201 = vst [vmem:[#allocation2 + $0x70] sm:$0xff] %v183
    %202 = vst [vmem:[#allocation2 + $0x78] sm:$0xff] %v185
    %s203 = scalar_lea.vmem %s2, 4
    %v204 = vld [vmem:[%s203] ss:$8 sm:$0x3]
    %v206 = vlaneseq
    %v207 = vshrl.u32 %v206, 7
    %v208 = vsub.s32 0, %v207
    %v209 = vrot.slane %v204, %v208
    %v210 = vlaneseq
    %v211 = vshrl.u32 %v210, 7
    %v212 = vsub.s32 1, %v211
    %v213 = vrot.slane %v204, %v212
    %s216 = scalar_lea.vmem %s2, 5
    %v217 = vld [vmem:[%s216] ss:$8 sm:$0x3]
    %s218 = scalar_lea.vmem %s2, 6
    %v219 = vld [vmem:[%s218] ss:$8 sm:$0x3]
    %v221 = vlaneseq
    %v222 = vshrl.u32 %v221, 7
    %v223 = vsub.s32 0, %v222
    %v224 = vrot.slane %v219, %v223
    %v225 = vlaneseq
    %v226 = vshrl.u32 %v225, 7
    %v227 = vsub.s32 1, %v226
    %v228 = vrot.slane %v219, %v227
    %s231 = scalar_lea.vmem %s2, 7
    %v232 = vld [vmem:[%s231] ss:$8 sm:$0x3]
    %v233 = vld [vmem:[#allocation4] sm:$0xff]
    %v234 = vld [vmem:[#allocation4 + $0x8] sm:$0xff]
    %v235 = vld [vmem:[#allocation4 + $0x10] sm:$0xff]
    %v236 = vld [vmem:[#allocation4 + $0x18] sm:$0xff]
    %v237 = vld [vmem:[#allocation4 + $0x20] sm:$0xff]
    %v238 = vld [vmem:[#allocation4 + $0x28] sm:$0xff]
    %v239 = vld [vmem:[#allocation4 + $0x30] sm:$0xff]
    %v240 = vld [vmem:[#allocation4 + $0x38] sm:$0xff]
    %v241 = vld [vmem:[#allocation4 + $0x40] sm:$0xff]
    %v242 = vld [vmem:[#allocation4 + $0x48] sm:$0xff]
    %v243 = vld [vmem:[#allocation4 + $0x50] sm:$0xff]
    %v244 = vld [vmem:[#allocation4 + $0x58] sm:$0xff]
    %v245 = vld [vmem:[#allocation4 + $0x60] sm:$0xff]
    %v246 = vld [vmem:[#allocation4 + $0x68] sm:$0xff]
    %v247 = vld [vmem:[#allocation4 + $0x70] sm:$0xff]
    %v248 = vld [vmem:[#allocation4 + $0x78] sm:$0xff]
    %vm249 = vcmask 523264
    %v251 = vsel %vm249, 0.0, 0
    %253 = vmatprep.subr.mxu0 %v234
    %254 = vmatpush1.msra.mxu0 %v233
    %255 = vmatprep.subr.mxu0 %v236
    %256 = vmatpush1.msra.mxu0 %v235
    %257 = vmatprep.subr.mxu0 %v238
    %258 = vmatpush1.msra.mxu0 %v237
    %259 = vmatprep.subr.mxu0 %v240
    %260 = vmatpush1.msra.mxu0 %v239
    %261 = vmatprep.subr.mxu0 %v242
    %262 = vmatpush1.msra.mxu0 %v241
    %263 = vmatprep.subr.mxu0 %v244
    %264 = vmatpush1.msra.mxu0 %v243
    %265 = vmatprep.subr.mxu0 %v246
    %266 = vmatpush1.msra.mxu0 %v245
    %267 = vmatprep.subr.mxu0 %v248
    %268 = vmatpush1.msra.mxu0 %v247
    %269 = vmatprep.subr.mxu0 0.0
    %270 = vmatpush1.msra.mxu0 0.0
    %271 = vmatprep.subr.mxu0 0.0
    %272 = vmatpush1.msra.mxu0 0.0
    %273 = vmatprep.subr.mxu0 0.0
    %274 = vmatpush1.msra.mxu0 0.0
    %275 = vmatprep.subr.mxu0 0.0
    %276 = vmatpush1.msra.mxu0 0.0
    %277 = vmatprep.subr.mxu0 0.0
    %278 = vmatpush1.msra.mxu0 0.0
    %279 = vmatprep.subr.mxu0 0.0
    %280 = vmatpush1.msra.mxu0 0.0
    %281 = vmatprep.subr.mxu0 0.0
    %282 = vmatpush1.msra.mxu0 0.0
    %283 = vmatprep.subr.mxu0 0.0
    %284 = vmatpush1.msra.mxu0 0.0
    %285 = vmatprep.subr.mxu0 0.0
    %286 = vmatpush1.msra.mxu0 0.0
    %287 = vmatprep.subr.mxu0 0.0
    %288 = vmatpush1.msra.mxu0 0.0
    %289 = vmatprep.subr.mxu0 0.0
    %290 = vmatpush1.msra.mxu0 0.0
    %291 = vmatprep.subr.mxu0 0.0
    %292 = vmatpush1.msra.mxu0 0.0
    %293 = vmatprep.subr.mxu0 0.0
    %294 = vmatpush1.msra.mxu0 0.0
    %295 = vmatprep.subr.mxu0 0.0
    %296 = vmatpush1.msra.mxu0 0.0
    %297 = vmatprep.subr.mxu0 0.0
    %298 = vmatpush1.msra.mxu0 0.0
    %299 = vmatprep.subr.mxu0 0.0
    %300 = vmatpush1.msra.mxu0 0.0
    %301 = vmatprep.subr.mxu0 0.0
    %302 = vmatpush1.msra.mxu0 0.0
    %303 = vmatprep.subr.mxu0 0.0
    %304 = vmatpush1.msra.mxu0 0.0
    %305 = vmatprep.subr.mxu0 0.0
    %306 = vmatpush1.msra.mxu0 0.0
    %307 = vmatprep.subr.mxu0 0.0
    %308 = vmatpush1.msra.mxu0 0.0
    %309 = vmatprep.subr.mxu0 0.0
    %310 = vmatpush1.msra.mxu0 0.0
    %311 = vmatprep.subr.mxu0 0.0
    %312 = vmatpush1.msra.mxu0 0.0
    %313 = vmatprep.subr.mxu0 0.0
    %314 = vmatpush1.msra.mxu0 0.0
    %315 = vmatprep.subr.mxu0 0.0
    %316 = vmatpush1.msra.mxu0 0.0
    %317 = vmatprep.mubr.f32.mxu0 0.0
    %318 = vmatmul.mubr.f32.gmra.mrb[0].mxu0 %v251
    %v319 = vpop.f32.mrb[0].mxu0
    %v320 = vadd.f32 0.0, %v319
    %v321 = vpop.f32.mrb[0].mxu0
    %v322 = vadd.f32 0.0, %v321
    %323 = vdwg.mxu0
    %s324 = scalar_lea.vmem [#allocation4], 256
    %v325 = vld [vmem:[%s324] sm:$0xff]
    %v326 = vld [vmem:[%s324 + $0x8] sm:$0xff]
    %v327 = vld [vmem:[%s324 + $0x10] sm:$0xff]
    %v328 = vld [vmem:[%s324 + $0x18] sm:$0xff]
    %v329 = vld [vmem:[%s324 + $0x20] sm:$0xff]
    %v330 = vld [vmem:[%s324 + $0x28] sm:$0xff]
    %v331 = vld [vmem:[%s324 + $0x30] sm:$0xff]
    %v332 = vld [vmem:[%s324 + $0x38] sm:$0xff]
    %v333 = vld [vmem:[%s324 + $0x40] sm:$0xff]
    %v334 = vld [vmem:[%s324 + $0x48] sm:$0xff]
    %v335 = vld [vmem:[%s324 + $0x50] sm:$0xff]
    %v336 = vld [vmem:[%s324 + $0x58] sm:$0xff]
    %v337 = vld [vmem:[%s324 + $0x60] sm:$0xff]
    %v338 = vld [vmem:[%s324 + $0x68] sm:$0xff]
    %v339 = vld [vmem:[%s324 + $0x70] sm:$0xff]
    %v340 = vld [vmem:[%s324 + $0x78] sm:$0xff]
    %341 = vmatprep.subr.mxu0 %v326
    %342 = vmatpush1.msra.mxu0 %v325
    %343 = vmatprep.subr.mxu0 %v328
    %344 = vmatpush1.msra.mxu0 %v327
    %345 = vmatprep.subr.mxu0 %v330
    %346 = vmatpush1.msra.mxu0 %v329
    %347 = vmatprep.subr.mxu0 %v332
    %348 = vmatpush1.msra.mxu0 %v331
    %349 = vmatprep.subr.mxu0 %v334
    %350 = vmatpush1.msra.mxu0 %v333
    %351 = vmatprep.subr.mxu0 %v336
    %352 = vmatpush1.msra.mxu0 %v335
    %353 = vmatprep.subr.mxu0 %v338
    %354 = vmatpush1.msra.mxu0 %v337
    %355 = vmatprep.subr.mxu0 %v340
    %356 = vmatpush1.msra.mxu0 %v339
    %357 = vmatprep.subr.mxu0 0.0
    %358 = vmatpush1.msra.mxu0 0.0
    %359 = vmatprep.subr.mxu0 0.0
    %360 = vmatpush1.msra.mxu0 0.0
    %361 = vmatprep.subr.mxu0 0.0
    %362 = vmatpush1.msra.mxu0 0.0
    %363 = vmatprep.subr.mxu0 0.0
    %364 = vmatpush1.msra.mxu0 0.0
    %365 = vmatprep.subr.mxu0 0.0
    %366 = vmatpush1.msra.mxu0 0.0
    %367 = vmatprep.subr.mxu0 0.0
    %368 = vmatpush1.msra.mxu0 0.0
    %369 = vmatprep.subr.mxu0 0.0
    %370 = vmatpush1.msra.mxu0 0.0
    %371 = vmatprep.subr.mxu0 0.0
    %372 = vmatpush1.msra.mxu0 0.0
    %373 = vmatprep.subr.mxu0 0.0
    %374 = vmatpush1.msra.mxu0 0.0
    %375 = vmatprep.subr.mxu0 0.0
    %376 = vmatpush1.msra.mxu0 0.0
    %377 = vmatprep.subr.mxu0 0.0
    %378 = vmatpush1.msra.mxu0 0.0
    %379 = vmatprep.subr.mxu0 0.0
    %380 = vmatpush1.msra.mxu0 0.0
    %381 = vmatprep.subr.mxu0 0.0
    %382 = vmatpush1.msra.mxu0 0.0
    %383 = vmatprep.subr.mxu0 0.0
    %384 = vmatpush1.msra.mxu0 0.0
    %385 = vmatprep.subr.mxu0 0.0
    %386 = vmatpush1.msra.mxu0 0.0
    %387 = vmatprep.subr.mxu0 0.0
    %388 = vmatpush1.msra.mxu0 0.0
    %389 = vmatprep.subr.mxu0 0.0
    %390 = vmatpush1.msra.mxu0 0.0
    %391 = vmatprep.subr.mxu0 0.0
    %392 = vmatpush1.msra.mxu0 0.0
    %393 = vmatprep.subr.mxu0 0.0
    %394 = vmatpush1.msra.mxu0 0.0
    %395 = vmatprep.subr.mxu0 0.0
    %396 = vmatpush1.msra.mxu0 0.0
    %397 = vmatprep.subr.mxu0 0.0
    %398 = vmatpush1.msra.mxu0 0.0
    %399 = vmatprep.subr.mxu0 0.0
    %400 = vmatpush1.msra.mxu0 0.0
    %401 = vmatprep.subr.mxu0 0.0
    %402 = vmatpush1.msra.mxu0 0.0
    %403 = vmatprep.subr.mxu0 0.0
    %404 = vmatpush1.msra.mxu0 0.0
    %405 = vmatprep.mubr.f32.mxu0 0.0
    %406 = vmatmul.mubr.f32.gmra.mrb[0].mxu0 %v251
    %v407 = vpop.f32.mrb[0].mxu0
    %v408 = vadd.f32 %v209, %v407
    %v409 = vpop.f32.mrb[0].mxu0
    %v410 = vadd.f32 %v213, %v409
    %411 = vdwg.mxu0
    %v412 = vld [vmem:[#allocation2] sm:$0xff]
    %v413 = vld [vmem:[#allocation2 + $0x8] sm:$0xff]
    %v414 = vadd.f32 %v412, %v320
    %v415 = vadd.f32 %v413, %v322
    %v416 = vxor.u32 %v414, 2147483648
    %v417 = vxor.u32 %v415, 2147483648
    %v418 = vmul.f32 %v416, 1.442695
    %v419 = vpow.pop %v418
    %v420 = vmul.f32 %v417, 1.442695
    %v421 = vpow.pop %v420
    %v422 = vadd.f32 %v419, 1.0
    %v423 = vadd.f32 %v421, 1.0
    %v424 = vrcp.pop %v422
    %v425 = vmul.f32 1.0, %v424
    %v426 = vrcp.pop %v423
    %v427 = vmul.f32 1.0, %v426
    %v428 = vtanh.pop %v415
    %v429 = vmul.f32 %v425, 0.0
    %431 = vrot.lane.b32.xlu0 %v428, 64
    %v432 = vpop.permute.xlu0 %431
    %v434 = vmul.f32 %v425, %v432
    %436 = vrot.lane.b32.xlu0 %v434, 64
    %v437 = vpop.permute.xlu0 %436
    %v439 = vadd.f32 %v429, %v437
    %v440 = vtanh.pop %v439
    %442 = vrot.lane.b32.xlu0 %v440, 64
    %v443 = vpop.permute.xlu0 %442
    %v445 = vmul.f32 %v427, %v443
    %s446 = scalar_lea.vmem [#allocation4], 128
    %v447 = vld [vmem:[%s446] sm:$0xff]
    %v448 = vld [vmem:[%s446 + $0x8] sm:$0xff]
    %v449 = vld [vmem:[%s446 + $0x10] sm:$0xff]
    %v450 = vld [vmem:[%s446 + $0x18] sm:$0xff]
    %v451 = vld [vmem:[%s446 + $0x20] sm:$0xff]
    %v452 = vld [vmem:[%s446 + $0x28] sm:$0xff]
    %v453 = vld [vmem:[%s446 + $0x30] sm:$0xff]
    %v454 = vld [vmem:[%s446 + $0x38] sm:$0xff]
    %v455 = vld [vmem:[%s446 + $0x40] sm:$0xff]
    %v456 = vld [vmem:[%s446 + $0x48] sm:$0xff]
    %v457 = vld [vmem:[%s446 + $0x50] sm:$0xff]
    %v458 = vld [vmem:[%s446 + $0x58] sm:$0xff]
    %v459 = vld [vmem:[%s446 + $0x60] sm:$0xff]
    %v460 = vld [vmem:[%s446 + $0x68] sm:$0xff]
    %v461 = vld [vmem:[%s446 + $0x70] sm:$0xff]
    %v462 = vld [vmem:[%s446 + $0x78] sm:$0xff]
    %v464 = vsel %vm249, %v445, 0
    %466 = vmatprep.subr.mxu0 %v448
    %467 = vmatpush1.msra.mxu0 %v447
    %468 = vmatprep.subr.mxu0 %v450
    %469 = vmatpush1.msra.mxu0 %v449
    %470 = vmatprep.subr.mxu0 %v452
    %471 = vmatpush1.msra.mxu0 %v451
    %472 = vmatprep.subr.mxu0 %v454
    %473 = vmatpush1.msra.mxu0 %v453
    %474 = vmatprep.subr.mxu0 %v456
    %475 = vmatpush1.msra.mxu0 %v455
    %476 = vmatprep.subr.mxu0 %v458
    %477 = vmatpush1.msra.mxu0 %v457
    %478 = vmatprep.subr.mxu0 %v460
    %479 = vmatpush1.msra.mxu0 %v459
    %480 = vmatprep.subr.mxu0 %v462
    %481 = vmatpush1.msra.mxu0 %v461
    %482 = vmatprep.subr.mxu0 0.0
    %483 = vmatpush1.msra.mxu0 0.0
    %484 = vmatprep.subr.mxu0 0.0
    %485 = vmatpush1.msra.mxu0 0.0
    %486 = vmatprep.subr.mxu0 0.0
    %487 = vmatpush1.msra.mxu0 0.0
    %488 = vmatprep.subr.mxu0 0.0
    %489 = vmatpush1.msra.mxu0 0.0
    %490 = vmatprep.subr.mxu0 0.0
    %491 = vmatpush1.msra.mxu0 0.0
    %492 = vmatprep.subr.mxu0 0.0
    %493 = vmatpush1.msra.mxu0 0.0
    %494 = vmatprep.subr.mxu0 0.0
    %495 = vmatpush1.msra.mxu0 0.0
    %496 = vmatprep.subr.mxu0 0.0
    %497 = vmatpush1.msra.mxu0 0.0
    %498 = vmatprep.subr.mxu0 0.0
    %499 = vmatpush1.msra.mxu0 0.0
    %500 = vmatprep.subr.mxu0 0.0
    %501 = vmatpush1.msra.mxu0 0.0
    %502 = vmatprep.subr.mxu0 0.0
    %503 = vmatpush1.msra.mxu0 0.0
    %504 = vmatprep.subr.mxu0 0.0
    %505 = vmatpush1.msra.mxu0 0.0
    %506 = vmatprep.subr.mxu0 0.0
    %507 = vmatpush1.msra.mxu0 0.0
    %508 = vmatprep.subr.mxu0 0.0
    %509 = vmatpush1.msra.mxu0 0.0
    %510 = vmatprep.subr.mxu0 0.0
    %511 = vmatpush1.msra.mxu0 0.0
    %512 = vmatprep.subr.mxu0 0.0
    %513 = vmatpush1.msra.mxu0 0.0
    %514 = vmatprep.subr.mxu0 0.0
    %515 = vmatpush1.msra.mxu0 0.0
    %516 = vmatprep.subr.mxu0 0.0
    %517 = vmatpush1.msra.mxu0 0.0
    %518 = vmatprep.subr.mxu0 0.0
    %519 = vmatpush1.msra.mxu0 0.0
    %520 = vmatprep.subr.mxu0 0.0
    %521 = vmatpush1.msra.mxu0 0.0
    %522 = vmatprep.subr.mxu0 0.0
    %523 = vmatpush1.msra.mxu0 0.0
    %524 = vmatprep.subr.mxu0 0.0
    %525 = vmatpush1.msra.mxu0 0.0
    %526 = vmatprep.subr.mxu0 0.0
    %527 = vmatpush1.msra.mxu0 0.0
    %528 = vmatprep.subr.mxu0 0.0
    %529 = vmatpush1.msra.mxu0 0.0
    %530 = vmatprep.mubr.f32.mxu0 0.0
    %531 = vmatmul.mubr.f32.gmra.mrb[0].mxu0 %v464
    %v532 = vpop.f32.mrb[0].mxu0
    %v533 = vadd.f32 %v408, %v532
    %v534 = vpop.f32.mrb[0].mxu0
    %v535 = vadd.f32 %v410, %v534
    %536 = vdwg.mxu0
    %v537 = vxor.u32 %v533, 2147483648
    %v538 = vxor.u32 %v535, 2147483648
    %v539 = vmul.f32 %v537, 1.442695
    %v540 = vpow.pop %v539
    %v541 = vmul.f32 %v538, 1.442695
    %v542 = vpow.pop %v541
    %v543 = vadd.f32 %v540, 1.0
    %v544 = vadd.f32 %v542, 1.0
    %v545 = vrcp.pop %v543
    %v546 = vmul.f32 1.0, %v545
    %v547 = vrcp.pop %v544
    %v548 = vmul.f32 1.0, %v547
    %v549 = vtanh.pop %v535
    %v550 = vmul.f32 %v546, 0.0
    %552 = vrot.lane.b32.xlu0 %v549, 64
    %v553 = vpop.permute.xlu0 %552
    %v555 = vmul.f32 %v546, %v553
    %557 = vrot.lane.b32.xlu0 %v555, 64
    %v558 = vpop.permute.xlu0 %557
    %v560 = vadd.f32 %v550, %v558
    %v561 = vtanh.pop %v560
    %563 = vrot.lane.b32.xlu0 %v561, 64
    %v564 = vpop.permute.xlu0 %563
    %v566 = vmul.f32 %v548, %v564
    %567 = vmatprep.subr.mxu0 %v234
    %568 = vmatpush1.msra.mxu0 %v233
    %569 = vmatprep.subr.mxu0 %v236
    %570 = vmatpush1.msra.mxu0 %v235
    %571 = vmatprep.subr.mxu0 %v238
    %572 = vmatpush1.msra.mxu0 %v237
    %573 = vmatprep.subr.mxu0 %v240
    %574 = vmatpush1.msra.mxu0 %v239
    %575 = vmatprep.subr.mxu0 %v242
    %576 = vmatpush1.msra.mxu0 %v241
    %577 = vmatprep.subr.mxu0 %v244
    %578 = vmatpush1.msra.mxu0 %v243
    %579 = vmatprep.subr.mxu0 %v246
    %580 = vmatpush1.msra.mxu0 %v245
    %581 = vmatprep.subr.mxu0 %v248
    %582 = vmatpush1.msra.mxu0 %v247
    %583 = vmatprep.subr.mxu0 0.0
    %584 = vmatpush1.msra.mxu0 0.0
    %585 = vmatprep.subr.mxu0 0.0
    %586 = vmatpush1.msra.mxu0 0.0
    %587 = vmatprep.subr.mxu0 0.0
    %588 = vmatpush1.msra.mxu0 0.0
    %589 = vmatprep.subr.mxu0 0.0
    %590 = vmatpush1.msra.mxu0 0.0
    %591 = vmatprep.subr.mxu0 0.0
    %592 = vmatpush1.msra.mxu0 0.0
    %593 = vmatprep.subr.mxu0 0.0
    %594 = vmatpush1.msra.mxu0 0.0
    %595 = vmatprep.subr.mxu0 0.0
    %596 = vmatpush1.msra.mxu0 0.0
    %597 = vmatprep.subr.mxu0 0.0
    %598 = vmatpush1.msra.mxu0 0.0
    %599 = vmatprep.subr.mxu0 0.0
    %600 = vmatpush1.msra.mxu0 0.0
    %601 = vmatprep.subr.mxu0 0.0
    %602 = vmatpush1.msra.mxu0 0.0
    %603 = vmatprep.subr.mxu0 0.0
    %604 = vmatpush1.msra.mxu0 0.0
    %605 = vmatprep.subr.mxu0 0.0
    %606 = vmatpush1.msra.mxu0 0.0
    %607 = vmatprep.subr.mxu0 0.0
    %608 = vmatpush1.msra.mxu0 0.0
    %609 = vmatprep.subr.mxu0 0.0
    %610 = vmatpush1.msra.mxu0 0.0
    %611 = vmatprep.subr.mxu0 0.0
    %612 = vmatpush1.msra.mxu0 0.0
    %613 = vmatprep.subr.mxu0 0.0
    %614 = vmatpush1.msra.mxu0 0.0
    %615 = vmatprep.subr.mxu0 0.0
    %616 = vmatpush1.msra.mxu0 0.0
    %617 = vmatprep.subr.mxu0 0.0
    %618 = vmatpush1.msra.mxu0 0.0
    %619 = vmatprep.subr.mxu0 0.0
    %620 = vmatpush1.msra.mxu0 0.0
    %621 = vmatprep.subr.mxu0 0.0
    %622 = vmatpush1.msra.mxu0 0.0
    %623 = vmatprep.subr.mxu0 0.0
    %624 = vmatpush1.msra.mxu0 0.0
    %625 = vmatprep.subr.mxu0 0.0
    %626 = vmatpush1.msra.mxu0 0.0
    %627 = vmatprep.subr.mxu0 0.0
    %628 = vmatpush1.msra.mxu0 0.0
    %629 = vmatprep.subr.mxu0 0.0
    %630 = vmatpush1.msra.mxu0 0.0
    %631 = vmatprep.mubr.f32.mxu0 0.0
    %632 = vmatmul.mubr.f32.gmra.mrb[0].mxu0 %v464
    %v633 = vpop.f32.mrb[0].mxu0
    %v634 = vadd.f32 0.0, %v633
    %v635 = vpop.f32.mrb[0].mxu0
    %v636 = vadd.f32 0.0, %v635
    %637 = vdwg.mxu0
    %v639 = vsel %vm249, %v566, 0
    %641 = vmatprep.subr.mxu0 %v326
    %642 = vmatpush1.msra.mxu0 %v325
    %643 = vmatprep.subr.mxu0 %v328
    %644 = vmatpush1.msra.mxu0 %v327
    %645 = vmatprep.subr.mxu0 %v330
    %646 = vmatpush1.msra.mxu0 %v329
    %647 = vmatprep.subr.mxu0 %v332
    %648 = vmatpush1.msra.mxu0 %v331
    %649 = vmatprep.subr.mxu0 %v334
    %650 = vmatpush1.msra.mxu0 %v333
    %651 = vmatprep.subr.mxu0 %v336
    %652 = vmatpush1.msra.mxu0 %v335
    %653 = vmatprep.subr.mxu0 %v338
    %654 = vmatpush1.msra.mxu0 %v337
    %655 = vmatprep.subr.mxu0 %v340
    %656 = vmatpush1.msra.mxu0 %v339
    %657 = vmatprep.subr.mxu0 0.0
    %658 = vmatpush1.msra.mxu0 0.0
    %659 = vmatprep.subr.mxu0 0.0
    %660 = vmatpush1.msra.mxu0 0.0
    %661 = vmatprep.subr.mxu0 0.0
    %662 = vmatpush1.msra.mxu0 0.0
    %663 = vmatprep.subr.mxu0 0.0
    %664 = vmatpush1.msra.mxu0 0.0
    %665 = vmatprep.subr.mxu0 0.0
    %666 = vmatpush1.msra.mxu0 0.0
    %667 = vmatprep.subr.mxu0 0.0
    %668 = vmatpush1.msra.mxu0 0.0
    %669 = vmatprep.subr.mxu0 0.0
    %670 = vmatpush1.msra.mxu0 0.0
    %671 = vmatprep.subr.mxu0 0.0
    %672 = vmatpush1.msra.mxu0 0.0
    %673 = vmatprep.subr.mxu0 0.0
    %674 = vmatpush1.msra.mxu0 0.0
    %675 = vmatprep.subr.mxu0 0.0
    %676 = vmatpush1.msra.mxu0 0.0
    %677 = vmatprep.subr.mxu0 0.0
    %678 = vmatpush1.msra.mxu0 0.0
    %679 = vmatprep.subr.mxu0 0.0
    %680 = vmatpush1.msra.mxu0 0.0
    %681 = vmatprep.subr.mxu0 0.0
    %682 = vmatpush1.msra.mxu0 0.0
    %683 = vmatprep.subr.mxu0 0.0
    %684 = vmatpush1.msra.mxu0 0.0
    %685 = vmatprep.subr.mxu0 0.0
    %686 = vmatpush1.msra.mxu0 0.0
    %687 = vmatprep.subr.mxu0 0.0
    %688 = vmatpush1.msra.mxu0 0.0
    %689 = vmatprep.subr.mxu0 0.0
    %690 = vmatpush1.msra.mxu0 0.0
    %691 = vmatprep.subr.mxu0 0.0
    %692 = vmatpush1.msra.mxu0 0.0
    %693 = vmatprep.subr.mxu0 0.0
    %694 = vmatpush1.msra.mxu0 0.0
    %695 = vmatprep.subr.mxu0 0.0
    %696 = vmatpush1.msra.mxu0 0.0
    %697 = vmatprep.subr.mxu0 0.0
    %698 = vmatpush1.msra.mxu0 0.0
    %699 = vmatprep.subr.mxu0 0.0
    %700 = vmatpush1.msra.mxu0 0.0
    %701 = vmatprep.subr.mxu0 0.0
    %702 = vmatpush1.msra.mxu0 0.0
    %703 = vmatprep.subr.mxu0 0.0
    %704 = vmatpush1.msra.mxu0 0.0
    %705 = vmatprep.mubr.f32.mxu0 0.0
    %706 = vmatmul.mubr.f32.gmra.mrb[0].mxu0 %v639
    %v707 = vpop.f32.mrb[0].mxu0
    %v708 = vadd.f32 %v209, %v707
    %v709 = vpop.f32.mrb[0].mxu0
    %v710 = vadd.f32 %v213, %v709
    %711 = vdwg.mxu0
    %s712 = scalar_lea.vmem [#allocation2], 16
    %v713 = vld [vmem:[%s712] sm:$0xff]
    %v714 = vld [vmem:[%s712 + $0x8] sm:$0xff]
    %v715 = vadd.f32 %v713, %v634
    %v716 = vadd.f32 %v714, %v636
    %v717 = vxor.u32 %v715, 2147483648
    %v718 = vxor.u32 %v716, 2147483648
    %v719 = vmul.f32 %v717, 1.442695
    %v720 = vpow.pop %v719
    %v721 = vmul.f32 %v718, 1.442695
    %v722 = vpow.pop %v721
    %v723 = vadd.f32 %v720, 1.0
    %v724 = vadd.f32 %v722, 1.0
    %v725 = vrcp.pop %v723
    %v726 = vmul.f32 1.0, %v725
    %v727 = vrcp.pop %v724
    %v728 = vmul.f32 1.0, %v727
    %v729 = vtanh.pop %v716
    %v730 = vmul.f32 %v726, %v439
    %732 = vrot.lane.b32.xlu0 %v729, 64
    %v733 = vpop.permute.xlu0 %732
    %v735 = vmul.f32 %v726, %v733
    %737 = vrot.lane.b32.xlu0 %v735, 64
    %v738 = vpop.permute.xlu0 %737
    %v740 = vadd.f32 %v730, %v738
    %v741 = vtanh.pop %v740
    %743 = vrot.lane.b32.xlu0 %v741, 64
    %v744 = vpop.permute.xlu0 %743
    %v746 = vmul.f32 %v728, %v744
    %v748 = vsel %vm249, %v746, 0
    %750 = vmatprep.subr.mxu0 %v448
    %751 = vmatpush1.msra.mxu0 %v447
    %752 = vmatprep.subr.mxu0 %v450
    %753 = vmatpush1.msra.mxu0 %v449
    %754 = vmatprep.subr.mxu0 %v452
    %755 = vmatpush1.msra.mxu0 %v451
    %756 = vmatprep.subr.mxu0 %v454
    %757 = vmatpush1.msra.mxu0 %v453
    %758 = vmatprep.subr.mxu0 %v456
    %759 = vmatpush1.msra.mxu0 %v455
    %760 = vmatprep.subr.mxu0 %v458
    %761 = vmatpush1.msra.mxu0 %v457
    %762 = vmatprep.subr.mxu0 %v460
    %763 = vmatpush1.msra.mxu0 %v459
    %764 = vmatprep.subr.mxu0 %v462
    %765 = vmatpush1.msra.mxu0 %v461
    %766 = vmatprep.subr.mxu0 0.0
    %767 = vmatpush1.msra.mxu0 0.0
    %768 = vmatprep.subr.mxu0 0.0
    %769 = vmatpush1.msra.mxu0 0.0
    %770 = vmatprep.subr.mxu0 0.0
    %771 = vmatpush1.msra.mxu0 0.0
    %772 = vmatprep.subr.mxu0 0.0
    %773 = vmatpush1.msra.mxu0 0.0
    %774 = vmatprep.subr.mxu0 0.0
    %775 = vmatpush1.msra.mxu0 0.0
    %776 = vmatprep.subr.mxu0 0.0
    %777 = vmatpush1.msra.mxu0 0.0
    %778 = vmatprep.subr.mxu0 0.0
    %779 = vmatpush1.msra.mxu0 0.0
    %780 = vmatprep.subr.mxu0 0.0
    %781 = vmatpush1.msra.mxu0 0.0
    %782 = vmatprep.subr.mxu0 0.0
    %783 = vmatpush1.msra.mxu0 0.0
    %784 = vmatprep.subr.mxu0 0.0
    %785 = vmatpush1.msra.mxu0 0.0
    %786 = vmatprep.subr.mxu0 0.0
    %787 = vmatpush1.msra.mxu0 0.0
    %788 = vmatprep.subr.mxu0 0.0
    %789 = vmatpush1.msra.mxu0 0.0
    %790 = vmatprep.subr.mxu0 0.0
    %791 = vmatpush1.msra.mxu0 0.0
    %792 = vmatprep.subr.mxu0 0.0
    %793 = vmatpush1.msra.mxu0 0.0
    %794 = vmatprep.subr.mxu0 0.0
    %795 = vmatpush1.msra.mxu0 0.0
    %796 = vmatprep.subr.mxu0 0.0
    %797 = vmatpush1.msra.mxu0 0.0
    %798 = vmatprep.subr.mxu0 0.0
    %799 = vmatpush1.msra.mxu0 0.0
    %800 = vmatprep.subr.mxu0 0.0
    %801 = vmatpush1.msra.mxu0 0.0
    %802 = vmatprep.subr.mxu0 0.0
    %803 = vmatpush1.msra.mxu0 0.0
    %804 = vmatprep.subr.mxu0 0.0
    %805 = vmatpush1.msra.mxu0 0.0
    %806 = vmatprep.subr.mxu0 0.0
    %807 = vmatpush1.msra.mxu0 0.0
    %808 = vmatprep.subr.mxu0 0.0
    %809 = vmatpush1.msra.mxu0 0.0
    %810 = vmatprep.subr.mxu0 0.0
    %811 = vmatpush1.msra.mxu0 0.0
    %812 = vmatprep.subr.mxu0 0.0
    %813 = vmatpush1.msra.mxu0 0.0
    %814 = vmatprep.mubr.f32.mxu0 0.0
    %815 = vmatmul.mubr.f32.gmra.mrb[0].mxu0 %v748
    %v816 = vpop.f32.mrb[0].mxu0
    %v817 = vadd.f32 %v708, %v816
    %v818 = vpop.f32.mrb[0].mxu0
    %v819 = vadd.f32 %v710, %v818
    %820 = vdwg.mxu0
    %v821 = vxor.u32 %v817, 2147483648
    %v822 = vxor.u32 %v819, 2147483648
    %v823 = vmul.f32 %v821, 1.442695
    %v824 = vpow.pop %v823
    %v825 = vmul.f32 %v822, 1.442695
    %v826 = vpow.pop %v825
    %v827 = vadd.f32 %v824, 1.0
    %v828 = vadd.f32 %v826, 1.0
    %v829 = vrcp.pop %v827
    %v830 = vmul.f32 1.0, %v829
    %v831 = vrcp.pop %v828
    %v832 = vmul.f32 1.0, %v831
    %v833 = vtanh.pop %v819
    %v834 = vmul.f32 %v830, %v560
    %836 = vrot.lane.b32.xlu0 %v833, 64
    %v837 = vpop.permute.xlu0 %836
    %v839 = vmul.f32 %v830, %v837
    %841 = vrot.lane.b32.xlu0 %v839, 64
    %v842 = vpop.permute.xlu0 %841
    %v844 = vadd.f32 %v834, %v842
    %v845 = vtanh.pop %v844
    %847 = vrot.lane.b32.xlu0 %v845, 64
    %v848 = vpop.permute.xlu0 %847
    %v850 = vmul.f32 %v832, %v848
    %851 = vmatprep.subr.mxu0 %v234
    %852 = vmatpush1.msra.mxu0 %v233
    %853 = vmatprep.subr.mxu0 %v236
    %854 = vmatpush1.msra.mxu0 %v235
    %855 = vmatprep.subr.mxu0 %v238
    %856 = vmatpush1.msra.mxu0 %v237
    %857 = vmatprep.subr.mxu0 %v240
    %858 = vmatpush1.msra.mxu0 %v239
    %859 = vmatprep.subr.mxu0 %v242
    %860 = vmatpush1.msra.mxu0 %v241
    %861 = vmatprep.subr.mxu0 %v244
    %862 = vmatpush1.msra.mxu0 %v243
    %863 = vmatprep.subr.mxu0 %v246
    %864 = vmatpush1.msra.mxu0 %v245
    %865 = vmatprep.subr.mxu0 %v248
    %866 = vmatpush1.msra.mxu0 %v247
    %867 = vmatprep.subr.mxu0 0.0
    %868 = vmatpush1.msra.mxu0 0.0
    %869 = vmatprep.subr.mxu0 0.0
    %870 = vmatpush1.msra.mxu0 0.0
    %871 = vmatprep.subr.mxu0 0.0
    %872 = vmatpush1.msra.mxu0 0.0
    %873 = vmatprep.subr.mxu0 0.0
    %874 = vmatpush1.msra.mxu0 0.0
    %875 = vmatprep.subr.mxu0 0.0
    %876 = vmatpush1.msra.mxu0 0.0
    %877 = vmatprep.subr.mxu0 0.0
    %878 = vmatpush1.msra.mxu0 0.0
    %879 = vmatprep.subr.mxu0 0.0
    %880 = vmatpush1.msra.mxu0 0.0
    %881 = vmatprep.subr.mxu0 0.0
    %882 = vmatpush1.msra.mxu0 0.0
    %883 = vmatprep.subr.mxu0 0.0
    %884 = vmatpush1.msra.mxu0 0.0
    %885 = vmatprep.subr.mxu0 0.0
    %886 = vmatpush1.msra.mxu0 0.0
    %887 = vmatprep.subr.mxu0 0.0
    %888 = vmatpush1.msra.mxu0 0.0
    %889 = vmatprep.subr.mxu0 0.0
    %890 = vmatpush1.msra.mxu0 0.0
    %891 = vmatprep.subr.mxu0 0.0
    %892 = vmatpush1.msra.mxu0 0.0
    %893 = vmatprep.subr.mxu0 0.0
    %894 = vmatpush1.msra.mxu0 0.0
    %895 = vmatprep.subr.mxu0 0.0
    %896 = vmatpush1.msra.mxu0 0.0
    %897 = vmatprep.subr.mxu0 0.0
    %898 = vmatpush1.msra.mxu0 0.0
    %899 = vmatprep.subr.mxu0 0.0
    %900 = vmatpush1.msra.mxu0 0.0
    %901 = vmatprep.subr.mxu0 0.0
    %902 = vmatpush1.msra.mxu0 0.0
    %903 = vmatprep.subr.mxu0 0.0
    %904 = vmatpush1.msra.mxu0 0.0
    %905 = vmatprep.subr.mxu0 0.0
    %906 = vmatpush1.msra.mxu0 0.0
    %907 = vmatprep.subr.mxu0 0.0
    %908 = vmatpush1.msra.mxu0 0.0
    %909 = vmatprep.subr.mxu0 0.0
    %910 = vmatpush1.msra.mxu0 0.0
    %911 = vmatprep.subr.mxu0 0.0
    %912 = vmatpush1.msra.mxu0 0.0
    %913 = vmatprep.subr.mxu0 0.0
    %914 = vmatpush1.msra.mxu0 0.0
    %915 = vmatprep.mubr.f32.mxu0 0.0
    %916 = vmatmul.mubr.f32.gmra.mrb[0].mxu0 %v748
    %v917 = vpop.f32.mrb[0].mxu0
    %v918 = vadd.f32 0.0, %v917
    %v919 = vpop.f32.mrb[0].mxu0
    %v920 = vadd.f32 0.0, %v919
    %921 = vdwg.mxu0
    %v923 = vsel %vm249, %v850, 0
    %925 = vmatprep.subr.mxu0 %v326
    %926 = vmatpush1.msra.mxu0 %v325
    %927 = vmatprep.subr.mxu0 %v328
    %928 = vmatpush1.msra.mxu0 %v327
    %929 = vmatprep.subr.mxu0 %v330
    %930 = vmatpush1.msra.mxu0 %v329
    %931 = vmatprep.subr.mxu0 %v332
    %932 = vmatpush1.msra.mxu0 %v331
    %933 = vmatprep.subr.mxu0 %v334
    %934 = vmatpush1.msra.mxu0 %v333
    %935 = vmatprep.subr.mxu0 %v336
    %936 = vmatpush1.msra.mxu0 %v335
    %937 = vmatprep.subr.mxu0 %v338
    %938 = vmatpush1.msra.mxu0 %v337
    %939 = vmatprep.subr.mxu0 %v340
    %940 = vmatpush1.msra.mxu0 %v339
    %941 = vmatprep.subr.mxu0 0.0
    %942 = vmatpush1.msra.mxu0 0.0
    %943 = vmatprep.subr.mxu0 0.0
    %944 = vmatpush1.msra.mxu0 0.0
    %945 = vmatprep.subr.mxu0 0.0
    %946 = vmatpush1.msra.mxu0 0.0
    %947 = vmatprep.subr.mxu0 0.0
    %948 = vmatpush1.msra.mxu0 0.0
    %949 = vmatprep.subr.mxu0 0.0
    %950 = vmatpush1.msra.mxu0 0.0
    %951 = vmatprep.subr.mxu0 0.0
    %952 = vmatpush1.msra.mxu0 0.0
    %953 = vmatprep.subr.mxu0 0.0
    %954 = vmatpush1.msra.mxu0 0.0
    %955 = vmatprep.subr.mxu0 0.0
    %956 = vmatpush1.msra.mxu0 0.0
    %957 = vmatprep.subr.mxu0 0.0
    %958 = vmatpush1.msra.mxu0 0.0
    %959 = vmatprep.subr.mxu0 0.0
    %960 = vmatpush1.msra.mxu0 0.0
    %961 = vmatprep.subr.mxu0 0.0
    %962 = vmatpush1.msra.mxu0 0.0
    %963 = vmatprep.subr.mxu0 0.0
    %964 = vmatpush1.msra.mxu0 0.0
    %965 = vmatprep.subr.mxu0 0.0
    %966 = vmatpush1.msra.mxu0 0.0
    %967 = vmatprep.subr.mxu0 0.0
    %968 = vmatpush1.msra.mxu0 0.0
    %969 = vmatprep.subr.mxu0 0.0
    %970 = vmatpush1.msra.mxu0 0.0
    %971 = vmatprep.subr.mxu0 0.0
    %972 = vmatpush1.msra.mxu0 0.0
    %973 = vmatprep.subr.mxu0 0.0
    %974 = vmatpush1.msra.mxu0 0.0
    %975 = vmatprep.subr.mxu0 0.0
    %976 = vmatpush1.msra.mxu0 0.0
    %977 = vmatprep.subr.mxu0 0.0
    %978 = vmatpush1.msra.mxu0 0.0
    %979 = vmatprep.subr.mxu0 0.0
    %980 = vmatpush1.msra.mxu0 0.0
    %981 = vmatprep.subr.mxu0 0.0
    %982 = vmatpush1.msra.mxu0 0.0
    %983 = vmatprep.subr.mxu0 0.0
    %984 = vmatpush1.msra.mxu0 0.0
    %985 = vmatprep.subr.mxu0 0.0
    %986 = vmatpush1.msra.mxu0 0.0
    %987 = vmatprep.subr.mxu0 0.0
    %988 = vmatpush1.msra.mxu0 0.0
    %989 = vmatprep.mubr.f32.mxu0 0.0
    %990 = vmatmul.mubr.f32.gmra.mrb[0].mxu0 %v923
    %v991 = vpop.f32.mrb[0].mxu0
    %v992 = vadd.f32 %v209, %v991
    %v993 = vpop.f32.mrb[0].mxu0
    %v994 = vadd.f32 %v213, %v993
    %995 = vdwg.mxu0
    %s996 = scalar_lea.vmem [#allocation2], 32
    %v997 = vld [vmem:[%s996] sm:$0xff]
    %v998 = vld [vmem:[%s996 + $0x8] sm:$0xff]
    %v999 = vadd.f32 %v997, %v918
    %v1000 = vadd.f32 %v998, %v920
    %v1001 = vxor.u32 %v999, 2147483648
    %v1002 = vxor.u32 %v1000, 2147483648
    %v1003 = vmul.f32 %v1001, 1.442695
    %v1004 = vpow.pop %v1003
    %v1005 = vmul.f32 %v1002, 1.442695
    %v1006 = vpow.pop %v1005
    %v1007 = vadd.f32 %v1004, 1.0
    %v1008 = vadd.f32 %v1006, 1.0
    %v1009 = vrcp.pop %v1007
    %v1010 = vmul.f32 1.0, %v1009
    %v1011 = vrcp.pop %v1008
    %v1012 = vmul.f32 1.0, %v1011
    %v1013 = vtanh.pop %v1000
    %v1014 = vmul.f32 %v1010, %v740
    %1016 = vrot.lane.b32.xlu0 %v1013, 64
    %v1017 = vpop.permute.xlu0 %1016
    %v1019 = vmul.f32 %v1010, %v1017
    %1021 = vrot.lane.b32.xlu0 %v1019, 64
    %v1022 = vpop.permute.xlu0 %1021
    %v1024 = vadd.f32 %v1014, %v1022
    %v1025 = vtanh.pop %v1024
    %1027 = vrot.lane.b32.xlu0 %v1025, 64
    %v1028 = vpop.permute.xlu0 %1027
    %v1030 = vmul.f32 %v1012, %v1028
    %v1032 = vsel %vm249, %v1030, 0
    %1034 = vmatprep.subr.mxu0 %v448
    %1035 = vmatpush1.msra.mxu0 %v447
    %1036 = vmatprep.subr.mxu0 %v450
    %1037 = vmatpush1.msra.mxu0 %v449
    %1038 = vmatprep.subr.mxu0 %v452
    %1039 = vmatpush1.msra.mxu0 %v451
    %1040 = vmatprep.subr.mxu0 %v454
    %1041 = vmatpush1.msra.mxu0 %v453
    %1042 = vmatprep.subr.mxu0 %v456
    %1043 = vmatpush1.msra.mxu0 %v455
    %1044 = vmatprep.subr.mxu0 %v458
    %1045 = vmatpush1.msra.mxu0 %v457
    %1046 = vmatprep.subr.mxu0 %v460
    %1047 = vmatpush1.msra.mxu0 %v459
    %1048 = vmatprep.subr.mxu0 %v462
    %1049 = vmatpush1.msra.mxu0 %v461
    %1050 = vmatprep.subr.mxu0 0.0
    %1051 = vmatpush1.msra.mxu0 0.0
    %1052 = vmatprep.subr.mxu0 0.0
    %1053 = vmatpush1.msra.mxu0 0.0
    %1054 = vmatprep.subr.mxu0 0.0
    %1055 = vmatpush1.msra.mxu0 0.0
    %1056 = vmatprep.subr.mxu0 0.0
    %1057 = vmatpush1.msra.mxu0 0.0
    %1058 = vmatprep.subr.mxu0 0.0
    %1059 = vmatpush1.msra.mxu0 0.0
    %1060 = vmatprep.subr.mxu0 0.0
    %1061 = vmatpush1.msra.mxu0 0.0
    %1062 = vmatprep.subr.mxu0 0.0
    %1063 = vmatpush1.msra.mxu0 0.0
    %1064 = vmatprep.subr.mxu0 0.0
    %1065 = vmatpush1.msra.mxu0 0.0
    %1066 = vmatprep.subr.mxu0 0.0
    %1067 = vmatpush1.msra.mxu0 0.0
    %1068 = vmatprep.subr.mxu0 0.0
    %1069 = vmatpush1.msra.mxu0 0.0
    %1070 = vmatprep.subr.mxu0 0.0
    %1071 = vmatpush1.msra.mxu0 0.0
    %1072 = vmatprep.subr.mxu0 0.0
    %1073 = vmatpush1.msra.mxu0 0.0
    %1074 = vmatprep.subr.mxu0 0.0
    %1075 = vmatpush1.msra.mxu0 0.0
    %1076 = vmatprep.subr.mxu0 0.0
    %1077 = vmatpush1.msra.mxu0 0.0
    %1078 = vmatprep.subr.mxu0 0.0
    %1079 = vmatpush1.msra.mxu0 0.0
    %1080 = vmatprep.subr.mxu0 0.0
    %1081 = vmatpush1.msra.mxu0 0.0
    %1082 = vmatprep.subr.mxu0 0.0
    %1083 = vmatpush1.msra.mxu0 0.0
    %1084 = vmatprep.subr.mxu0 0.0
    %1085 = vmatpush1.msra.mxu0 0.0
    %1086 = vmatprep.subr.mxu0 0.0
    %1087 = vmatpush1.msra.mxu0 0.0
    %1088 = vmatprep.subr.mxu0 0.0
    %1089 = vmatpush1.msra.mxu0 0.0
    %1090 = vmatprep.subr.mxu0 0.0
    %1091 = vmatpush1.msra.mxu0 0.0
    %1092 = vmatprep.subr.mxu0 0.0
    %1093 = vmatpush1.msra.mxu0 0.0
    %1094 = vmatprep.subr.mxu0 0.0
    %1095 = vmatpush1.msra.mxu0 0.0
    %1096 = vmatprep.subr.mxu0 0.0
    %1097 = vmatpush1.msra.mxu0 0.0
    %1098 = vmatprep.mubr.f32.mxu0 0.0
    %1099 = vmatmul.mubr.f32.gmra.mrb[0].mxu0 %v1032
    %v1100 = vpop.f32.mrb[0].mxu0
    %v1101 = vadd.f32 %v992, %v1100
    %v1102 = vpop.f32.mrb[0].mxu0
    %v1103 = vadd.f32 %v994, %v1102
    %1104 = vdwg.mxu0
    %v1105 = vxor.u32 %v1101, 2147483648
    %v1106 = vxor.u32 %v1103, 2147483648
    %v1107 = vmul.f32 %v1105, 1.442695
    %v1108 = vpow.pop %v1107
    %v1109 = vmul.f32 %v1106, 1.442695
    %v1110 = vpow.pop %v1109
    %v1111 = vadd.f32 %v1108, 1.0
    %v1112 = vadd.f32 %v1110, 1.0
    %v1113 = vrcp.pop %v1111
    %v1114 = vmul.f32 1.0, %v1113
    %v1115 = vrcp.pop %v1112
    %v1116 = vmul.f32 1.0, %v1115
    %v1117 = vtanh.pop %v1103
    %v1118 = vmul.f32 %v1114, %v844
    %1120 = vrot.lane.b32.xlu0 %v1117, 64
    %v1121 = vpop.permute.xlu0 %1120
    %v1123 = vmul.f32 %v1114, %v1121
    %1125 = vrot.lane.b32.xlu0 %v1123, 64
    %v1126 = vpop.permute.xlu0 %1125
    %v1128 = vadd.f32 %v1118, %v1126
    %v1129 = vtanh.pop %v1128
    %1131 = vrot.lane.b32.xlu0 %v1129, 64
    %v1132 = vpop.permute.xlu0 %1131
    %v1134 = vmul.f32 %v1116, %v1132
    %1135 = vmatprep.subr.mxu0 %v234
    %1136 = vmatpush1.msra.mxu0 %v233
    %1137 = vmatprep.subr.mxu0 %v236
    %1138 = vmatpush1.msra.mxu0 %v235
    %1139 = vmatprep.subr.mxu0 %v238
    %1140 = vmatpush1.msra.mxu0 %v237
    %1141 = vmatprep.subr.mxu0 %v240
    %1142 = vmatpush1.msra.mxu0 %v239
    %1143 = vmatprep.subr.mxu0 %v242
    %1144 = vmatpush1.msra.mxu0 %v241
    %1145 = vmatprep.subr.mxu0 %v244
    %1146 = vmatpush1.msra.mxu0 %v243
    %1147 = vmatprep.subr.mxu0 %v246
    %1148 = vmatpush1.msra.mxu0 %v245
    %1149 = vmatprep.subr.mxu0 %v248
    %1150 = vmatpush1.msra.mxu0 %v247
    %1151 = vmatprep.subr.mxu0 0.0
    %1152 = vmatpush1.msra.mxu0 0.0
    %1153 = vmatprep.subr.mxu0 0.0
    %1154 = vmatpush1.msra.mxu0 0.0
    %1155 = vmatprep.subr.mxu0 0.0
    %1156 = vmatpush1.msra.mxu0 0.0
    %1157 = vmatprep.subr.mxu0 0.0
    %1158 = vmatpush1.msra.mxu0 0.0
    %1159 = vmatprep.subr.mxu0 0.0
    %1160 = vmatpush1.msra.mxu0 0.0
    %1161 = vmatprep.subr.mxu0 0.0
    %1162 = vmatpush1.msra.mxu0 0.0
    %1163 = vmatprep.subr.mxu0 0.0
    %1164 = vmatpush1.msra.mxu0 0.0
    %1165 = vmatprep.subr.mxu0 0.0
    %1166 = vmatpush1.msra.mxu0 0.0
    %1167 = vmatprep.subr.mxu0 0.0
    %1168 = vmatpush1.msra.mxu0 0.0
    %1169 = vmatprep.subr.mxu0 0.0
    %1170 = vmatpush1.msra.mxu0 0.0
    %1171 = vmatprep.subr.mxu0 0.0
    %1172 = vmatpush1.msra.mxu0 0.0
    %1173 = vmatprep.subr.mxu0 0.0
    %1174 = vmatpush1.msra.mxu0 0.0
    %1175 = vmatprep.subr.mxu0 0.0
    %1176 = vmatpush1.msra.mxu0 0.0
    %1177 = vmatprep.subr.mxu0 0.0
    %1178 = vmatpush1.msra.mxu0 0.0
    %1179 = vmatprep.subr.mxu0 0.0
    %1180 = vmatpush1.msra.mxu0 0.0
    %1181 = vmatprep.subr.mxu0 0.0
    %1182 = vmatpush1.msra.mxu0 0.0
    %1183 = vmatprep.subr.mxu0 0.0
    %1184 = vmatpush1.msra.mxu0 0.0
    %1185 = vmatprep.subr.mxu0 0.0
    %1186 = vmatpush1.msra.mxu0 0.0
    %1187 = vmatprep.subr.mxu0 0.0
    %1188 = vmatpush1.msra.mxu0 0.0
    %1189 = vmatprep.subr.mxu0 0.0
    %1190 = vmatpush1.msra.mxu0 0.0
    %1191 = vmatprep.subr.mxu0 0.0
    %1192 = vmatpush1.msra.mxu0 0.0
    %1193 = vmatprep.subr.mxu0 0.0
    %1194 = vmatpush1.msra.mxu0 0.0
    %1195 = vmatprep.subr.mxu0 0.0
    %1196 = vmatpush1.msra.mxu0 0.0
    %1197 = vmatprep.subr.mxu0 0.0
    %1198 = vmatpush1.msra.mxu0 0.0
    %1199 = vmatprep.mubr.f32.mxu0 0.0
    %1200 = vmatmul.mubr.f32.gmra.mrb[0].mxu0 %v1032
    %v1201 = vpop.f32.mrb[0].mxu0
    %v1202 = vadd.f32 0.0, %v1201
    %v1203 = vpop.f32.mrb[0].mxu0
    %v1204 = vadd.f32 0.0, %v1203
    %1205 = vdwg.mxu0
    %v1207 = vsel %vm249, %v1134, 0
    %1209 = vmatprep.subr.mxu0 %v326
    %1210 = vmatpush1.msra.mxu0 %v325
    %1211 = vmatprep.subr.mxu0 %v328
    %1212 = vmatpush1.msra.mxu0 %v327
    %1213 = vmatprep.subr.mxu0 %v330
    %1214 = vmatpush1.msra.mxu0 %v329
    %1215 = vmatprep.subr.mxu0 %v332
    %1216 = vmatpush1.msra.mxu0 %v331
    %1217 = vmatprep.subr.mxu0 %v334
    %1218 = vmatpush1.msra.mxu0 %v333
    %1219 = vmatprep.subr.mxu0 %v336
    %1220 = vmatpush1.msra.mxu0 %v335
    %1221 = vmatprep.subr.mxu0 %v338
    %1222 = vmatpush1.msra.mxu0 %v337
    %1223 = vmatprep.subr.mxu0 %v340
    %1224 = vmatpush1.msra.mxu0 %v339
    %1225 = vmatprep.subr.mxu0 0.0
    %1226 = vmatpush1.msra.mxu0 0.0
    %1227 = vmatprep.subr.mxu0 0.0
    %1228 = vmatpush1.msra.mxu0 0.0
    %1229 = vmatprep.subr.mxu0 0.0
    %1230 = vmatpush1.msra.mxu0 0.0
    %1231 = vmatprep.subr.mxu0 0.0
    %1232 = vmatpush1.msra.mxu0 0.0
    %1233 = vmatprep.subr.mxu0 0.0
    %1234 = vmatpush1.msra.mxu0 0.0
    %1235 = vmatprep.subr.mxu0 0.0
    %1236 = vmatpush1.msra.mxu0 0.0
    %1237 = vmatprep.subr.mxu0 0.0
    %1238 = vmatpush1.msra.mxu0 0.0
    %1239 = vmatprep.subr.mxu0 0.0
    %1240 = vmatpush1.msra.mxu0 0.0
    %1241 = vmatprep.subr.mxu0 0.0
    %1242 = vmatpush1.msra.mxu0 0.0
    %1243 = vmatprep.subr.mxu0 0.0
    %1244 = vmatpush1.msra.mxu0 0.0
    %1245 = vmatprep.subr.mxu0 0.0
    %1246 = vmatpush1.msra.mxu0 0.0
    %1247 = vmatprep.subr.mxu0 0.0
    %1248 = vmatpush1.msra.mxu0 0.0
    %1249 = vmatprep.subr.mxu0 0.0
    %1250 = vmatpush1.msra.mxu0 0.0
    %1251 = vmatprep.subr.mxu0 0.0
    %1252 = vmatpush1.msra.mxu0 0.0
    %1253 = vmatprep.subr.mxu0 0.0
    %1254 = vmatpush1.msra.mxu0 0.0
    %1255 = vmatprep.subr.mxu0 0.0
    %1256 = vmatpush1.msra.mxu0 0.0
    %1257 = vmatprep.subr.mxu0 0.0
    %1258 = vmatpush1.msra.mxu0 0.0
    %1259 = vmatprep.subr.mxu0 0.0
    %1260 = vmatpush1.msra.mxu0 0.0
    %1261 = vmatprep.subr.mxu0 0.0
    %1262 = vmatpush1.msra.mxu0 0.0
    %1263 = vmatprep.subr.mxu0 0.0
    %1264 = vmatpush1.msra.mxu0 0.0
    %1265 = vmatprep.subr.mxu0 0.0
    %1266 = vmatpush1.msra.mxu0 0.0
    %1267 = vmatprep.subr.mxu0 0.0
    %1268 = vmatpush1.msra.mxu0 0.0
    %1269 = vmatprep.subr.mxu0 0.0
    %1270 = vmatpush1.msra.mxu0 0.0
    %1271 = vmatprep.subr.mxu0 0.0
    %1272 = vmatpush1.msra.mxu0 0.0
    %1273 = vmatprep.mubr.f32.mxu0 0.0
    %1274 = vmatmul.mubr.f32.gmra.mrb[0].mxu0 %v1207
    %v1275 = vpop.f32.mrb[0].mxu0
    %v1276 = vadd.f32 %v209, %v1275
    %v1277 = vpop.f32.mrb[0].mxu0
    %v1278 = vadd.f32 %v213, %v1277
    %1279 = vdwg.mxu0
    %s1280 = scalar_lea.vmem [#allocation2], 48
    %v1281 = vld [vmem:[%s1280] sm:$0xff]
    %v1282 = vld [vmem:[%s1280 + $0x8] sm:$0xff]
    %v1283 = vadd.f32 %v1281, %v1202
    %v1284 = vadd.f32 %v1282, %v1204
    %v1285 = vxor.u32 %v1283, 2147483648
    %v1286 = vxor.u32 %v1284, 2147483648
    %v1287 = vmul.f32 %v1285, 1.442695
    %v1288 = vpow.pop %v1287
    %v1289 = vmul.f32 %v1286, 1.442695
    %v1290 = vpow.pop %v1289
    %v1291 = vadd.f32 %v1288, 1.0
    %v1292 = vadd.f32 %v1290, 1.0
    %v1293 = vrcp.pop %v1291
    %v1294 = vmul.f32 1.0, %v1293
    %v1295 = vrcp.pop %v1292
    %v1296 = vmul.f32 1.0, %v1295
    %v1297 = vtanh.pop %v1284
    %v1298 = vmul.f32 %v1294, %v1024
    %1300 = vrot.lane.b32.xlu0 %v1297, 64
    %v1301 = vpop.permute.xlu0 %1300
    %v1303 = vmul.f32 %v1294, %v1301
    %1305 = vrot.lane.b32.xlu0 %v1303, 64
    %v1306 = vpop.permute.xlu0 %1305
    %v1308 = vadd.f32 %v1298, %v1306
    %v1309 = vtanh.pop %v1308
    %1311 = vrot.lane.b32.xlu0 %v1309, 64
    %v1312 = vpop.permute.xlu0 %1311
    %v1314 = vmul.f32 %v1296, %v1312
    %v1316 = vsel %vm249, %v1314, 0
    %1318 = vmatprep.subr.mxu0 %v448
    %1319 = vmatpush1.msra.mxu0 %v447
    %1320 = vmatprep.subr.mxu0 %v450
    %1321 = vmatpush1.msra.mxu0 %v449
    %1322 = vmatprep.subr.mxu0 %v452
    %1323 = vmatpush1.msra.mxu0 %v451
    %1324 = vmatprep.subr.mxu0 %v454
    %1325 = vmatpush1.msra.mxu0 %v453
    %1326 = vmatprep.subr.mxu0 %v456
    %1327 = vmatpush1.msra.mxu0 %v455
    %1328 = vmatprep.subr.mxu0 %v458
    %1329 = vmatpush1.msra.mxu0 %v457
    %1330 = vmatprep.subr.mxu0 %v460
    %1331 = vmatpush1.msra.mxu0 %v459
    %1332 = vmatprep.subr.mxu0 %v462
    %1333 = vmatpush1.msra.mxu0 %v461
    %1334 = vmatprep.subr.mxu0 0.0
    %1335 = vmatpush1.msra.mxu0 0.0
    %1336 = vmatprep.subr.mxu0 0.0
    %1337 = vmatpush1.msra.mxu0 0.0
    %1338 = vmatprep.subr.mxu0 0.0
    %1339 = vmatpush1.msra.mxu0 0.0
    %1340 = vmatprep.subr.mxu0 0.0
    %1341 = vmatpush1.msra.mxu0 0.0
    %1342 = vmatprep.subr.mxu0 0.0
    %1343 = vmatpush1.msra.mxu0 0.0
    %1344 = vmatprep.subr.mxu0 0.0
    %1345 = vmatpush1.msra.mxu0 0.0
    %1346 = vmatprep.subr.mxu0 0.0
    %1347 = vmatpush1.msra.mxu0 0.0
    %1348 = vmatprep.subr.mxu0 0.0
    %1349 = vmatpush1.msra.mxu0 0.0
    %1350 = vmatprep.subr.mxu0 0.0
    %1351 = vmatpush1.msra.mxu0 0.0
    %1352 = vmatprep.subr.mxu0 0.0
    %1353 = vmatpush1.msra.mxu0 0.0
    %1354 = vmatprep.subr.mxu0 0.0
    %1355 = vmatpush1.msra.mxu0 0.0
    %1356 = vmatprep.subr.mxu0 0.0
    %1357 = vmatpush1.msra.mxu0 0.0
    %1358 = vmatprep.subr.mxu0 0.0
    %1359 = vmatpush1.msra.mxu0 0.0
    %1360 = vmatprep.subr.mxu0 0.0
    %1361 = vmatpush1.msra.mxu0 0.0
    %1362 = vmatprep.subr.mxu0 0.0
    %1363 = vmatpush1.msra.mxu0 0.0
    %1364 = vmatprep.subr.mxu0 0.0
    %1365 = vmatpush1.msra.mxu0 0.0
    %1366 = vmatprep.subr.mxu0 0.0
    %1367 = vmatpush1.msra.mxu0 0.0
    %1368 = vmatprep.subr.mxu0 0.0
    %1369 = vmatpush1.msra.mxu0 0.0
    %1370 = vmatprep.subr.mxu0 0.0
    %1371 = vmatpush1.msra.mxu0 0.0
    %1372 = vmatprep.subr.mxu0 0.0
    %1373 = vmatpush1.msra.mxu0 0.0
    %1374 = vmatprep.subr.mxu0 0.0
    %1375 = vmatpush1.msra.mxu0 0.0
    %1376 = vmatprep.subr.mxu0 0.0
    %1377 = vmatpush1.msra.mxu0 0.0
    %1378 = vmatprep.subr.mxu0 0.0
    %1379 = vmatpush1.msra.mxu0 0.0
    %1380 = vmatprep.subr.mxu0 0.0
    %1381 = vmatpush1.msra.mxu0 0.0
    %1382 = vmatprep.mubr.f32.mxu0 0.0
    %1383 = vmatmul.mubr.f32.gmra.mrb[0].mxu0 %v1316
    %v1384 = vpop.f32.mrb[0].mxu0
    %v1385 = vadd.f32 %v1276, %v1384
    %v1386 = vpop.f32.mrb[0].mxu0
    %v1387 = vadd.f32 %v1278, %v1386
    %1388 = vdwg.mxu0
    %v1389 = vxor.u32 %v1385, 2147483648
    %v1390 = vxor.u32 %v1387, 2147483648
    %v1391 = vmul.f32 %v1389, 1.442695
    %v1392 = vpow.pop %v1391
    %v1393 = vmul.f32 %v1390, 1.442695
    %v1394 = vpow.pop %v1393
    %v1395 = vadd.f32 %v1392, 1.0
    %v1396 = vadd.f32 %v1394, 1.0
    %v1397 = vrcp.pop %v1395
    %v1398 = vmul.f32 1.0, %v1397
    %v1399 = vrcp.pop %v1396
    %v1400 = vmul.f32 1.0, %v1399
    %v1401 = vtanh.pop %v1387
    %v1402 = vmul.f32 %v1398, %v1128
    %1404 = vrot.lane.b32.xlu0 %v1401, 64
    %v1405 = vpop.permute.xlu0 %1404
    %v1407 = vmul.f32 %v1398, %v1405
    %1409 = vrot.lane.b32.xlu0 %v1407, 64
    %v1410 = vpop.permute.xlu0 %1409
    %v1412 = vadd.f32 %v1402, %v1410
    %v1413 = vtanh.pop %v1412
    %1415 = vrot.lane.b32.xlu0 %v1413, 64
    %v1416 = vpop.permute.xlu0 %1415
    %v1418 = vmul.f32 %v1400, %v1416
    %1419 = vmatprep.subr.mxu0 %v234
    %1420 = vmatpush1.msra.mxu0 %v233
    %1421 = vmatprep.subr.mxu0 %v236
    %1422 = vmatpush1.msra.mxu0 %v235
    %1423 = vmatprep.subr.mxu0 %v238
    %1424 = vmatpush1.msra.mxu0 %v237
    %1425 = vmatprep.subr.mxu0 %v240
    %1426 = vmatpush1.msra.mxu0 %v239
    %1427 = vmatprep.subr.mxu0 %v242
    %1428 = vmatpush1.msra.mxu0 %v241
    %1429 = vmatprep.subr.mxu0 %v244
    %1430 = vmatpush1.msra.mxu0 %v243
    %1431 = vmatprep.subr.mxu0 %v246
    %1432 = vmatpush1.msra.mxu0 %v245
    %1433 = vmatprep.subr.mxu0 %v248
    %1434 = vmatpush1.msra.mxu0 %v247
    %1435 = vmatprep.subr.mxu0 0.0
    %1436 = vmatpush1.msra.mxu0 0.0
    %1437 = vmatprep.subr.mxu0 0.0
    %1438 = vmatpush1.msra.mxu0 0.0
    %1439 = vmatprep.subr.mxu0 0.0
    %1440 = vmatpush1.msra.mxu0 0.0
    %1441 = vmatprep.subr.mxu0 0.0
    %1442 = vmatpush1.msra.mxu0 0.0
    %1443 = vmatprep.subr.mxu0 0.0
    %1444 = vmatpush1.msra.mxu0 0.0
    %1445 = vmatprep.subr.mxu0 0.0
    %1446 = vmatpush1.msra.mxu0 0.0
    %1447 = vmatprep.subr.mxu0 0.0
    %1448 = vmatpush1.msra.mxu0 0.0
    %1449 = vmatprep.subr.mxu0 0.0
    %1450 = vmatpush1.msra.mxu0 0.0
    %1451 = vmatprep.subr.mxu0 0.0
    %1452 = vmatpush1.msra.mxu0 0.0
    %1453 = vmatprep.subr.mxu0 0.0
    %1454 = vmatpush1.msra.mxu0 0.0
    %1455 = vmatprep.subr.mxu0 0.0
    %1456 = vmatpush1.msra.mxu0 0.0
    %1457 = vmatprep.subr.mxu0 0.0
    %1458 = vmatpush1.msra.mxu0 0.0
    %1459 = vmatprep.subr.mxu0 0.0
    %1460 = vmatpush1.msra.mxu0 0.0
    %1461 = vmatprep.subr.mxu0 0.0
    %1462 = vmatpush1.msra.mxu0 0.0
    %1463 = vmatprep.subr.mxu0 0.0
    %1464 = vmatpush1.msra.mxu0 0.0
    %1465 = vmatprep.subr.mxu0 0.0
    %1466 = vmatpush1.msra.mxu0 0.0
    %1467 = vmatprep.subr.mxu0 0.0
    %1468 = vmatpush1.msra.mxu0 0.0
    %1469 = vmatprep.subr.mxu0 0.0
    %1470 = vmatpush1.msra.mxu0 0.0
    %1471 = vmatprep.subr.mxu0 0.0
    %1472 = vmatpush1.msra.mxu0 0.0
    %1473 = vmatprep.subr.mxu0 0.0
    %1474 = vmatpush1.msra.mxu0 0.0
    %1475 = vmatprep.subr.mxu0 0.0
    %1476 = vmatpush1.msra.mxu0 0.0
    %1477 = vmatprep.subr.mxu0 0.0
    %1478 = vmatpush1.msra.mxu0 0.0
    %1479 = vmatprep.subr.mxu0 0.0
    %1480 = vmatpush1.msra.mxu0 0.0
    %1481 = vmatprep.subr.mxu0 0.0
    %1482 = vmatpush1.msra.mxu0 0.0
    %1483 = vmatprep.mubr.f32.mxu0 0.0
    %1484 = vmatmul.mubr.f32.gmra.mrb[0].mxu0 %v1316
    %v1485 = vpop.f32.mrb[0].mxu0
    %v1486 = vadd.f32 0.0, %v1485
    %v1487 = vpop.f32.mrb[0].mxu0
    %v1488 = vadd.f32 0.0, %v1487
    %1489 = vdwg.mxu0
    %v1491 = vsel %vm249, %v1418, 0
    %1493 = vmatprep.subr.mxu0 %v326
    %1494 = vmatpush1.msra.mxu0 %v325
    %1495 = vmatprep.subr.mxu0 %v328
    %1496 = vmatpush1.msra.mxu0 %v327
    %1497 = vmatprep.subr.mxu0 %v330
    %1498 = vmatpush1.msra.mxu0 %v329
    %1499 = vmatprep.subr.mxu0 %v332
    %1500 = vmatpush1.msra.mxu0 %v331
    %1501 = vmatprep.subr.mxu0 %v334
    %1502 = vmatpush1.msra.mxu0 %v333
    %1503 = vmatprep.subr.mxu0 %v336
    %1504 = vmatpush1.msra.mxu0 %v335
    %1505 = vmatprep.subr.mxu0 %v338
    %1506 = vmatpush1.msra.mxu0 %v337
    %1507 = vmatprep.subr.mxu0 %v340
    %1508 = vmatpush1.msra.mxu0 %v339
    %1509 = vmatprep.subr.mxu0 0.0
    %1510 = vmatpush1.msra.mxu0 0.0
    %1511 = vmatprep.subr.mxu0 0.0
    %1512 = vmatpush1.msra.mxu0 0.0
    %1513 = vmatprep.subr.mxu0 0.0
    %1514 = vmatpush1.msra.mxu0 0.0
    %1515 = vmatprep.subr.mxu0 0.0
    %1516 = vmatpush1.msra.mxu0 0.0
    %1517 = vmatprep.subr.mxu0 0.0
    %1518 = vmatpush1.msra.mxu0 0.0
    %1519 = vmatprep.subr.mxu0 0.0
    %1520 = vmatpush1.msra.mxu0 0.0
    %1521 = vmatprep.subr.mxu0 0.0
    %1522 = vmatpush1.msra.mxu0 0.0
    %1523 = vmatprep.subr.mxu0 0.0
    %1524 = vmatpush1.msra.mxu0 0.0
    %1525 = vmatprep.subr.mxu0 0.0
    %1526 = vmatpush1.msra.mxu0 0.0
    %1527 = vmatprep.subr.mxu0 0.0
    %1528 = vmatpush1.msra.mxu0 0.0
    %1529 = vmatprep.subr.mxu0 0.0
    %1530 = vmatpush1.msra.mxu0 0.0
    %1531 = vmatprep.subr.mxu0 0.0
    %1532 = vmatpush1.msra.mxu0 0.0
    %1533 = vmatprep.subr.mxu0 0.0
    %1534 = vmatpush1.msra.mxu0 0.0
    %1535 = vmatprep.subr.mxu0 0.0
    %1536 = vmatpush1.msra.mxu0 0.0
    %1537 = vmatprep.subr.mxu0 0.0
    %1538 = vmatpush1.msra.mxu0 0.0
    %1539 = vmatprep.subr.mxu0 0.0
    %1540 = vmatpush1.msra.mxu0 0.0
    %1541 = vmatprep.subr.mxu0 0.0
    %1542 = vmatpush1.msra.mxu0 0.0
    %1543 = vmatprep.subr.mxu0 0.0
    %1544 = vmatpush1.msra.mxu0 0.0
    %1545 = vmatprep.subr.mxu0 0.0
    %1546 = vmatpush1.msra.mxu0 0.0
    %1547 = vmatprep.subr.mxu0 0.0
    %1548 = vmatpush1.msra.mxu0 0.0
    %1549 = vmatprep.subr.mxu0 0.0
    %1550 = vmatpush1.msra.mxu0 0.0
    %1551 = vmatprep.subr.mxu0 0.0
    %1552 = vmatpush1.msra.mxu0 0.0
    %1553 = vmatprep.subr.mxu0 0.0
    %1554 = vmatpush1.msra.mxu0 0.0
    %1555 = vmatprep.subr.mxu0 0.0
    %1556 = vmatpush1.msra.mxu0 0.0
    %1557 = vmatprep.mubr.f32.mxu0 0.0
    %1558 = vmatmul.mubr.f32.gmra.mrb[0].mxu0 %v1491
    %v1559 = vpop.f32.mrb[0].mxu0
    %v1560 = vadd.f32 %v209, %v1559
    %v1561 = vpop.f32.mrb[0].mxu0
    %v1562 = vadd.f32 %v213, %v1561
    %1563 = vdwg.mxu0
    %s1564 = scalar_lea.vmem [#allocation2], 64
    %v1565 = vld [vmem:[%s1564] sm:$0xff]
    %v1566 = vld [vmem:[%s1564 + $0x8] sm:$0xff]
    %v1567 = vadd.f32 %v1565, %v1486
    %v1568 = vadd.f32 %v1566, %v1488
    %v1569 = vxor.u32 %v1567, 2147483648
    %v1570 = vxor.u32 %v1568, 2147483648
    %v1571 = vmul.f32 %v1569, 1.442695
    %v1572 = vpow.pop %v1571
    %v1573 = vmul.f32 %v1570, 1.442695
    %v1574 = vpow.pop %v1573
    %v1575 = vadd.f32 %v1572, 1.0
    %v1576 = vadd.f32 %v1574, 1.0
    %v1577 = vrcp.pop %v1575
    %v1578 = vmul.f32 1.0, %v1577
    %v1579 = vrcp.pop %v1576
    %v1580 = vmul.f32 1.0, %v1579
    %v1581 = vtanh.pop %v1568
    %v1582 = vmul.f32 %v1578, %v1308
    %1584 = vrot.lane.b32.xlu0 %v1581, 64
    %v1585 = vpop.permute.xlu0 %1584
    %v1587 = vmul.f32 %v1578, %v1585
    %1589 = vrot.lane.b32.xlu0 %v1587, 64
    %v1590 = vpop.permute.xlu0 %1589
    %v1592 = vadd.f32 %v1582, %v1590
    %v1593 = vtanh.pop %v1592
    %1595 = vrot.lane.b32.xlu0 %v1593, 64
    %v1596 = vpop.permute.xlu0 %1595
    %v1598 = vmul.f32 %v1580, %v1596
    %v1600 = vsel %vm249, %v1598, 0
    %1602 = vmatprep.subr.mxu0 %v448
    %1603 = vmatpush1.msra.mxu0 %v447
    %1604 = vmatprep.subr.mxu0 %v450
    %1605 = vmatpush1.msra.mxu0 %v449
    %1606 = vmatprep.subr.mxu0 %v452
    %1607 = vmatpush1.msra.mxu0 %v451
    %1608 = vmatprep.subr.mxu0 %v454
    %1609 = vmatpush1.msra.mxu0 %v453
    %1610 = vmatprep.subr.mxu0 %v456
    %1611 = vmatpush1.msra.mxu0 %v455
    %1612 = vmatprep.subr.mxu0 %v458
    %1613 = vmatpush1.msra.mxu0 %v457
    %1614 = vmatprep.subr.mxu0 %v460
    %1615 = vmatpush1.msra.mxu0 %v459
    %1616 = vmatprep.subr.mxu0 %v462
    %1617 = vmatpush1.msra.mxu0 %v461
    %1618 = vmatprep.subr.mxu0 0.0
    %1619 = vmatpush1.msra.mxu0 0.0
    %1620 = vmatprep.subr.mxu0 0.0
    %1621 = vmatpush1.msra.mxu0 0.0
    %1622 = vmatprep.subr.mxu0 0.0
    %1623 = vmatpush1.msra.mxu0 0.0
    %1624 = vmatprep.subr.mxu0 0.0
    %1625 = vmatpush1.msra.mxu0 0.0
    %1626 = vmatprep.subr.mxu0 0.0
    %1627 = vmatpush1.msra.mxu0 0.0
    %1628 = vmatprep.subr.mxu0 0.0
    %1629 = vmatpush1.msra.mxu0 0.0
    %1630 = vmatprep.subr.mxu0 0.0
    %1631 = vmatpush1.msra.mxu0 0.0
    %1632 = vmatprep.subr.mxu0 0.0
    %1633 = vmatpush1.msra.mxu0 0.0
    %1634 = vmatprep.subr.mxu0 0.0
    %1635 = vmatpush1.msra.mxu0 0.0
    %1636 = vmatprep.subr.mxu0 0.0
    %1637 = vmatpush1.msra.mxu0 0.0
    %1638 = vmatprep.subr.mxu0 0.0
    %1639 = vmatpush1.msra.mxu0 0.0
    %1640 = vmatprep.subr.mxu0 0.0
    %1641 = vmatpush1.msra.mxu0 0.0
    %1642 = vmatprep.subr.mxu0 0.0
    %1643 = vmatpush1.msra.mxu0 0.0
    %1644 = vmatprep.subr.mxu0 0.0
    %1645 = vmatpush1.msra.mxu0 0.0
    %1646 = vmatprep.subr.mxu0 0.0
    %1647 = vmatpush1.msra.mxu0 0.0
    %1648 = vmatprep.subr.mxu0 0.0
    %1649 = vmatpush1.msra.mxu0 0.0
    %1650 = vmatprep.subr.mxu0 0.0
    %1651 = vmatpush1.msra.mxu0 0.0
    %1652 = vmatprep.subr.mxu0 0.0
    %1653 = vmatpush1.msra.mxu0 0.0
    %1654 = vmatprep.subr.mxu0 0.0
    %1655 = vmatpush1.msra.mxu0 0.0
    %1656 = vmatprep.subr.mxu0 0.0
    %1657 = vmatpush1.msra.mxu0 0.0
    %1658 = vmatprep.subr.mxu0 0.0
    %1659 = vmatpush1.msra.mxu0 0.0
    %1660 = vmatprep.subr.mxu0 0.0
    %1661 = vmatpush1.msra.mxu0 0.0
    %1662 = vmatprep.subr.mxu0 0.0
    %1663 = vmatpush1.msra.mxu0 0.0
    %1664 = vmatprep.subr.mxu0 0.0
    %1665 = vmatpush1.msra.mxu0 0.0
    %1666 = vmatprep.mubr.f32.mxu0 0.0
    %1667 = vmatmul.mubr.f32.gmra.mrb[0].mxu0 %v1600
    %v1668 = vpop.f32.mrb[0].mxu0
    %v1669 = vadd.f32 %v1560, %v1668
    %v1670 = vpop.f32.mrb[0].mxu0
    %v1671 = vadd.f32 %v1562, %v1670
    %1672 = vdwg.mxu0
    %v1673 = vxor.u32 %v1669, 2147483648
    %v1674 = vxor.u32 %v1671, 2147483648
    %v1675 = vmul.f32 %v1673, 1.442695
    %v1676 = vpow.pop %v1675
    %v1677 = vmul.f32 %v1674, 1.442695
    %v1678 = vpow.pop %v1677
    %v1679 = vadd.f32 %v1676, 1.0
    %v1680 = vadd.f32 %v1678, 1.0
    %v1681 = vrcp.pop %v1679
    %v1682 = vmul.f32 1.0, %v1681
    %v1683 = vrcp.pop %v1680
    %v1684 = vmul.f32 1.0, %v1683
    %v1685 = vtanh.pop %v1671
    %v1686 = vmul.f32 %v1682, %v1412
    %1688 = vrot.lane.b32.xlu0 %v1685, 64
    %v1689 = vpop.permute.xlu0 %1688
    %v1691 = vmul.f32 %v1682, %v1689
    %1693 = vrot.lane.b32.xlu0 %v1691, 64
    %v1694 = vpop.permute.xlu0 %1693
    %v1696 = vadd.f32 %v1686, %v1694
    %v1697 = vtanh.pop %v1696
    %1699 = vrot.lane.b32.xlu0 %v1697, 64
    %v1700 = vpop.permute.xlu0 %1699
    %v1702 = vmul.f32 %v1684, %v1700
    %1703 = vmatprep.subr.mxu0 %v234
    %1704 = vmatpush1.msra.mxu0 %v233
    %1705 = vmatprep.subr.mxu0 %v236
    %1706 = vmatpush1.msra.mxu0 %v235
    %1707 = vmatprep.subr.mxu0 %v238
    %1708 = vmatpush1.msra.mxu0 %v237
    %1709 = vmatprep.subr.mxu0 %v240
    %1710 = vmatpush1.msra.mxu0 %v239
    %1711 = vmatprep.subr.mxu0 %v242
    %1712 = vmatpush1.msra.mxu0 %v241
    %1713 = vmatprep.subr.mxu0 %v244
    %1714 = vmatpush1.msra.mxu0 %v243
    %1715 = vmatprep.subr.mxu0 %v246
    %1716 = vmatpush1.msra.mxu0 %v245
    %1717 = vmatprep.subr.mxu0 %v248
    %1718 = vmatpush1.msra.mxu0 %v247
    %1719 = vmatprep.subr.mxu0 0.0
    %1720 = vmatpush1.msra.mxu0 0.0
    %1721 = vmatprep.subr.mxu0 0.0
    %1722 = vmatpush1.msra.mxu0 0.0
    %1723 = vmatprep.subr.mxu0 0.0
    %1724 = vmatpush1.msra.mxu0 0.0
    %1725 = vmatprep.subr.mxu0 0.0
    %1726 = vmatpush1.msra.mxu0 0.0
    %1727 = vmatprep.subr.mxu0 0.0
    %1728 = vmatpush1.msra.mxu0 0.0
    %1729 = vmatprep.subr.mxu0 0.0
    %1730 = vmatpush1.msra.mxu0 0.0
    %1731 = vmatprep.subr.mxu0 0.0
    %1732 = vmatpush1.msra.mxu0 0.0
    %1733 = vmatprep.subr.mxu0 0.0
    %1734 = vmatpush1.msra.mxu0 0.0
    %1735 = vmatprep.subr.mxu0 0.0
    %1736 = vmatpush1.msra.mxu0 0.0
    %1737 = vmatprep.subr.mxu0 0.0
    %1738 = vmatpush1.msra.mxu0 0.0
    %1739 = vmatprep.subr.mxu0 0.0
    %1740 = vmatpush1.msra.mxu0 0.0
    %1741 = vmatprep.subr.mxu0 0.0
    %1742 = vmatpush1.msra.mxu0 0.0
    %1743 = vmatprep.subr.mxu0 0.0
    %1744 = vmatpush1.msra.mxu0 0.0
    %1745 = vmatprep.subr.mxu0 0.0
    %1746 = vmatpush1.msra.mxu0 0.0
    %1747 = vmatprep.subr.mxu0 0.0
    %1748 = vmatpush1.msra.mxu0 0.0
    %1749 = vmatprep.subr.mxu0 0.0
    %1750 = vmatpush1.msra.mxu0 0.0
    %1751 = vmatprep.subr.mxu0 0.0
    %1752 = vmatpush1.msra.mxu0 0.0
    %1753 = vmatprep.subr.mxu0 0.0
    %1754 = vmatpush1.msra.mxu0 0.0
    %1755 = vmatprep.subr.mxu0 0.0
    %1756 = vmatpush1.msra.mxu0 0.0
    %1757 = vmatprep.subr.mxu0 0.0
    %1758 = vmatpush1.msra.mxu0 0.0
    %1759 = vmatprep.subr.mxu0 0.0
    %1760 = vmatpush1.msra.mxu0 0.0
    %1761 = vmatprep.subr.mxu0 0.0
    %1762 = vmatpush1.msra.mxu0 0.0
    %1763 = vmatprep.subr.mxu0 0.0
    %1764 = vmatpush1.msra.mxu0 0.0
    %1765 = vmatprep.subr.mxu0 0.0
    %1766 = vmatpush1.msra.mxu0 0.0
    %1767 = vmatprep.mubr.f32.mxu0 0.0
    %1768 = vmatmul.mubr.f32.gmra.mrb[0].mxu0 %v1600
    %v1769 = vpop.f32.mrb[0].mxu0
    %v1770 = vadd.f32 0.0, %v1769
    %v1771 = vpop.f32.mrb[0].mxu0
    %v1772 = vadd.f32 0.0, %v1771
    %1773 = vdwg.mxu0
    %v1775 = vsel %vm249, %v1702, 0
    %1777 = vmatprep.subr.mxu0 %v326
    %1778 = vmatpush1.msra.mxu0 %v325
    %1779 = vmatprep.subr.mxu0 %v328
    %1780 = vmatpush1.msra.mxu0 %v327
    %1781 = vmatprep.subr.mxu0 %v330
    %1782 = vmatpush1.msra.mxu0 %v329
    %1783 = vmatprep.subr.mxu0 %v332
    %1784 = vmatpush1.msra.mxu0 %v331
    %1785 = vmatprep.subr.mxu0 %v334
    %1786 = vmatpush1.msra.mxu0 %v333
    %1787 = vmatprep.subr.mxu0 %v336
    %1788 = vmatpush1.msra.mxu0 %v335
    %1789 = vmatprep.subr.mxu0 %v338
    %1790 = vmatpush1.msra.mxu0 %v337
    %1791 = vmatprep.subr.mxu0 %v340
    %1792 = vmatpush1.msra.mxu0 %v339
    %1793 = vmatprep.subr.mxu0 0.0
    %1794 = vmatpush1.msra.mxu0 0.0
    %1795 = vmatprep.subr.mxu0 0.0
    %1796 = vmatpush1.msra.mxu0 0.0
    %1797 = vmatprep.subr.mxu0 0.0
    %1798 = vmatpush1.msra.mxu0 0.0
    %1799 = vmatprep.subr.mxu0 0.0
    %1800 = vmatpush1.msra.mxu0 0.0
    %1801 = vmatprep.subr.mxu0 0.0
    %1802 = vmatpush1.msra.mxu0 0.0
    %1803 = vmatprep.subr.mxu0 0.0
    %1804 = vmatpush1.msra.mxu0 0.0
    %1805 = vmatprep.subr.mxu0 0.0
    %1806 = vmatpush1.msra.mxu0 0.0
    %1807 = vmatprep.subr.mxu0 0.0
    %1808 = vmatpush1.msra.mxu0 0.0
    %1809 = vmatprep.subr.mxu0 0.0
    %1810 = vmatpush1.msra.mxu0 0.0
    %1811 = vmatprep.subr.mxu0 0.0
    %1812 = vmatpush1.msra.mxu0 0.0
    %1813 = vmatprep.subr.mxu0 0.0
    %1814 = vmatpush1.msra.mxu0 0.0
    %1815 = vmatprep.subr.mxu0 0.0
    %1816 = vmatpush1.msra.mxu0 0.0
    %1817 = vmatprep.subr.mxu0 0.0
    %1818 = vmatpush1.msra.mxu0 0.0
    %1819 = vmatprep.subr.mxu0 0.0
    %1820 = vmatpush1.msra.mxu0 0.0
    %1821 = vmatprep.subr.mxu0 0.0
    %1822 = vmatpush1.msra.mxu0 0.0
    %1823 = vmatprep.subr.mxu0 0.0
    %1824 = vmatpush1.msra.mxu0 0.0
    %1825 = vmatprep.subr.mxu0 0.0
    %1826 = vmatpush1.msra.mxu0 0.0
    %1827 = vmatprep.subr.mxu0 0.0
    %1828 = vmatpush1.msra.mxu0 0.0
    %1829 = vmatprep.subr.mxu0 0.0
    %1830 = vmatpush1.msra.mxu0 0.0
    %1831 = vmatprep.subr.mxu0 0.0
    %1832 = vmatpush1.msra.mxu0 0.0
    %1833 = vmatprep.subr.mxu0 0.0
    %1834 = vmatpush1.msra.mxu0 0.0
    %1835 = vmatprep.subr.mxu0 0.0
    %1836 = vmatpush1.msra.mxu0 0.0
    %1837 = vmatprep.subr.mxu0 0.0
    %1838 = vmatpush1.msra.mxu0 0.0
    %1839 = vmatprep.subr.mxu0 0.0
    %1840 = vmatpush1.msra.mxu0 0.0
    %1841 = vmatprep.mubr.f32.mxu0 0.0
    %1842 = vmatmul.mubr.f32.gmra.mrb[0].mxu0 %v1775
    %v1843 = vpop.f32.mrb[0].mxu0
    %v1844 = vadd.f32 %v209, %v1843
    %v1845 = vpop.f32.mrb[0].mxu0
    %v1846 = vadd.f32 %v213, %v1845
    %1847 = vdwg.mxu0
    %s1848 = scalar_lea.vmem [#allocation2], 80
    %v1849 = vld [vmem:[%s1848] sm:$0xff]
    %v1850 = vld [vmem:[%s1848 + $0x8] sm:$0xff]
    %v1851 = vadd.f32 %v1849, %v1770
    %v1852 = vadd.f32 %v1850, %v1772
    %v1853 = vxor.u32 %v1851, 2147483648
    %v1854 = vxor.u32 %v1852, 2147483648
    %v1855 = vmul.f32 %v1853, 1.442695
    %v1856 = vpow.pop %v1855
    %v1857 = vmul.f32 %v1854, 1.442695
    %v1858 = vpow.pop %v1857
    %v1859 = vadd.f32 %v1856, 1.0
    %v1860 = vadd.f32 %v1858, 1.0
    %v1861 = vrcp.pop %v1859
    %v1862 = vmul.f32 1.0, %v1861
    %v1863 = vrcp.pop %v1860
    %v1864 = vmul.f32 1.0, %v1863
    %v1865 = vtanh.pop %v1852
    %v1866 = vmul.f32 %v1862, %v1592
    %1868 = vrot.lane.b32.xlu0 %v1865, 64
    %v1869 = vpop.permute.xlu0 %1868
    %v1871 = vmul.f32 %v1862, %v1869
    %1873 = vrot.lane.b32.xlu0 %v1871, 64
    %v1874 = vpop.permute.xlu0 %1873
    %v1876 = vadd.f32 %v1866, %v1874
    %v1877 = vtanh.pop %v1876
    %1879 = vrot.lane.b32.xlu0 %v1877, 64
    %v1880 = vpop.permute.xlu0 %1879
    %v1882 = vmul.f32 %v1864, %v1880
    %v1884 = vsel %vm249, %v1882, 0
    %1886 = vmatprep.subr.mxu0 %v448
    %1887 = vmatpush1.msra.mxu0 %v447
    %1888 = vmatprep.subr.mxu0 %v450
    %1889 = vmatpush1.msra.mxu0 %v449
    %1890 = vmatprep.subr.mxu0 %v452
    %1891 = vmatpush1.msra.mxu0 %v451
    %1892 = vmatprep.subr.mxu0 %v454
    %1893 = vmatpush1.msra.mxu0 %v453
    %1894 = vmatprep.subr.mxu0 %v456
    %1895 = vmatpush1.msra.mxu0 %v455
    %1896 = vmatprep.subr.mxu0 %v458
    %1897 = vmatpush1.msra.mxu0 %v457
    %1898 = vmatprep.subr.mxu0 %v460
    %1899 = vmatpush1.msra.mxu0 %v459
    %1900 = vmatprep.subr.mxu0 %v462
    %1901 = vmatpush1.msra.mxu0 %v461
    %1902 = vmatprep.subr.mxu0 0.0
    %1903 = vmatpush1.msra.mxu0 0.0
    %1904 = vmatprep.subr.mxu0 0.0
    %1905 = vmatpush1.msra.mxu0 0.0
    %1906 = vmatprep.subr.mxu0 0.0
    %1907 = vmatpush1.msra.mxu0 0.0
    %1908 = vmatprep.subr.mxu0 0.0
    %1909 = vmatpush1.msra.mxu0 0.0
    %1910 = vmatprep.subr.mxu0 0.0
    %1911 = vmatpush1.msra.mxu0 0.0
    %1912 = vmatprep.subr.mxu0 0.0
    %1913 = vmatpush1.msra.mxu0 0.0
    %1914 = vmatprep.subr.mxu0 0.0
    %1915 = vmatpush1.msra.mxu0 0.0
    %1916 = vmatprep.subr.mxu0 0.0
    %1917 = vmatpush1.msra.mxu0 0.0
    %1918 = vmatprep.subr.mxu0 0.0
    %1919 = vmatpush1.msra.mxu0 0.0
    %1920 = vmatprep.subr.mxu0 0.0
    %1921 = vmatpush1.msra.mxu0 0.0
    %1922 = vmatprep.subr.mxu0 0.0
    %1923 = vmatpush1.msra.mxu0 0.0
    %1924 = vmatprep.subr.mxu0 0.0
    %1925 = vmatpush1.msra.mxu0 0.0
    %1926 = vmatprep.subr.mxu0 0.0
    %1927 = vmatpush1.msra.mxu0 0.0
    %1928 = vmatprep.subr.mxu0 0.0
    %1929 = vmatpush1.msra.mxu0 0.0
    %1930 = vmatprep.subr.mxu0 0.0
    %1931 = vmatpush1.msra.mxu0 0.0
    %1932 = vmatprep.subr.mxu0 0.0
    %1933 = vmatpush1.msra.mxu0 0.0
    %1934 = vmatprep.subr.mxu0 0.0
    %1935 = vmatpush1.msra.mxu0 0.0
    %1936 = vmatprep.subr.mxu0 0.0
    %1937 = vmatpush1.msra.mxu0 0.0
    %1938 = vmatprep.subr.mxu0 0.0
    %1939 = vmatpush1.msra.mxu0 0.0
    %1940 = vmatprep.subr.mxu0 0.0
    %1941 = vmatpush1.msra.mxu0 0.0
    %1942 = vmatprep.subr.mxu0 0.0
    %1943 = vmatpush1.msra.mxu0 0.0
    %1944 = vmatprep.subr.mxu0 0.0
    %1945 = vmatpush1.msra.mxu0 0.0
    %1946 = vmatprep.subr.mxu0 0.0
    %1947 = vmatpush1.msra.mxu0 0.0
    %1948 = vmatprep.subr.mxu0 0.0
    %1949 = vmatpush1.msra.mxu0 0.0
    %1950 = vmatprep.mubr.f32.mxu0 0.0
    %1951 = vmatmul.mubr.f32.gmra.mrb[0].mxu0 %v1884
    %v1952 = vpop.f32.mrb[0].mxu0
    %v1953 = vadd.f32 %v1844, %v1952
    %v1954 = vpop.f32.mrb[0].mxu0
    %v1955 = vadd.f32 %v1846, %v1954
    %1956 = vdwg.mxu0
    %v1957 = vxor.u32 %v1953, 2147483648
    %v1958 = vxor.u32 %v1955, 2147483648
    %v1959 = vmul.f32 %v1957, 1.442695
    %v1960 = vpow.pop %v1959
    %v1961 = vmul.f32 %v1958, 1.442695
    %v1962 = vpow.pop %v1961
    %v1963 = vadd.f32 %v1960, 1.0
    %v1964 = vadd.f32 %v1962, 1.0
    %v1965 = vrcp.pop %v1963
    %v1966 = vmul.f32 1.0, %v1965
    %v1967 = vrcp.pop %v1964
    %v1968 = vmul.f32 1.0, %v1967
    %v1969 = vtanh.pop %v1955
    %v1970 = vmul.f32 %v1966, %v1696
    %1972 = vrot.lane.b32.xlu0 %v1969, 64
    %v1973 = vpop.permute.xlu0 %1972
    %v1975 = vmul.f32 %v1966, %v1973
    %1977 = vrot.lane.b32.xlu0 %v1975, 64
    %v1978 = vpop.permute.xlu0 %1977
    %v1980 = vadd.f32 %v1970, %v1978
    %v1981 = vtanh.pop %v1980
    %1983 = vrot.lane.b32.xlu0 %v1981, 64
    %v1984 = vpop.permute.xlu0 %1983
    %v1986 = vmul.f32 %v1968, %v1984
    %1987 = vmatprep.subr.mxu0 %v234
    %1988 = vmatpush1.msra.mxu0 %v233
    %1989 = vmatprep.subr.mxu0 %v236
    %1990 = vmatpush1.msra.mxu0 %v235
    %1991 = vmatprep.subr.mxu0 %v238
    %1992 = vmatpush1.msra.mxu0 %v237
    %1993 = vmatprep.subr.mxu0 %v240
    %1994 = vmatpush1.msra.mxu0 %v239
    %1995 = vmatprep.subr.mxu0 %v242
    %1996 = vmatpush1.msra.mxu0 %v241
    %1997 = vmatprep.subr.mxu0 %v244
    %1998 = vmatpush1.msra.mxu0 %v243
    %1999 = vmatprep.subr.mxu0 %v246
    %2000 = vmatpush1.msra.mxu0 %v245
    %2001 = vmatprep.subr.mxu0 %v248
    %2002 = vmatpush1.msra.mxu0 %v247
    %2003 = vmatprep.subr.mxu0 0.0
    %2004 = vmatpush1.msra.mxu0 0.0
    %2005 = vmatprep.subr.mxu0 0.0
    %2006 = vmatpush1.msra.mxu0 0.0
    %2007 = vmatprep.subr.mxu0 0.0
    %2008 = vmatpush1.msra.mxu0 0.0
    %2009 = vmatprep.subr.mxu0 0.0
    %2010 = vmatpush1.msra.mxu0 0.0
    %2011 = vmatprep.subr.mxu0 0.0
    %2012 = vmatpush1.msra.mxu0 0.0
    %2013 = vmatprep.subr.mxu0 0.0
    %2014 = vmatpush1.msra.mxu0 0.0
    %2015 = vmatprep.subr.mxu0 0.0
    %2016 = vmatpush1.msra.mxu0 0.0
    %2017 = vmatprep.subr.mxu0 0.0
    %2018 = vmatpush1.msra.mxu0 0.0
    %2019 = vmatprep.subr.mxu0 0.0
    %2020 = vmatpush1.msra.mxu0 0.0
    %2021 = vmatprep.subr.mxu0 0.0
    %2022 = vmatpush1.msra.mxu0 0.0
    %2023 = vmatprep.subr.mxu0 0.0
    %2024 = vmatpush1.msra.mxu0 0.0
    %2025 = vmatprep.subr.mxu0 0.0
    %2026 = vmatpush1.msra.mxu0 0.0
    %2027 = vmatprep.subr.mxu0 0.0
    %2028 = vmatpush1.msra.mxu0 0.0
    %2029 = vmatprep.subr.mxu0 0.0
    %2030 = vmatpush1.msra.mxu0 0.0
    %2031 = vmatprep.subr.mxu0 0.0
    %2032 = vmatpush1.msra.mxu0 0.0
    %2033 = vmatprep.subr.mxu0 0.0
    %2034 = vmatpush1.msra.mxu0 0.0
    %2035 = vmatprep.subr.mxu0 0.0
    %2036 = vmatpush1.msra.mxu0 0.0
    %2037 = vmatprep.subr.mxu0 0.0
    %2038 = vmatpush1.msra.mxu0 0.0
    %2039 = vmatprep.subr.mxu0 0.0
    %2040 = vmatpush1.msra.mxu0 0.0
    %2041 = vmatprep.subr.mxu0 0.0
    %2042 = vmatpush1.msra.mxu0 0.0
    %2043 = vmatprep.subr.mxu0 0.0
    %2044 = vmatpush1.msra.mxu0 0.0
    %2045 = vmatprep.subr.mxu0 0.0
    %2046 = vmatpush1.msra.mxu0 0.0
    %2047 = vmatprep.subr.mxu0 0.0
    %2048 = vmatpush1.msra.mxu0 0.0
    %2049 = vmatprep.subr.mxu0 0.0
    %2050 = vmatpush1.msra.mxu0 0.0
    %2051 = vmatprep.mubr.f32.mxu0 0.0
    %2052 = vmatmul.mubr.f32.gmra.mrb[0].mxu0 %v1884
    %v2053 = vpop.f32.mrb[0].mxu0
    %v2054 = vadd.f32 0.0, %v2053
    %v2055 = vpop.f32.mrb[0].mxu0
    %v2056 = vadd.f32 0.0, %v2055
    %2057 = vdwg.mxu0
    %v2059 = vsel %vm249, %v1986, 0
    %2061 = vmatprep.subr.mxu0 %v326
    %2062 = vmatpush1.msra.mxu0 %v325
    %2063 = vmatprep.subr.mxu0 %v328
    %2064 = vmatpush1.msra.mxu0 %v327
    %2065 = vmatprep.subr.mxu0 %v330
    %2066 = vmatpush1.msra.mxu0 %v329
    %2067 = vmatprep.subr.mxu0 %v332
    %2068 = vmatpush1.msra.mxu0 %v331
    %2069 = vmatprep.subr.mxu0 %v334
    %2070 = vmatpush1.msra.mxu0 %v333
    %2071 = vmatprep.subr.mxu0 %v336
    %2072 = vmatpush1.msra.mxu0 %v335
    %2073 = vmatprep.subr.mxu0 %v338
    %2074 = vmatpush1.msra.mxu0 %v337
    %2075 = vmatprep.subr.mxu0 %v340
    %2076 = vmatpush1.msra.mxu0 %v339
    %2077 = vmatprep.subr.mxu0 0.0
    %2078 = vmatpush1.msra.mxu0 0.0
    %2079 = vmatprep.subr.mxu0 0.0
    %2080 = vmatpush1.msra.mxu0 0.0
    %2081 = vmatprep.subr.mxu0 0.0
    %2082 = vmatpush1.msra.mxu0 0.0
    %2083 = vmatprep.subr.mxu0 0.0
    %2084 = vmatpush1.msra.mxu0 0.0
    %2085 = vmatprep.subr.mxu0 0.0
    %2086 = vmatpush1.msra.mxu0 0.0
    %2087 = vmatprep.subr.mxu0 0.0
    %2088 = vmatpush1.msra.mxu0 0.0
    %2089 = vmatprep.subr.mxu0 0.0
    %2090 = vmatpush1.msra.mxu0 0.0
    %2091 = vmatprep.subr.mxu0 0.0
    %2092 = vmatpush1.msra.mxu0 0.0
    %2093 = vmatprep.subr.mxu0 0.0
    %2094 = vmatpush1.msra.mxu0 0.0
    %2095 = vmatprep.subr.mxu0 0.0
    %2096 = vmatpush1.msra.mxu0 0.0
    %2097 = vmatprep.subr.mxu0 0.0
    %2098 = vmatpush1.msra.mxu0 0.0
    %2099 = vmatprep.subr.mxu0 0.0
    %2100 = vmatpush1.msra.mxu0 0.0
    %2101 = vmatprep.subr.mxu0 0.0
    %2102 = vmatpush1.msra.mxu0 0.0
    %2103 = vmatprep.subr.mxu0 0.0
    %2104 = vmatpush1.msra.mxu0 0.0
    %2105 = vmatprep.subr.mxu0 0.0
    %2106 = vmatpush1.msra.mxu0 0.0
    %2107 = vmatprep.subr.mxu0 0.0
    %2108 = vmatpush1.msra.mxu0 0.0
    %2109 = vmatprep.subr.mxu0 0.0
    %2110 = vmatpush1.msra.mxu0 0.0
    %2111 = vmatprep.subr.mxu0 0.0
    %2112 = vmatpush1.msra.mxu0 0.0
    %2113 = vmatprep.subr.mxu0 0.0
    %2114 = vmatpush1.msra.mxu0 0.0
    %2115 = vmatprep.subr.mxu0 0.0
    %2116 = vmatpush1.msra.mxu0 0.0
    %2117 = vmatprep.subr.mxu0 0.0
    %2118 = vmatpush1.msra.mxu0 0.0
    %2119 = vmatprep.subr.mxu0 0.0
    %2120 = vmatpush1.msra.mxu0 0.0
    %2121 = vmatprep.subr.mxu0 0.0
    %2122 = vmatpush1.msra.mxu0 0.0
    %2123 = vmatprep.subr.mxu0 0.0
    %2124 = vmatpush1.msra.mxu0 0.0
    %2125 = vmatprep.mubr.f32.mxu0 0.0
    %2126 = vmatmul.mubr.f32.gmra.mrb[0].mxu0 %v2059
    %v2127 = vpop.f32.mrb[0].mxu0
    %v2128 = vadd.f32 %v209, %v2127
    %v2129 = vpop.f32.mrb[0].mxu0
    %v2130 = vadd.f32 %v213, %v2129
    %2131 = vdwg.mxu0
    %s2132 = scalar_lea.vmem [#allocation2], 96
    %v2133 = vld [vmem:[%s2132] sm:$0xff]
    %v2134 = vld [vmem:[%s2132 + $0x8] sm:$0xff]
    %v2135 = vadd.f32 %v2133, %v2054
    %v2136 = vadd.f32 %v2134, %v2056
    %v2137 = vxor.u32 %v2135, 2147483648
    %v2138 = vxor.u32 %v2136, 2147483648
    %v2139 = vmul.f32 %v2137, 1.442695
    %v2140 = vpow.pop %v2139
    %v2141 = vmul.f32 %v2138, 1.442695
    %v2142 = vpow.pop %v2141
    %v2143 = vadd.f32 %v2140, 1.0
    %v2144 = vadd.f32 %v2142, 1.0
    %v2145 = vrcp.pop %v2143
    %v2146 = vmul.f32 1.0, %v2145
    %v2147 = vrcp.pop %v2144
    %v2148 = vmul.f32 1.0, %v2147
    %v2149 = vtanh.pop %v2136
    %v2150 = vmul.f32 %v2146, %v1876
    %2152 = vrot.lane.b32.xlu0 %v2149, 64
    %v2153 = vpop.permute.xlu0 %2152
    %v2155 = vmul.f32 %v2146, %v2153
    %2157 = vrot.lane.b32.xlu0 %v2155, 64
    %v2158 = vpop.permute.xlu0 %2157
    %v2160 = vadd.f32 %v2150, %v2158
    %v2161 = vtanh.pop %v2160
    %2163 = vrot.lane.b32.xlu0 %v2161, 64
    %v2164 = vpop.permute.xlu0 %2163
    %v2166 = vmul.f32 %v2148, %v2164
    %v2168 = vsel %vm249, %v2166, 0
    %2170 = vmatprep.subr.mxu0 %v448
    %2171 = vmatpush1.msra.mxu0 %v447
    %2172 = vmatprep.subr.mxu0 %v450
    %2173 = vmatpush1.msra.mxu0 %v449
    %2174 = vmatprep.subr.mxu0 %v452
    %2175 = vmatpush1.msra.mxu0 %v451
    %2176 = vmatprep.subr.mxu0 %v454
    %2177 = vmatpush1.msra.mxu0 %v453
    %2178 = vmatprep.subr.mxu0 %v456
    %2179 = vmatpush1.msra.mxu0 %v455
    %2180 = vmatprep.subr.mxu0 %v458
    %2181 = vmatpush1.msra.mxu0 %v457
    %2182 = vmatprep.subr.mxu0 %v460
    %2183 = vmatpush1.msra.mxu0 %v459
    %2184 = vmatprep.subr.mxu0 %v462
    %2185 = vmatpush1.msra.mxu0 %v461
    %2186 = vmatprep.subr.mxu0 0.0
    %2187 = vmatpush1.msra.mxu0 0.0
    %2188 = vmatprep.subr.mxu0 0.0
    %2189 = vmatpush1.msra.mxu0 0.0
    %2190 = vmatprep.subr.mxu0 0.0
    %2191 = vmatpush1.msra.mxu0 0.0
    %2192 = vmatprep.subr.mxu0 0.0
    %2193 = vmatpush1.msra.mxu0 0.0
    %2194 = vmatprep.subr.mxu0 0.0
    %2195 = vmatpush1.msra.mxu0 0.0
    %2196 = vmatprep.subr.mxu0 0.0
    %2197 = vmatpush1.msra.mxu0 0.0
    %2198 = vmatprep.subr.mxu0 0.0
    %2199 = vmatpush1.msra.mxu0 0.0
    %2200 = vmatprep.subr.mxu0 0.0
    %2201 = vmatpush1.msra.mxu0 0.0
    %2202 = vmatprep.subr.mxu0 0.0
    %2203 = vmatpush1.msra.mxu0 0.0
    %2204 = vmatprep.subr.mxu0 0.0
    %2205 = vmatpush1.msra.mxu0 0.0
    %2206 = vmatprep.subr.mxu0 0.0
    %2207 = vmatpush1.msra.mxu0 0.0
    %2208 = vmatprep.subr.mxu0 0.0
    %2209 = vmatpush1.msra.mxu0 0.0
    %2210 = vmatprep.subr.mxu0 0.0
    %2211 = vmatpush1.msra.mxu0 0.0
    %2212 = vmatprep.subr.mxu0 0.0
    %2213 = vmatpush1.msra.mxu0 0.0
    %2214 = vmatprep.subr.mxu0 0.0
    %2215 = vmatpush1.msra.mxu0 0.0
    %2216 = vmatprep.subr.mxu0 0.0
    %2217 = vmatpush1.msra.mxu0 0.0
    %2218 = vmatprep.subr.mxu0 0.0
    %2219 = vmatpush1.msra.mxu0 0.0
    %2220 = vmatprep.subr.mxu0 0.0
    %2221 = vmatpush1.msra.mxu0 0.0
    %2222 = vmatprep.subr.mxu0 0.0
    %2223 = vmatpush1.msra.mxu0 0.0
    %2224 = vmatprep.subr.mxu0 0.0
    %2225 = vmatpush1.msra.mxu0 0.0
    %2226 = vmatprep.subr.mxu0 0.0
    %2227 = vmatpush1.msra.mxu0 0.0
    %2228 = vmatprep.subr.mxu0 0.0
    %2229 = vmatpush1.msra.mxu0 0.0
    %2230 = vmatprep.subr.mxu0 0.0
    %2231 = vmatpush1.msra.mxu0 0.0
    %2232 = vmatprep.subr.mxu0 0.0
    %2233 = vmatpush1.msra.mxu0 0.0
    %2234 = vmatprep.mubr.f32.mxu0 0.0
    %2235 = vmatmul.mubr.f32.gmra.mrb[0].mxu0 %v2168
    %v2236 = vpop.f32.mrb[0].mxu0
    %v2237 = vadd.f32 %v2128, %v2236
    %v2238 = vpop.f32.mrb[0].mxu0
    %v2239 = vadd.f32 %v2130, %v2238
    %2240 = vdwg.mxu0
    %v2241 = vxor.u32 %v2237, 2147483648
    %v2242 = vxor.u32 %v2239, 2147483648
    %v2243 = vmul.f32 %v2241, 1.442695
    %v2244 = vpow.pop %v2243
    %v2245 = vmul.f32 %v2242, 1.442695
    %v2246 = vpow.pop %v2245
    %v2247 = vadd.f32 %v2244, 1.0
    %v2248 = vadd.f32 %v2246, 1.0
    %v2249 = vrcp.pop %v2247
    %v2250 = vmul.f32 1.0, %v2249
    %v2251 = vrcp.pop %v2248
    %v2252 = vmul.f32 1.0, %v2251
    %v2253 = vtanh.pop %v2239
    %v2254 = vmul.f32 %v2250, %v1980
    %2256 = vrot.lane.b32.xlu0 %v2253, 64
    %v2257 = vpop.permute.xlu0 %2256
    %v2259 = vmul.f32 %v2250, %v2257
    %2261 = vrot.lane.b32.xlu0 %v2259, 64
    %v2262 = vpop.permute.xlu0 %2261
    %v2264 = vadd.f32 %v2254, %v2262
    %v2265 = vtanh.pop %v2264
    %2267 = vrot.lane.b32.xlu0 %v2265, 64
    %v2268 = vpop.permute.xlu0 %2267
    %v2270 = vmul.f32 %v2252, %v2268
    %2271 = vmatprep.subr.mxu0 %v234
    %2272 = vmatpush1.msra.mxu0 %v233
    %2273 = vmatprep.subr.mxu0 %v236
    %2274 = vmatpush1.msra.mxu0 %v235
    %2275 = vmatprep.subr.mxu0 %v238
    %2276 = vmatpush1.msra.mxu0 %v237
    %2277 = vmatprep.subr.mxu0 %v240
    %2278 = vmatpush1.msra.mxu0 %v239
    %2279 = vmatprep.subr.mxu0 %v242
    %2280 = vmatpush1.msra.mxu0 %v241
    %2281 = vmatprep.subr.mxu0 %v244
    %2282 = vmatpush1.msra.mxu0 %v243
    %2283 = vmatprep.subr.mxu0 %v246
    %2284 = vmatpush1.msra.mxu0 %v245
    %2285 = vmatprep.subr.mxu0 %v248
    %2286 = vmatpush1.msra.mxu0 %v247
    %2287 = vmatprep.subr.mxu0 0.0
    %2288 = vmatpush1.msra.mxu0 0.0
    %2289 = vmatprep.subr.mxu0 0.0
    %2290 = vmatpush1.msra.mxu0 0.0
    %2291 = vmatprep.subr.mxu0 0.0
    %2292 = vmatpush1.msra.mxu0 0.0
    %2293 = vmatprep.subr.mxu0 0.0
    %2294 = vmatpush1.msra.mxu0 0.0
    %2295 = vmatprep.subr.mxu0 0.0
    %2296 = vmatpush1.msra.mxu0 0.0
    %2297 = vmatprep.subr.mxu0 0.0
    %2298 = vmatpush1.msra.mxu0 0.0
    %2299 = vmatprep.subr.mxu0 0.0
    %2300 = vmatpush1.msra.mxu0 0.0
    %2301 = vmatprep.subr.mxu0 0.0
    %2302 = vmatpush1.msra.mxu0 0.0
    %2303 = vmatprep.subr.mxu0 0.0
    %2304 = vmatpush1.msra.mxu0 0.0
    %2305 = vmatprep.subr.mxu0 0.0
    %2306 = vmatpush1.msra.mxu0 0.0
    %2307 = vmatprep.subr.mxu0 0.0
    %2308 = vmatpush1.msra.mxu0 0.0
    %2309 = vmatprep.subr.mxu0 0.0
    %2310 = vmatpush1.msra.mxu0 0.0
    %2311 = vmatprep.subr.mxu0 0.0
    %2312 = vmatpush1.msra.mxu0 0.0
    %2313 = vmatprep.subr.mxu0 0.0
    %2314 = vmatpush1.msra.mxu0 0.0
    %2315 = vmatprep.subr.mxu0 0.0
    %2316 = vmatpush1.msra.mxu0 0.0
    %2317 = vmatprep.subr.mxu0 0.0
    %2318 = vmatpush1.msra.mxu0 0.0
    %2319 = vmatprep.subr.mxu0 0.0
    %2320 = vmatpush1.msra.mxu0 0.0
    %2321 = vmatprep.subr.mxu0 0.0
    %2322 = vmatpush1.msra.mxu0 0.0
    %2323 = vmatprep.subr.mxu0 0.0
    %2324 = vmatpush1.msra.mxu0 0.0
    %2325 = vmatprep.subr.mxu0 0.0
    %2326 = vmatpush1.msra.mxu0 0.0
    %2327 = vmatprep.subr.mxu0 0.0
    %2328 = vmatpush1.msra.mxu0 0.0
    %2329 = vmatprep.subr.mxu0 0.0
    %2330 = vmatpush1.msra.mxu0 0.0
    %2331 = vmatprep.subr.mxu0 0.0
    %2332 = vmatpush1.msra.mxu0 0.0
    %2333 = vmatprep.subr.mxu0 0.0
    %2334 = vmatpush1.msra.mxu0 0.0
    %2335 = vmatprep.mubr.f32.mxu0 0.0
    %2336 = vmatmul.mubr.f32.gmra.mrb[0].mxu0 %v2168
    %v2337 = vpop.f32.mrb[0].mxu0
    %v2338 = vadd.f32 0.0, %v2337
    %v2339 = vpop.f32.mrb[0].mxu0
    %v2340 = vadd.f32 0.0, %v2339
    %2341 = vdwg.mxu0
    %v2343 = vsel %vm249, %v2270, 0
    %2345 = vmatprep.subr.mxu0 %v326
    %2346 = vmatpush1.msra.mxu0 %v325
    %2347 = vmatprep.subr.mxu0 %v328
    %2348 = vmatpush1.msra.mxu0 %v327
    %2349 = vmatprep.subr.mxu0 %v330
    %2350 = vmatpush1.msra.mxu0 %v329
    %2351 = vmatprep.subr.mxu0 %v332
    %2352 = vmatpush1.msra.mxu0 %v331
    %2353 = vmatprep.subr.mxu0 %v334
    %2354 = vmatpush1.msra.mxu0 %v333
    %2355 = vmatprep.subr.mxu0 %v336
    %2356 = vmatpush1.msra.mxu0 %v335
    %2357 = vmatprep.subr.mxu0 %v338
    %2358 = vmatpush1.msra.mxu0 %v337
    %2359 = vmatprep.subr.mxu0 %v340
    %2360 = vmatpush1.msra.mxu0 %v339
    %2361 = vmatprep.subr.mxu0 0.0
    %2362 = vmatpush1.msra.mxu0 0.0
    %2363 = vmatprep.subr.mxu0 0.0
    %2364 = vmatpush1.msra.mxu0 0.0
    %2365 = vmatprep.subr.mxu0 0.0
    %2366 = vmatpush1.msra.mxu0 0.0
    %2367 = vmatprep.subr.mxu0 0.0
    %2368 = vmatpush1.msra.mxu0 0.0
    %2369 = vmatprep.subr.mxu0 0.0
    %2370 = vmatpush1.msra.mxu0 0.0
    %2371 = vmatprep.subr.mxu0 0.0
    %2372 = vmatpush1.msra.mxu0 0.0
    %2373 = vmatprep.subr.mxu0 0.0
    %2374 = vmatpush1.msra.mxu0 0.0
    %2375 = vmatprep.subr.mxu0 0.0
    %2376 = vmatpush1.msra.mxu0 0.0
    %2377 = vmatprep.subr.mxu0 0.0
    %2378 = vmatpush1.msra.mxu0 0.0
    %2379 = vmatprep.subr.mxu0 0.0
    %2380 = vmatpush1.msra.mxu0 0.0
    %2381 = vmatprep.subr.mxu0 0.0
    %2382 = vmatpush1.msra.mxu0 0.0
    %2383 = vmatprep.subr.mxu0 0.0
    %2384 = vmatpush1.msra.mxu0 0.0
    %2385 = vmatprep.subr.mxu0 0.0
    %2386 = vmatpush1.msra.mxu0 0.0
    %2387 = vmatprep.subr.mxu0 0.0
    %2388 = vmatpush1.msra.mxu0 0.0
    %2389 = vmatprep.subr.mxu0 0.0
    %2390 = vmatpush1.msra.mxu0 0.0
    %2391 = vmatprep.subr.mxu0 0.0
    %2392 = vmatpush1.msra.mxu0 0.0
    %2393 = vmatprep.subr.mxu0 0.0
    %2394 = vmatpush1.msra.mxu0 0.0
    %2395 = vmatprep.subr.mxu0 0.0
    %2396 = vmatpush1.msra.mxu0 0.0
    %2397 = vmatprep.subr.mxu0 0.0
    %2398 = vmatpush1.msra.mxu0 0.0
    %2399 = vmatprep.subr.mxu0 0.0
    %2400 = vmatpush1.msra.mxu0 0.0
    %2401 = vmatprep.subr.mxu0 0.0
    %2402 = vmatpush1.msra.mxu0 0.0
    %2403 = vmatprep.subr.mxu0 0.0
    %2404 = vmatpush1.msra.mxu0 0.0
    %2405 = vmatprep.subr.mxu0 0.0
    %2406 = vmatpush1.msra.mxu0 0.0
    %2407 = vmatprep.subr.mxu0 0.0
    %2408 = vmatpush1.msra.mxu0 0.0
    %2409 = vmatprep.mubr.f32.mxu0 0.0
    %2410 = vmatmul.mubr.f32.gmra.mrb[0].mxu0 %v2343
    %v2411 = vpop.f32.mrb[0].mxu0
    %v2412 = vadd.f32 %v209, %v2411
    %v2413 = vpop.f32.mrb[0].mxu0
    %v2414 = vadd.f32 %v213, %v2413
    %2415 = vdwg.mxu0
    %s2416 = scalar_lea.vmem [#allocation2], 112
    %v2417 = vld [vmem:[%s2416] sm:$0xff]
    %v2418 = vld [vmem:[%s2416 + $0x8] sm:$0xff]
    %v2419 = vadd.f32 %v2417, %v2338
    %v2420 = vadd.f32 %v2418, %v2340
    %v2421 = vxor.u32 %v2419, 2147483648
    %v2422 = vxor.u32 %v2420, 2147483648
    %v2423 = vmul.f32 %v2421, 1.442695
    %v2424 = vpow.pop %v2423
    %v2425 = vmul.f32 %v2422, 1.442695
    %v2426 = vpow.pop %v2425
    %v2427 = vadd.f32 %v2424, 1.0
    %v2428 = vadd.f32 %v2426, 1.0
    %v2429 = vrcp.pop %v2427
    %v2430 = vmul.f32 1.0, %v2429
    %v2431 = vrcp.pop %v2428
    %v2432 = vmul.f32 1.0, %v2431
    %v2433 = vtanh.pop %v2420
    %v2434 = vmul.f32 %v2430, %v2160
    %2436 = vrot.lane.b32.xlu0 %v2433, 64
    %v2437 = vpop.permute.xlu0 %2436
    %v2439 = vmul.f32 %v2430, %v2437
    %2441 = vrot.lane.b32.xlu0 %v2439, 64
    %v2442 = vpop.permute.xlu0 %2441
    %v2444 = vadd.f32 %v2434, %v2442
    %v2445 = vtanh.pop %v2444
    %2447 = vrot.lane.b32.xlu0 %v2445, 64
    %v2448 = vpop.permute.xlu0 %2447
    %v2450 = vmul.f32 %v2432, %v2448
    %v2452 = vsel %vm249, %v2450, 0
    %2454 = vmatprep.subr.mxu0 %v448
    %2455 = vmatpush1.msra.mxu0 %v447
    %2456 = vmatprep.subr.mxu0 %v450
    %2457 = vmatpush1.msra.mxu0 %v449
    %2458 = vmatprep.subr.mxu0 %v452
    %2459 = vmatpush1.msra.mxu0 %v451
    %2460 = vmatprep.subr.mxu0 %v454
    %2461 = vmatpush1.msra.mxu0 %v453
    %2462 = vmatprep.subr.mxu0 %v456
    %2463 = vmatpush1.msra.mxu0 %v455
    %2464 = vmatprep.subr.mxu0 %v458
    %2465 = vmatpush1.msra.mxu0 %v457
    %2466 = vmatprep.subr.mxu0 %v460
    %2467 = vmatpush1.msra.mxu0 %v459
    %2468 = vmatprep.subr.mxu0 %v462
    %2469 = vmatpush1.msra.mxu0 %v461
    %2470 = vmatprep.subr.mxu0 0.0
    %2471 = vmatpush1.msra.mxu0 0.0
    %2472 = vmatprep.subr.mxu0 0.0
    %2473 = vmatpush1.msra.mxu0 0.0
    %2474 = vmatprep.subr.mxu0 0.0
    %2475 = vmatpush1.msra.mxu0 0.0
    %2476 = vmatprep.subr.mxu0 0.0
    %2477 = vmatpush1.msra.mxu0 0.0
    %2478 = vmatprep.subr.mxu0 0.0
    %2479 = vmatpush1.msra.mxu0 0.0
    %2480 = vmatprep.subr.mxu0 0.0
    %2481 = vmatpush1.msra.mxu0 0.0
    %2482 = vmatprep.subr.mxu0 0.0
    %2483 = vmatpush1.msra.mxu0 0.0
    %2484 = vmatprep.subr.mxu0 0.0
    %2485 = vmatpush1.msra.mxu0 0.0
    %2486 = vmatprep.subr.mxu0 0.0
    %2487 = vmatpush1.msra.mxu0 0.0
    %2488 = vmatprep.subr.mxu0 0.0
    %2489 = vmatpush1.msra.mxu0 0.0
    %2490 = vmatprep.subr.mxu0 0.0
    %2491 = vmatpush1.msra.mxu0 0.0
    %2492 = vmatprep.subr.mxu0 0.0
    %2493 = vmatpush1.msra.mxu0 0.0
    %2494 = vmatprep.subr.mxu0 0.0
    %2495 = vmatpush1.msra.mxu0 0.0
    %2496 = vmatprep.subr.mxu0 0.0
    %2497 = vmatpush1.msra.mxu0 0.0
    %2498 = vmatprep.subr.mxu0 0.0
    %2499 = vmatpush1.msra.mxu0 0.0
    %2500 = vmatprep.subr.mxu0 0.0
    %2501 = vmatpush1.msra.mxu0 0.0
    %2502 = vmatprep.subr.mxu0 0.0
    %2503 = vmatpush1.msra.mxu0 0.0
    %2504 = vmatprep.subr.mxu0 0.0
    %2505 = vmatpush1.msra.mxu0 0.0
    %2506 = vmatprep.subr.mxu0 0.0
    %2507 = vmatpush1.msra.mxu0 0.0
    %2508 = vmatprep.subr.mxu0 0.0
    %2509 = vmatpush1.msra.mxu0 0.0
    %2510 = vmatprep.subr.mxu0 0.0
    %2511 = vmatpush1.msra.mxu0 0.0
    %2512 = vmatprep.subr.mxu0 0.0
    %2513 = vmatpush1.msra.mxu0 0.0
    %2514 = vmatprep.subr.mxu0 0.0
    %2515 = vmatpush1.msra.mxu0 0.0
    %2516 = vmatprep.subr.mxu0 0.0
    %2517 = vmatpush1.msra.mxu0 0.0
    %2518 = vmatprep.mubr.f32.mxu0 0.0
    %2519 = vmatmul.mubr.f32.gmra.mrb[0].mxu0 %v2452
    %v2520 = vpop.f32.mrb[0].mxu0
    %v2521 = vadd.f32 %v2412, %v2520
    %v2522 = vpop.f32.mrb[0].mxu0
    %v2523 = vadd.f32 %v2414, %v2522
    %2524 = vdwg.mxu0
    %v2525 = vxor.u32 %v2521, 2147483648
    %v2526 = vxor.u32 %v2523, 2147483648
    %v2527 = vmul.f32 %v2525, 1.442695
    %v2528 = vpow.pop %v2527
    %v2529 = vmul.f32 %v2526, 1.442695
    %v2530 = vpow.pop %v2529
    %v2531 = vadd.f32 %v2528, 1.0
    %v2532 = vadd.f32 %v2530, 1.0
    %v2533 = vrcp.pop %v2531
    %v2534 = vmul.f32 1.0, %v2533
    %v2535 = vrcp.pop %v2532
    %v2536 = vmul.f32 1.0, %v2535
    %v2537 = vtanh.pop %v2523
    %v2538 = vmul.f32 %v2534, %v2264
    %2540 = vrot.lane.b32.xlu0 %v2537, 64
    %v2541 = vpop.permute.xlu0 %2540
    %v2543 = vmul.f32 %v2534, %v2541
    %2545 = vrot.lane.b32.xlu0 %v2543, 64
    %v2546 = vpop.permute.xlu0 %2545
    %v2548 = vadd.f32 %v2538, %v2546
    %v2549 = vtanh.pop %v2548
    %2551 = vrot.lane.b32.xlu0 %v2549, 64
    %v2552 = vpop.permute.xlu0 %2551
    %v2554 = vmul.f32 %v2536, %v2552
    %2555 = vst.msk [vmem:[#allocation8] sm:$0xff] %vm249, %v2554
    %s2556 = scalar_lea.vmem [#allocation4], 384
    %v2557 = vld [vmem:[%s2556] sm:$0xff]
    %v2558 = vld [vmem:[%s2556 + $0x8] sm:$0xff]
    %v2559 = vld [vmem:[%s2556 + $0x10] sm:$0xff]
    %v2560 = vld [vmem:[%s2556 + $0x18] sm:$0xff]
    %v2561 = vld [vmem:[%s2556 + $0x20] sm:$0xff]
    %v2562 = vld [vmem:[%s2556 + $0x28] sm:$0xff]
    %v2563 = vld [vmem:[%s2556 + $0x30] sm:$0xff]
    %v2564 = vld [vmem:[%s2556 + $0x38] sm:$0xff]
    %v2565 = vld [vmem:[%s2556 + $0x40] sm:$0xff]
    %v2566 = vld [vmem:[%s2556 + $0x48] sm:$0xff]
    %v2567 = vld [vmem:[%s2556 + $0x50] sm:$0xff]
    %v2568 = vld [vmem:[%s2556 + $0x58] sm:$0xff]
    %v2569 = vld [vmem:[%s2556 + $0x60] sm:$0xff]
    %v2570 = vld [vmem:[%s2556 + $0x68] sm:$0xff]
    %v2571 = vld [vmem:[%s2556 + $0x70] sm:$0xff]
    %v2572 = vld [vmem:[%s2556 + $0x78] sm:$0xff]
    %v2574 = vlaneseq
    %v2575 = vshrl.u32 %v2574, 7
    %v2576 = vsub.s32 0, %v2575
    %v2577 = vrot.slane %v217, %v2576
    %v2578 = vlaneseq
    %v2579 = vshrl.u32 %v2578, 7
    %v2580 = vsub.s32 1, %v2579
    %v2581 = vrot.slane %v217, %v2580
    %v2585 = vsel %vm249, %v2554, 0
    %2587 = vmatprep.subr.mxu0 %v2558
    %2588 = vmatpush1.msra.mxu0 %v2557
    %2589 = vmatprep.subr.mxu0 %v2560
    %2590 = vmatpush1.msra.mxu0 %v2559
    %2591 = vmatprep.subr.mxu0 %v2562
    %2592 = vmatpush1.msra.mxu0 %v2561
    %2593 = vmatprep.subr.mxu0 %v2564
    %2594 = vmatpush1.msra.mxu0 %v2563
    %2595 = vmatprep.subr.mxu0 %v2566
    %2596 = vmatpush1.msra.mxu0 %v2565
    %2597 = vmatprep.subr.mxu0 %v2568
    %2598 = vmatpush1.msra.mxu0 %v2567
    %2599 = vmatprep.subr.mxu0 %v2570
    %2600 = vmatpush1.msra.mxu0 %v2569
    %2601 = vmatprep.subr.mxu0 %v2572
    %2602 = vmatpush1.msra.mxu0 %v2571
    %2603 = vmatprep.subr.mxu0 0.0
    %2604 = vmatpush1.msra.mxu0 0.0
    %2605 = vmatprep.subr.mxu0 0.0
    %2606 = vmatpush1.msra.mxu0 0.0
    %2607 = vmatprep.subr.mxu0 0.0
    %2608 = vmatpush1.msra.mxu0 0.0
    %2609 = vmatprep.subr.mxu0 0.0
    %2610 = vmatpush1.msra.mxu0 0.0
    %2611 = vmatprep.subr.mxu0 0.0
    %2612 = vmatpush1.msra.mxu0 0.0
    %2613 = vmatprep.subr.mxu0 0.0
    %2614 = vmatpush1.msra.mxu0 0.0
    %2615 = vmatprep.subr.mxu0 0.0
    %2616 = vmatpush1.msra.mxu0 0.0
    %2617 = vmatprep.subr.mxu0 0.0
    %2618 = vmatpush1.msra.mxu0 0.0
    %2619 = vmatprep.subr.mxu0 0.0
    %2620 = vmatpush1.msra.mxu0 0.0
    %2621 = vmatprep.subr.mxu0 0.0
    %2622 = vmatpush1.msra.mxu0 0.0
    %2623 = vmatprep.subr.mxu0 0.0
    %2624 = vmatpush1.msra.mxu0 0.0
    %2625 = vmatprep.subr.mxu0 0.0
    %2626 = vmatpush1.msra.mxu0 0.0
    %2627 = vmatprep.subr.mxu0 0.0
    %2628 = vmatpush1.msra.mxu0 0.0
    %2629 = vmatprep.subr.mxu0 0.0
    %2630 = vmatpush1.msra.mxu0 0.0
    %2631 = vmatprep.subr.mxu0 0.0
    %2632 = vmatpush1.msra.mxu0 0.0
    %2633 = vmatprep.subr.mxu0 0.0
    %2634 = vmatpush1.msra.mxu0 0.0
    %2635 = vmatprep.subr.mxu0 0.0
    %2636 = vmatpush1.msra.mxu0 0.0
    %2637 = vmatprep.subr.mxu0 0.0
    %2638 = vmatpush1.msra.mxu0 0.0
    %2639 = vmatprep.subr.mxu0 0.0
    %2640 = vmatpush1.msra.mxu0 0.0
    %2641 = vmatprep.subr.mxu0 0.0
    %2642 = vmatpush1.msra.mxu0 0.0
    %2643 = vmatprep.subr.mxu0 0.0
    %2644 = vmatpush1.msra.mxu0 0.0
    %2645 = vmatprep.subr.mxu0 0.0
    %2646 = vmatpush1.msra.mxu0 0.0
    %2647 = vmatprep.subr.mxu0 0.0
    %2648 = vmatpush1.msra.mxu0 0.0
    %2649 = vmatprep.subr.mxu0 0.0
    %2650 = vmatpush1.msra.mxu0 0.0
    %2651 = vmatprep.mubr.f32.mxu0 0.0
    %2652 = vmatmul.mubr.f32.gmra.mrb[0].mxu0 %v2585
    %v2653 = vpop.f32.mrb[0].mxu0
    %v2654 = vadd.f32 %v2577, %v2653
    %v2655 = vpop.f32.mrb[0].mxu0
    %v2656 = vadd.f32 %v2581, %v2655
    %2657 = vdwg.mxu0
    %s2658 = scalar_lea.vmem [#allocation4], 512
    %v2659 = vld [vmem:[%s2658] sm:$0xff]
    %v2660 = vld [vmem:[%s2658 + $0x8] sm:$0xff]
    %v2661 = vld [vmem:[%s2658 + $0x10] sm:$0xff]
    %v2662 = vld [vmem:[%s2658 + $0x18] sm:$0xff]
    %v2663 = vld [vmem:[%s2658 + $0x20] sm:$0xff]
    %v2664 = vld [vmem:[%s2658 + $0x28] sm:$0xff]
    %v2665 = vld [vmem:[%s2658 + $0x30] sm:$0xff]
    %v2666 = vld [vmem:[%s2658 + $0x38] sm:$0xff]
    %v2667 = vld [vmem:[%s2658 + $0x40] sm:$0xff]
    %v2668 = vld [vmem:[%s2658 + $0x48] sm:$0xff]
    %v2669 = vld [vmem:[%s2658 + $0x50] sm:$0xff]
    %v2670 = vld [vmem:[%s2658 + $0x58] sm:$0xff]
    %v2671 = vld [vmem:[%s2658 + $0x60] sm:$0xff]
    %v2672 = vld [vmem:[%s2658 + $0x68] sm:$0xff]
    %v2673 = vld [vmem:[%s2658 + $0x70] sm:$0xff]
    %v2674 = vld [vmem:[%s2658 + $0x78] sm:$0xff]
    %2675 = vmatprep.subr.mxu0 %v2660
    %2676 = vmatpush1.msra.mxu0 %v2659
    %2677 = vmatprep.subr.mxu0 %v2662
    %2678 = vmatpush1.msra.mxu0 %v2661
    %2679 = vmatprep.subr.mxu0 %v2664
    %2680 = vmatpush1.msra.mxu0 %v2663
    %2681 = vmatprep.subr.mxu0 %v2666
    %2682 = vmatpush1.msra.mxu0 %v2665
    %2683 = vmatprep.subr.mxu0 %v2668
    %2684 = vmatpush1.msra.mxu0 %v2667
    %2685 = vmatprep.subr.mxu0 %v2670
    %2686 = vmatpush1.msra.mxu0 %v2669
    %2687 = vmatprep.subr.mxu0 %v2672
    %2688 = vmatpush1.msra.mxu0 %v2671
    %2689 = vmatprep.subr.mxu0 %v2674
    %2690 = vmatpush1.msra.mxu0 %v2673
    %2691 = vmatprep.subr.mxu0 0.0
    %2692 = vmatpush1.msra.mxu0 0.0
    %2693 = vmatprep.subr.mxu0 0.0
    %2694 = vmatpush1.msra.mxu0 0.0
    %2695 = vmatprep.subr.mxu0 0.0
    %2696 = vmatpush1.msra.mxu0 0.0
    %2697 = vmatprep.subr.mxu0 0.0
    %2698 = vmatpush1.msra.mxu0 0.0
    %2699 = vmatprep.subr.mxu0 0.0
    %2700 = vmatpush1.msra.mxu0 0.0
    %2701 = vmatprep.subr.mxu0 0.0
    %2702 = vmatpush1.msra.mxu0 0.0
    %2703 = vmatprep.subr.mxu0 0.0
    %2704 = vmatpush1.msra.mxu0 0.0
    %2705 = vmatprep.subr.mxu0 0.0
    %2706 = vmatpush1.msra.mxu0 0.0
    %2707 = vmatprep.subr.mxu0 0.0
    %2708 = vmatpush1.msra.mxu0 0.0
    %2709 = vmatprep.subr.mxu0 0.0
    %2710 = vmatpush1.msra.mxu0 0.0
    %2711 = vmatprep.subr.mxu0 0.0
    %2712 = vmatpush1.msra.mxu0 0.0
    %2713 = vmatprep.subr.mxu0 0.0
    %2714 = vmatpush1.msra.mxu0 0.0
    %2715 = vmatprep.subr.mxu0 0.0
    %2716 = vmatpush1.msra.mxu0 0.0
    %2717 = vmatprep.subr.mxu0 0.0
    %2718 = vmatpush1.msra.mxu0 0.0
    %2719 = vmatprep.subr.mxu0 0.0
    %2720 = vmatpush1.msra.mxu0 0.0
    %2721 = vmatprep.subr.mxu0 0.0
    %2722 = vmatpush1.msra.mxu0 0.0
    %2723 = vmatprep.subr.mxu0 0.0
    %2724 = vmatpush1.msra.mxu0 0.0
    %2725 = vmatprep.subr.mxu0 0.0
    %2726 = vmatpush1.msra.mxu0 0.0
    %2727 = vmatprep.subr.mxu0 0.0
    %2728 = vmatpush1.msra.mxu0 0.0
    %2729 = vmatprep.subr.mxu0 0.0
    %2730 = vmatpush1.msra.mxu0 0.0
    %2731 = vmatprep.subr.mxu0 0.0
    %2732 = vmatpush1.msra.mxu0 0.0
    %2733 = vmatprep.subr.mxu0 0.0
    %2734 = vmatpush1.msra.mxu0 0.0
    %2735 = vmatprep.subr.mxu0 0.0
    %2736 = vmatpush1.msra.mxu0 0.0
    %2737 = vmatprep.subr.mxu0 0.0
    %2738 = vmatpush1.msra.mxu0 0.0
    %2739 = vmatprep.mubr.f32.mxu0 0.0
    %2740 = vmatmul.mubr.f32.gmra.mrb[0].mxu0 %v251
    %v2741 = vpop.f32.mrb[0].mxu0
    %v2742 = vadd.f32 0.0, %v2741
    %v2743 = vpop.f32.mrb[0].mxu0
    %v2744 = vadd.f32 0.0, %v2743
    %2745 = vdwg.mxu0
    %s2746 = scalar_lea.vmem [#allocation4], 768
    %v2747 = vld [vmem:[%s2746] sm:$0xff]
    %v2748 = vld [vmem:[%s2746 + $0x8] sm:$0xff]
    %v2749 = vld [vmem:[%s2746 + $0x10] sm:$0xff]
    %v2750 = vld [vmem:[%s2746 + $0x18] sm:$0xff]
    %v2751 = vld [vmem:[%s2746 + $0x20] sm:$0xff]
    %v2752 = vld [vmem:[%s2746 + $0x28] sm:$0xff]
    %v2753 = vld [vmem:[%s2746 + $0x30] sm:$0xff]
    %v2754 = vld [vmem:[%s2746 + $0x38] sm:$0xff]
    %v2755 = vld [vmem:[%s2746 + $0x40] sm:$0xff]
    %v2756 = vld [vmem:[%s2746 + $0x48] sm:$0xff]
    %v2757 = vld [vmem:[%s2746 + $0x50] sm:$0xff]
    %v2758 = vld [vmem:[%s2746 + $0x58] sm:$0xff]
    %v2759 = vld [vmem:[%s2746 + $0x60] sm:$0xff]
    %v2760 = vld [vmem:[%s2746 + $0x68] sm:$0xff]
    %v2761 = vld [vmem:[%s2746 + $0x70] sm:$0xff]
    %v2762 = vld [vmem:[%s2746 + $0x78] sm:$0xff]
    %2763 = vmatprep.subr.mxu0 %v2748
    %2764 = vmatpush1.msra.mxu0 %v2747
    %2765 = vmatprep.subr.mxu0 %v2750
    %2766 = vmatpush1.msra.mxu0 %v2749
    %2767 = vmatprep.subr.mxu0 %v2752
    %2768 = vmatpush1.msra.mxu0 %v2751
    %2769 = vmatprep.subr.mxu0 %v2754
    %2770 = vmatpush1.msra.mxu0 %v2753
    %2771 = vmatprep.subr.mxu0 %v2756
    %2772 = vmatpush1.msra.mxu0 %v2755
    %2773 = vmatprep.subr.mxu0 %v2758
    %2774 = vmatpush1.msra.mxu0 %v2757
    %2775 = vmatprep.subr.mxu0 %v2760
    %2776 = vmatpush1.msra.mxu0 %v2759
    %2777 = vmatprep.subr.mxu0 %v2762
    %2778 = vmatpush1.msra.mxu0 %v2761
    %2779 = vmatprep.subr.mxu0 0.0
    %2780 = vmatpush1.msra.mxu0 0.0
    %2781 = vmatprep.subr.mxu0 0.0
    %2782 = vmatpush1.msra.mxu0 0.0
    %2783 = vmatprep.subr.mxu0 0.0
    %2784 = vmatpush1.msra.mxu0 0.0
    %2785 = vmatprep.subr.mxu0 0.0
    %2786 = vmatpush1.msra.mxu0 0.0
    %2787 = vmatprep.subr.mxu0 0.0
    %2788 = vmatpush1.msra.mxu0 0.0
    %2789 = vmatprep.subr.mxu0 0.0
    %2790 = vmatpush1.msra.mxu0 0.0
    %2791 = vmatprep.subr.mxu0 0.0
    %2792 = vmatpush1.msra.mxu0 0.0
    %2793 = vmatprep.subr.mxu0 0.0
    %2794 = vmatpush1.msra.mxu0 0.0
    %2795 = vmatprep.subr.mxu0 0.0
    %2796 = vmatpush1.msra.mxu0 0.0
    %2797 = vmatprep.subr.mxu0 0.0
    %2798 = vmatpush1.msra.mxu0 0.0
    %2799 = vmatprep.subr.mxu0 0.0
    %2800 = vmatpush1.msra.mxu0 0.0
    %2801 = vmatprep.subr.mxu0 0.0
    %2802 = vmatpush1.msra.mxu0 0.0
    %2803 = vmatprep.subr.mxu0 0.0
    %2804 = vmatpush1.msra.mxu0 0.0
    %2805 = vmatprep.subr.mxu0 0.0
    %2806 = vmatpush1.msra.mxu0 0.0
    %2807 = vmatprep.subr.mxu0 0.0
    %2808 = vmatpush1.msra.mxu0 0.0
    %2809 = vmatprep.subr.mxu0 0.0
    %2810 = vmatpush1.msra.mxu0 0.0
    %2811 = vmatprep.subr.mxu0 0.0
    %2812 = vmatpush1.msra.mxu0 0.0
    %2813 = vmatprep.subr.mxu0 0.0
    %2814 = vmatpush1.msra.mxu0 0.0
    %2815 = vmatprep.subr.mxu0 0.0
    %2816 = vmatpush1.msra.mxu0 0.0
    %2817 = vmatprep.subr.mxu0 0.0
    %2818 = vmatpush1.msra.mxu0 0.0
    %2819 = vmatprep.subr.mxu0 0.0
    %2820 = vmatpush1.msra.mxu0 0.0
    %2821 = vmatprep.subr.mxu0 0.0
    %2822 = vmatpush1.msra.mxu0 0.0
    %2823 = vmatprep.subr.mxu0 0.0
    %2824 = vmatpush1.msra.mxu0 0.0
    %2825 = vmatprep.subr.mxu0 0.0
    %2826 = vmatpush1.msra.mxu0 0.0
    %2827 = vmatprep.mubr.f32.mxu0 0.0
    %2828 = vmatmul.mubr.f32.gmra.mrb[0].mxu0 %v251
    %v2829 = vpop.f32.mrb[0].mxu0
    %v2830 = vadd.f32 %v224, %v2829
    %v2831 = vpop.f32.mrb[0].mxu0
    %v2832 = vadd.f32 %v228, %v2831
    %2833 = vdwg.mxu0
    %v2834 = vadd.f32 %v2654, %v2742
    %v2835 = vadd.f32 %v2656, %v2744
    %v2836 = vxor.u32 %v2834, 2147483648
    %v2837 = vxor.u32 %v2835, 2147483648
    %v2838 = vmul.f32 %v2836, 1.442695
    %v2839 = vpow.pop %v2838
    %v2840 = vmul.f32 %v2837, 1.442695
    %v2841 = vpow.pop %v2840
    %v2842 = vadd.f32 %v2839, 1.0
    %v2843 = vadd.f32 %v2841, 1.0
    %v2844 = vrcp.pop %v2842
    %v2845 = vmul.f32 1.0, %v2844
    %v2846 = vrcp.pop %v2843
    %v2847 = vmul.f32 1.0, %v2846
    %v2848 = vtanh.pop %v2835
    %v2849 = vmul.f32 %v2845, 0.0
    %2851 = vrot.lane.b32.xlu0 %v2848, 64
    %v2852 = vpop.permute.xlu0 %2851
    %v2854 = vmul.f32 %v2845, %v2852
    %2856 = vrot.lane.b32.xlu0 %v2854, 64
    %v2857 = vpop.permute.xlu0 %2856
    %v2859 = vadd.f32 %v2849, %v2857
    %v2860 = vtanh.pop %v2859
    %2862 = vrot.lane.b32.xlu0 %v2860, 64
    %v2863 = vpop.permute.xlu0 %2862
    %v2865 = vmul.f32 %v2847, %v2863
    %s2866 = scalar_lea.vmem [#allocation4], 640
    %v2867 = vld [vmem:[%s2866] sm:$0xff]
    %v2868 = vld [vmem:[%s2866 + $0x8] sm:$0xff]
    %v2869 = vld [vmem:[%s2866 + $0x10] sm:$0xff]
    %v2870 = vld [vmem:[%s2866 + $0x18] sm:$0xff]
    %v2871 = vld [vmem:[%s2866 + $0x20] sm:$0xff]
    %v2872 = vld [vmem:[%s2866 + $0x28] sm:$0xff]
    %v2873 = vld [vmem:[%s2866 + $0x30] sm:$0xff]
    %v2874 = vld [vmem:[%s2866 + $0x38] sm:$0xff]
    %v2875 = vld [vmem:[%s2866 + $0x40] sm:$0xff]
    %v2876 = vld [vmem:[%s2866 + $0x48] sm:$0xff]
    %v2877 = vld [vmem:[%s2866 + $0x50] sm:$0xff]
    %v2878 = vld [vmem:[%s2866 + $0x58] sm:$0xff]
    %v2879 = vld [vmem:[%s2866 + $0x60] sm:$0xff]
    %v2880 = vld [vmem:[%s2866 + $0x68] sm:$0xff]
    %v2881 = vld [vmem:[%s2866 + $0x70] sm:$0xff]
    %v2882 = vld [vmem:[%s2866 + $0x78] sm:$0xff]
    %v2884 = vsel %vm249, %v2865, 0
    %2886 = vmatprep.subr.mxu0 %v2868
    %2887 = vmatpush1.msra.mxu0 %v2867
    %2888 = vmatprep.subr.mxu0 %v2870
    %2889 = vmatpush1.msra.mxu0 %v2869
    %2890 = vmatprep.subr.mxu0 %v2872
    %2891 = vmatpush1.msra.mxu0 %v2871
    %2892 = vmatprep.subr.mxu0 %v2874
    %2893 = vmatpush1.msra.mxu0 %v2873
    %2894 = vmatprep.subr.mxu0 %v2876
    %2895 = vmatpush1.msra.mxu0 %v2875
    %2896 = vmatprep.subr.mxu0 %v2878
    %2897 = vmatpush1.msra.mxu0 %v2877
    %2898 = vmatprep.subr.mxu0 %v2880
    %2899 = vmatpush1.msra.mxu0 %v2879
    %2900 = vmatprep.subr.mxu0 %v2882
    %2901 = vmatpush1.msra.mxu0 %v2881
    %2902 = vmatprep.subr.mxu0 0.0
    %2903 = vmatpush1.msra.mxu0 0.0
    %2904 = vmatprep.subr.mxu0 0.0
    %2905 = vmatpush1.msra.mxu0 0.0
    %2906 = vmatprep.subr.mxu0 0.0
    %2907 = vmatpush1.msra.mxu0 0.0
    %2908 = vmatprep.subr.mxu0 0.0
    %2909 = vmatpush1.msra.mxu0 0.0
    %2910 = vmatprep.subr.mxu0 0.0
    %2911 = vmatpush1.msra.mxu0 0.0
    %2912 = vmatprep.subr.mxu0 0.0
    %2913 = vmatpush1.msra.mxu0 0.0
    %2914 = vmatprep.subr.mxu0 0.0
    %2915 = vmatpush1.msra.mxu0 0.0
    %2916 = vmatprep.subr.mxu0 0.0
    %2917 = vmatpush1.msra.mxu0 0.0
    %2918 = vmatprep.subr.mxu0 0.0
    %2919 = vmatpush1.msra.mxu0 0.0
    %2920 = vmatprep.subr.mxu0 0.0
    %2921 = vmatpush1.msra.mxu0 0.0
    %2922 = vmatprep.subr.mxu0 0.0
    %2923 = vmatpush1.msra.mxu0 0.0
    %2924 = vmatprep.subr.mxu0 0.0
    %2925 = vmatpush1.msra.mxu0 0.0
    %2926 = vmatprep.subr.mxu0 0.0
    %2927 = vmatpush1.msra.mxu0 0.0
    %2928 = vmatprep.subr.mxu0 0.0
    %2929 = vmatpush1.msra.mxu0 0.0
    %2930 = vmatprep.subr.mxu0 0.0
    %2931 = vmatpush1.msra.mxu0 0.0
    %2932 = vmatprep.subr.mxu0 0.0
    %2933 = vmatpush1.msra.mxu0 0.0
    %2934 = vmatprep.subr.mxu0 0.0
    %2935 = vmatpush1.msra.mxu0 0.0
    %2936 = vmatprep.subr.mxu0 0.0
    %2937 = vmatpush1.msra.mxu0 0.0
    %2938 = vmatprep.subr.mxu0 0.0
    %2939 = vmatpush1.msra.mxu0 0.0
    %2940 = vmatprep.subr.mxu0 0.0
    %2941 = vmatpush1.msra.mxu0 0.0
    %2942 = vmatprep.subr.mxu0 0.0
    %2943 = vmatpush1.msra.mxu0 0.0
    %2944 = vmatprep.subr.mxu0 0.0
    %2945 = vmatpush1.msra.mxu0 0.0
    %2946 = vmatprep.subr.mxu0 0.0
    %2947 = vmatpush1.msra.mxu0 0.0
    %2948 = vmatprep.subr.mxu0 0.0
    %2949 = vmatpush1.msra.mxu0 0.0
    %2950 = vmatprep.mubr.f32.mxu0 0.0
    %2951 = vmatmul.mubr.f32.gmra.mrb[0].mxu0 %v2884
    %v2952 = vpop.f32.mrb[0].mxu0
    %v2953 = vadd.f32 %v2830, %v2952
    %v2954 = vpop.f32.mrb[0].mxu0
    %v2955 = vadd.f32 %v2832, %v2954
    %2956 = vdwg.mxu0
    %v2957 = vxor.u32 %v2953, 2147483648
    %v2958 = vxor.u32 %v2955, 2147483648
    %v2959 = vmul.f32 %v2957, 1.442695
    %v2960 = vpow.pop %v2959
    %v2961 = vmul.f32 %v2958, 1.442695
    %v2962 = vpow.pop %v2961
    %v2963 = vadd.f32 %v2960, 1.0
    %v2964 = vadd.f32 %v2962, 1.0
    %v2965 = vrcp.pop %v2963
    %v2966 = vmul.f32 1.0, %v2965
    %v2967 = vrcp.pop %v2964
    %v2968 = vmul.f32 1.0, %v2967
    %v2969 = vtanh.pop %v2955
    %v2970 = vmul.f32 %v2966, 0.0
    %2972 = vrot.lane.b32.xlu0 %v2969, 64
    %v2973 = vpop.permute.xlu0 %2972
    %v2975 = vmul.f32 %v2966, %v2973
    %2977 = vrot.lane.b32.xlu0 %v2975, 64
    %v2978 = vpop.permute.xlu0 %2977
    %v2980 = vadd.f32 %v2970, %v2978
    %v2981 = vtanh.pop %v2980
    %2983 = vrot.lane.b32.xlu0 %v2981, 64
    %v2984 = vpop.permute.xlu0 %2983
    %v2986 = vmul.f32 %v2968, %v2984
    %2987 = vst.msk [vmem:[#allocation3] sm:$0xff] %vm249, %v2986
    %v2988 = vld [vmem:[%s2658] sm:$0xff]
    %v2989 = vld [vmem:[%s2658 + $0x8] sm:$0xff]
    %v2990 = vld [vmem:[%s2658 + $0x10] sm:$0xff]
    %v2991 = vld [vmem:[%s2658 + $0x18] sm:$0xff]
    %v2992 = vld [vmem:[%s2658 + $0x20] sm:$0xff]
    %v2993 = vld [vmem:[%s2658 + $0x28] sm:$0xff]
    %v2994 = vld [vmem:[%s2658 + $0x30] sm:$0xff]
    %v2995 = vld [vmem:[%s2658 + $0x38] sm:$0xff]
    %v2996 = vld [vmem:[%s2658 + $0x40] sm:$0xff]
    %v2997 = vld [vmem:[%s2658 + $0x48] sm:$0xff]
    %v2998 = vld [vmem:[%s2658 + $0x50] sm:$0xff]
    %v2999 = vld [vmem:[%s2658 + $0x58] sm:$0xff]
    %v3000 = vld [vmem:[%s2658 + $0x60] sm:$0xff]
    %v3001 = vld [vmem:[%s2658 + $0x68] sm:$0xff]
    %v3002 = vld [vmem:[%s2658 + $0x70] sm:$0xff]
    %v3003 = vld [vmem:[%s2658 + $0x78] sm:$0xff]
    %3004 = vmatprep.subr.mxu0 %v2989
    %3005 = vmatpush1.msra.mxu0 %v2988
    %3006 = vmatprep.subr.mxu0 %v2991
    %3007 = vmatpush1.msra.mxu0 %v2990
    %3008 = vmatprep.subr.mxu0 %v2993
    %3009 = vmatpush1.msra.mxu0 %v2992
    %3010 = vmatprep.subr.mxu0 %v2995
    %3011 = vmatpush1.msra.mxu0 %v2994
    %3012 = vmatprep.subr.mxu0 %v2997
    %3013 = vmatpush1.msra.mxu0 %v2996
    %3014 = vmatprep.subr.mxu0 %v2999
    %3015 = vmatpush1.msra.mxu0 %v2998
    %3016 = vmatprep.subr.mxu0 %v3001
    %3017 = vmatpush1.msra.mxu0 %v3000
    %3018 = vmatprep.subr.mxu0 %v3003
    %3019 = vmatpush1.msra.mxu0 %v3002
    %3020 = vmatprep.subr.mxu0 0.0
    %3021 = vmatpush1.msra.mxu0 0.0
    %3022 = vmatprep.subr.mxu0 0.0
    %3023 = vmatpush1.msra.mxu0 0.0
    %3024 = vmatprep.subr.mxu0 0.0
    %3025 = vmatpush1.msra.mxu0 0.0
    %3026 = vmatprep.subr.mxu0 0.0
    %3027 = vmatpush1.msra.mxu0 0.0
    %3028 = vmatprep.subr.mxu0 0.0
    %3029 = vmatpush1.msra.mxu0 0.0
    %3030 = vmatprep.subr.mxu0 0.0
    %3031 = vmatpush1.msra.mxu0 0.0
    %3032 = vmatprep.subr.mxu0 0.0
    %3033 = vmatpush1.msra.mxu0 0.0
    %3034 = vmatprep.subr.mxu0 0.0
    %3035 = vmatpush1.msra.mxu0 0.0
    %3036 = vmatprep.subr.mxu0 0.0
    %3037 = vmatpush1.msra.mxu0 0.0
    %3038 = vmatprep.subr.mxu0 0.0
    %3039 = vmatpush1.msra.mxu0 0.0
    %3040 = vmatprep.subr.mxu0 0.0
    %3041 = vmatpush1.msra.mxu0 0.0
    %3042 = vmatprep.subr.mxu0 0.0
    %3043 = vmatpush1.msra.mxu0 0.0
    %3044 = vmatprep.subr.mxu0 0.0
    %3045 = vmatpush1.msra.mxu0 0.0
    %3046 = vmatprep.subr.mxu0 0.0
    %3047 = vmatpush1.msra.mxu0 0.0
    %3048 = vmatprep.subr.mxu0 0.0
    %3049 = vmatpush1.msra.mxu0 0.0
    %3050 = vmatprep.subr.mxu0 0.0
    %3051 = vmatpush1.msra.mxu0 0.0
    %3052 = vmatprep.subr.mxu0 0.0
    %3053 = vmatpush1.msra.mxu0 0.0
    %3054 = vmatprep.subr.mxu0 0.0
    %3055 = vmatpush1.msra.mxu0 0.0
    %3056 = vmatprep.subr.mxu0 0.0
    %3057 = vmatpush1.msra.mxu0 0.0
    %3058 = vmatprep.subr.mxu0 0.0
    %3059 = vmatpush1.msra.mxu0 0.0
    %3060 = vmatprep.subr.mxu0 0.0
    %3061 = vmatpush1.msra.mxu0 0.0
    %3062 = vmatprep.subr.mxu0 0.0
    %3063 = vmatpush1.msra.mxu0 0.0
    %3064 = vmatprep.subr.mxu0 0.0
    %3065 = vmatpush1.msra.mxu0 0.0
    %3066 = vmatprep.subr.mxu0 0.0
    %3067 = vmatpush1.msra.mxu0 0.0
    %3068 = vmatprep.mubr.f32.mxu0 0.0
    %3069 = vmatmul.mubr.f32.gmra.mrb[0].mxu0 %v2884
    %v3070 = vpop.f32.mrb[0].mxu0
    %v3071 = vadd.f32 0.0, %v3070
    %v3072 = vpop.f32.mrb[0].mxu0
    %v3073 = vadd.f32 0.0, %v3072
    %3074 = vdwg.mxu0
    %v3075 = vld [vmem:[%s2746] sm:$0xff]
    %v3076 = vld [vmem:[%s2746 + $0x8] sm:$0xff]
    %v3077 = vld [vmem:[%s2746 + $0x10] sm:$0xff]
    %v3078 = vld [vmem:[%s2746 + $0x18] sm:$0xff]
    %v3079 = vld [vmem:[%s2746 + $0x20] sm:$0xff]
    %v3080 = vld [vmem:[%s2746 + $0x28] sm:$0xff]
    %v3081 = vld [vmem:[%s2746 + $0x30] sm:$0xff]
    %v3082 = vld [vmem:[%s2746 + $0x38] sm:$0xff]
    %v3083 = vld [vmem:[%s2746 + $0x40] sm:$0xff]
    %v3084 = vld [vmem:[%s2746 + $0x48] sm:$0xff]
    %v3085 = vld [vmem:[%s2746 + $0x50] sm:$0xff]
    %v3086 = vld [vmem:[%s2746 + $0x58] sm:$0xff]
    %v3087 = vld [vmem:[%s2746 + $0x60] sm:$0xff]
    %v3088 = vld [vmem:[%s2746 + $0x68] sm:$0xff]
    %v3089 = vld [vmem:[%s2746 + $0x70] sm:$0xff]
    %v3090 = vld [vmem:[%s2746 + $0x78] sm:$0xff]
    %v3092 = vsel %vm249, %v2986, 0
    %3094 = vmatprep.subr.mxu0 %v3076
    %3095 = vmatpush1.msra.mxu0 %v3075
    %3096 = vmatprep.subr.mxu0 %v3078
    %3097 = vmatpush1.msra.mxu0 %v3077
    %3098 = vmatprep.subr.mxu0 %v3080
    %3099 = vmatpush1.msra.mxu0 %v3079
    %3100 = vmatprep.subr.mxu0 %v3082
    %3101 = vmatpush1.msra.mxu0 %v3081
    %3102 = vmatprep.subr.mxu0 %v3084
    %3103 = vmatpush1.msra.mxu0 %v3083
    %3104 = vmatprep.subr.mxu0 %v3086
    %3105 = vmatpush1.msra.mxu0 %v3085
    %3106 = vmatprep.subr.mxu0 %v3088
    %3107 = vmatpush1.msra.mxu0 %v3087
    %3108 = vmatprep.subr.mxu0 %v3090
    %3109 = vmatpush1.msra.mxu0 %v3089
    %3110 = vmatprep.subr.mxu0 0.0
    %3111 = vmatpush1.msra.mxu0 0.0
    %3112 = vmatprep.subr.mxu0 0.0
    %3113 = vmatpush1.msra.mxu0 0.0
    %3114 = vmatprep.subr.mxu0 0.0
    %3115 = vmatpush1.msra.mxu0 0.0
    %3116 = vmatprep.subr.mxu0 0.0
    %3117 = vmatpush1.msra.mxu0 0.0
    %3118 = vmatprep.subr.mxu0 0.0
    %3119 = vmatpush1.msra.mxu0 0.0
    %3120 = vmatprep.subr.mxu0 0.0
    %3121 = vmatpush1.msra.mxu0 0.0
    %3122 = vmatprep.subr.mxu0 0.0
    %3123 = vmatpush1.msra.mxu0 0.0
    %3124 = vmatprep.subr.mxu0 0.0
    %3125 = vmatpush1.msra.mxu0 0.0
    %3126 = vmatprep.subr.mxu0 0.0
    %3127 = vmatpush1.msra.mxu0 0.0
    %3128 = vmatprep.subr.mxu0 0.0
    %3129 = vmatpush1.msra.mxu0 0.0
    %3130 = vmatprep.subr.mxu0 0.0
    %3131 = vmatpush1.msra.mxu0 0.0
    %3132 = vmatprep.subr.mxu0 0.0
    %3133 = vmatpush1.msra.mxu0 0.0
    %3134 = vmatprep.subr.mxu0 0.0
    %3135 = vmatpush1.msra.mxu0 0.0
    %3136 = vmatprep.subr.mxu0 0.0
    %3137 = vmatpush1.msra.mxu0 0.0
    %3138 = vmatprep.subr.mxu0 0.0
    %3139 = vmatpush1.msra.mxu0 0.0
    %3140 = vmatprep.subr.mxu0 0.0
    %3141 = vmatpush1.msra.mxu0 0.0
    %3142 = vmatprep.subr.mxu0 0.0
    %3143 = vmatpush1.msra.mxu0 0.0
    %3144 = vmatprep.subr.mxu0 0.0
    %3145 = vmatpush1.msra.mxu0 0.0
    %3146 = vmatprep.subr.mxu0 0.0
    %3147 = vmatpush1.msra.mxu0 0.0
    %3148 = vmatprep.subr.mxu0 0.0
    %3149 = vmatpush1.msra.mxu0 0.0
    %3150 = vmatprep.subr.mxu0 0.0
    %3151 = vmatpush1.msra.mxu0 0.0
    %3152 = vmatprep.subr.mxu0 0.0
    %3153 = vmatpush1.msra.mxu0 0.0
    %3154 = vmatprep.subr.mxu0 0.0
    %3155 = vmatpush1.msra.mxu0 0.0
    %3156 = vmatprep.subr.mxu0 0.0
    %3157 = vmatpush1.msra.mxu0 0.0
    %3158 = vmatprep.mubr.f32.mxu0 0.0
    %3159 = vmatmul.mubr.f32.gmra.mrb[0].mxu0 %v3092
    %v3160 = vpop.f32.mrb[0].mxu0
    %v3161 = vadd.f32 %v224, %v3160
    %v3162 = vpop.f32.mrb[0].mxu0
    %v3163 = vadd.f32 %v228, %v3162
    %3164 = vdwg.mxu0
    %v3165 = vadd.f32 %v2654, %v3071
    %v3166 = vadd.f32 %v2656, %v3073
    %v3167 = vxor.u32 %v3165, 2147483648
    %v3168 = vxor.u32 %v3166, 2147483648
    %v3169 = vmul.f32 %v3167, 1.442695
    %v3170 = vpow.pop %v3169
    %v3171 = vmul.f32 %v3168, 1.442695
    %v3172 = vpow.pop %v3171
    %v3173 = vadd.f32 %v3170, 1.0
    %v3174 = vadd.f32 %v3172, 1.0
    %v3175 = vrcp.pop %v3173
    %v3176 = vmul.f32 1.0, %v3175
    %v3177 = vrcp.pop %v3174
    %v3178 = vmul.f32 1.0, %v3177
    %v3179 = vtanh.pop %v3166
    %v3180 = vmul.f32 %v3176, %v2859
    %3182 = vrot.lane.b32.xlu0 %v3179, 64
    %v3183 = vpop.permute.xlu0 %3182
    %v3185 = vmul.f32 %v3176, %v3183
    %3187 = vrot.lane.b32.xlu0 %v3185, 64
    %v3188 = vpop.permute.xlu0 %3187
    %v3190 = vadd.f32 %v3180, %v3188
    %v3191 = vtanh.pop %v3190
    %3193 = vrot.lane.b32.xlu0 %v3191, 64
    %v3194 = vpop.permute.xlu0 %3193
    %v3196 = vmul.f32 %v3178, %v3194
    %v3197 = vld [vmem:[%s2866] sm:$0xff]
    %v3198 = vld [vmem:[%s2866 + $0x8] sm:$0xff]
    %v3199 = vld [vmem:[%s2866 + $0x10] sm:$0xff]
    %v3200 = vld [vmem:[%s2866 + $0x18] sm:$0xff]
    %v3201 = vld [vmem:[%s2866 + $0x20] sm:$0xff]
    %v3202 = vld [vmem:[%s2866 + $0x28] sm:$0xff]
    %v3203 = vld [vmem:[%s2866 + $0x30] sm:$0xff]
    %v3204 = vld [vmem:[%s2866 + $0x38] sm:$0xff]
    %v3205 = vld [vmem:[%s2866 + $0x40] sm:$0xff]
    %v3206 = vld [vmem:[%s2866 + $0x48] sm:$0xff]
    %v3207 = vld [vmem:[%s2866 + $0x50] sm:$0xff]
    %v3208 = vld [vmem:[%s2866 + $0x58] sm:$0xff]
    %v3209 = vld [vmem:[%s2866 + $0x60] sm:$0xff]
    %v3210 = vld [vmem:[%s2866 + $0x68] sm:$0xff]
    %v3211 = vld [vmem:[%s2866 + $0x70] sm:$0xff]
    %v3212 = vld [vmem:[%s2866 + $0x78] sm:$0xff]
    %v3214 = vsel %vm249, %v3196, 0
    %3216 = vmatprep.subr.mxu0 %v3198
    %3217 = vmatpush1.msra.mxu0 %v3197
    %3218 = vmatprep.subr.mxu0 %v3200
    %3219 = vmatpush1.msra.mxu0 %v3199
    %3220 = vmatprep.subr.mxu0 %v3202
    %3221 = vmatpush1.msra.mxu0 %v3201
    %3222 = vmatprep.subr.mxu0 %v3204
    %3223 = vmatpush1.msra.mxu0 %v3203
    %3224 = vmatprep.subr.mxu0 %v3206
    %3225 = vmatpush1.msra.mxu0 %v3205
    %3226 = vmatprep.subr.mxu0 %v3208
    %3227 = vmatpush1.msra.mxu0 %v3207
    %3228 = vmatprep.subr.mxu0 %v3210
    %3229 = vmatpush1.msra.mxu0 %v3209
    %3230 = vmatprep.subr.mxu0 %v3212
    %3231 = vmatpush1.msra.mxu0 %v3211
    %3232 = vmatprep.subr.mxu0 0.0
    %3233 = vmatpush1.msra.mxu0 0.0
    %3234 = vmatprep.subr.mxu0 0.0
    %3235 = vmatpush1.msra.mxu0 0.0
    %3236 = vmatprep.subr.mxu0 0.0
    %3237 = vmatpush1.msra.mxu0 0.0
    %3238 = vmatprep.subr.mxu0 0.0
    %3239 = vmatpush1.msra.mxu0 0.0
    %3240 = vmatprep.subr.mxu0 0.0
    %3241 = vmatpush1.msra.mxu0 0.0
    %3242 = vmatprep.subr.mxu0 0.0
    %3243 = vmatpush1.msra.mxu0 0.0
    %3244 = vmatprep.subr.mxu0 0.0
    %3245 = vmatpush1.msra.mxu0 0.0
    %3246 = vmatprep.subr.mxu0 0.0
    %3247 = vmatpush1.msra.mxu0 0.0
    %3248 = vmatprep.subr.mxu0 0.0
    %3249 = vmatpush1.msra.mxu0 0.0
    %3250 = vmatprep.subr.mxu0 0.0
    %3251 = vmatpush1.msra.mxu0 0.0
    %3252 = vmatprep.subr.mxu0 0.0
    %3253 = vmatpush1.msra.mxu0 0.0
    %3254 = vmatprep.subr.mxu0 0.0
    %3255 = vmatpush1.msra.mxu0 0.0
    %3256 = vmatprep.subr.mxu0 0.0
    %3257 = vmatpush1.msra.mxu0 0.0
    %3258 = vmatprep.subr.mxu0 0.0
    %3259 = vmatpush1.msra.mxu0 0.0
    %3260 = vmatprep.subr.mxu0 0.0
    %3261 = vmatpush1.msra.mxu0 0.0
    %3262 = vmatprep.subr.mxu0 0.0
    %3263 = vmatpush1.msra.mxu0 0.0
    %3264 = vmatprep.subr.mxu0 0.0
    %3265 = vmatpush1.msra.mxu0 0.0
    %3266 = vmatprep.subr.mxu0 0.0
    %3267 = vmatpush1.msra.mxu0 0.0
    %3268 = vmatprep.subr.mxu0 0.0
    %3269 = vmatpush1.msra.mxu0 0.0
    %3270 = vmatprep.subr.mxu0 0.0
    %3271 = vmatpush1.msra.mxu0 0.0
    %3272 = vmatprep.subr.mxu0 0.0
    %3273 = vmatpush1.msra.mxu0 0.0
    %3274 = vmatprep.subr.mxu0 0.0
    %3275 = vmatpush1.msra.mxu0 0.0
    %3276 = vmatprep.subr.mxu0 0.0
    %3277 = vmatpush1.msra.mxu0 0.0
    %3278 = vmatprep.subr.mxu0 0.0
    %3279 = vmatpush1.msra.mxu0 0.0
    %3280 = vmatprep.mubr.f32.mxu0 0.0
    %3281 = vmatmul.mubr.f32.gmra.mrb[0].mxu0 %v3214
    %v3282 = vpop.f32.mrb[0].mxu0
    %v3283 = vadd.f32 %v3161, %v3282
    %v3284 = vpop.f32.mrb[0].mxu0
    %v3285 = vadd.f32 %v3163, %v3284
    %3286 = vdwg.mxu0
    %v3287 = vxor.u32 %v3283, 2147483648
    %v3288 = vxor.u32 %v3285, 2147483648
    %v3289 = vmul.f32 %v3287, 1.442695
    %v3290 = vpow.pop %v3289
    %v3291 = vmul.f32 %v3288, 1.442695
    %v3292 = vpow.pop %v3291
    %v3293 = vadd.f32 %v3290, 1.0
    %v3294 = vadd.f32 %v3292, 1.0
    %v3295 = vrcp.pop %v3293
    %v3296 = vmul.f32 1.0, %v3295
    %v3297 = vrcp.pop %v3294
    %v3298 = vmul.f32 1.0, %v3297
    %v3299 = vtanh.pop %v3285
    %v3300 = vmul.f32 %v3296, %v2980
    %3302 = vrot.lane.b32.xlu0 %v3299, 64
    %v3303 = vpop.permute.xlu0 %3302
    %v3305 = vmul.f32 %v3296, %v3303
    %3307 = vrot.lane.b32.xlu0 %v3305, 64
    %v3308 = vpop.permute.xlu0 %3307
    %v3310 = vadd.f32 %v3300, %v3308
    %v3311 = vtanh.pop %v3310
    %3313 = vrot.lane.b32.xlu0 %v3311, 64
    %v3314 = vpop.permute.xlu0 %3313
    %v3316 = vmul.f32 %v3298, %v3314
    %s3317 = scalar_lea.vmem [#allocation3], 8
    %3318 = vst.msk [vmem:[%s3317] sm:$0xff] %vm249, %v3316
    %v3319 = vld [vmem:[%s2658] sm:$0xff]
    %v3320 = vld [vmem:[%s2658 + $0x8] sm:$0xff]
    %v3321 = vld [vmem:[%s2658 + $0x10] sm:$0xff]
    %v3322 = vld [vmem:[%s2658 + $0x18] sm:$0xff]
    %v3323 = vld [vmem:[%s2658 + $0x20] sm:$0xff]
    %v3324 = vld [vmem:[%s2658 + $0x28] sm:$0xff]
    %v3325 = vld [vmem:[%s2658 + $0x30] sm:$0xff]
    %v3326 = vld [vmem:[%s2658 + $0x38] sm:$0xff]
    %v3327 = vld [vmem:[%s2658 + $0x40] sm:$0xff]
    %v3328 = vld [vmem:[%s2658 + $0x48] sm:$0xff]
    %v3329 = vld [vmem:[%s2658 + $0x50] sm:$0xff]
    %v3330 = vld [vmem:[%s2658 + $0x58] sm:$0xff]
    %v3331 = vld [vmem:[%s2658 + $0x60] sm:$0xff]
    %v3332 = vld [vmem:[%s2658 + $0x68] sm:$0xff]
    %v3333 = vld [vmem:[%s2658 + $0x70] sm:$0xff]
    %v3334 = vld [vmem:[%s2658 + $0x78] sm:$0xff]
    %3335 = vmatprep.subr.mxu0 %v3320
    %3336 = vmatpush1.msra.mxu0 %v3319
    %3337 = vmatprep.subr.mxu0 %v3322
    %3338 = vmatpush1.msra.mxu0 %v3321
    %3339 = vmatprep.subr.mxu0 %v3324
    %3340 = vmatpush1.msra.mxu0 %v3323
    %3341 = vmatprep.subr.mxu0 %v3326
    %3342 = vmatpush1.msra.mxu0 %v3325
    %3343 = vmatprep.subr.mxu0 %v3328
    %3344 = vmatpush1.msra.mxu0 %v3327
    %3345 = vmatprep.subr.mxu0 %v3330
    %3346 = vmatpush1.msra.mxu0 %v3329
    %3347 = vmatprep.subr.mxu0 %v3332
    %3348 = vmatpush1.msra.mxu0 %v3331
    %3349 = vmatprep.subr.mxu0 %v3334
    %3350 = vmatpush1.msra.mxu0 %v3333
    %3351 = vmatprep.subr.mxu0 0.0
    %3352 = vmatpush1.msra.mxu0 0.0
    %3353 = vmatprep.subr.mxu0 0.0
    %3354 = vmatpush1.msra.mxu0 0.0
    %3355 = vmatprep.subr.mxu0 0.0
    %3356 = vmatpush1.msra.mxu0 0.0
    %3357 = vmatprep.subr.mxu0 0.0
    %3358 = vmatpush1.msra.mxu0 0.0
    %3359 = vmatprep.subr.mxu0 0.0
    %3360 = vmatpush1.msra.mxu0 0.0
    %3361 = vmatprep.subr.mxu0 0.0
    %3362 = vmatpush1.msra.mxu0 0.0
    %3363 = vmatprep.subr.mxu0 0.0
    %3364 = vmatpush1.msra.mxu0 0.0
    %3365 = vmatprep.subr.mxu0 0.0
    %3366 = vmatpush1.msra.mxu0 0.0
    %3367 = vmatprep.subr.mxu0 0.0
    %3368 = vmatpush1.msra.mxu0 0.0
    %3369 = vmatprep.subr.mxu0 0.0
    %3370 = vmatpush1.msra.mxu0 0.0
    %3371 = vmatprep.subr.mxu0 0.0
    %3372 = vmatpush1.msra.mxu0 0.0
    %3373 = vmatprep.subr.mxu0 0.0
    %3374 = vmatpush1.msra.mxu0 0.0
    %3375 = vmatprep.subr.mxu0 0.0
    %3376 = vmatpush1.msra.mxu0 0.0
    %3377 = vmatprep.subr.mxu0 0.0
    %3378 = vmatpush1.msra.mxu0 0.0
    %3379 = vmatprep.subr.mxu0 0.0
    %3380 = vmatpush1.msra.mxu0 0.0
    %3381 = vmatprep.subr.mxu0 0.0
    %3382 = vmatpush1.msra.mxu0 0.0
    %3383 = vmatprep.subr.mxu0 0.0
    %3384 = vmatpush1.msra.mxu0 0.0
    %3385 = vmatprep.subr.mxu0 0.0
    %3386 = vmatpush1.msra.mxu0 0.0
    %3387 = vmatprep.subr.mxu0 0.0
    %3388 = vmatpush1.msra.mxu0 0.0
    %3389 = vmatprep.subr.mxu0 0.0
    %3390 = vmatpush1.msra.mxu0 0.0
    %3391 = vmatprep.subr.mxu0 0.0
    %3392 = vmatpush1.msra.mxu0 0.0
    %3393 = vmatprep.subr.mxu0 0.0
    %3394 = vmatpush1.msra.mxu0 0.0
    %3395 = vmatprep.subr.mxu0 0.0
    %3396 = vmatpush1.msra.mxu0 0.0
    %3397 = vmatprep.subr.mxu0 0.0
    %3398 = vmatpush1.msra.mxu0 0.0
    %3399 = vmatprep.mubr.f32.mxu0 0.0
    %3400 = vmatmul.mubr.f32.gmra.mrb[0].mxu0 %v3214
    %v3401 = vpop.f32.mrb[0].mxu0
    %v3402 = vadd.f32 0.0, %v3401
    %v3403 = vpop.f32.mrb[0].mxu0
    %v3404 = vadd.f32 0.0, %v3403
    %3405 = vdwg.mxu0
    %v3406 = vld [vmem:[%s2746] sm:$0xff]
    %v3407 = vld [vmem:[%s2746 + $0x8] sm:$0xff]
    %v3408 = vld [vmem:[%s2746 + $0x10] sm:$0xff]
    %v3409 = vld [vmem:[%s2746 + $0x18] sm:$0xff]
    %v3410 = vld [vmem:[%s2746 + $0x20] sm:$0xff]
    %v3411 = vld [vmem:[%s2746 + $0x28] sm:$0xff]
    %v3412 = vld [vmem:[%s2746 + $0x30] sm:$0xff]
    %v3413 = vld [vmem:[%s2746 + $0x38] sm:$0xff]
    %v3414 = vld [vmem:[%s2746 + $0x40] sm:$0xff]
    %v3415 = vld [vmem:[%s2746 + $0x48] sm:$0xff]
    %v3416 = vld [vmem:[%s2746 + $0x50] sm:$0xff]
    %v3417 = vld [vmem:[%s2746 + $0x58] sm:$0xff]
    %v3418 = vld [vmem:[%s2746 + $0x60] sm:$0xff]
    %v3419 = vld [vmem:[%s2746 + $0x68] sm:$0xff]
    %v3420 = vld [vmem:[%s2746 + $0x70] sm:$0xff]
    %v3421 = vld [vmem:[%s2746 + $0x78] sm:$0xff]
    %v3423 = vsel %vm249, %v3316, 0
    %3425 = vmatprep.subr.mxu0 %v3407
    %3426 = vmatpush1.msra.mxu0 %v3406
    %3427 = vmatprep.subr.mxu0 %v3409
    %3428 = vmatpush1.msra.mxu0 %v3408
    %3429 = vmatprep.subr.mxu0 %v3411
    %3430 = vmatpush1.msra.mxu0 %v3410
    %3431 = vmatprep.subr.mxu0 %v3413
    %3432 = vmatpush1.msra.mxu0 %v3412
    %3433 = vmatprep.subr.mxu0 %v3415
    %3434 = vmatpush1.msra.mxu0 %v3414
    %3435 = vmatprep.subr.mxu0 %v3417
    %3436 = vmatpush1.msra.mxu0 %v3416
    %3437 = vmatprep.subr.mxu0 %v3419
    %3438 = vmatpush1.msra.mxu0 %v3418
    %3439 = vmatprep.subr.mxu0 %v3421
    %3440 = vmatpush1.msra.mxu0 %v3420
    %3441 = vmatprep.subr.mxu0 0.0
    %3442 = vmatpush1.msra.mxu0 0.0
    %3443 = vmatprep.subr.mxu0 0.0
    %3444 = vmatpush1.msra.mxu0 0.0
    %3445 = vmatprep.subr.mxu0 0.0
    %3446 = vmatpush1.msra.mxu0 0.0
    %3447 = vmatprep.subr.mxu0 0.0
    %3448 = vmatpush1.msra.mxu0 0.0
    %3449 = vmatprep.subr.mxu0 0.0
    %3450 = vmatpush1.msra.mxu0 0.0
    %3451 = vmatprep.subr.mxu0 0.0
    %3452 = vmatpush1.msra.mxu0 0.0
    %3453 = vmatprep.subr.mxu0 0.0
    %3454 = vmatpush1.msra.mxu0 0.0
    %3455 = vmatprep.subr.mxu0 0.0
    %3456 = vmatpush1.msra.mxu0 0.0
    %3457 = vmatprep.subr.mxu0 0.0
    %3458 = vmatpush1.msra.mxu0 0.0
    %3459 = vmatprep.subr.mxu0 0.0
    %3460 = vmatpush1.msra.mxu0 0.0
    %3461 = vmatprep.subr.mxu0 0.0
    %3462 = vmatpush1.msra.mxu0 0.0
    %3463 = vmatprep.subr.mxu0 0.0
    %3464 = vmatpush1.msra.mxu0 0.0
    %3465 = vmatprep.subr.mxu0 0.0
    %3466 = vmatpush1.msra.mxu0 0.0
    %3467 = vmatprep.subr.mxu0 0.0
    %3468 = vmatpush1.msra.mxu0 0.0
    %3469 = vmatprep.subr.mxu0 0.0
    %3470 = vmatpush1.msra.mxu0 0.0
    %3471 = vmatprep.subr.mxu0 0.0
    %3472 = vmatpush1.msra.mxu0 0.0
    %3473 = vmatprep.subr.mxu0 0.0
    %3474 = vmatpush1.msra.mxu0 0.0
    %3475 = vmatprep.subr.mxu0 0.0
    %3476 = vmatpush1.msra.mxu0 0.0
    %3477 = vmatprep.subr.mxu0 0.0
    %3478 = vmatpush1.msra.mxu0 0.0
    %3479 = vmatprep.subr.mxu0 0.0
    %3480 = vmatpush1.msra.mxu0 0.0
    %3481 = vmatprep.subr.mxu0 0.0
    %3482 = vmatpush1.msra.mxu0 0.0
    %3483 = vmatprep.subr.mxu0 0.0
    %3484 = vmatpush1.msra.mxu0 0.0
    %3485 = vmatprep.subr.mxu0 0.0
    %3486 = vmatpush1.msra.mxu0 0.0
    %3487 = vmatprep.subr.mxu0 0.0
    %3488 = vmatpush1.msra.mxu0 0.0
    %3489 = vmatprep.mubr.f32.mxu0 0.0
    %3490 = vmatmul.mubr.f32.gmra.mrb[0].mxu0 %v3423
    %v3491 = vpop.f32.mrb[0].mxu0
    %v3492 = vadd.f32 %v224, %v3491
    %v3493 = vpop.f32.mrb[0].mxu0
    %v3494 = vadd.f32 %v228, %v3493
    %3495 = vdwg.mxu0
    %v3496 = vadd.f32 %v2654, %v3402
    %v3497 = vadd.f32 %v2656, %v3404
    %v3498 = vxor.u32 %v3496, 2147483648
    %v3499 = vxor.u32 %v3497, 2147483648
    %v3500 = vmul.f32 %v3498, 1.442695
    %v3501 = vpow.pop %v3500
    %v3502 = vmul.f32 %v3499, 1.442695
    %v3503 = vpow.pop %v3502
    %v3504 = vadd.f32 %v3501, 1.0
    %v3505 = vadd.f32 %v3503, 1.0
    %v3506 = vrcp.pop %v3504
    %v3507 = vmul.f32 1.0, %v3506
    %v3508 = vrcp.pop %v3505
    %v3509 = vmul.f32 1.0, %v3508
    %v3510 = vtanh.pop %v3497
    %v3511 = vmul.f32 %v3507, %v3190
    %3513 = vrot.lane.b32.xlu0 %v3510, 64
    %v3514 = vpop.permute.xlu0 %3513
    %v3516 = vmul.f32 %v3507, %v3514
    %3518 = vrot.lane.b32.xlu0 %v3516, 64
    %v3519 = vpop.permute.xlu0 %3518
    %v3521 = vadd.f32 %v3511, %v3519
    %v3522 = vtanh.pop %v3521
    %3524 = vrot.lane.b32.xlu0 %v3522, 64
    %v3525 = vpop.permute.xlu0 %3524
    %v3527 = vmul.f32 %v3509, %v3525
    %v3528 = vld [vmem:[%s2866] sm:$0xff]
    %v3529 = vld [vmem:[%s2866 + $0x8] sm:$0xff]
    %v3530 = vld [vmem:[%s2866 + $0x10] sm:$0xff]
    %v3531 = vld [vmem:[%s2866 + $0x18] sm:$0xff]
    %v3532 = vld [vmem:[%s2866 + $0x20] sm:$0xff]
    %v3533 = vld [vmem:[%s2866 + $0x28] sm:$0xff]
    %v3534 = vld [vmem:[%s2866 + $0x30] sm:$0xff]
    %v3535 = vld [vmem:[%s2866 + $0x38] sm:$0xff]
    %v3536 = vld [vmem:[%s2866 + $0x40] sm:$0xff]
    %v3537 = vld [vmem:[%s2866 + $0x48] sm:$0xff]
    %v3538 = vld [vmem:[%s2866 + $0x50] sm:$0xff]
    %v3539 = vld [vmem:[%s2866 + $0x58] sm:$0xff]
    %v3540 = vld [vmem:[%s2866 + $0x60] sm:$0xff]
    %v3541 = vld [vmem:[%s2866 + $0x68] sm:$0xff]
    %v3542 = vld [vmem:[%s2866 + $0x70] sm:$0xff]
    %v3543 = vld [vmem:[%s2866 + $0x78] sm:$0xff]
    %v3545 = vsel %vm249, %v3527, 0
    %3547 = vmatprep.subr.mxu0 %v3529
    %3548 = vmatpush1.msra.mxu0 %v3528
    %3549 = vmatprep.subr.mxu0 %v3531
    %3550 = vmatpush1.msra.mxu0 %v3530
    %3551 = vmatprep.subr.mxu0 %v3533
    %3552 = vmatpush1.msra.mxu0 %v3532
    %3553 = vmatprep.subr.mxu0 %v3535
    %3554 = vmatpush1.msra.mxu0 %v3534
    %3555 = vmatprep.subr.mxu0 %v3537
    %3556 = vmatpush1.msra.mxu0 %v3536
    %3557 = vmatprep.subr.mxu0 %v3539
    %3558 = vmatpush1.msra.mxu0 %v3538
    %3559 = vmatprep.subr.mxu0 %v3541
    %3560 = vmatpush1.msra.mxu0 %v3540
    %3561 = vmatprep.subr.mxu0 %v3543
    %3562 = vmatpush1.msra.mxu0 %v3542
    %3563 = vmatprep.subr.mxu0 0.0
    %3564 = vmatpush1.msra.mxu0 0.0
    %3565 = vmatprep.subr.mxu0 0.0
    %3566 = vmatpush1.msra.mxu0 0.0
    %3567 = vmatprep.subr.mxu0 0.0
    %3568 = vmatpush1.msra.mxu0 0.0
    %3569 = vmatprep.subr.mxu0 0.0
    %3570 = vmatpush1.msra.mxu0 0.0
    %3571 = vmatprep.subr.mxu0 0.0
    %3572 = vmatpush1.msra.mxu0 0.0
    %3573 = vmatprep.subr.mxu0 0.0
    %3574 = vmatpush1.msra.mxu0 0.0
    %3575 = vmatprep.subr.mxu0 0.0
    %3576 = vmatpush1.msra.mxu0 0.0
    %3577 = vmatprep.subr.mxu0 0.0
    %3578 = vmatpush1.msra.mxu0 0.0
    %3579 = vmatprep.subr.mxu0 0.0
    %3580 = vmatpush1.msra.mxu0 0.0
    %3581 = vmatprep.subr.mxu0 0.0
    %3582 = vmatpush1.msra.mxu0 0.0
    %3583 = vmatprep.subr.mxu0 0.0
    %3584 = vmatpush1.msra.mxu0 0.0
    %3585 = vmatprep.subr.mxu0 0.0
    %3586 = vmatpush1.msra.mxu0 0.0
    %3587 = vmatprep.subr.mxu0 0.0
    %3588 = vmatpush1.msra.mxu0 0.0
    %3589 = vmatprep.subr.mxu0 0.0
    %3590 = vmatpush1.msra.mxu0 0.0
    %3591 = vmatprep.subr.mxu0 0.0
    %3592 = vmatpush1.msra.mxu0 0.0
    %3593 = vmatprep.subr.mxu0 0.0
    %3594 = vmatpush1.msra.mxu0 0.0
    %3595 = vmatprep.subr.mxu0 0.0
    %3596 = vmatpush1.msra.mxu0 0.0
    %3597 = vmatprep.subr.mxu0 0.0
    %3598 = vmatpush1.msra.mxu0 0.0
    %3599 = vmatprep.subr.mxu0 0.0
    %3600 = vmatpush1.msra.mxu0 0.0
    %3601 = vmatprep.subr.mxu0 0.0
    %3602 = vmatpush1.msra.mxu0 0.0
    %3603 = vmatprep.subr.mxu0 0.0
    %3604 = vmatpush1.msra.mxu0 0.0
    %3605 = vmatprep.subr.mxu0 0.0
    %3606 = vmatpush1.msra.mxu0 0.0
    %3607 = vmatprep.subr.mxu0 0.0
    %3608 = vmatpush1.msra.mxu0 0.0
    %3609 = vmatprep.subr.mxu0 0.0
    %3610 = vmatpush1.msra.mxu0 0.0
    %3611 = vmatprep.mubr.f32.mxu0 0.0
    %3612 = vmatmul.mubr.f32.gmra.mrb[0].mxu0 %v3545
    %v3613 = vpop.f32.mrb[0].mxu0
    %v3614 = vadd.f32 %v3492, %v3613
    %v3615 = vpop.f32.mrb[0].mxu0
    %v3616 = vadd.f32 %v3494, %v3615
    %3617 = vdwg.mxu0
    %v3618 = vxor.u32 %v3614, 2147483648
    %v3619 = vxor.u32 %v3616, 2147483648
    %v3620 = vmul.f32 %v3618, 1.442695
    %v3621 = vpow.pop %v3620
    %v3622 = vmul.f32 %v3619, 1.442695
    %v3623 = vpow.pop %v3622
    %v3624 = vadd.f32 %v3621, 1.0
    %v3625 = vadd.f32 %v3623, 1.0
    %v3626 = vrcp.pop %v3624
    %v3627 = vmul.f32 1.0, %v3626
    %v3628 = vrcp.pop %v3625
    %v3629 = vmul.f32 1.0, %v3628
    %v3630 = vtanh.pop %v3616
    %v3631 = vmul.f32 %v3627, %v3310
    %3633 = vrot.lane.b32.xlu0 %v3630, 64
    %v3634 = vpop.permute.xlu0 %3633
    %v3636 = vmul.f32 %v3627, %v3634
    %3638 = vrot.lane.b32.xlu0 %v3636, 64
    %v3639 = vpop.permute.xlu0 %3638
    %v3641 = vadd.f32 %v3631, %v3639
    %v3642 = vtanh.pop %v3641
    %3644 = vrot.lane.b32.xlu0 %v3642, 64
    %v3645 = vpop.permute.xlu0 %3644
    %v3647 = vmul.f32 %v3629, %v3645
    %s3648 = scalar_lea.vmem [#allocation3], 16
    %3649 = vst.msk [vmem:[%s3648] sm:$0xff] %vm249, %v3647
    %v3650 = vld [vmem:[%s2658] sm:$0xff]
    %v3651 = vld [vmem:[%s2658 + $0x8] sm:$0xff]
    %v3652 = vld [vmem:[%s2658 + $0x10] sm:$0xff]
    %v3653 = vld [vmem:[%s2658 + $0x18] sm:$0xff]
    %v3654 = vld [vmem:[%s2658 + $0x20] sm:$0xff]
    %v3655 = vld [vmem:[%s2658 + $0x28] sm:$0xff]
    %v3656 = vld [vmem:[%s2658 + $0x30] sm:$0xff]
    %v3657 = vld [vmem:[%s2658 + $0x38] sm:$0xff]
    %v3658 = vld [vmem:[%s2658 + $0x40] sm:$0xff]
    %v3659 = vld [vmem:[%s2658 + $0x48] sm:$0xff]
    %v3660 = vld [vmem:[%s2658 + $0x50] sm:$0xff]
    %v3661 = vld [vmem:[%s2658 + $0x58] sm:$0xff]
    %v3662 = vld [vmem:[%s2658 + $0x60] sm:$0xff]
    %v3663 = vld [vmem:[%s2658 + $0x68] sm:$0xff]
    %v3664 = vld [vmem:[%s2658 + $0x70] sm:$0xff]
    %v3665 = vld [vmem:[%s2658 + $0x78] sm:$0xff]
    %3666 = vmatprep.subr.mxu0 %v3651
    %3667 = vmatpush1.msra.mxu0 %v3650
    %3668 = vmatprep.subr.mxu0 %v3653
    %3669 = vmatpush1.msra.mxu0 %v3652
    %3670 = vmatprep.subr.mxu0 %v3655
    %3671 = vmatpush1.msra.mxu0 %v3654
    %3672 = vmatprep.subr.mxu0 %v3657
    %3673 = vmatpush1.msra.mxu0 %v3656
    %3674 = vmatprep.subr.mxu0 %v3659
    %3675 = vmatpush1.msra.mxu0 %v3658
    %3676 = vmatprep.subr.mxu0 %v3661
    %3677 = vmatpush1.msra.mxu0 %v3660
    %3678 = vmatprep.subr.mxu0 %v3663
    %3679 = vmatpush1.msra.mxu0 %v3662
    %3680 = vmatprep.subr.mxu0 %v3665
    %3681 = vmatpush1.msra.mxu0 %v3664
    %3682 = vmatprep.subr.mxu0 0.0
    %3683 = vmatpush1.msra.mxu0 0.0
    %3684 = vmatprep.subr.mxu0 0.0
    %3685 = vmatpush1.msra.mxu0 0.0
    %3686 = vmatprep.subr.mxu0 0.0
    %3687 = vmatpush1.msra.mxu0 0.0
    %3688 = vmatprep.subr.mxu0 0.0
    %3689 = vmatpush1.msra.mxu0 0.0
    %3690 = vmatprep.subr.mxu0 0.0
    %3691 = vmatpush1.msra.mxu0 0.0
    %3692 = vmatprep.subr.mxu0 0.0
    %3693 = vmatpush1.msra.mxu0 0.0
    %3694 = vmatprep.subr.mxu0 0.0
    %3695 = vmatpush1.msra.mxu0 0.0
    %3696 = vmatprep.subr.mxu0 0.0
    %3697 = vmatpush1.msra.mxu0 0.0
    %3698 = vmatprep.subr.mxu0 0.0
    %3699 = vmatpush1.msra.mxu0 0.0
    %3700 = vmatprep.subr.mxu0 0.0
    %3701 = vmatpush1.msra.mxu0 0.0
    %3702 = vmatprep.subr.mxu0 0.0
    %3703 = vmatpush1.msra.mxu0 0.0
    %3704 = vmatprep.subr.mxu0 0.0
    %3705 = vmatpush1.msra.mxu0 0.0
    %3706 = vmatprep.subr.mxu0 0.0
    %3707 = vmatpush1.msra.mxu0 0.0
    %3708 = vmatprep.subr.mxu0 0.0
    %3709 = vmatpush1.msra.mxu0 0.0
    %3710 = vmatprep.subr.mxu0 0.0
    %3711 = vmatpush1.msra.mxu0 0.0
    %3712 = vmatprep.subr.mxu0 0.0
    %3713 = vmatpush1.msra.mxu0 0.0
    %3714 = vmatprep.subr.mxu0 0.0
    %3715 = vmatpush1.msra.mxu0 0.0
    %3716 = vmatprep.subr.mxu0 0.0
    %3717 = vmatpush1.msra.mxu0 0.0
    %3718 = vmatprep.subr.mxu0 0.0
    %3719 = vmatpush1.msra.mxu0 0.0
    %3720 = vmatprep.subr.mxu0 0.0
    %3721 = vmatpush1.msra.mxu0 0.0
    %3722 = vmatprep.subr.mxu0 0.0
    %3723 = vmatpush1.msra.mxu0 0.0
    %3724 = vmatprep.subr.mxu0 0.0
    %3725 = vmatpush1.msra.mxu0 0.0
    %3726 = vmatprep.subr.mxu0 0.0
    %3727 = vmatpush1.msra.mxu0 0.0
    %3728 = vmatprep.subr.mxu0 0.0
    %3729 = vmatpush1.msra.mxu0 0.0
    %3730 = vmatprep.mubr.f32.mxu0 0.0
    %3731 = vmatmul.mubr.f32.gmra.mrb[0].mxu0 %v3545
    %v3732 = vpop.f32.mrb[0].mxu0
    %v3733 = vadd.f32 0.0, %v3732
    %v3734 = vpop.f32.mrb[0].mxu0
    %v3735 = vadd.f32 0.0, %v3734
    %3736 = vdwg.mxu0
    %v3737 = vld [vmem:[%s2746] sm:$0xff]
    %v3738 = vld [vmem:[%s2746 + $0x8] sm:$0xff]
    %v3739 = vld [vmem:[%s2746 + $0x10] sm:$0xff]
    %v3740 = vld [vmem:[%s2746 + $0x18] sm:$0xff]
    %v3741 = vld [vmem:[%s2746 + $0x20] sm:$0xff]
    %v3742 = vld [vmem:[%s2746 + $0x28] sm:$0xff]
    %v3743 = vld [vmem:[%s2746 + $0x30] sm:$0xff]
    %v3744 = vld [vmem:[%s2746 + $0x38] sm:$0xff]
    %v3745 = vld [vmem:[%s2746 + $0x40] sm:$0xff]
    %v3746 = vld [vmem:[%s2746 + $0x48] sm:$0xff]
    %v3747 = vld [vmem:[%s2746 + $0x50] sm:$0xff]
    %v3748 = vld [vmem:[%s2746 + $0x58] sm:$0xff]
    %v3749 = vld [vmem:[%s2746 + $0x60] sm:$0xff]
    %v3750 = vld [vmem:[%s2746 + $0x68] sm:$0xff]
    %v3751 = vld [vmem:[%s2746 + $0x70] sm:$0xff]
    %v3752 = vld [vmem:[%s2746 + $0x78] sm:$0xff]
    %v3754 = vsel %vm249, %v3647, 0
    %3756 = vmatprep.subr.mxu0 %v3738
    %3757 = vmatpush1.msra.mxu0 %v3737
    %3758 = vmatprep.subr.mxu0 %v3740
    %3759 = vmatpush1.msra.mxu0 %v3739
    %3760 = vmatprep.subr.mxu0 %v3742
    %3761 = vmatpush1.msra.mxu0 %v3741
    %3762 = vmatprep.subr.mxu0 %v3744
    %3763 = vmatpush1.msra.mxu0 %v3743
    %3764 = vmatprep.subr.mxu0 %v3746
    %3765 = vmatpush1.msra.mxu0 %v3745
    %3766 = vmatprep.subr.mxu0 %v3748
    %3767 = vmatpush1.msra.mxu0 %v3747
    %3768 = vmatprep.subr.mxu0 %v3750
    %3769 = vmatpush1.msra.mxu0 %v3749
    %3770 = vmatprep.subr.mxu0 %v3752
    %3771 = vmatpush1.msra.mxu0 %v3751
    %3772 = vmatprep.subr.mxu0 0.0
    %3773 = vmatpush1.msra.mxu0 0.0
    %3774 = vmatprep.subr.mxu0 0.0
    %3775 = vmatpush1.msra.mxu0 0.0
    %3776 = vmatprep.subr.mxu0 0.0
    %3777 = vmatpush1.msra.mxu0 0.0
    %3778 = vmatprep.subr.mxu0 0.0
    %3779 = vmatpush1.msra.mxu0 0.0
    %3780 = vmatprep.subr.mxu0 0.0
    %3781 = vmatpush1.msra.mxu0 0.0
    %3782 = vmatprep.subr.mxu0 0.0
    %3783 = vmatpush1.msra.mxu0 0.0
    %3784 = vmatprep.subr.mxu0 0.0
    %3785 = vmatpush1.msra.mxu0 0.0
    %3786 = vmatprep.subr.mxu0 0.0
    %3787 = vmatpush1.msra.mxu0 0.0
    %3788 = vmatprep.subr.mxu0 0.0
    %3789 = vmatpush1.msra.mxu0 0.0
    %3790 = vmatprep.subr.mxu0 0.0
    %3791 = vmatpush1.msra.mxu0 0.0
    %3792 = vmatprep.subr.mxu0 0.0
    %3793 = vmatpush1.msra.mxu0 0.0
    %3794 = vmatprep.subr.mxu0 0.0
    %3795 = vmatpush1.msra.mxu0 0.0
    %3796 = vmatprep.subr.mxu0 0.0
    %3797 = vmatpush1.msra.mxu0 0.0
    %3798 = vmatprep.subr.mxu0 0.0
    %3799 = vmatpush1.msra.mxu0 0.0
    %3800 = vmatprep.subr.mxu0 0.0
    %3801 = vmatpush1.msra.mxu0 0.0
    %3802 = vmatprep.subr.mxu0 0.0
    %3803 = vmatpush1.msra.mxu0 0.0
    %3804 = vmatprep.subr.mxu0 0.0
    %3805 = vmatpush1.msra.mxu0 0.0
    %3806 = vmatprep.subr.mxu0 0.0
    %3807 = vmatpush1.msra.mxu0 0.0
    %3808 = vmatprep.subr.mxu0 0.0
    %3809 = vmatpush1.msra.mxu0 0.0
    %3810 = vmatprep.subr.mxu0 0.0
    %3811 = vmatpush1.msra.mxu0 0.0
    %3812 = vmatprep.subr.mxu0 0.0
    %3813 = vmatpush1.msra.mxu0 0.0
    %3814 = vmatprep.subr.mxu0 0.0
    %3815 = vmatpush1.msra.mxu0 0.0
    %3816 = vmatprep.subr.mxu0 0.0
    %3817 = vmatpush1.msra.mxu0 0.0
    %3818 = vmatprep.subr.mxu0 0.0
    %3819 = vmatpush1.msra.mxu0 0.0
    %3820 = vmatprep.mubr.f32.mxu0 0.0
    %3821 = vmatmul.mubr.f32.gmra.mrb[0].mxu0 %v3754
    %v3822 = vpop.f32.mrb[0].mxu0
    %v3823 = vadd.f32 %v224, %v3822
    %v3824 = vpop.f32.mrb[0].mxu0
    %v3825 = vadd.f32 %v228, %v3824
    %3826 = vdwg.mxu0
    %v3827 = vadd.f32 %v2654, %v3733
    %v3828 = vadd.f32 %v2656, %v3735
    %v3829 = vxor.u32 %v3827, 2147483648
    %v3830 = vxor.u32 %v3828, 2147483648
    %v3831 = vmul.f32 %v3829, 1.442695
    %v3832 = vpow.pop %v3831
    %v3833 = vmul.f32 %v3830, 1.442695
    %v3834 = vpow.pop %v3833
    %v3835 = vadd.f32 %v3832, 1.0
    %v3836 = vadd.f32 %v3834, 1.0
    %v3837 = vrcp.pop %v3835
    %v3838 = vmul.f32 1.0, %v3837
    %v3839 = vrcp.pop %v3836
    %v3840 = vmul.f32 1.0, %v3839
    %v3841 = vtanh.pop %v3828
    %v3842 = vmul.f32 %v3838, %v3521
    %3844 = vrot.lane.b32.xlu0 %v3841, 64
    %v3845 = vpop.permute.xlu0 %3844
    %v3847 = vmul.f32 %v3838, %v3845
    %3849 = vrot.lane.b32.xlu0 %v3847, 64
    %v3850 = vpop.permute.xlu0 %3849
    %v3852 = vadd.f32 %v3842, %v3850
    %v3853 = vtanh.pop %v3852
    %3855 = vrot.lane.b32.xlu0 %v3853, 64
    %v3856 = vpop.permute.xlu0 %3855
    %v3858 = vmul.f32 %v3840, %v3856
    %v3859 = vld [vmem:[%s2866] sm:$0xff]
    %v3860 = vld [vmem:[%s2866 + $0x8] sm:$0xff]
    %v3861 = vld [vmem:[%s2866 + $0x10] sm:$0xff]
    %v3862 = vld [vmem:[%s2866 + $0x18] sm:$0xff]
    %v3863 = vld [vmem:[%s2866 + $0x20] sm:$0xff]
    %v3864 = vld [vmem:[%s2866 + $0x28] sm:$0xff]
    %v3865 = vld [vmem:[%s2866 + $0x30] sm:$0xff]
    %v3866 = vld [vmem:[%s2866 + $0x38] sm:$0xff]
    %v3867 = vld [vmem:[%s2866 + $0x40] sm:$0xff]
    %v3868 = vld [vmem:[%s2866 + $0x48] sm:$0xff]
    %v3869 = vld [vmem:[%s2866 + $0x50] sm:$0xff]
    %v3870 = vld [vmem:[%s2866 + $0x58] sm:$0xff]
    %v3871 = vld [vmem:[%s2866 + $0x60] sm:$0xff]
    %v3872 = vld [vmem:[%s2866 + $0x68] sm:$0xff]
    %v3873 = vld [vmem:[%s2866 + $0x70] sm:$0xff]
    %v3874 = vld [vmem:[%s2866 + $0x78] sm:$0xff]
    %v3876 = vsel %vm249, %v3858, 0
    %3878 = vmatprep.subr.mxu0 %v3860
    %3879 = vmatpush1.msra.mxu0 %v3859
    %3880 = vmatprep.subr.mxu0 %v3862
    %3881 = vmatpush1.msra.mxu0 %v3861
    %3882 = vmatprep.subr.mxu0 %v3864
    %3883 = vmatpush1.msra.mxu0 %v3863
    %3884 = vmatprep.subr.mxu0 %v3866
    %3885 = vmatpush1.msra.mxu0 %v3865
    %3886 = vmatprep.subr.mxu0 %v3868
    %3887 = vmatpush1.msra.mxu0 %v3867
    %3888 = vmatprep.subr.mxu0 %v3870
    %3889 = vmatpush1.msra.mxu0 %v3869
    %3890 = vmatprep.subr.mxu0 %v3872
    %3891 = vmatpush1.msra.mxu0 %v3871
    %3892 = vmatprep.subr.mxu0 %v3874
    %3893 = vmatpush1.msra.mxu0 %v3873
    %3894 = vmatprep.subr.mxu0 0.0
    %3895 = vmatpush1.msra.mxu0 0.0
    %3896 = vmatprep.subr.mxu0 0.0
    %3897 = vmatpush1.msra.mxu0 0.0
    %3898 = vmatprep.subr.mxu0 0.0
    %3899 = vmatpush1.msra.mxu0 0.0
    %3900 = vmatprep.subr.mxu0 0.0
    %3901 = vmatpush1.msra.mxu0 0.0
    %3902 = vmatprep.subr.mxu0 0.0
    %3903 = vmatpush1.msra.mxu0 0.0
    %3904 = vmatprep.subr.mxu0 0.0
    %3905 = vmatpush1.msra.mxu0 0.0
    %3906 = vmatprep.subr.mxu0 0.0
    %3907 = vmatpush1.msra.mxu0 0.0
    %3908 = vmatprep.subr.mxu0 0.0
    %3909 = vmatpush1.msra.mxu0 0.0
    %3910 = vmatprep.subr.mxu0 0.0
    %3911 = vmatpush1.msra.mxu0 0.0
    %3912 = vmatprep.subr.mxu0 0.0
    %3913 = vmatpush1.msra.mxu0 0.0
    %3914 = vmatprep.subr.mxu0 0.0
    %3915 = vmatpush1.msra.mxu0 0.0
    %3916 = vmatprep.subr.mxu0 0.0
    %3917 = vmatpush1.msra.mxu0 0.0
    %3918 = vmatprep.subr.mxu0 0.0
    %3919 = vmatpush1.msra.mxu0 0.0
    %3920 = vmatprep.subr.mxu0 0.0
    %3921 = vmatpush1.msra.mxu0 0.0
    %3922 = vmatprep.subr.mxu0 0.0
    %3923 = vmatpush1.msra.mxu0 0.0
    %3924 = vmatprep.subr.mxu0 0.0
    %3925 = vmatpush1.msra.mxu0 0.0
    %3926 = vmatprep.subr.mxu0 0.0
    %3927 = vmatpush1.msra.mxu0 0.0
    %3928 = vmatprep.subr.mxu0 0.0
    %3929 = vmatpush1.msra.mxu0 0.0
    %3930 = vmatprep.subr.mxu0 0.0
    %3931 = vmatpush1.msra.mxu0 0.0
    %3932 = vmatprep.subr.mxu0 0.0
    %3933 = vmatpush1.msra.mxu0 0.0
    %3934 = vmatprep.subr.mxu0 0.0
    %3935 = vmatpush1.msra.mxu0 0.0
    %3936 = vmatprep.subr.mxu0 0.0
    %3937 = vmatpush1.msra.mxu0 0.0
    %3938 = vmatprep.subr.mxu0 0.0
    %3939 = vmatpush1.msra.mxu0 0.0
    %3940 = vmatprep.subr.mxu0 0.0
    %3941 = vmatpush1.msra.mxu0 0.0
    %3942 = vmatprep.mubr.f32.mxu0 0.0
    %3943 = vmatmul.mubr.f32.gmra.mrb[0].mxu0 %v3876
    %v3944 = vpop.f32.mrb[0].mxu0
    %v3945 = vadd.f32 %v3823, %v3944
    %v3946 = vpop.f32.mrb[0].mxu0
    %v3947 = vadd.f32 %v3825, %v3946
    %3948 = vdwg.mxu0
    %v3949 = vxor.u32 %v3945, 2147483648
    %v3950 = vxor.u32 %v3947, 2147483648
    %v3951 = vmul.f32 %v3949, 1.442695
    %v3952 = vpow.pop %v3951
    %v3953 = vmul.f32 %v3950, 1.442695
    %v3954 = vpow.pop %v3953
    %v3955 = vadd.f32 %v3952, 1.0
    %v3956 = vadd.f32 %v3954, 1.0
    %v3957 = vrcp.pop %v3955
    %v3958 = vmul.f32 1.0, %v3957
    %v3959 = vrcp.pop %v3956
    %v3960 = vmul.f32 1.0, %v3959
    %v3961 = vtanh.pop %v3947
    %v3962 = vmul.f32 %v3958, %v3641
    %3964 = vrot.lane.b32.xlu0 %v3961, 64
    %v3965 = vpop.permute.xlu0 %3964
    %v3967 = vmul.f32 %v3958, %v3965
    %3969 = vrot.lane.b32.xlu0 %v3967, 64
    %v3970 = vpop.permute.xlu0 %3969
    %v3972 = vadd.f32 %v3962, %v3970
    %v3973 = vtanh.pop %v3972
    %3975 = vrot.lane.b32.xlu0 %v3973, 64
    %v3976 = vpop.permute.xlu0 %3975
    %v3978 = vmul.f32 %v3960, %v3976
    %s3979 = scalar_lea.vmem [#allocation3], 24
    %3980 = vst.msk [vmem:[%s3979] sm:$0xff] %vm249, %v3978
    %v3981 = vld [vmem:[%s2658] sm:$0xff]
    %v3982 = vld [vmem:[%s2658 + $0x8] sm:$0xff]
    %v3983 = vld [vmem:[%s2658 + $0x10] sm:$0xff]
    %v3984 = vld [vmem:[%s2658 + $0x18] sm:$0xff]
    %v3985 = vld [vmem:[%s2658 + $0x20] sm:$0xff]
    %v3986 = vld [vmem:[%s2658 + $0x28] sm:$0xff]
    %v3987 = vld [vmem:[%s2658 + $0x30] sm:$0xff]
    %v3988 = vld [vmem:[%s2658 + $0x38] sm:$0xff]
    %v3989 = vld [vmem:[%s2658 + $0x40] sm:$0xff]
    %v3990 = vld [vmem:[%s2658 + $0x48] sm:$0xff]
    %v3991 = vld [vmem:[%s2658 + $0x50] sm:$0xff]
    %v3992 = vld [vmem:[%s2658 + $0x58] sm:$0xff]
    %v3993 = vld [vmem:[%s2658 + $0x60] sm:$0xff]
    %v3994 = vld [vmem:[%s2658 + $0x68] sm:$0xff]
    %v3995 = vld [vmem:[%s2658 + $0x70] sm:$0xff]
    %v3996 = vld [vmem:[%s2658 + $0x78] sm:$0xff]
    %3997 = vmatprep.subr.mxu0 %v3982
    %3998 = vmatpush1.msra.mxu0 %v3981
    %3999 = vmatprep.subr.mxu0 %v3984
    %4000 = vmatpush1.msra.mxu0 %v3983
    %4001 = vmatprep.subr.mxu0 %v3986
    %4002 = vmatpush1.msra.mxu0 %v3985
    %4003 = vmatprep.subr.mxu0 %v3988
    %4004 = vmatpush1.msra.mxu0 %v3987
    %4005 = vmatprep.subr.mxu0 %v3990
    %4006 = vmatpush1.msra.mxu0 %v3989
    %4007 = vmatprep.subr.mxu0 %v3992
    %4008 = vmatpush1.msra.mxu0 %v3991
    %4009 = vmatprep.subr.mxu0 %v3994
    %4010 = vmatpush1.msra.mxu0 %v3993
    %4011 = vmatprep.subr.mxu0 %v3996
    %4012 = vmatpush1.msra.mxu0 %v3995
    %4013 = vmatprep.subr.mxu0 0.0
    %4014 = vmatpush1.msra.mxu0 0.0
    %4015 = vmatprep.subr.mxu0 0.0
    %4016 = vmatpush1.msra.mxu0 0.0
    %4017 = vmatprep.subr.mxu0 0.0
    %4018 = vmatpush1.msra.mxu0 0.0
    %4019 = vmatprep.subr.mxu0 0.0
    %4020 = vmatpush1.msra.mxu0 0.0
    %4021 = vmatprep.subr.mxu0 0.0
    %4022 = vmatpush1.msra.mxu0 0.0
    %4023 = vmatprep.subr.mxu0 0.0
    %4024 = vmatpush1.msra.mxu0 0.0
    %4025 = vmatprep.subr.mxu0 0.0
    %4026 = vmatpush1.msra.mxu0 0.0
    %4027 = vmatprep.subr.mxu0 0.0
    %4028 = vmatpush1.msra.mxu0 0.0
    %4029 = vmatprep.subr.mxu0 0.0
    %4030 = vmatpush1.msra.mxu0 0.0
    %4031 = vmatprep.subr.mxu0 0.0
    %4032 = vmatpush1.msra.mxu0 0.0
    %4033 = vmatprep.subr.mxu0 0.0
    %4034 = vmatpush1.msra.mxu0 0.0
    %4035 = vmatprep.subr.mxu0 0.0
    %4036 = vmatpush1.msra.mxu0 0.0
    %4037 = vmatprep.subr.mxu0 0.0
    %4038 = vmatpush1.msra.mxu0 0.0
    %4039 = vmatprep.subr.mxu0 0.0
    %4040 = vmatpush1.msra.mxu0 0.0
    %4041 = vmatprep.subr.mxu0 0.0
    %4042 = vmatpush1.msra.mxu0 0.0
    %4043 = vmatprep.subr.mxu0 0.0
    %4044 = vmatpush1.msra.mxu0 0.0
    %4045 = vmatprep.subr.mxu0 0.0
    %4046 = vmatpush1.msra.mxu0 0.0
    %4047 = vmatprep.subr.mxu0 0.0
    %4048 = vmatpush1.msra.mxu0 0.0
    %4049 = vmatprep.subr.mxu0 0.0
    %4050 = vmatpush1.msra.mxu0 0.0
    %4051 = vmatprep.subr.mxu0 0.0
    %4052 = vmatpush1.msra.mxu0 0.0
    %4053 = vmatprep.subr.mxu0 0.0
    %4054 = vmatpush1.msra.mxu0 0.0
    %4055 = vmatprep.subr.mxu0 0.0
    %4056 = vmatpush1.msra.mxu0 0.0
    %4057 = vmatprep.subr.mxu0 0.0
    %4058 = vmatpush1.msra.mxu0 0.0
    %4059 = vmatprep.subr.mxu0 0.0
    %4060 = vmatpush1.msra.mxu0 0.0
    %4061 = vmatprep.mubr.f32.mxu0 0.0
    %4062 = vmatmul.mubr.f32.gmra.mrb[0].mxu0 %v3876
    %v4063 = vpop.f32.mrb[0].mxu0
    %v4064 = vadd.f32 0.0, %v4063
    %v4065 = vpop.f32.mrb[0].mxu0
    %v4066 = vadd.f32 0.0, %v4065
    %4067 = vdwg.mxu0
    %v4068 = vld [vmem:[%s2746] sm:$0xff]
    %v4069 = vld [vmem:[%s2746 + $0x8] sm:$0xff]
    %v4070 = vld [vmem:[%s2746 + $0x10] sm:$0xff]
    %v4071 = vld [vmem:[%s2746 + $0x18] sm:$0xff]
    %v4072 = vld [vmem:[%s2746 + $0x20] sm:$0xff]
    %v4073 = vld [vmem:[%s2746 + $0x28] sm:$0xff]
    %v4074 = vld [vmem:[%s2746 + $0x30] sm:$0xff]
    %v4075 = vld [vmem:[%s2746 + $0x38] sm:$0xff]
    %v4076 = vld [vmem:[%s2746 + $0x40] sm:$0xff]
    %v4077 = vld [vmem:[%s2746 + $0x48] sm:$0xff]
    %v4078 = vld [vmem:[%s2746 + $0x50] sm:$0xff]
    %v4079 = vld [vmem:[%s2746 + $0x58] sm:$0xff]
    %v4080 = vld [vmem:[%s2746 + $0x60] sm:$0xff]
    %v4081 = vld [vmem:[%s2746 + $0x68] sm:$0xff]
    %v4082 = vld [vmem:[%s2746 + $0x70] sm:$0xff]
    %v4083 = vld [vmem:[%s2746 + $0x78] sm:$0xff]
    %v4085 = vsel %vm249, %v3978, 0
    %4087 = vmatprep.subr.mxu0 %v4069
    %4088 = vmatpush1.msra.mxu0 %v4068
    %4089 = vmatprep.subr.mxu0 %v4071
    %4090 = vmatpush1.msra.mxu0 %v4070
    %4091 = vmatprep.subr.mxu0 %v4073
    %4092 = vmatpush1.msra.mxu0 %v4072
    %4093 = vmatprep.subr.mxu0 %v4075
    %4094 = vmatpush1.msra.mxu0 %v4074
    %4095 = vmatprep.subr.mxu0 %v4077
    %4096 = vmatpush1.msra.mxu0 %v4076
    %4097 = vmatprep.subr.mxu0 %v4079
    %4098 = vmatpush1.msra.mxu0 %v4078
    %4099 = vmatprep.subr.mxu0 %v4081
    %4100 = vmatpush1.msra.mxu0 %v4080
    %4101 = vmatprep.subr.mxu0 %v4083
    %4102 = vmatpush1.msra.mxu0 %v4082
    %4103 = vmatprep.subr.mxu0 0.0
    %4104 = vmatpush1.msra.mxu0 0.0
    %4105 = vmatprep.subr.mxu0 0.0
    %4106 = vmatpush1.msra.mxu0 0.0
    %4107 = vmatprep.subr.mxu0 0.0
    %4108 = vmatpush1.msra.mxu0 0.0
    %4109 = vmatprep.subr.mxu0 0.0
    %4110 = vmatpush1.msra.mxu0 0.0
    %4111 = vmatprep.subr.mxu0 0.0
    %4112 = vmatpush1.msra.mxu0 0.0
    %4113 = vmatprep.subr.mxu0 0.0
    %4114 = vmatpush1.msra.mxu0 0.0
    %4115 = vmatprep.subr.mxu0 0.0
    %4116 = vmatpush1.msra.mxu0 0.0
    %4117 = vmatprep.subr.mxu0 0.0
    %4118 = vmatpush1.msra.mxu0 0.0
    %4119 = vmatprep.subr.mxu0 0.0
    %4120 = vmatpush1.msra.mxu0 0.0
    %4121 = vmatprep.subr.mxu0 0.0
    %4122 = vmatpush1.msra.mxu0 0.0
    %4123 = vmatprep.subr.mxu0 0.0
    %4124 = vmatpush1.msra.mxu0 0.0
    %4125 = vmatprep.subr.mxu0 0.0
    %4126 = vmatpush1.msra.mxu0 0.0
    %4127 = vmatprep.subr.mxu0 0.0
    %4128 = vmatpush1.msra.mxu0 0.0
    %4129 = vmatprep.subr.mxu0 0.0
    %4130 = vmatpush1.msra.mxu0 0.0
    %4131 = vmatprep.subr.mxu0 0.0
    %4132 = vmatpush1.msra.mxu0 0.0
    %4133 = vmatprep.subr.mxu0 0.0
    %4134 = vmatpush1.msra.mxu0 0.0
    %4135 = vmatprep.subr.mxu0 0.0
    %4136 = vmatpush1.msra.mxu0 0.0
    %4137 = vmatprep.subr.mxu0 0.0
    %4138 = vmatpush1.msra.mxu0 0.0
    %4139 = vmatprep.subr.mxu0 0.0
    %4140 = vmatpush1.msra.mxu0 0.0
    %4141 = vmatprep.subr.mxu0 0.0
    %4142 = vmatpush1.msra.mxu0 0.0
    %4143 = vmatprep.subr.mxu0 0.0
    %4144 = vmatpush1.msra.mxu0 0.0
    %4145 = vmatprep.subr.mxu0 0.0
    %4146 = vmatpush1.msra.mxu0 0.0
    %4147 = vmatprep.subr.mxu0 0.0
    %4148 = vmatpush1.msra.mxu0 0.0
    %4149 = vmatprep.subr.mxu0 0.0
    %4150 = vmatpush1.msra.mxu0 0.0
    %4151 = vmatprep.mubr.f32.mxu0 0.0
    %4152 = vmatmul.mubr.f32.gmra.mrb[0].mxu0 %v4085
    %v4153 = vpop.f32.mrb[0].mxu0
    %v4154 = vadd.f32 %v224, %v4153
    %v4155 = vpop.f32.mrb[0].mxu0
    %v4156 = vadd.f32 %v228, %v4155
    %4157 = vdwg.mxu0
    %v4158 = vadd.f32 %v2654, %v4064
    %v4159 = vadd.f32 %v2656, %v4066
    %v4160 = vxor.u32 %v4158, 2147483648
    %v4161 = vxor.u32 %v4159, 2147483648
    %v4162 = vmul.f32 %v4160, 1.442695
    %v4163 = vpow.pop %v4162
    %v4164 = vmul.f32 %v4161, 1.442695
    %v4165 = vpow.pop %v4164
    %v4166 = vadd.f32 %v4163, 1.0
    %v4167 = vadd.f32 %v4165, 1.0
    %v4168 = vrcp.pop %v4166
    %v4169 = vmul.f32 1.0, %v4168
    %v4170 = vrcp.pop %v4167
    %v4171 = vmul.f32 1.0, %v4170
    %v4172 = vtanh.pop %v4159
    %v4173 = vmul.f32 %v4169, %v3852
    %4175 = vrot.lane.b32.xlu0 %v4172, 64
    %v4176 = vpop.permute.xlu0 %4175
    %v4178 = vmul.f32 %v4169, %v4176
    %4180 = vrot.lane.b32.xlu0 %v4178, 64
    %v4181 = vpop.permute.xlu0 %4180
    %v4183 = vadd.f32 %v4173, %v4181
    %v4184 = vtanh.pop %v4183
    %4186 = vrot.lane.b32.xlu0 %v4184, 64
    %v4187 = vpop.permute.xlu0 %4186
    %v4189 = vmul.f32 %v4171, %v4187
    %v4190 = vld [vmem:[%s2866] sm:$0xff]
    %v4191 = vld [vmem:[%s2866 + $0x8] sm:$0xff]
    %v4192 = vld [vmem:[%s2866 + $0x10] sm:$0xff]
    %v4193 = vld [vmem:[%s2866 + $0x18] sm:$0xff]
    %v4194 = vld [vmem:[%s2866 + $0x20] sm:$0xff]
    %v4195 = vld [vmem:[%s2866 + $0x28] sm:$0xff]
    %v4196 = vld [vmem:[%s2866 + $0x30] sm:$0xff]
    %v4197 = vld [vmem:[%s2866 + $0x38] sm:$0xff]
    %v4198 = vld [vmem:[%s2866 + $0x40] sm:$0xff]
    %v4199 = vld [vmem:[%s2866 + $0x48] sm:$0xff]
    %v4200 = vld [vmem:[%s2866 + $0x50] sm:$0xff]
    %v4201 = vld [vmem:[%s2866 + $0x58] sm:$0xff]
    %v4202 = vld [vmem:[%s2866 + $0x60] sm:$0xff]
    %v4203 = vld [vmem:[%s2866 + $0x68] sm:$0xff]
    %v4204 = vld [vmem:[%s2866 + $0x70] sm:$0xff]
    %v4205 = vld [vmem:[%s2866 + $0x78] sm:$0xff]
    %v4207 = vsel %vm249, %v4189, 0
    %4209 = vmatprep.subr.mxu0 %v4191
    %4210 = vmatpush1.msra.mxu0 %v4190
    %4211 = vmatprep.subr.mxu0 %v4193
    %4212 = vmatpush1.msra.mxu0 %v4192
    %4213 = vmatprep.subr.mxu0 %v4195
    %4214 = vmatpush1.msra.mxu0 %v4194
    %4215 = vmatprep.subr.mxu0 %v4197
    %4216 = vmatpush1.msra.mxu0 %v4196
    %4217 = vmatprep.subr.mxu0 %v4199
    %4218 = vmatpush1.msra.mxu0 %v4198
    %4219 = vmatprep.subr.mxu0 %v4201
    %4220 = vmatpush1.msra.mxu0 %v4200
    %4221 = vmatprep.subr.mxu0 %v4203
    %4222 = vmatpush1.msra.mxu0 %v4202
    %4223 = vmatprep.subr.mxu0 %v4205
    %4224 = vmatpush1.msra.mxu0 %v4204
    %4225 = vmatprep.subr.mxu0 0.0
    %4226 = vmatpush1.msra.mxu0 0.0
    %4227 = vmatprep.subr.mxu0 0.0
    %4228 = vmatpush1.msra.mxu0 0.0
    %4229 = vmatprep.subr.mxu0 0.0
    %4230 = vmatpush1.msra.mxu0 0.0
    %4231 = vmatprep.subr.mxu0 0.0
    %4232 = vmatpush1.msra.mxu0 0.0
    %4233 = vmatprep.subr.mxu0 0.0
    %4234 = vmatpush1.msra.mxu0 0.0
    %4235 = vmatprep.subr.mxu0 0.0
    %4236 = vmatpush1.msra.mxu0 0.0
    %4237 = vmatprep.subr.mxu0 0.0
    %4238 = vmatpush1.msra.mxu0 0.0
    %4239 = vmatprep.subr.mxu0 0.0
    %4240 = vmatpush1.msra.mxu0 0.0
    %4241 = vmatprep.subr.mxu0 0.0
    %4242 = vmatpush1.msra.mxu0 0.0
    %4243 = vmatprep.subr.mxu0 0.0
    %4244 = vmatpush1.msra.mxu0 0.0
    %4245 = vmatprep.subr.mxu0 0.0
    %4246 = vmatpush1.msra.mxu0 0.0
    %4247 = vmatprep.subr.mxu0 0.0
    %4248 = vmatpush1.msra.mxu0 0.0
    %4249 = vmatprep.subr.mxu0 0.0
    %4250 = vmatpush1.msra.mxu0 0.0
    %4251 = vmatprep.subr.mxu0 0.0
    %4252 = vmatpush1.msra.mxu0 0.0
    %4253 = vmatprep.subr.mxu0 0.0
    %4254 = vmatpush1.msra.mxu0 0.0
    %4255 = vmatprep.subr.mxu0 0.0
    %4256 = vmatpush1.msra.mxu0 0.0
    %4257 = vmatprep.subr.mxu0 0.0
    %4258 = vmatpush1.msra.mxu0 0.0
    %4259 = vmatprep.subr.mxu0 0.0
    %4260 = vmatpush1.msra.mxu0 0.0
    %4261 = vmatprep.subr.mxu0 0.0
    %4262 = vmatpush1.msra.mxu0 0.0
    %4263 = vmatprep.subr.mxu0 0.0
    %4264 = vmatpush1.msra.mxu0 0.0
    %4265 = vmatprep.subr.mxu0 0.0
    %4266 = vmatpush1.msra.mxu0 0.0
    %4267 = vmatprep.subr.mxu0 0.0
    %4268 = vmatpush1.msra.mxu0 0.0
    %4269 = vmatprep.subr.mxu0 0.0
    %4270 = vmatpush1.msra.mxu0 0.0
    %4271 = vmatprep.subr.mxu0 0.0
    %4272 = vmatpush1.msra.mxu0 0.0
    %4273 = vmatprep.mubr.f32.mxu0 0.0
    %4274 = vmatmul.mubr.f32.gmra.mrb[0].mxu0 %v4207
    %v4275 = vpop.f32.mrb[0].mxu0
    %v4276 = vadd.f32 %v4154, %v4275
    %v4277 = vpop.f32.mrb[0].mxu0
    %v4278 = vadd.f32 %v4156, %v4277
    %4279 = vdwg.mxu0
    %v4280 = vxor.u32 %v4276, 2147483648
    %v4281 = vxor.u32 %v4278, 2147483648
    %v4282 = vmul.f32 %v4280, 1.442695
    %v4283 = vpow.pop %v4282
    %v4284 = vmul.f32 %v4281, 1.442695
    %v4285 = vpow.pop %v4284
    %v4286 = vadd.f32 %v4283, 1.0
    %v4287 = vadd.f32 %v4285, 1.0
    %v4288 = vrcp.pop %v4286
    %v4289 = vmul.f32 1.0, %v4288
    %v4290 = vrcp.pop %v4287
    %v4291 = vmul.f32 1.0, %v4290
    %v4292 = vtanh.pop %v4278
    %v4293 = vmul.f32 %v4289, %v3972
    %4295 = vrot.lane.b32.xlu0 %v4292, 64
    %v4296 = vpop.permute.xlu0 %4295
    %v4298 = vmul.f32 %v4289, %v4296
    %4300 = vrot.lane.b32.xlu0 %v4298, 64
    %v4301 = vpop.permute.xlu0 %4300
    %v4303 = vadd.f32 %v4293, %v4301
    %v4304 = vtanh.pop %v4303
    %4306 = vrot.lane.b32.xlu0 %v4304, 64
    %v4307 = vpop.permute.xlu0 %4306
    %v4309 = vmul.f32 %v4291, %v4307
    %s4310 = scalar_lea.vmem [#allocation3], 32
    %4311 = vst.msk [vmem:[%s4310] sm:$0xff] %vm249, %v4309
    %v4312 = vld [vmem:[%s2658] sm:$0xff]
    %v4313 = vld [vmem:[%s2658 + $0x8] sm:$0xff]
    %v4314 = vld [vmem:[%s2658 + $0x10] sm:$0xff]
    %v4315 = vld [vmem:[%s2658 + $0x18] sm:$0xff]
    %v4316 = vld [vmem:[%s2658 + $0x20] sm:$0xff]
    %v4317 = vld [vmem:[%s2658 + $0x28] sm:$0xff]
    %v4318 = vld [vmem:[%s2658 + $0x30] sm:$0xff]
    %v4319 = vld [vmem:[%s2658 + $0x38] sm:$0xff]
    %v4320 = vld [vmem:[%s2658 + $0x40] sm:$0xff]
    %v4321 = vld [vmem:[%s2658 + $0x48] sm:$0xff]
    %v4322 = vld [vmem:[%s2658 + $0x50] sm:$0xff]
    %v4323 = vld [vmem:[%s2658 + $0x58] sm:$0xff]
    %v4324 = vld [vmem:[%s2658 + $0x60] sm:$0xff]
    %v4325 = vld [vmem:[%s2658 + $0x68] sm:$0xff]
    %v4326 = vld [vmem:[%s2658 + $0x70] sm:$0xff]
    %v4327 = vld [vmem:[%s2658 + $0x78] sm:$0xff]
    %4328 = vmatprep.subr.mxu0 %v4313
    %4329 = vmatpush1.msra.mxu0 %v4312
    %4330 = vmatprep.subr.mxu0 %v4315
    %4331 = vmatpush1.msra.mxu0 %v4314
    %4332 = vmatprep.subr.mxu0 %v4317
    %4333 = vmatpush1.msra.mxu0 %v4316
    %4334 = vmatprep.subr.mxu0 %v4319
    %4335 = vmatpush1.msra.mxu0 %v4318
    %4336 = vmatprep.subr.mxu0 %v4321
    %4337 = vmatpush1.msra.mxu0 %v4320
    %4338 = vmatprep.subr.mxu0 %v4323
    %4339 = vmatpush1.msra.mxu0 %v4322
    %4340 = vmatprep.subr.mxu0 %v4325
    %4341 = vmatpush1.msra.mxu0 %v4324
    %4342 = vmatprep.subr.mxu0 %v4327
    %4343 = vmatpush1.msra.mxu0 %v4326
    %4344 = vmatprep.subr.mxu0 0.0
    %4345 = vmatpush1.msra.mxu0 0.0
    %4346 = vmatprep.subr.mxu0 0.0
    %4347 = vmatpush1.msra.mxu0 0.0
    %4348 = vmatprep.subr.mxu0 0.0
    %4349 = vmatpush1.msra.mxu0 0.0
    %4350 = vmatprep.subr.mxu0 0.0
    %4351 = vmatpush1.msra.mxu0 0.0
    %4352 = vmatprep.subr.mxu0 0.0
    %4353 = vmatpush1.msra.mxu0 0.0
    %4354 = vmatprep.subr.mxu0 0.0
    %4355 = vmatpush1.msra.mxu0 0.0
    %4356 = vmatprep.subr.mxu0 0.0
    %4357 = vmatpush1.msra.mxu0 0.0
    %4358 = vmatprep.subr.mxu0 0.0
    %4359 = vmatpush1.msra.mxu0 0.0
    %4360 = vmatprep.subr.mxu0 0.0
    %4361 = vmatpush1.msra.mxu0 0.0
    %4362 = vmatprep.subr.mxu0 0.0
    %4363 = vmatpush1.msra.mxu0 0.0
    %4364 = vmatprep.subr.mxu0 0.0
    %4365 = vmatpush1.msra.mxu0 0.0
    %4366 = vmatprep.subr.mxu0 0.0
    %4367 = vmatpush1.msra.mxu0 0.0
    %4368 = vmatprep.subr.mxu0 0.0
    %4369 = vmatpush1.msra.mxu0 0.0
    %4370 = vmatprep.subr.mxu0 0.0
    %4371 = vmatpush1.msra.mxu0 0.0
    %4372 = vmatprep.subr.mxu0 0.0
    %4373 = vmatpush1.msra.mxu0 0.0
    %4374 = vmatprep.subr.mxu0 0.0
    %4375 = vmatpush1.msra.mxu0 0.0
    %4376 = vmatprep.subr.mxu0 0.0
    %4377 = vmatpush1.msra.mxu0 0.0
    %4378 = vmatprep.subr.mxu0 0.0
    %4379 = vmatpush1.msra.mxu0 0.0
    %4380 = vmatprep.subr.mxu0 0.0
    %4381 = vmatpush1.msra.mxu0 0.0
    %4382 = vmatprep.subr.mxu0 0.0
    %4383 = vmatpush1.msra.mxu0 0.0
    %4384 = vmatprep.subr.mxu0 0.0
    %4385 = vmatpush1.msra.mxu0 0.0
    %4386 = vmatprep.subr.mxu0 0.0
    %4387 = vmatpush1.msra.mxu0 0.0
    %4388 = vmatprep.subr.mxu0 0.0
    %4389 = vmatpush1.msra.mxu0 0.0
    %4390 = vmatprep.subr.mxu0 0.0
    %4391 = vmatpush1.msra.mxu0 0.0
    %4392 = vmatprep.mubr.f32.mxu0 0.0
    %4393 = vmatmul.mubr.f32.gmra.mrb[0].mxu0 %v4207
    %v4394 = vpop.f32.mrb[0].mxu0
    %v4395 = vadd.f32 0.0, %v4394
    %v4396 = vpop.f32.mrb[0].mxu0
    %v4397 = vadd.f32 0.0, %v4396
    %4398 = vdwg.mxu0
    %v4399 = vld [vmem:[%s2746] sm:$0xff]
    %v4400 = vld [vmem:[%s2746 + $0x8] sm:$0xff]
    %v4401 = vld [vmem:[%s2746 + $0x10] sm:$0xff]
    %v4402 = vld [vmem:[%s2746 + $0x18] sm:$0xff]
    %v4403 = vld [vmem:[%s2746 + $0x20] sm:$0xff]
    %v4404 = vld [vmem:[%s2746 + $0x28] sm:$0xff]
    %v4405 = vld [vmem:[%s2746 + $0x30] sm:$0xff]
    %v4406 = vld [vmem:[%s2746 + $0x38] sm:$0xff]
    %v4407 = vld [vmem:[%s2746 + $0x40] sm:$0xff]
    %v4408 = vld [vmem:[%s2746 + $0x48] sm:$0xff]
    %v4409 = vld [vmem:[%s2746 + $0x50] sm:$0xff]
    %v4410 = vld [vmem:[%s2746 + $0x58] sm:$0xff]
    %v4411 = vld [vmem:[%s2746 + $0x60] sm:$0xff]
    %v4412 = vld [vmem:[%s2746 + $0x68] sm:$0xff]
    %v4413 = vld [vmem:[%s2746 + $0x70] sm:$0xff]
    %v4414 = vld [vmem:[%s2746 + $0x78] sm:$0xff]
    %v4416 = vsel %vm249, %v4309, 0
    %4418 = vmatprep.subr.mxu0 %v4400
    %4419 = vmatpush1.msra.mxu0 %v4399
    %4420 = vmatprep.subr.mxu0 %v4402
    %4421 = vmatpush1.msra.mxu0 %v4401
    %4422 = vmatprep.subr.mxu0 %v4404
    %4423 = vmatpush1.msra.mxu0 %v4403
    %4424 = vmatprep.subr.mxu0 %v4406
    %4425 = vmatpush1.msra.mxu0 %v4405
    %4426 = vmatprep.subr.mxu0 %v4408
    %4427 = vmatpush1.msra.mxu0 %v4407
    %4428 = vmatprep.subr.mxu0 %v4410
    %4429 = vmatpush1.msra.mxu0 %v4409
    %4430 = vmatprep.subr.mxu0 %v4412
    %4431 = vmatpush1.msra.mxu0 %v4411
    %4432 = vmatprep.subr.mxu0 %v4414
    %4433 = vmatpush1.msra.mxu0 %v4413
    %4434 = vmatprep.subr.mxu0 0.0
    %4435 = vmatpush1.msra.mxu0 0.0
    %4436 = vmatprep.subr.mxu0 0.0
    %4437 = vmatpush1.msra.mxu0 0.0
    %4438 = vmatprep.subr.mxu0 0.0
    %4439 = vmatpush1.msra.mxu0 0.0
    %4440 = vmatprep.subr.mxu0 0.0
    %4441 = vmatpush1.msra.mxu0 0.0
    %4442 = vmatprep.subr.mxu0 0.0
    %4443 = vmatpush1.msra.mxu0 0.0
    %4444 = vmatprep.subr.mxu0 0.0
    %4445 = vmatpush1.msra.mxu0 0.0
    %4446 = vmatprep.subr.mxu0 0.0
    %4447 = vmatpush1.msra.mxu0 0.0
    %4448 = vmatprep.subr.mxu0 0.0
    %4449 = vmatpush1.msra.mxu0 0.0
    %4450 = vmatprep.subr.mxu0 0.0
    %4451 = vmatpush1.msra.mxu0 0.0
    %4452 = vmatprep.subr.mxu0 0.0
    %4453 = vmatpush1.msra.mxu0 0.0
    %4454 = vmatprep.subr.mxu0 0.0
    %4455 = vmatpush1.msra.mxu0 0.0
    %4456 = vmatprep.subr.mxu0 0.0
    %4457 = vmatpush1.msra.mxu0 0.0
    %4458 = vmatprep.subr.mxu0 0.0
    %4459 = vmatpush1.msra.mxu0 0.0
    %4460 = vmatprep.subr.mxu0 0.0
    %4461 = vmatpush1.msra.mxu0 0.0
    %4462 = vmatprep.subr.mxu0 0.0
    %4463 = vmatpush1.msra.mxu0 0.0
    %4464 = vmatprep.subr.mxu0 0.0
    %4465 = vmatpush1.msra.mxu0 0.0
    %4466 = vmatprep.subr.mxu0 0.0
    %4467 = vmatpush1.msra.mxu0 0.0
    %4468 = vmatprep.subr.mxu0 0.0
    %4469 = vmatpush1.msra.mxu0 0.0
    %4470 = vmatprep.subr.mxu0 0.0
    %4471 = vmatpush1.msra.mxu0 0.0
    %4472 = vmatprep.subr.mxu0 0.0
    %4473 = vmatpush1.msra.mxu0 0.0
    %4474 = vmatprep.subr.mxu0 0.0
    %4475 = vmatpush1.msra.mxu0 0.0
    %4476 = vmatprep.subr.mxu0 0.0
    %4477 = vmatpush1.msra.mxu0 0.0
    %4478 = vmatprep.subr.mxu0 0.0
    %4479 = vmatpush1.msra.mxu0 0.0
    %4480 = vmatprep.subr.mxu0 0.0
    %4481 = vmatpush1.msra.mxu0 0.0
    %4482 = vmatprep.mubr.f32.mxu0 0.0
    %4483 = vmatmul.mubr.f32.gmra.mrb[0].mxu0 %v4416
    %v4484 = vpop.f32.mrb[0].mxu0
    %v4485 = vadd.f32 %v224, %v4484
    %v4486 = vpop.f32.mrb[0].mxu0
    %v4487 = vadd.f32 %v228, %v4486
    %4488 = vdwg.mxu0
    %v4489 = vadd.f32 %v2654, %v4395
    %v4490 = vadd.f32 %v2656, %v4397
    %v4491 = vxor.u32 %v4489, 2147483648
    %v4492 = vxor.u32 %v4490, 2147483648
    %v4493 = vmul.f32 %v4491, 1.442695
    %v4494 = vpow.pop %v4493
    %v4495 = vmul.f32 %v4492, 1.442695
    %v4496 = vpow.pop %v4495
    %v4497 = vadd.f32 %v4494, 1.0
    %v4498 = vadd.f32 %v4496, 1.0
    %v4499 = vrcp.pop %v4497
    %v4500 = vmul.f32 1.0, %v4499
    %v4501 = vrcp.pop %v4498
    %v4502 = vmul.f32 1.0, %v4501
    %v4503 = vtanh.pop %v4490
    %v4504 = vmul.f32 %v4500, %v4183
    %4506 = vrot.lane.b32.xlu0 %v4503, 64
    %v4507 = vpop.permute.xlu0 %4506
    %v4509 = vmul.f32 %v4500, %v4507
    %4511 = vrot.lane.b32.xlu0 %v4509, 64
    %v4512 = vpop.permute.xlu0 %4511
    %v4514 = vadd.f32 %v4504, %v4512
    %v4515 = vtanh.pop %v4514
    %4517 = vrot.lane.b32.xlu0 %v4515, 64
    %v4518 = vpop.permute.xlu0 %4517
    %v4520 = vmul.f32 %v4502, %v4518
    %v4521 = vld [vmem:[%s2866] sm:$0xff]
    %v4522 = vld [vmem:[%s2866 + $0x8] sm:$0xff]
    %v4523 = vld [vmem:[%s2866 + $0x10] sm:$0xff]
    %v4524 = vld [vmem:[%s2866 + $0x18] sm:$0xff]
    %v4525 = vld [vmem:[%s2866 + $0x20] sm:$0xff]
    %v4526 = vld [vmem:[%s2866 + $0x28] sm:$0xff]
    %v4527 = vld [vmem:[%s2866 + $0x30] sm:$0xff]
    %v4528 = vld [vmem:[%s2866 + $0x38] sm:$0xff]
    %v4529 = vld [vmem:[%s2866 + $0x40] sm:$0xff]
    %v4530 = vld [vmem:[%s2866 + $0x48] sm:$0xff]
    %v4531 = vld [vmem:[%s2866 + $0x50] sm:$0xff]
    %v4532 = vld [vmem:[%s2866 + $0x58] sm:$0xff]
    %v4533 = vld [vmem:[%s2866 + $0x60] sm:$0xff]
    %v4534 = vld [vmem:[%s2866 + $0x68] sm:$0xff]
    %v4535 = vld [vmem:[%s2866 + $0x70] sm:$0xff]
    %v4536 = vld [vmem:[%s2866 + $0x78] sm:$0xff]
    %v4538 = vsel %vm249, %v4520, 0
    %4540 = vmatprep.subr.mxu0 %v4522
    %4541 = vmatpush1.msra.mxu0 %v4521
    %4542 = vmatprep.subr.mxu0 %v4524
    %4543 = vmatpush1.msra.mxu0 %v4523
    %4544 = vmatprep.subr.mxu0 %v4526
    %4545 = vmatpush1.msra.mxu0 %v4525
    %4546 = vmatprep.subr.mxu0 %v4528
    %4547 = vmatpush1.msra.mxu0 %v4527
    %4548 = vmatprep.subr.mxu0 %v4530
    %4549 = vmatpush1.msra.mxu0 %v4529
    %4550 = vmatprep.subr.mxu0 %v4532
    %4551 = vmatpush1.msra.mxu0 %v4531
    %4552 = vmatprep.subr.mxu0 %v4534
    %4553 = vmatpush1.msra.mxu0 %v4533
    %4554 = vmatprep.subr.mxu0 %v4536
    %4555 = vmatpush1.msra.mxu0 %v4535
    %4556 = vmatprep.subr.mxu0 0.0
    %4557 = vmatpush1.msra.mxu0 0.0
    %4558 = vmatprep.subr.mxu0 0.0
    %4559 = vmatpush1.msra.mxu0 0.0
    %4560 = vmatprep.subr.mxu0 0.0
    %4561 = vmatpush1.msra.mxu0 0.0
    %4562 = vmatprep.subr.mxu0 0.0
    %4563 = vmatpush1.msra.mxu0 0.0
    %4564 = vmatprep.subr.mxu0 0.0
    %4565 = vmatpush1.msra.mxu0 0.0
    %4566 = vmatprep.subr.mxu0 0.0
    %4567 = vmatpush1.msra.mxu0 0.0
    %4568 = vmatprep.subr.mxu0 0.0
    %4569 = vmatpush1.msra.mxu0 0.0
    %4570 = vmatprep.subr.mxu0 0.0
    %4571 = vmatpush1.msra.mxu0 0.0
    %4572 = vmatprep.subr.mxu0 0.0
    %4573 = vmatpush1.msra.mxu0 0.0
    %4574 = vmatprep.subr.mxu0 0.0
    %4575 = vmatpush1.msra.mxu0 0.0
    %4576 = vmatprep.subr.mxu0 0.0
    %4577 = vmatpush1.msra.mxu0 0.0
    %4578 = vmatprep.subr.mxu0 0.0
    %4579 = vmatpush1.msra.mxu0 0.0
    %4580 = vmatprep.subr.mxu0 0.0
    %4581 = vmatpush1.msra.mxu0 0.0
    %4582 = vmatprep.subr.mxu0 0.0
    %4583 = vmatpush1.msra.mxu0 0.0
    %4584 = vmatprep.subr.mxu0 0.0
    %4585 = vmatpush1.msra.mxu0 0.0
    %4586 = vmatprep.subr.mxu0 0.0
    %4587 = vmatpush1.msra.mxu0 0.0
    %4588 = vmatprep.subr.mxu0 0.0
    %4589 = vmatpush1.msra.mxu0 0.0
    %4590 = vmatprep.subr.mxu0 0.0
    %4591 = vmatpush1.msra.mxu0 0.0
    %4592 = vmatprep.subr.mxu0 0.0
    %4593 = vmatpush1.msra.mxu0 0.0
    %4594 = vmatprep.subr.mxu0 0.0
    %4595 = vmatpush1.msra.mxu0 0.0
    %4596 = vmatprep.subr.mxu0 0.0
    %4597 = vmatpush1.msra.mxu0 0.0
    %4598 = vmatprep.subr.mxu0 0.0
    %4599 = vmatpush1.msra.mxu0 0.0
    %4600 = vmatprep.subr.mxu0 0.0
    %4601 = vmatpush1.msra.mxu0 0.0
    %4602 = vmatprep.subr.mxu0 0.0
    %4603 = vmatpush1.msra.mxu0 0.0
    %4604 = vmatprep.mubr.f32.mxu0 0.0
    %4605 = vmatmul.mubr.f32.gmra.mrb[0].mxu0 %v4538
    %v4606 = vpop.f32.mrb[0].mxu0
    %v4607 = vadd.f32 %v4485, %v4606
    %v4608 = vpop.f32.mrb[0].mxu0
    %v4609 = vadd.f32 %v4487, %v4608
    %4610 = vdwg.mxu0
    %v4611 = vxor.u32 %v4607, 2147483648
    %v4612 = vxor.u32 %v4609, 2147483648
    %v4613 = vmul.f32 %v4611, 1.442695
    %v4614 = vpow.pop %v4613
    %v4615 = vmul.f32 %v4612, 1.442695
    %v4616 = vpow.pop %v4615
    %v4617 = vadd.f32 %v4614, 1.0
    %v4618 = vadd.f32 %v4616, 1.0
    %v4619 = vrcp.pop %v4617
    %v4620 = vmul.f32 1.0, %v4619
    %v4621 = vrcp.pop %v4618
    %v4622 = vmul.f32 1.0, %v4621
    %v4623 = vtanh.pop %v4609
    %v4624 = vmul.f32 %v4620, %v4303
    %4626 = vrot.lane.b32.xlu0 %v4623, 64
    %v4627 = vpop.permute.xlu0 %4626
    %v4629 = vmul.f32 %v4620, %v4627
    %4631 = vrot.lane.b32.xlu0 %v4629, 64
    %v4632 = vpop.permute.xlu0 %4631
    %v4634 = vadd.f32 %v4624, %v4632
    %v4635 = vtanh.pop %v4634
    %4637 = vrot.lane.b32.xlu0 %v4635, 64
    %v4638 = vpop.permute.xlu0 %4637
    %v4640 = vmul.f32 %v4622, %v4638
    %s4641 = scalar_lea.vmem [#allocation3], 40
    %4642 = vst.msk [vmem:[%s4641] sm:$0xff] %vm249, %v4640
    %v4643 = vld [vmem:[%s2658] sm:$0xff]
    %v4644 = vld [vmem:[%s2658 + $0x8] sm:$0xff]
    %v4645 = vld [vmem:[%s2658 + $0x10] sm:$0xff]
    %v4646 = vld [vmem:[%s2658 + $0x18] sm:$0xff]
    %v4647 = vld [vmem:[%s2658 + $0x20] sm:$0xff]
    %v4648 = vld [vmem:[%s2658 + $0x28] sm:$0xff]
    %v4649 = vld [vmem:[%s2658 + $0x30] sm:$0xff]
    %v4650 = vld [vmem:[%s2658 + $0x38] sm:$0xff]
    %v4651 = vld [vmem:[%s2658 + $0x40] sm:$0xff]
    %v4652 = vld [vmem:[%s2658 + $0x48] sm:$0xff]
    %v4653 = vld [vmem:[%s2658 + $0x50] sm:$0xff]
    %v4654 = vld [vmem:[%s2658 + $0x58] sm:$0xff]
    %v4655 = vld [vmem:[%s2658 + $0x60] sm:$0xff]
    %v4656 = vld [vmem:[%s2658 + $0x68] sm:$0xff]
    %v4657 = vld [vmem:[%s2658 + $0x70] sm:$0xff]
    %v4658 = vld [vmem:[%s2658 + $0x78] sm:$0xff]
    %4659 = vmatprep.subr.mxu0 %v4644
    %4660 = vmatpush1.msra.mxu0 %v4643
    %4661 = vmatprep.subr.mxu0 %v4646
    %4662 = vmatpush1.msra.mxu0 %v4645
    %4663 = vmatprep.subr.mxu0 %v4648
    %4664 = vmatpush1.msra.mxu0 %v4647
    %4665 = vmatprep.subr.mxu0 %v4650
    %4666 = vmatpush1.msra.mxu0 %v4649
    %4667 = vmatprep.subr.mxu0 %v4652
    %4668 = vmatpush1.msra.mxu0 %v4651
    %4669 = vmatprep.subr.mxu0 %v4654
    %4670 = vmatpush1.msra.mxu0 %v4653
    %4671 = vmatprep.subr.mxu0 %v4656
    %4672 = vmatpush1.msra.mxu0 %v4655
    %4673 = vmatprep.subr.mxu0 %v4658
    %4674 = vmatpush1.msra.mxu0 %v4657
    %4675 = vmatprep.subr.mxu0 0.0
    %4676 = vmatpush1.msra.mxu0 0.0
    %4677 = vmatprep.subr.mxu0 0.0
    %4678 = vmatpush1.msra.mxu0 0.0
    %4679 = vmatprep.subr.mxu0 0.0
    %4680 = vmatpush1.msra.mxu0 0.0
    %4681 = vmatprep.subr.mxu0 0.0
    %4682 = vmatpush1.msra.mxu0 0.0
    %4683 = vmatprep.subr.mxu0 0.0
    %4684 = vmatpush1.msra.mxu0 0.0
    %4685 = vmatprep.subr.mxu0 0.0
    %4686 = vmatpush1.msra.mxu0 0.0
    %4687 = vmatprep.subr.mxu0 0.0
    %4688 = vmatpush1.msra.mxu0 0.0
    %4689 = vmatprep.subr.mxu0 0.0
    %4690 = vmatpush1.msra.mxu0 0.0
    %4691 = vmatprep.subr.mxu0 0.0
    %4692 = vmatpush1.msra.mxu0 0.0
    %4693 = vmatprep.subr.mxu0 0.0
    %4694 = vmatpush1.msra.mxu0 0.0
    %4695 = vmatprep.subr.mxu0 0.0
    %4696 = vmatpush1.msra.mxu0 0.0
    %4697 = vmatprep.subr.mxu0 0.0
    %4698 = vmatpush1.msra.mxu0 0.0
    %4699 = vmatprep.subr.mxu0 0.0
    %4700 = vmatpush1.msra.mxu0 0.0
    %4701 = vmatprep.subr.mxu0 0.0
    %4702 = vmatpush1.msra.mxu0 0.0
    %4703 = vmatprep.subr.mxu0 0.0
    %4704 = vmatpush1.msra.mxu0 0.0
    %4705 = vmatprep.subr.mxu0 0.0
    %4706 = vmatpush1.msra.mxu0 0.0
    %4707 = vmatprep.subr.mxu0 0.0
    %4708 = vmatpush1.msra.mxu0 0.0
    %4709 = vmatprep.subr.mxu0 0.0
    %4710 = vmatpush1.msra.mxu0 0.0
    %4711 = vmatprep.subr.mxu0 0.0
    %4712 = vmatpush1.msra.mxu0 0.0
    %4713 = vmatprep.subr.mxu0 0.0
    %4714 = vmatpush1.msra.mxu0 0.0
    %4715 = vmatprep.subr.mxu0 0.0
    %4716 = vmatpush1.msra.mxu0 0.0
    %4717 = vmatprep.subr.mxu0 0.0
    %4718 = vmatpush1.msra.mxu0 0.0
    %4719 = vmatprep.subr.mxu0 0.0
    %4720 = vmatpush1.msra.mxu0 0.0
    %4721 = vmatprep.subr.mxu0 0.0
    %4722 = vmatpush1.msra.mxu0 0.0
    %4723 = vmatprep.mubr.f32.mxu0 0.0
    %4724 = vmatmul.mubr.f32.gmra.mrb[0].mxu0 %v4538
    %v4725 = vpop.f32.mrb[0].mxu0
    %v4726 = vadd.f32 0.0, %v4725
    %v4727 = vpop.f32.mrb[0].mxu0
    %v4728 = vadd.f32 0.0, %v4727
    %4729 = vdwg.mxu0
    %v4730 = vld [vmem:[%s2746] sm:$0xff]
    %v4731 = vld [vmem:[%s2746 + $0x8] sm:$0xff]
    %v4732 = vld [vmem:[%s2746 + $0x10] sm:$0xff]
    %v4733 = vld [vmem:[%s2746 + $0x18] sm:$0xff]
    %v4734 = vld [vmem:[%s2746 + $0x20] sm:$0xff]
    %v4735 = vld [vmem:[%s2746 + $0x28] sm:$0xff]
    %v4736 = vld [vmem:[%s2746 + $0x30] sm:$0xff]
    %v4737 = vld [vmem:[%s2746 + $0x38] sm:$0xff]
    %v4738 = vld [vmem:[%s2746 + $0x40] sm:$0xff]
    %v4739 = vld [vmem:[%s2746 + $0x48] sm:$0xff]
    %v4740 = vld [vmem:[%s2746 + $0x50] sm:$0xff]
    %v4741 = vld [vmem:[%s2746 + $0x58] sm:$0xff]
    %v4742 = vld [vmem:[%s2746 + $0x60] sm:$0xff]
    %v4743 = vld [vmem:[%s2746 + $0x68] sm:$0xff]
    %v4744 = vld [vmem:[%s2746 + $0x70] sm:$0xff]
    %v4745 = vld [vmem:[%s2746 + $0x78] sm:$0xff]
    %v4747 = vsel %vm249, %v4640, 0
    %4749 = vmatprep.subr.mxu0 %v4731
    %4750 = vmatpush1.msra.mxu0 %v4730
    %4751 = vmatprep.subr.mxu0 %v4733
    %4752 = vmatpush1.msra.mxu0 %v4732
    %4753 = vmatprep.subr.mxu0 %v4735
    %4754 = vmatpush1.msra.mxu0 %v4734
    %4755 = vmatprep.subr.mxu0 %v4737
    %4756 = vmatpush1.msra.mxu0 %v4736
    %4757 = vmatprep.subr.mxu0 %v4739
    %4758 = vmatpush1.msra.mxu0 %v4738
    %4759 = vmatprep.subr.mxu0 %v4741
    %4760 = vmatpush1.msra.mxu0 %v4740
    %4761 = vmatprep.subr.mxu0 %v4743
    %4762 = vmatpush1.msra.mxu0 %v4742
    %4763 = vmatprep.subr.mxu0 %v4745
    %4764 = vmatpush1.msra.mxu0 %v4744
    %4765 = vmatprep.subr.mxu0 0.0
    %4766 = vmatpush1.msra.mxu0 0.0
    %4767 = vmatprep.subr.mxu0 0.0
    %4768 = vmatpush1.msra.mxu0 0.0
    %4769 = vmatprep.subr.mxu0 0.0
    %4770 = vmatpush1.msra.mxu0 0.0
    %4771 = vmatprep.subr.mxu0 0.0
    %4772 = vmatpush1.msra.mxu0 0.0
    %4773 = vmatprep.subr.mxu0 0.0
    %4774 = vmatpush1.msra.mxu0 0.0
    %4775 = vmatprep.subr.mxu0 0.0
    %4776 = vmatpush1.msra.mxu0 0.0
    %4777 = vmatprep.subr.mxu0 0.0
    %4778 = vmatpush1.msra.mxu0 0.0
    %4779 = vmatprep.subr.mxu0 0.0
    %4780 = vmatpush1.msra.mxu0 0.0
    %4781 = vmatprep.subr.mxu0 0.0
    %4782 = vmatpush1.msra.mxu0 0.0
    %4783 = vmatprep.subr.mxu0 0.0
    %4784 = vmatpush1.msra.mxu0 0.0
    %4785 = vmatprep.subr.mxu0 0.0
    %4786 = vmatpush1.msra.mxu0 0.0
    %4787 = vmatprep.subr.mxu0 0.0
    %4788 = vmatpush1.msra.mxu0 0.0
    %4789 = vmatprep.subr.mxu0 0.0
    %4790 = vmatpush1.msra.mxu0 0.0
    %4791 = vmatprep.subr.mxu0 0.0
    %4792 = vmatpush1.msra.mxu0 0.0
    %4793 = vmatprep.subr.mxu0 0.0
    %4794 = vmatpush1.msra.mxu0 0.0
    %4795 = vmatprep.subr.mxu0 0.0
    %4796 = vmatpush1.msra.mxu0 0.0
    %4797 = vmatprep.subr.mxu0 0.0
    %4798 = vmatpush1.msra.mxu0 0.0
    %4799 = vmatprep.subr.mxu0 0.0
    %4800 = vmatpush1.msra.mxu0 0.0
    %4801 = vmatprep.subr.mxu0 0.0
    %4802 = vmatpush1.msra.mxu0 0.0
    %4803 = vmatprep.subr.mxu0 0.0
    %4804 = vmatpush1.msra.mxu0 0.0
    %4805 = vmatprep.subr.mxu0 0.0
    %4806 = vmatpush1.msra.mxu0 0.0
    %4807 = vmatprep.subr.mxu0 0.0
    %4808 = vmatpush1.msra.mxu0 0.0
    %4809 = vmatprep.subr.mxu0 0.0
    %4810 = vmatpush1.msra.mxu0 0.0
    %4811 = vmatprep.subr.mxu0 0.0
    %4812 = vmatpush1.msra.mxu0 0.0
    %4813 = vmatprep.mubr.f32.mxu0 0.0
    %4814 = vmatmul.mubr.f32.gmra.mrb[0].mxu0 %v4747
    %v4815 = vpop.f32.mrb[0].mxu0
    %v4816 = vadd.f32 %v224, %v4815
    %v4817 = vpop.f32.mrb[0].mxu0
    %v4818 = vadd.f32 %v228, %v4817
    %4819 = vdwg.mxu0
    %v4820 = vadd.f32 %v2654, %v4726
    %v4821 = vadd.f32 %v2656, %v4728
    %v4822 = vxor.u32 %v4820, 2147483648
    %v4823 = vxor.u32 %v4821, 2147483648
    %v4824 = vmul.f32 %v4822, 1.442695
    %v4825 = vpow.pop %v4824
    %v4826 = vmul.f32 %v4823, 1.442695
    %v4827 = vpow.pop %v4826
    %v4828 = vadd.f32 %v4825, 1.0
    %v4829 = vadd.f32 %v4827, 1.0
    %v4830 = vrcp.pop %v4828
    %v4831 = vmul.f32 1.0, %v4830
    %v4832 = vrcp.pop %v4829
    %v4833 = vmul.f32 1.0, %v4832
    %v4834 = vtanh.pop %v4821
    %v4835 = vmul.f32 %v4831, %v4514
    %4837 = vrot.lane.b32.xlu0 %v4834, 64
    %v4838 = vpop.permute.xlu0 %4837
    %v4840 = vmul.f32 %v4831, %v4838
    %4842 = vrot.lane.b32.xlu0 %v4840, 64
    %v4843 = vpop.permute.xlu0 %4842
    %v4845 = vadd.f32 %v4835, %v4843
    %v4846 = vtanh.pop %v4845
    %4848 = vrot.lane.b32.xlu0 %v4846, 64
    %v4849 = vpop.permute.xlu0 %4848
    %v4851 = vmul.f32 %v4833, %v4849
    %v4852 = vld [vmem:[%s2866] sm:$0xff]
    %v4853 = vld [vmem:[%s2866 + $0x8] sm:$0xff]
    %v4854 = vld [vmem:[%s2866 + $0x10] sm:$0xff]
    %v4855 = vld [vmem:[%s2866 + $0x18] sm:$0xff]
    %v4856 = vld [vmem:[%s2866 + $0x20] sm:$0xff]
    %v4857 = vld [vmem:[%s2866 + $0x28] sm:$0xff]
    %v4858 = vld [vmem:[%s2866 + $0x30] sm:$0xff]
    %v4859 = vld [vmem:[%s2866 + $0x38] sm:$0xff]
    %v4860 = vld [vmem:[%s2866 + $0x40] sm:$0xff]
    %v4861 = vld [vmem:[%s2866 + $0x48] sm:$0xff]
    %v4862 = vld [vmem:[%s2866 + $0x50] sm:$0xff]
    %v4863 = vld [vmem:[%s2866 + $0x58] sm:$0xff]
    %v4864 = vld [vmem:[%s2866 + $0x60] sm:$0xff]
    %v4865 = vld [vmem:[%s2866 + $0x68] sm:$0xff]
    %v4866 = vld [vmem:[%s2866 + $0x70] sm:$0xff]
    %v4867 = vld [vmem:[%s2866 + $0x78] sm:$0xff]
    %v4869 = vsel %vm249, %v4851, 0
    %4871 = vmatprep.subr.mxu0 %v4853
    %4872 = vmatpush1.msra.mxu0 %v4852
    %4873 = vmatprep.subr.mxu0 %v4855
    %4874 = vmatpush1.msra.mxu0 %v4854
    %4875 = vmatprep.subr.mxu0 %v4857
    %4876 = vmatpush1.msra.mxu0 %v4856
    %4877 = vmatprep.subr.mxu0 %v4859
    %4878 = vmatpush1.msra.mxu0 %v4858
    %4879 = vmatprep.subr.mxu0 %v4861
    %4880 = vmatpush1.msra.mxu0 %v4860
    %4881 = vmatprep.subr.mxu0 %v4863
    %4882 = vmatpush1.msra.mxu0 %v4862
    %4883 = vmatprep.subr.mxu0 %v4865
    %4884 = vmatpush1.msra.mxu0 %v4864
    %4885 = vmatprep.subr.mxu0 %v4867
    %4886 = vmatpush1.msra.mxu0 %v4866
    %4887 = vmatprep.subr.mxu0 0.0
    %4888 = vmatpush1.msra.mxu0 0.0
    %4889 = vmatprep.subr.mxu0 0.0
    %4890 = vmatpush1.msra.mxu0 0.0
    %4891 = vmatprep.subr.mxu0 0.0
    %4892 = vmatpush1.msra.mxu0 0.0
    %4893 = vmatprep.subr.mxu0 0.0
    %4894 = vmatpush1.msra.mxu0 0.0
    %4895 = vmatprep.subr.mxu0 0.0
    %4896 = vmatpush1.msra.mxu0 0.0
    %4897 = vmatprep.subr.mxu0 0.0
    %4898 = vmatpush1.msra.mxu0 0.0
    %4899 = vmatprep.subr.mxu0 0.0
    %4900 = vmatpush1.msra.mxu0 0.0
    %4901 = vmatprep.subr.mxu0 0.0
    %4902 = vmatpush1.msra.mxu0 0.0
    %4903 = vmatprep.subr.mxu0 0.0
    %4904 = vmatpush1.msra.mxu0 0.0
    %4905 = vmatprep.subr.mxu0 0.0
    %4906 = vmatpush1.msra.mxu0 0.0
    %4907 = vmatprep.subr.mxu0 0.0
    %4908 = vmatpush1.msra.mxu0 0.0
    %4909 = vmatprep.subr.mxu0 0.0
    %4910 = vmatpush1.msra.mxu0 0.0
    %4911 = vmatprep.subr.mxu0 0.0
    %4912 = vmatpush1.msra.mxu0 0.0
    %4913 = vmatprep.subr.mxu0 0.0
    %4914 = vmatpush1.msra.mxu0 0.0
    %4915 = vmatprep.subr.mxu0 0.0
    %4916 = vmatpush1.msra.mxu0 0.0
    %4917 = vmatprep.subr.mxu0 0.0
    %4918 = vmatpush1.msra.mxu0 0.0
    %4919 = vmatprep.subr.mxu0 0.0
    %4920 = vmatpush1.msra.mxu0 0.0
    %4921 = vmatprep.subr.mxu0 0.0
    %4922 = vmatpush1.msra.mxu0 0.0
    %4923 = vmatprep.subr.mxu0 0.0
    %4924 = vmatpush1.msra.mxu0 0.0
    %4925 = vmatprep.subr.mxu0 0.0
    %4926 = vmatpush1.msra.mxu0 0.0
    %4927 = vmatprep.subr.mxu0 0.0
    %4928 = vmatpush1.msra.mxu0 0.0
    %4929 = vmatprep.subr.mxu0 0.0
    %4930 = vmatpush1.msra.mxu0 0.0
    %4931 = vmatprep.subr.mxu0 0.0
    %4932 = vmatpush1.msra.mxu0 0.0
    %4933 = vmatprep.subr.mxu0 0.0
    %4934 = vmatpush1.msra.mxu0 0.0
    %4935 = vmatprep.mubr.f32.mxu0 0.0
    %4936 = vmatmul.mubr.f32.gmra.mrb[0].mxu0 %v4869
    %v4937 = vpop.f32.mrb[0].mxu0
    %v4938 = vadd.f32 %v4816, %v4937
    %v4939 = vpop.f32.mrb[0].mxu0
    %v4940 = vadd.f32 %v4818, %v4939
    %4941 = vdwg.mxu0
    %v4942 = vxor.u32 %v4938, 2147483648
    %v4943 = vxor.u32 %v4940, 2147483648
    %v4944 = vmul.f32 %v4942, 1.442695
    %v4945 = vpow.pop %v4944
    %v4946 = vmul.f32 %v4943, 1.442695
    %v4947 = vpow.pop %v4946
    %v4948 = vadd.f32 %v4945, 1.0
    %v4949 = vadd.f32 %v4947, 1.0
    %v4950 = vrcp.pop %v4948
    %v4951 = vmul.f32 1.0, %v4950
    %v4952 = vrcp.pop %v4949
    %v4953 = vmul.f32 1.0, %v4952
    %v4954 = vtanh.pop %v4940
    %v4955 = vmul.f32 %v4951, %v4634
    %4957 = vrot.lane.b32.xlu0 %v4954, 64
    %v4958 = vpop.permute.xlu0 %4957
    %v4960 = vmul.f32 %v4951, %v4958
    %4962 = vrot.lane.b32.xlu0 %v4960, 64
    %v4963 = vpop.permute.xlu0 %4962
    %v4965 = vadd.f32 %v4955, %v4963
    %v4966 = vtanh.pop %v4965
    %4968 = vrot.lane.b32.xlu0 %v4966, 64
    %v4969 = vpop.permute.xlu0 %4968
    %v4971 = vmul.f32 %v4953, %v4969
    %s4972 = scalar_lea.vmem [#allocation3], 48
    %4973 = vst.msk [vmem:[%s4972] sm:$0xff] %vm249, %v4971
    %v4974 = vld [vmem:[%s2658] sm:$0xff]
    %v4975 = vld [vmem:[%s2658 + $0x8] sm:$0xff]
    %v4976 = vld [vmem:[%s2658 + $0x10] sm:$0xff]
    %v4977 = vld [vmem:[%s2658 + $0x18] sm:$0xff]
    %v4978 = vld [vmem:[%s2658 + $0x20] sm:$0xff]
    %v4979 = vld [vmem:[%s2658 + $0x28] sm:$0xff]
    %v4980 = vld [vmem:[%s2658 + $0x30] sm:$0xff]
    %v4981 = vld [vmem:[%s2658 + $0x38] sm:$0xff]
    %v4982 = vld [vmem:[%s2658 + $0x40] sm:$0xff]
    %v4983 = vld [vmem:[%s2658 + $0x48] sm:$0xff]
    %v4984 = vld [vmem:[%s2658 + $0x50] sm:$0xff]
    %v4985 = vld [vmem:[%s2658 + $0x58] sm:$0xff]
    %v4986 = vld [vmem:[%s2658 + $0x60] sm:$0xff]
    %v4987 = vld [vmem:[%s2658 + $0x68] sm:$0xff]
    %v4988 = vld [vmem:[%s2658 + $0x70] sm:$0xff]
    %v4989 = vld [vmem:[%s2658 + $0x78] sm:$0xff]
    %4990 = vmatprep.subr.mxu0 %v4975
    %4991 = vmatpush1.msra.mxu0 %v4974
    %4992 = vmatprep.subr.mxu0 %v4977
    %4993 = vmatpush1.msra.mxu0 %v4976
    %4994 = vmatprep.subr.mxu0 %v4979
    %4995 = vmatpush1.msra.mxu0 %v4978
    %4996 = vmatprep.subr.mxu0 %v4981
    %4997 = vmatpush1.msra.mxu0 %v4980
    %4998 = vmatprep.subr.mxu0 %v4983
    %4999 = vmatpush1.msra.mxu0 %v4982
    %5000 = vmatprep.subr.mxu0 %v4985
    %5001 = vmatpush1.msra.mxu0 %v4984
    %5002 = vmatprep.subr.mxu0 %v4987
    %5003 = vmatpush1.msra.mxu0 %v4986
    %5004 = vmatprep.subr.mxu0 %v4989
    %5005 = vmatpush1.msra.mxu0 %v4988
    %5006 = vmatprep.subr.mxu0 0.0
    %5007 = vmatpush1.msra.mxu0 0.0
    %5008 = vmatprep.subr.mxu0 0.0
    %5009 = vmatpush1.msra.mxu0 0.0
    %5010 = vmatprep.subr.mxu0 0.0
    %5011 = vmatpush1.msra.mxu0 0.0
    %5012 = vmatprep.subr.mxu0 0.0
    %5013 = vmatpush1.msra.mxu0 0.0
    %5014 = vmatprep.subr.mxu0 0.0
    %5015 = vmatpush1.msra.mxu0 0.0
    %5016 = vmatprep.subr.mxu0 0.0
    %5017 = vmatpush1.msra.mxu0 0.0
    %5018 = vmatprep.subr.mxu0 0.0
    %5019 = vmatpush1.msra.mxu0 0.0
    %5020 = vmatprep.subr.mxu0 0.0
    %5021 = vmatpush1.msra.mxu0 0.0
    %5022 = vmatprep.subr.mxu0 0.0
    %5023 = vmatpush1.msra.mxu0 0.0
    %5024 = vmatprep.subr.mxu0 0.0
    %5025 = vmatpush1.msra.mxu0 0.0
    %5026 = vmatprep.subr.mxu0 0.0
    %5027 = vmatpush1.msra.mxu0 0.0
    %5028 = vmatprep.subr.mxu0 0.0
    %5029 = vmatpush1.msra.mxu0 0.0
    %5030 = vmatprep.subr.mxu0 0.0
    %5031 = vmatpush1.msra.mxu0 0.0
    %5032 = vmatprep.subr.mxu0 0.0
    %5033 = vmatpush1.msra.mxu0 0.0
    %5034 = vmatprep.subr.mxu0 0.0
    %5035 = vmatpush1.msra.mxu0 0.0
    %5036 = vmatprep.subr.mxu0 0.0
    %5037 = vmatpush1.msra.mxu0 0.0
    %5038 = vmatprep.subr.mxu0 0.0
    %5039 = vmatpush1.msra.mxu0 0.0
    %5040 = vmatprep.subr.mxu0 0.0
    %5041 = vmatpush1.msra.mxu0 0.0
    %5042 = vmatprep.subr.mxu0 0.0
    %5043 = vmatpush1.msra.mxu0 0.0
    %5044 = vmatprep.subr.mxu0 0.0
    %5045 = vmatpush1.msra.mxu0 0.0
    %5046 = vmatprep.subr.mxu0 0.0
    %5047 = vmatpush1.msra.mxu0 0.0
    %5048 = vmatprep.subr.mxu0 0.0
    %5049 = vmatpush1.msra.mxu0 0.0
    %5050 = vmatprep.subr.mxu0 0.0
    %5051 = vmatpush1.msra.mxu0 0.0
    %5052 = vmatprep.subr.mxu0 0.0
    %5053 = vmatpush1.msra.mxu0 0.0
    %5054 = vmatprep.mubr.f32.mxu0 0.0
    %5055 = vmatmul.mubr.f32.gmra.mrb[0].mxu0 %v4869
    %v5056 = vpop.f32.mrb[0].mxu0
    %v5057 = vadd.f32 0.0, %v5056
    %v5058 = vpop.f32.mrb[0].mxu0
    %v5059 = vadd.f32 0.0, %v5058
    %5060 = vdwg.mxu0
    %v5061 = vld [vmem:[%s2746] sm:$0xff]
    %v5062 = vld [vmem:[%s2746 + $0x8] sm:$0xff]
    %v5063 = vld [vmem:[%s2746 + $0x10] sm:$0xff]
    %v5064 = vld [vmem:[%s2746 + $0x18] sm:$0xff]
    %v5065 = vld [vmem:[%s2746 + $0x20] sm:$0xff]
    %v5066 = vld [vmem:[%s2746 + $0x28] sm:$0xff]
    %v5067 = vld [vmem:[%s2746 + $0x30] sm:$0xff]
    %v5068 = vld [vmem:[%s2746 + $0x38] sm:$0xff]
    %v5069 = vld [vmem:[%s2746 + $0x40] sm:$0xff]
    %v5070 = vld [vmem:[%s2746 + $0x48] sm:$0xff]
    %v5071 = vld [vmem:[%s2746 + $0x50] sm:$0xff]
    %v5072 = vld [vmem:[%s2746 + $0x58] sm:$0xff]
    %v5073 = vld [vmem:[%s2746 + $0x60] sm:$0xff]
    %v5074 = vld [vmem:[%s2746 + $0x68] sm:$0xff]
    %v5075 = vld [vmem:[%s2746 + $0x70] sm:$0xff]
    %v5076 = vld [vmem:[%s2746 + $0x78] sm:$0xff]
    %v5078 = vsel %vm249, %v4971, 0
    %5080 = vmatprep.subr.mxu0 %v5062
    %5081 = vmatpush1.msra.mxu0 %v5061
    %5082 = vmatprep.subr.mxu0 %v5064
    %5083 = vmatpush1.msra.mxu0 %v5063
    %5084 = vmatprep.subr.mxu0 %v5066
    %5085 = vmatpush1.msra.mxu0 %v5065
    %5086 = vmatprep.subr.mxu0 %v5068
    %5087 = vmatpush1.msra.mxu0 %v5067
    %5088 = vmatprep.subr.mxu0 %v5070
    %5089 = vmatpush1.msra.mxu0 %v5069
    %5090 = vmatprep.subr.mxu0 %v5072
    %5091 = vmatpush1.msra.mxu0 %v5071
    %5092 = vmatprep.subr.mxu0 %v5074
    %5093 = vmatpush1.msra.mxu0 %v5073
    %5094 = vmatprep.subr.mxu0 %v5076
    %5095 = vmatpush1.msra.mxu0 %v5075
    %5096 = vmatprep.subr.mxu0 0.0
    %5097 = vmatpush1.msra.mxu0 0.0
    %5098 = vmatprep.subr.mxu0 0.0
    %5099 = vmatpush1.msra.mxu0 0.0
    %5100 = vmatprep.subr.mxu0 0.0
    %5101 = vmatpush1.msra.mxu0 0.0
    %5102 = vmatprep.subr.mxu0 0.0
    %5103 = vmatpush1.msra.mxu0 0.0
    %5104 = vmatprep.subr.mxu0 0.0
    %5105 = vmatpush1.msra.mxu0 0.0
    %5106 = vmatprep.subr.mxu0 0.0
    %5107 = vmatpush1.msra.mxu0 0.0
    %5108 = vmatprep.subr.mxu0 0.0
    %5109 = vmatpush1.msra.mxu0 0.0
    %5110 = vmatprep.subr.mxu0 0.0
    %5111 = vmatpush1.msra.mxu0 0.0
    %5112 = vmatprep.subr.mxu0 0.0
    %5113 = vmatpush1.msra.mxu0 0.0
    %5114 = vmatprep.subr.mxu0 0.0
    %5115 = vmatpush1.msra.mxu0 0.0
    %5116 = vmatprep.subr.mxu0 0.0
    %5117 = vmatpush1.msra.mxu0 0.0
    %5118 = vmatprep.subr.mxu0 0.0
    %5119 = vmatpush1.msra.mxu0 0.0
    %5120 = vmatprep.subr.mxu0 0.0
    %5121 = vmatpush1.msra.mxu0 0.0
    %5122 = vmatprep.subr.mxu0 0.0
    %5123 = vmatpush1.msra.mxu0 0.0
    %5124 = vmatprep.subr.mxu0 0.0
    %5125 = vmatpush1.msra.mxu0 0.0
    %5126 = vmatprep.subr.mxu0 0.0
    %5127 = vmatpush1.msra.mxu0 0.0
    %5128 = vmatprep.subr.mxu0 0.0
    %5129 = vmatpush1.msra.mxu0 0.0
    %5130 = vmatprep.subr.mxu0 0.0
    %5131 = vmatpush1.msra.mxu0 0.0
    %5132 = vmatprep.subr.mxu0 0.0
    %5133 = vmatpush1.msra.mxu0 0.0
    %5134 = vmatprep.subr.mxu0 0.0
    %5135 = vmatpush1.msra.mxu0 0.0
    %5136 = vmatprep.subr.mxu0 0.0
    %5137 = vmatpush1.msra.mxu0 0.0
    %5138 = vmatprep.subr.mxu0 0.0
    %5139 = vmatpush1.msra.mxu0 0.0
    %5140 = vmatprep.subr.mxu0 0.0
    %5141 = vmatpush1.msra.mxu0 0.0
    %5142 = vmatprep.subr.mxu0 0.0
    %5143 = vmatpush1.msra.mxu0 0.0
    %5144 = vmatprep.mubr.f32.mxu0 0.0
    %5145 = vmatmul.mubr.f32.gmra.mrb[0].mxu0 %v5078
    %v5146 = vpop.f32.mrb[0].mxu0
    %v5147 = vadd.f32 %v224, %v5146
    %v5148 = vpop.f32.mrb[0].mxu0
    %v5149 = vadd.f32 %v228, %v5148
    %5150 = vdwg.mxu0
    %v5151 = vadd.f32 %v2654, %v5057
    %v5152 = vadd.f32 %v2656, %v5059
    %v5153 = vxor.u32 %v5151, 2147483648
    %v5154 = vxor.u32 %v5152, 2147483648
    %v5155 = vmul.f32 %v5153, 1.442695
    %v5156 = vpow.pop %v5155
    %v5157 = vmul.f32 %v5154, 1.442695
    %v5158 = vpow.pop %v5157
    %v5159 = vadd.f32 %v5156, 1.0
    %v5160 = vadd.f32 %v5158, 1.0
    %v5161 = vrcp.pop %v5159
    %v5162 = vmul.f32 1.0, %v5161
    %v5163 = vrcp.pop %v5160
    %v5164 = vmul.f32 1.0, %v5163
    %v5165 = vtanh.pop %v5152
    %v5166 = vmul.f32 %v5162, %v4845
    %5168 = vrot.lane.b32.xlu0 %v5165, 64
    %v5169 = vpop.permute.xlu0 %5168
    %v5171 = vmul.f32 %v5162, %v5169
    %5173 = vrot.lane.b32.xlu0 %v5171, 64
    %v5174 = vpop.permute.xlu0 %5173
    %v5176 = vadd.f32 %v5166, %v5174
    %v5177 = vtanh.pop %v5176
    %5179 = vrot.lane.b32.xlu0 %v5177, 64
    %v5180 = vpop.permute.xlu0 %5179
    %v5182 = vmul.f32 %v5164, %v5180
    %v5183 = vld [vmem:[%s2866] sm:$0xff]
    %v5184 = vld [vmem:[%s2866 + $0x8] sm:$0xff]
    %v5185 = vld [vmem:[%s2866 + $0x10] sm:$0xff]
    %v5186 = vld [vmem:[%s2866 + $0x18] sm:$0xff]
    %v5187 = vld [vmem:[%s2866 + $0x20] sm:$0xff]
    %v5188 = vld [vmem:[%s2866 + $0x28] sm:$0xff]
    %v5189 = vld [vmem:[%s2866 + $0x30] sm:$0xff]
    %v5190 = vld [vmem:[%s2866 + $0x38] sm:$0xff]
    %v5191 = vld [vmem:[%s2866 + $0x40] sm:$0xff]
    %v5192 = vld [vmem:[%s2866 + $0x48] sm:$0xff]
    %v5193 = vld [vmem:[%s2866 + $0x50] sm:$0xff]
    %v5194 = vld [vmem:[%s2866 + $0x58] sm:$0xff]
    %v5195 = vld [vmem:[%s2866 + $0x60] sm:$0xff]
    %v5196 = vld [vmem:[%s2866 + $0x68] sm:$0xff]
    %v5197 = vld [vmem:[%s2866 + $0x70] sm:$0xff]
    %v5198 = vld [vmem:[%s2866 + $0x78] sm:$0xff]
    %v5200 = vsel %vm249, %v5182, 0
    %5202 = vmatprep.subr.mxu0 %v5184
    %5203 = vmatpush1.msra.mxu0 %v5183
    %5204 = vmatprep.subr.mxu0 %v5186
    %5205 = vmatpush1.msra.mxu0 %v5185
    %5206 = vmatprep.subr.mxu0 %v5188
    %5207 = vmatpush1.msra.mxu0 %v5187
    %5208 = vmatprep.subr.mxu0 %v5190
    %5209 = vmatpush1.msra.mxu0 %v5189
    %5210 = vmatprep.subr.mxu0 %v5192
    %5211 = vmatpush1.msra.mxu0 %v5191
    %5212 = vmatprep.subr.mxu0 %v5194
    %5213 = vmatpush1.msra.mxu0 %v5193
    %5214 = vmatprep.subr.mxu0 %v5196
    %5215 = vmatpush1.msra.mxu0 %v5195
    %5216 = vmatprep.subr.mxu0 %v5198
    %5217 = vmatpush1.msra.mxu0 %v5197
    %5218 = vmatprep.subr.mxu0 0.0
    %5219 = vmatpush1.msra.mxu0 0.0
    %5220 = vmatprep.subr.mxu0 0.0
    %5221 = vmatpush1.msra.mxu0 0.0
    %5222 = vmatprep.subr.mxu0 0.0
    %5223 = vmatpush1.msra.mxu0 0.0
    %5224 = vmatprep.subr.mxu0 0.0
    %5225 = vmatpush1.msra.mxu0 0.0
    %5226 = vmatprep.subr.mxu0 0.0
    %5227 = vmatpush1.msra.mxu0 0.0
    %5228 = vmatprep.subr.mxu0 0.0
    %5229 = vmatpush1.msra.mxu0 0.0
    %5230 = vmatprep.subr.mxu0 0.0
    %5231 = vmatpush1.msra.mxu0 0.0
    %5232 = vmatprep.subr.mxu0 0.0
    %5233 = vmatpush1.msra.mxu0 0.0
    %5234 = vmatprep.subr.mxu0 0.0
    %5235 = vmatpush1.msra.mxu0 0.0
    %5236 = vmatprep.subr.mxu0 0.0
    %5237 = vmatpush1.msra.mxu0 0.0
    %5238 = vmatprep.subr.mxu0 0.0
    %5239 = vmatpush1.msra.mxu0 0.0
    %5240 = vmatprep.subr.mxu0 0.0
    %5241 = vmatpush1.msra.mxu0 0.0
    %5242 = vmatprep.subr.mxu0 0.0
    %5243 = vmatpush1.msra.mxu0 0.0
    %5244 = vmatprep.subr.mxu0 0.0
    %5245 = vmatpush1.msra.mxu0 0.0
    %5246 = vmatprep.subr.mxu0 0.0
    %5247 = vmatpush1.msra.mxu0 0.0
    %5248 = vmatprep.subr.mxu0 0.0
    %5249 = vmatpush1.msra.mxu0 0.0
    %5250 = vmatprep.subr.mxu0 0.0
    %5251 = vmatpush1.msra.mxu0 0.0
    %5252 = vmatprep.subr.mxu0 0.0
    %5253 = vmatpush1.msra.mxu0 0.0
    %5254 = vmatprep.subr.mxu0 0.0
    %5255 = vmatpush1.msra.mxu0 0.0
    %5256 = vmatprep.subr.mxu0 0.0
    %5257 = vmatpush1.msra.mxu0 0.0
    %5258 = vmatprep.subr.mxu0 0.0
    %5259 = vmatpush1.msra.mxu0 0.0
    %5260 = vmatprep.subr.mxu0 0.0
    %5261 = vmatpush1.msra.mxu0 0.0
    %5262 = vmatprep.subr.mxu0 0.0
    %5263 = vmatpush1.msra.mxu0 0.0
    %5264 = vmatprep.subr.mxu0 0.0
    %5265 = vmatpush1.msra.mxu0 0.0
    %5266 = vmatprep.mubr.f32.mxu0 0.0
    %5267 = vmatmul.mubr.f32.gmra.mrb[0].mxu0 %v5200
    %v5268 = vpop.f32.mrb[0].mxu0
    %v5269 = vadd.f32 %v5147, %v5268
    %v5270 = vpop.f32.mrb[0].mxu0
    %v5271 = vadd.f32 %v5149, %v5270
    %5272 = vdwg.mxu0
    %v5273 = vxor.u32 %v5269, 2147483648
    %v5274 = vxor.u32 %v5271, 2147483648
    %v5275 = vmul.f32 %v5273, 1.442695
    %v5276 = vpow.pop %v5275
    %v5277 = vmul.f32 %v5274, 1.442695
    %v5278 = vpow.pop %v5277
    %v5279 = vadd.f32 %v5276, 1.0
    %v5280 = vadd.f32 %v5278, 1.0
    %v5281 = vrcp.pop %v5279
    %v5282 = vmul.f32 1.0, %v5281
    %v5283 = vrcp.pop %v5280
    %v5284 = vmul.f32 1.0, %v5283
    %v5285 = vtanh.pop %v5271
    %v5286 = vmul.f32 %v5282, %v4965
    %5288 = vrot.lane.b32.xlu0 %v5285, 64
    %v5289 = vpop.permute.xlu0 %5288
    %v5291 = vmul.f32 %v5282, %v5289
    %5293 = vrot.lane.b32.xlu0 %v5291, 64
    %v5294 = vpop.permute.xlu0 %5293
    %v5296 = vadd.f32 %v5286, %v5294
    %v5297 = vtanh.pop %v5296
    %5299 = vrot.lane.b32.xlu0 %v5297, 64
    %v5300 = vpop.permute.xlu0 %5299
    %v5302 = vmul.f32 %v5284, %v5300
    %s5303 = scalar_lea.vmem [#allocation3], 56
    %5304 = vst.msk [vmem:[%s5303] sm:$0xff] %vm249, %v5302
    %v5305 = vld [vmem:[#allocation3] sm:$0xff]
    %v5306 = vld [vmem:[#allocation3 + $0x8] sm:$0xff]
    %v5307 = vld [vmem:[#allocation3 + $0x10] sm:$0xff]
    %v5308 = vld [vmem:[#allocation3 + $0x18] sm:$0xff]
    %v5309 = vld [vmem:[#allocation3 + $0x20] sm:$0xff]
    %v5310 = vld [vmem:[#allocation3 + $0x28] sm:$0xff]
    %v5311 = vld [vmem:[#allocation3 + $0x30] sm:$0xff]
    %v5312 = vld [vmem:[#allocation3 + $0x38] sm:$0xff]
    %s5313 = scalar_lea.vmem [#allocation4], 896
    %v5314 = vld [vmem:[%s5313] sm:$0xff]
    %v5315 = vld [vmem:[%s5313 + $0x8] sm:$0xff]
    %v5316 = vld [vmem:[%s5313 + $0x10] sm:$0xff]
    %v5317 = vld [vmem:[%s5313 + $0x18] sm:$0xff]
    %v5318 = vld [vmem:[%s5313 + $0x20] sm:$0xff]
    %v5319 = vld [vmem:[%s5313 + $0x28] sm:$0xff]
    %v5320 = vld [vmem:[%s5313 + $0x30] sm:$0xff]
    %v5321 = vld [vmem:[%s5313 + $0x38] sm:$0xff]
    %v5322 = vld [vmem:[%s5313 + $0x40] sm:$0xff]
    %v5323 = vld [vmem:[%s5313 + $0x48] sm:$0xff]
    %v5324 = vld [vmem:[%s5313 + $0x50] sm:$0xff]
    %v5325 = vld [vmem:[%s5313 + $0x58] sm:$0xff]
    %v5326 = vld [vmem:[%s5313 + $0x60] sm:$0xff]
    %v5327 = vld [vmem:[%s5313 + $0x68] sm:$0xff]
    %v5328 = vld [vmem:[%s5313 + $0x70] sm:$0xff]
    %v5329 = vld [vmem:[%s5313 + $0x78] sm:$0xff]
    %v5331 = vlaneseq
    %v5332 = vshrl.u32 %v5331, 7
    %v5333 = vsub.s32 0, %v5332
    %v5334 = vrot.slane %v232, %v5333
    %v5335 = vlaneseq
    %v5336 = vshrl.u32 %v5335, 7
    %v5337 = vsub.s32 1, %v5336
    %v5338 = vrot.slane %v232, %v5337
    %v5342 = vsel %vm249, %v5305, 0
    %v5345 = vsel %vm249, %v5306, 0
    %v5348 = vsel %vm249, %v5307, 0
    %v5351 = vsel %vm249, %v5308, 0
    %v5354 = vsel %vm249, %v5309, 0
    %v5357 = vsel %vm249, %v5310, 0
    %v5360 = vsel %vm249, %v5311, 0
    %v5363 = vsel %vm249, %v5312, 0
    %5365 = vmatprep.subr.mxu0 %v5315
    %5366 = vmatpush1.msra.mxu0 %v5314
    %5367 = vmatprep.subr.mxu0 %v5317
    %5368 = vmatpush1.msra.mxu0 %v5316
    %5369 = vmatprep.subr.mxu0 %v5319
    %5370 = vmatpush1.msra.mxu0 %v5318
    %5371 = vmatprep.subr.mxu0 %v5321
    %5372 = vmatpush1.msra.mxu0 %v5320
    %5373 = vmatprep.subr.mxu0 %v5323
    %5374 = vmatpush1.msra.mxu0 %v5322
    %5375 = vmatprep.subr.mxu0 %v5325
    %5376 = vmatpush1.msra.mxu0 %v5324
    %5377 = vmatprep.subr.mxu0 %v5327
    %5378 = vmatpush1.msra.mxu0 %v5326
    %5379 = vmatprep.subr.mxu0 %v5329
    %5380 = vmatpush1.msra.mxu0 %v5328
    %5381 = vmatprep.subr.mxu0 0.0
    %5382 = vmatpush1.msra.mxu0 0.0
    %5383 = vmatprep.subr.mxu0 0.0
    %5384 = vmatpush1.msra.mxu0 0.0
    %5385 = vmatprep.subr.mxu0 0.0
    %5386 = vmatpush1.msra.mxu0 0.0
    %5387 = vmatprep.subr.mxu0 0.0
    %5388 = vmatpush1.msra.mxu0 0.0
    %5389 = vmatprep.subr.mxu0 0.0
    %5390 = vmatpush1.msra.mxu0 0.0
    %5391 = vmatprep.subr.mxu0 0.0
    %5392 = vmatpush1.msra.mxu0 0.0
    %5393 = vmatprep.subr.mxu0 0.0
    %5394 = vmatpush1.msra.mxu0 0.0
    %5395 = vmatprep.subr.mxu0 0.0
    %5396 = vmatpush1.msra.mxu0 0.0
    %5397 = vmatprep.subr.mxu0 0.0
    %5398 = vmatpush1.msra.mxu0 0.0
    %5399 = vmatprep.subr.mxu0 0.0
    %5400 = vmatpush1.msra.mxu0 0.0
    %5401 = vmatprep.subr.mxu0 0.0
    %5402 = vmatpush1.msra.mxu0 0.0
    %5403 = vmatprep.subr.mxu0 0.0
    %5404 = vmatpush1.msra.mxu0 0.0
    %5405 = vmatprep.subr.mxu0 0.0
    %5406 = vmatpush1.msra.mxu0 0.0
    %5407 = vmatprep.subr.mxu0 0.0
    %5408 = vmatpush1.msra.mxu0 0.0
    %5409 = vmatprep.subr.mxu0 0.0
    %5410 = vmatpush1.msra.mxu0 0.0
    %5411 = vmatprep.subr.mxu0 0.0
    %5412 = vmatpush1.msra.mxu0 0.0
    %5413 = vmatprep.subr.mxu0 0.0
    %5414 = vmatpush1.msra.mxu0 0.0
    %5415 = vmatprep.subr.mxu0 0.0
    %5416 = vmatpush1.msra.mxu0 0.0
    %5417 = vmatprep.subr.mxu0 0.0
    %5418 = vmatpush1.msra.mxu0 0.0
    %5419 = vmatprep.subr.mxu0 0.0
    %5420 = vmatpush1.msra.mxu0 0.0
    %5421 = vmatprep.subr.mxu0 0.0
    %5422 = vmatpush1.msra.mxu0 0.0
    %5423 = vmatprep.subr.mxu0 0.0
    %5424 = vmatpush1.msra.mxu0 0.0
    %5425 = vmatprep.subr.mxu0 0.0
    %5426 = vmatpush1.msra.mxu0 0.0
    %5427 = vmatprep.subr.mxu0 0.0
    %5428 = vmatpush1.msra.mxu0 0.0
    %5429 = vmatprep.mubr.f32.mxu0 0.0
    %5430 = vmatmul.mubr.f32.gmra.mrb[0].mxu0 %v5342
    %v5431 = vpop.f32.mrb[0].mxu0
    %v5432 = vadd.f32 %v5334, %v5431
    %v5433 = vpop.f32.mrb[0].mxu0
    %v5434 = vadd.f32 %v5338, %v5433
    %5435 = vmatprep.mubr.f32.mxu0 0.0
    %5436 = vmatmul.mubr.f32.gmra.mrb[0].mxu0 %v5345
    %v5437 = vpop.f32.mrb[0].mxu0
    %v5438 = vadd.f32 %v5334, %v5437
    %v5439 = vpop.f32.mrb[0].mxu0
    %v5440 = vadd.f32 %v5338, %v5439
    %5441 = vmatprep.mubr.f32.mxu0 0.0
    %5442 = vmatmul.mubr.f32.gmra.mrb[0].mxu0 %v5348
    %v5443 = vpop.f32.mrb[0].mxu0
    %v5444 = vadd.f32 %v5334, %v5443
    %v5445 = vpop.f32.mrb[0].mxu0
    %v5446 = vadd.f32 %v5338, %v5445
    %5447 = vmatprep.mubr.f32.mxu0 0.0
    %5448 = vmatmul.mubr.f32.gmra.mrb[0].mxu0 %v5351
    %v5449 = vpop.f32.mrb[0].mxu0
    %v5450 = vadd.f32 %v5334, %v5449
    %v5451 = vpop.f32.mrb[0].mxu0
    %v5452 = vadd.f32 %v5338, %v5451
    %5453 = vmatprep.mubr.f32.mxu0 0.0
    %5454 = vmatmul.mubr.f32.gmra.mrb[0].mxu0 %v5354
    %v5455 = vpop.f32.mrb[0].mxu0
    %v5456 = vadd.f32 %v5334, %v5455
    %v5457 = vpop.f32.mrb[0].mxu0
    %v5458 = vadd.f32 %v5338, %v5457
    %5459 = vmatprep.mubr.f32.mxu0 0.0
    %5460 = vmatmul.mubr.f32.gmra.mrb[0].mxu0 %v5357
    %v5461 = vpop.f32.mrb[0].mxu0
    %v5462 = vadd.f32 %v5334, %v5461
    %v5463 = vpop.f32.mrb[0].mxu0
    %v5464 = vadd.f32 %v5338, %v5463
    %5465 = vmatprep.mubr.f32.mxu0 0.0
    %5466 = vmatmul.mubr.f32.gmra.mrb[0].mxu0 %v5360
    %v5467 = vpop.f32.mrb[0].mxu0
    %v5468 = vadd.f32 %v5334, %v5467
    %v5469 = vpop.f32.mrb[0].mxu0
    %v5470 = vadd.f32 %v5338, %v5469
    %5471 = vmatprep.mubr.f32.mxu0 0.0
    %5472 = vmatmul.mubr.f32.gmra.mrb[0].mxu0 %v5363
    %v5473 = vpop.f32.mrb[0].mxu0
    %v5474 = vadd.f32 %v5334, %v5473
    %v5475 = vpop.f32.mrb[0].mxu0
    %v5476 = vadd.f32 %v5338, %v5475
    %5477 = vdwg.mxu0
    %5478 = vst [vmem:[#allocation7] sm:$0xff] %v5432
    %5479 = vst [vmem:[#allocation7 + $0x8] sm:$0xff] %v5434
    %5480 = vst [vmem:[#allocation7 + $0x10] sm:$0xff] %v5438
    %5481 = vst [vmem:[#allocation7 + $0x18] sm:$0xff] %v5440
    %5482 = vst [vmem:[#allocation7 + $0x20] sm:$0xff] %v5444
    %5483 = vst [vmem:[#allocation7 + $0x28] sm:$0xff] %v5446
    %5484 = vst [vmem:[#allocation7 + $0x30] sm:$0xff] %v5450
    %5485 = vst [vmem:[#allocation7 + $0x38] sm:$0xff] %v5452
    %5486 = vst [vmem:[#allocation7 + $0x40] sm:$0xff] %v5456
    %5487 = vst [vmem:[#allocation7 + $0x48] sm:$0xff] %v5458
    %5488 = vst [vmem:[#allocation7 + $0x50] sm:$0xff] %v5462
    %5489 = vst [vmem:[#allocation7 + $0x58] sm:$0xff] %v5464
    %5490 = vst [vmem:[#allocation7 + $0x60] sm:$0xff] %v5468
    %5491 = vst [vmem:[#allocation7 + $0x68] sm:$0xff] %v5470
    %5492 = vst [vmem:[#allocation7 + $0x70] sm:$0xff] %v5474
    %5493 = vst [vmem:[#allocation7 + $0x78] sm:$0xff] %v5476
    // Predicated region
    $region18: #{tpu_custom_call.1} parent=1 // pred_check
      _
    $region19: #{tpu_custom_call.1} parent=1 // pred_check_branch
      %5495 = sbr.rel (0) target = $region21
    $region20: #{tpu_custom_call.1} parent=1 // pred_region
      %s5497 = ssub.s32 2048, 2048
      %5498 = vsyncadd [#allocation6], %s5497
      %s5499 = sshll.u32 [#allocation7], 4
      %s5500 = int_to_ptr.vmem [resolvable:$true] %s5499
      %5505 = dma.vmem_to_hbm [thread:$0]  %s5500, 2048, %s3, [#allocation6], 256, 256, 16
    $region21: #{tpu_custom_call.1} parent=1 // pred_fallthru
      _
    // Predicated region
    $region22: #{tpu_custom_call.1} parent=1 // pred_check
      _
    $region23: #{tpu_custom_call.1} parent=1 // pred_check_branch
      %5507 = sbr.rel (0) target = $region25
    $region24: #{tpu_custom_call.1} parent=1 // pred_region
      %s5509 = ssub.s32 128, 128
      %5510 = vsyncadd [#allocation9], %s5509
      %s5512 = sshll.u32 [#allocation8], 4
      %s5513 = int_to_ptr.vmem [resolvable:$true] %s5512
      %5515 = dma.vmem_to_hbm [thread:$0]  %s5513, 128, %s4, [#allocation9]
    $region25: #{tpu_custom_call.1} parent=1 // pred_fallthru
      _
    // Predicated region
    $region26: #{tpu_custom_call.1} parent=1 // pred_check
      _
    $region27: #{tpu_custom_call.1} parent=1 // pred_check_branch
      %5517 = sbr.rel (0) target = $region29
    $region28: #{tpu_custom_call.1} parent=1 // pred_region
      %5518 = dma.done [#allocation6], 2048
    $region29: #{tpu_custom_call.1} parent=1 // pred_fallthru
      _
    // Predicated region
    $region30: #{tpu_custom_call.1} parent=1 // pred_check
      _
    $region31: #{tpu_custom_call.1} parent=1 // pred_check_branch
      %5520 = sbr.rel (0) target = $region33
    $region32: #{tpu_custom_call.1} parent=1 // pred_region
      %5521 = dma.done [#allocation9], 128
    $region33: #{tpu_custom_call.1} parent=1 // pred_fallthru
      _
    %5522 = vsyncpa [#allocation5], 1
    %5523 = vsyncpa [#allocation6], 1
    %5524 = vsyncpa [#allocation9], 1

</llo_original>
